<compile_context>
chip_gen: v7x
topology: tpu7x:2x2x1
jax: 0.10.0
libtpu: 0.0.40
codegen_flags: <defaults>
</compile_context>

<pallas_src>
import functools
import math

import jax
import jax.numpy as jnp
from jax import lax
from jax.experimental import pallas as pl
from jax.experimental.pallas import tpu as pltpu


def _fused_block_kernel(x_ref, w1_ref, b1_ref, w2_ref, b2_ref, o_ref,
                        xpad_ref, ypad_ref, *, H, W, use_pn):
    """Fused (WSConv2d -> LReLU -> PixelNorm) x 2 for one batch element.

    x_ref   : (H, W, Cin)        unpadded NHWC input tile
    w1_ref  : (9, Cin, Cout)     conv1 weights, tap-major (kh*3+kw), scale folded in
    b1_ref  : (1, Cout)
    w2_ref  : (9, Cout, Cout)    conv2 weights, scale folded in
    b2_ref  : (1, Cout)
    o_ref   : (H*W, Cout)        output tile (flattened spatial, channels-last)
    xpad_ref: (H+2, W+2, Cin)    VMEM scratch: zero-padded input
    ypad_ref: (H+2, W+2, Cout)   VMEM scratch: zero-padded intermediate activation
    """
    cout = o_ref.shape[-1]

    def conv3x3(src_ref, w_ref, b_ref):
        # 3x3 / stride-1 conv as 9 accumulated MXU matmuls over shifted windows.
        # Bias is folded into the accumulator init (added before the activation,
        # exactly as in the PyTorch module).
        acc = jnp.broadcast_to(b_ref[...].astype(jnp.float32),
                               (H * W, w_ref.shape[-1]))
        for kh in range(3):
            for kw in range(3):
                win = src_ref[pl.ds(kh, H), pl.ds(kw, W), :].astype(jnp.float32)
                acc = acc + jnp.dot(win.reshape(H * W, win.shape[-1]),
                                    w_ref[kh * 3 + kw],
                                    preferred_element_type=jnp.float32)
        return acc

    def act(y):
        y = jnp.where(y >= 0.0, y, 0.2 * y)               # LeakyReLU(0.2)
        if use_pn:                                        # PixelNorm over channels
            ms = jnp.mean(y * y, axis=-1, keepdims=True)
            y = y * lax.rsqrt(ms + 1e-8)
        return y

    # Stage the input into a zero-padded VMEM scratch (padding never touches HBM).
    xpad_ref[...] = jnp.zeros_like(xpad_ref)
    xpad_ref[pl.ds(1, H), pl.ds(1, W), :] = x_ref[...]

    # Layer 1.
    y1 = act(conv3x3(xpad_ref, w1_ref, b1_ref))            # (H*W, Cout)

    # Keep the zero-padded intermediate entirely in VMEM (no HBM round trip).
    ypad_ref[...] = jnp.zeros_like(ypad_ref)
    ypad_ref[pl.ds(1, H), pl.ds(1, W), :] = y1.reshape(H, W, cout)

    # Layer 2.
    y2 = act(conv3x3(ypad_ref, w2_ref, b2_ref))             # (H*W, Cout)
    o_ref[...] = y2.astype(o_ref.dtype)


def conv2d_block_forward(x_nchw, params, *, use_pn=True):
    N, Cin, H, W = x_nchw.shape
    Cout = params["w1"].shape[0]

    # --- glue (layout only): NCHW -> NHWC. Padding is done inside the kernel.
    x_nhwc = jnp.transpose(x_nchw, (0, 2, 3, 1))

    def prep_w(w_oihw):
        cin, cout = w_oihw.shape[1], w_oihw.shape[0]
        scale = math.sqrt(2.0 / (cin * 9))                 # gain=2, 3x3 kernel
        # (Cout, Cin, kh, kw) -> (kh, kw, Cin, Cout) -> (9, Cin, Cout); fold scale.
        w = jnp.transpose(w_oihw, (2, 3, 1, 0)).reshape(9, cin, cout)
        return (w * scale).astype(jnp.float32)

    w1 = prep_w(params["w1"])
    w2 = prep_w(params["w2"])
    b1 = params["b1"].reshape(1, Cout).astype(jnp.float32)
    b2 = params["b2"].reshape(1, Cout).astype(jnp.float32)

    kernel = functools.partial(_fused_block_kernel, H=H, W=W, use_pn=use_pn)
    out_flat = pl.pallas_call(
        kernel,
        out_shape=jax.ShapeDtypeStruct((N, H * W, Cout), x_nchw.dtype),
        grid_spec=pltpu.PrefetchScalarGridSpec(
            num_scalar_prefetch=0,
            grid=(N,),
            in_specs=[
                pl.BlockSpec((pl.Squeezed(), H, W, Cin),
                             lambda n: (n, 0, 0, 0)),
                pl.BlockSpec((9, Cin, Cout), lambda n: (0, 0, 0)),
                pl.BlockSpec((1, Cout), lambda n: (0, 0)),
                pl.BlockSpec((9, Cout, Cout), lambda n: (0, 0, 0)),
                pl.BlockSpec((1, Cout), lambda n: (0, 0)),
            ],
            out_specs=pl.BlockSpec((pl.Squeezed(), H * W, Cout),
                                   lambda n: (n, 0, 0)),
            scratch_shapes=[
                pltpu.VMEM((H + 2, W + 2, Cin), x_nchw.dtype),
                pltpu.VMEM((H + 2, W + 2, Cout), jnp.float32),
            ],
        ),
        compiler_params=pltpu.CompilerParams(
            dimension_semantics=("parallel",),
            vmem_limit_bytes=48 * 1024 * 1024,
        ),
    )(x_nhwc, w1, b1, w2, b2)

    return jnp.transpose(out_flat.reshape(N, H, W, Cout), (0, 3, 1, 2))


def _reference_forward(x_nchw, params, *, use_pn=True):
    """Pure-JAX reference matching the PyTorch module."""
    def wsconv(x, w, b):
        cin = w.shape[1]
        scale = math.sqrt(2.0 / (cin * 9))
        y = lax.conv_general_dilated(
            x * scale, w, window_strides=(1, 1), padding=((1, 1), (1, 1)),
            dimension_numbers=("NCHW", "OIHW", "NCHW"))
        return y + b.reshape(1, -1, 1, 1)

    def lrelu(x):
        return jnp.where(x >= 0, x, 0.2 * x)

    def pn(x):
        return x / jnp.sqrt(jnp.mean(x * x, axis=1, keepdims=True) + 1e-8)

    x = lrelu(wsconv(x_nchw, params["w1"], params["b1"]))
    if use_pn:
        x = pn(x)
    x = lrelu(wsconv(x, params["w2"], params["b2"]))
    if use_pn:
        x = pn(x)
    return x


if __name__ == "__main__":
    key = jax.random.PRNGKey(0)
    N, Cin, Cout, H, W = 2, 4, 8, 16, 16
    kx, kw1, kw2 = jax.random.split(key, 3)

    # Deterministic parameters mirroring __init__: weights ~ N(0,1), biases = 0.
    x = jax.random.normal(kx, (N, Cin, H, W), dtype=jnp.float32)
    params = {
        "w1": jax.random.normal(kw1, (Cout, Cin, 3, 3), dtype=jnp.float32),
        "b1": jnp.zeros((Cout,), jnp.float32),
        "w2": jax.random.normal(kw2, (Cout, Cout, 3, 3), dtype=jnp.float32),
        "b2": jnp.zeros((Cout,), jnp.float32),
    }

    ok = True
    for use_pn in (True, False):
        fwd = jax.jit(functools.partial(conv2d_block_forward, use_pn=use_pn))
        out = jax.block_until_ready(fwd(x, params))
        ref = _reference_forward(x, params, use_pn=use_pn)
        assert out.shape == (N, Cout, H, W)
        err = float(jnp.max(jnp.abs(out - ref)))
        ok &= bool(jnp.allclose(out, ref, atol=1e-4, rtol=1e-4))
        assert ok, f"max abs err {err} (use_pn={use_pn})"

    print("KERNEL_OK")
</pallas_src>

<mosaic_0001>
module attributes {stable_mosaic.version = 11 : i64} {
  func.func @_fused_block_kernel(%arg0: i32, %arg1: memref<1x16x16x4xf32, #tpu.memory_space<vmem>>, %arg2: memref<9x4x8xf32, #tpu.memory_space<vmem>>, %arg3: memref<1x8xf32, #tpu.memory_space<vmem>>, %arg4: memref<9x8x8xf32, #tpu.memory_space<vmem>>, %arg5: memref<1x8xf32, #tpu.memory_space<vmem>>, %arg6: memref<1x256x8xf32, #tpu.memory_space<vmem>>, %arg7: memref<18x18x4xf32, #tpu.memory_space<vmem>>, %arg8: memref<18x18x8xf32, #tpu.memory_space<vmem>>) attributes {dimension_semantics = [#tpu.dimension_semantics<parallel>], iteration_bounds = array<i64: 2>, scalar_prefetch = 0 : i64, scratch_operands = 2 : i64, tpu.core_type = #tpu.core_type<tc>, window_params = [{transform_indices = @transform_0, window_bounds = array<i64: 1, 16, 16, 4>}, {pipeline_mode = #tpu.pipeline_mode<synchronous>, transform_indices = @transform_1, window_bounds = array<i64: 9, 4, 8>}, {pipeline_mode = #tpu.pipeline_mode<synchronous>, transform_indices = @transform_2, window_bounds = array<i64: 1, 8>}, {pipeline_mode = #tpu.pipeline_mode<synchronous>, transform_indices = @transform_3, window_bounds = array<i64: 9, 8, 8>}, {pipeline_mode = #tpu.pipeline_mode<synchronous>, transform_indices = @transform_4, window_bounds = array<i64: 1, 8>}, {transform_indices = @transform_5, window_bounds = array<i64: 1, 256, 8>}]} {
    %cst = arith.constant 0.000000e+00 : f32
    %0 = vector.broadcast %cst : f32 to vector<18x18x4xf32>
    %c0 = arith.constant 0 : index
    %c0_0 = arith.constant 0 : index
    %c0_1 = arith.constant 0 : index
    %1 = vector.load %arg7[%c0, %c0_0, %c0_1] : memref<18x18x4xf32, #tpu.memory_space<vmem>>, vector<18x18x4xf32>
    tpu.vector_store %arg7[%c0, %c0_0, %c0_1], %0 {strides = array<i32>} : memref<18x18x4xf32, #tpu.memory_space<vmem>>, vector<18x18x4xf32>,
    %c0_2 = arith.constant 0 : index
    %c0_3 = arith.constant 0 : index
    %c0_4 = arith.constant 0 : index
    %c0_5 = arith.constant 0 : index
    %2 = vector.load %arg1[%c0_2, %c0_3, %c0_4, %c0_5] : memref<1x16x16x4xf32, #tpu.memory_space<vmem>>, vector<1x16x16x4xf32>
    %3 = vector.shape_cast %2 : vector<1x16x16x4xf32> to vector<16x16x4xf32>
    %c1 = arith.constant 1 : index
    %c1_6 = arith.constant 1 : index
    %c0_7 = arith.constant 0 : index
    %4 = vector.load %arg7[%c1, %c1_6, %c0_7] : memref<18x18x4xf32, #tpu.memory_space<vmem>>, vector<16x16x4xf32>
    tpu.vector_store %arg7[%c1, %c1_6, %c0_7], %3 {strides = array<i32>} : memref<18x18x4xf32, #tpu.memory_space<vmem>>, vector<16x16x4xf32>,
    %c0_8 = arith.constant 0 : index
    %c0_9 = arith.constant 0 : index
    %5 = vector.load %arg3[%c0_8, %c0_9] : memref<1x8xf32, #tpu.memory_space<vmem>>, vector<1x8xf32>
    %6 = vector.shape_cast %5 : vector<1x8xf32> to vector<1x8xf32>
    %7 = vector.broadcast %6 : vector<1x8xf32> to vector<256x8xf32>
    %c0_10 = arith.constant 0 : index
    %c0_11 = arith.constant 0 : index
    %c0_12 = arith.constant 0 : index
    %8 = vector.load %arg7[%c0_10, %c0_11, %c0_12] : memref<18x18x4xf32, #tpu.memory_space<vmem>>, vector<16x16x4xf32>
    %9 = vector.shape_cast %8 : vector<16x16x4xf32> to vector<256x4xf32>
    %c0_13 = arith.constant 0 : index
    %c0_14 = arith.constant 0 : index
    %c0_15 = arith.constant 0 : index
    %10 = vector.load %arg2[%c0_13, %c0_14, %c0_15] : memref<9x4x8xf32, #tpu.memory_space<vmem>>, vector<1x4x8xf32>
    %11 = vector.shape_cast %10 : vector<1x4x8xf32> to vector<4x8xf32>
    %cst_16 = arith.constant dense<0.000000e+00> : vector<256x8xf32>
    %12 = tpu.matmul %9, %11, %cst_16 {dimension_numbers = #tpu.dot_dimension_numbers<[1], [0], [0], [1], [0, 0, 1, 1], [], []>} : vector<256x4xf32>, vector<4x8xf32>, vector<256x8xf32> -> vector<256x8xf32>
    %13 = arith.addf %7, %12 : vector<256x8xf32>
    %c0_17 = arith.constant 0 : index
    %c1_18 = arith.constant 1 : index
    %c0_19 = arith.constant 0 : index
    %14 = vector.load %arg7[%c0_17, %c1_18, %c0_19] : memref<18x18x4xf32, #tpu.memory_space<vmem>>, vector<16x16x4xf32>
    %15 = vector.shape_cast %14 : vector<16x16x4xf32> to vector<256x4xf32>
    %c1_20 = arith.constant 1 : index
    %c0_21 = arith.constant 0 : index
    %c0_22 = arith.constant 0 : index
    %16 = vector.load %arg2[%c1_20, %c0_21, %c0_22] : memref<9x4x8xf32, #tpu.memory_space<vmem>>, vector<1x4x8xf32>
    %17 = vector.shape_cast %16 : vector<1x4x8xf32> to vector<4x8xf32>
    %cst_23 = arith.constant dense<0.000000e+00> : vector<256x8xf32>
    %18 = tpu.matmul %15, %17, %cst_23 {dimension_numbers = #tpu.dot_dimension_numbers<[1], [0], [0], [1], [0, 0, 1, 1], [], []>} : vector<256x4xf32>, vector<4x8xf32>, vector<256x8xf32> -> vector<256x8xf32>
    %19 = arith.addf %13, %18 : vector<256x8xf32>
    %c0_24 = arith.constant 0 : index
    %c2 = arith.constant 2 : index
    %c0_25 = arith.constant 0 : index
    %20 = vector.load %arg7[%c0_24, %c2, %c0_25] : memref<18x18x4xf32, #tpu.memory_space<vmem>>, vector<16x16x4xf32>
    %21 = vector.shape_cast %20 : vector<16x16x4xf32> to vector<256x4xf32>
    %c2_26 = arith.constant 2 : index
    %c0_27 = arith.constant 0 : index
    %c0_28 = arith.constant 0 : index
    %22 = vector.load %arg2[%c2_26, %c0_27, %c0_28] : memref<9x4x8xf32, #tpu.memory_space<vmem>>, vector<1x4x8xf32>
    %23 = vector.shape_cast %22 : vector<1x4x8xf32> to vector<4x8xf32>
    %cst_29 = arith.constant dense<0.000000e+00> : vector<256x8xf32>
    %24 = tpu.matmul %21, %23, %cst_29 {dimension_numbers = #tpu.dot_dimension_numbers<[1], [0], [0], [1], [0, 0, 1, 1], [], []>} : vector<256x4xf32>, vector<4x8xf32>, vector<256x8xf32> -> vector<256x8xf32>
    %25 = arith.addf %19, %24 : vector<256x8xf32>
    %c1_30 = arith.constant 1 : index
    %c0_31 = arith.constant 0 : index
    %c0_32 = arith.constant 0 : index
    %26 = vector.load %arg7[%c1_30, %c0_31, %c0_32] : memref<18x18x4xf32, #tpu.memory_space<vmem>>, vector<16x16x4xf32>
    %27 = vector.shape_cast %26 : vector<16x16x4xf32> to vector<256x4xf32>
    %c3 = arith.constant 3 : index
    %c0_33 = arith.constant 0 : index
    %c0_34 = arith.constant 0 : index
    %28 = vector.load %arg2[%c3, %c0_33, %c0_34] : memref<9x4x8xf32, #tpu.memory_space<vmem>>, vector<1x4x8xf32>
    %29 = vector.shape_cast %28 : vector<1x4x8xf32> to vector<4x8xf32>
    %cst_35 = arith.constant dense<0.000000e+00> : vector<256x8xf32>
    %30 = tpu.matmul %27, %29, %cst_35 {dimension_numbers = #tpu.dot_dimension_numbers<[1], [0], [0], [1], [0, 0, 1, 1], [], []>} : vector<256x4xf32>, vector<4x8xf32>, vector<256x8xf32> -> vector<256x8xf32>
    %31 = arith.addf %25, %30 : vector<256x8xf32>
    %c1_36 = arith.constant 1 : index
    %c1_37 = arith.constant 1 : index
    %c0_38 = arith.constant 0 : index
    %32 = vector.load %arg7[%c1_36, %c1_37, %c0_38] : memref<18x18x4xf32, #tpu.memory_space<vmem>>, vector<16x16x4xf32>
    %33 = vector.shape_cast %32 : vector<16x16x4xf32> to vector<256x4xf32>
    %c4 = arith.constant 4 : index
    %c0_39 = arith.constant 0 : index
    %c0_40 = arith.constant 0 : index
    %34 = vector.load %arg2[%c4, %c0_39, %c0_40] : memref<9x4x8xf32, #tpu.memory_space<vmem>>, vector<1x4x8xf32>
    %35 = vector.shape_cast %34 : vector<1x4x8xf32> to vector<4x8xf32>
    %cst_41 = arith.constant dense<0.000000e+00> : vector<256x8xf32>
    %36 = tpu.matmul %33, %35, %cst_41 {dimension_numbers = #tpu.dot_dimension_numbers<[1], [0], [0], [1], [0, 0, 1, 1], [], []>} : vector<256x4xf32>, vector<4x8xf32>, vector<256x8xf32> -> vector<256x8xf32>
    %37 = arith.addf %31, %36 : vector<256x8xf32>
    %c1_42 = arith.constant 1 : index
    %c2_43 = arith.constant 2 : index
    %c0_44 = arith.constant 0 : index
    %38 = vector.load %arg7[%c1_42, %c2_43, %c0_44] : memref<18x18x4xf32, #tpu.memory_space<vmem>>, vector<16x16x4xf32>
    %39 = vector.shape_cast %38 : vector<16x16x4xf32> to vector<256x4xf32>
    %c5 = arith.constant 5 : index
    %c0_45 = arith.constant 0 : index
    %c0_46 = arith.constant 0 : index
    %40 = vector.load %arg2[%c5, %c0_45, %c0_46] : memref<9x4x8xf32, #tpu.memory_space<vmem>>, vector<1x4x8xf32>
    %41 = vector.shape_cast %40 : vector<1x4x8xf32> to vector<4x8xf32>
    %cst_47 = arith.constant dense<0.000000e+00> : vector<256x8xf32>
    %42 = tpu.matmul %39, %41, %cst_47 {dimension_numbers = #tpu.dot_dimension_numbers<[1], [0], [0], [1], [0, 0, 1, 1], [], []>} : vector<256x4xf32>, vector<4x8xf32>, vector<256x8xf32> -> vector<256x8xf32>
    %43 = arith.addf %37, %42 : vector<256x8xf32>
    %c2_48 = arith.constant 2 : index
    %c0_49 = arith.constant 0 : index
    %c0_50 = arith.constant 0 : index
    %44 = vector.load %arg7[%c2_48, %c0_49, %c0_50] : memref<18x18x4xf32, #tpu.memory_space<vmem>>, vector<16x16x4xf32>
    %45 = vector.shape_cast %44 : vector<16x16x4xf32> to vector<256x4xf32>
    %c6 = arith.constant 6 : index
    %c0_51 = arith.constant 0 : index
    %c0_52 = arith.constant 0 : index
    %46 = vector.load %arg2[%c6, %c0_51, %c0_52] : memref<9x4x8xf32, #tpu.memory_space<vmem>>, vector<1x4x8xf32>
    %47 = vector.shape_cast %46 : vector<1x4x8xf32> to vector<4x8xf32>
    %cst_53 = arith.constant dense<0.000000e+00> : vector<256x8xf32>
    %48 = tpu.matmul %45, %47, %cst_53 {dimension_numbers = #tpu.dot_dimension_numbers<[1], [0], [0], [1], [0, 0, 1, 1], [], []>} : vector<256x4xf32>, vector<4x8xf32>, vector<256x8xf32> -> vector<256x8xf32>
    %49 = arith.addf %43, %48 : vector<256x8xf32>
    %c2_54 = arith.constant 2 : index
    %c1_55 = arith.constant 1 : index
    %c0_56 = arith.constant 0 : index
    %50 = vector.load %arg7[%c2_54, %c1_55, %c0_56] : memref<18x18x4xf32, #tpu.memory_space<vmem>>, vector<16x16x4xf32>
    %51 = vector.shape_cast %50 : vector<16x16x4xf32> to vector<256x4xf32>
    %c7 = arith.constant 7 : index
    %c0_57 = arith.constant 0 : index
    %c0_58 = arith.constant 0 : index
    %52 = vector.load %arg2[%c7, %c0_57, %c0_58] : memref<9x4x8xf32, #tpu.memory_space<vmem>>, vector<1x4x8xf32>
    %53 = vector.shape_cast %52 : vector<1x4x8xf32> to vector<4x8xf32>
    %cst_59 = arith.constant dense<0.000000e+00> : vector<256x8xf32>
    %54 = tpu.matmul %51, %53, %cst_59 {dimension_numbers = #tpu.dot_dimension_numbers<[1], [0], [0], [1], [0, 0, 1, 1], [], []>} : vector<256x4xf32>, vector<4x8xf32>, vector<256x8xf32> -> vector<256x8xf32>
    %55 = arith.addf %49, %54 : vector<256x8xf32>
    %c2_60 = arith.constant 2 : index
    %c2_61 = arith.constant 2 : index
    %c0_62 = arith.constant 0 : index
    %56 = vector.load %arg7[%c2_60, %c2_61, %c0_62] : memref<18x18x4xf32, #tpu.memory_space<vmem>>, vector<16x16x4xf32>
    %57 = vector.shape_cast %56 : vector<16x16x4xf32> to vector<256x4xf32>
    %c8 = arith.constant 8 : index
    %c0_63 = arith.constant 0 : index
    %c0_64 = arith.constant 0 : index
    %58 = vector.load %arg2[%c8, %c0_63, %c0_64] : memref<9x4x8xf32, #tpu.memory_space<vmem>>, vector<1x4x8xf32>
    %59 = vector.shape_cast %58 : vector<1x4x8xf32> to vector<4x8xf32>
    %cst_65 = arith.constant dense<0.000000e+00> : vector<256x8xf32>
    %60 = tpu.matmul %57, %59, %cst_65 {dimension_numbers = #tpu.dot_dimension_numbers<[1], [0], [0], [1], [0, 0, 1, 1], [], []>} : vector<256x4xf32>, vector<4x8xf32>, vector<256x8xf32> -> vector<256x8xf32>
    %61 = arith.addf %55, %60 : vector<256x8xf32>
    %cst_66 = arith.constant 0.000000e+00 : f32
    %62 = vector.broadcast %cst_66 : f32 to vector<256x8xf32>
    %63 = arith.cmpf oge, %61, %62 : vector<256x8xf32>
    %cst_67 = arith.constant 2.000000e-01 : f32
    %64 = vector.broadcast %cst_67 : f32 to vector<256x8xf32>
    %65 = arith.mulf %64, %61 : vector<256x8xf32>
    %66 = arith.select %63, %61, %65 : vector<256x8xi1>, vector<256x8xf32>
    %67 = arith.mulf %66, %66 : vector<256x8xf32>
    %cst_68 = arith.constant dense<0.000000e+00> : vector<256xf32>
    %68 = vector.multi_reduction <add>, %67, %cst_68 [1] : vector<256x8xf32> to vector<256xf32>
    %69 = vector.shape_cast %68 : vector<256xf32> to vector<256x1xf32>
    %cst_69 = arith.constant 8.000000e+00 : f32
    %70 = vector.broadcast %cst_69 : f32 to vector<256x1xf32>
    %71 = arith.divf %69, %70 : vector<256x1xf32>
    %cst_70 = arith.constant 9.99999993E-9 : f32
    %72 = vector.broadcast %cst_70 : f32 to vector<256x1xf32>
    %73 = arith.addf %71, %72 : vector<256x1xf32>
    %74 = math.rsqrt %73 : vector<256x1xf32>
    %75 = vector.broadcast %74 : vector<256x1xf32> to vector<256x8xf32>
    %76 = arith.mulf %66, %75 : vector<256x8xf32>
    %cst_71 = arith.constant 0.000000e+00 : f32
    %77 = vector.broadcast %cst_71 : f32 to vector<18x18x8xf32>
    %c0_72 = arith.constant 0 : index
    %c0_73 = arith.constant 0 : index
    %c0_74 = arith.constant 0 : index
    %78 = vector.load %arg8[%c0_72, %c0_73, %c0_74] : memref<18x18x8xf32, #tpu.memory_space<vmem>>, vector<18x18x8xf32>
    tpu.vector_store %arg8[%c0_72, %c0_73, %c0_74], %77 {strides = array<i32>} : memref<18x18x8xf32, #tpu.memory_space<vmem>>, vector<18x18x8xf32>,
    %79 = vector.shape_cast %76 : vector<256x8xf32> to vector<16x16x8xf32>
    %c1_75 = arith.constant 1 : index
    %c1_76 = arith.constant 1 : index
    %c0_77 = arith.constant 0 : index
    %80 = vector.load %arg8[%c1_75, %c1_76, %c0_77] : memref<18x18x8xf32, #tpu.memory_space<vmem>>, vector<16x16x8xf32>
    tpu.vector_store %arg8[%c1_75, %c1_76, %c0_77], %79 {strides = array<i32>} : memref<18x18x8xf32, #tpu.memory_space<vmem>>, vector<16x16x8xf32>,
    %c0_78 = arith.constant 0 : index
    %c0_79 = arith.constant 0 : index
    %81 = vector.load %arg5[%c0_78, %c0_79] : memref<1x8xf32, #tpu.memory_space<vmem>>, vector<1x8xf32>
    %82 = vector.shape_cast %81 : vector<1x8xf32> to vector<1x8xf32>
    %83 = vector.broadcast %82 : vector<1x8xf32> to vector<256x8xf32>
    %c0_80 = arith.constant 0 : index
    %c0_81 = arith.constant 0 : index
    %c0_82 = arith.constant 0 : index
    %84 = vector.load %arg8[%c0_80, %c0_81, %c0_82] : memref<18x18x8xf32, #tpu.memory_space<vmem>>, vector<16x16x8xf32>
    %85 = vector.shape_cast %84 : vector<16x16x8xf32> to vector<256x8xf32>
    %c0_83 = arith.constant 0 : index
    %c0_84 = arith.constant 0 : index
    %c0_85 = arith.constant 0 : index
    %86 = vector.load %arg4[%c0_83, %c0_84, %c0_85] : memref<9x8x8xf32, #tpu.memory_space<vmem>>, vector<1x8x8xf32>
    %87 = vector.shape_cast %86 : vector<1x8x8xf32> to vector<8x8xf32>
    %cst_86 = arith.constant dense<0.000000e+00> : vector<256x8xf32>
    %88 = tpu.matmul %85, %87, %cst_86 {dimension_numbers = #tpu.dot_dimension_numbers<[1], [0], [0], [1], [0, 0, 1, 1], [], []>} : vector<256x8xf32>, vector<8x8xf32>, vector<256x8xf32> -> vector<256x8xf32>
    %89 = arith.addf %83, %88 : vector<256x8xf32>
    %c0_87 = arith.constant 0 : index
    %c1_88 = arith.constant 1 : index
    %c0_89 = arith.constant 0 : index
    %90 = vector.load %arg8[%c0_87, %c1_88, %c0_89] : memref<18x18x8xf32, #tpu.memory_space<vmem>>, vector<16x16x8xf32>
    %91 = vector.shape_cast %90 : vector<16x16x8xf32> to vector<256x8xf32>
    %c1_90 = arith.constant 1 : index
    %c0_91 = arith.constant 0 : index
    %c0_92 = arith.constant 0 : index
    %92 = vector.load %arg4[%c1_90, %c0_91, %c0_92] : memref<9x8x8xf32, #tpu.memory_space<vmem>>, vector<1x8x8xf32>
    %93 = vector.shape_cast %92 : vector<1x8x8xf32> to vector<8x8xf32>
    %cst_93 = arith.constant dense<0.000000e+00> : vector<256x8xf32>
    %94 = tpu.matmul %91, %93, %cst_93 {dimension_numbers = #tpu.dot_dimension_numbers<[1], [0], [0], [1], [0, 0, 1, 1], [], []>} : vector<256x8xf32>, vector<8x8xf32>, vector<256x8xf32> -> vector<256x8xf32>
    %95 = arith.addf %89, %94 : vector<256x8xf32>
    %c0_94 = arith.constant 0 : index
    %c2_95 = arith.constant 2 : index
    %c0_96 = arith.constant 0 : index
    %96 = vector.load %arg8[%c0_94, %c2_95, %c0_96] : memref<18x18x8xf32, #tpu.memory_space<vmem>>, vector<16x16x8xf32>
    %97 = vector.shape_cast %96 : vector<16x16x8xf32> to vector<256x8xf32>
    %c2_97 = arith.constant 2 : index
    %c0_98 = arith.constant 0 : index
    %c0_99 = arith.constant 0 : index
    %98 = vector.load %arg4[%c2_97, %c0_98, %c0_99] : memref<9x8x8xf32, #tpu.memory_space<vmem>>, vector<1x8x8xf32>
    %99 = vector.shape_cast %98 : vector<1x8x8xf32> to vector<8x8xf32>
    %cst_100 = arith.constant dense<0.000000e+00> : vector<256x8xf32>
    %100 = tpu.matmul %97, %99, %cst_100 {dimension_numbers = #tpu.dot_dimension_numbers<[1], [0], [0], [1], [0, 0, 1, 1], [], []>} : vector<256x8xf32>, vector<8x8xf32>, vector<256x8xf32> -> vector<256x8xf32>
    %101 = arith.addf %95, %100 : vector<256x8xf32>
    %c1_101 = arith.constant 1 : index
    %c0_102 = arith.constant 0 : index
    %c0_103 = arith.constant 0 : index
    %102 = vector.load %arg8[%c1_101, %c0_102, %c0_103] : memref<18x18x8xf32, #tpu.memory_space<vmem>>, vector<16x16x8xf32>
    %103 = vector.shape_cast %102 : vector<16x16x8xf32> to vector<256x8xf32>
    %c3_104 = arith.constant 3 : index
    %c0_105 = arith.constant 0 : index
    %c0_106 = arith.constant 0 : index
    %104 = vector.load %arg4[%c3_104, %c0_105, %c0_106] : memref<9x8x8xf32, #tpu.memory_space<vmem>>, vector<1x8x8xf32>
    %105 = vector.shape_cast %104 : vector<1x8x8xf32> to vector<8x8xf32>
    %cst_107 = arith.constant dense<0.000000e+00> : vector<256x8xf32>
    %106 = tpu.matmul %103, %105, %cst_107 {dimension_numbers = #tpu.dot_dimension_numbers<[1], [0], [0], [1], [0, 0, 1, 1], [], []>} : vector<256x8xf32>, vector<8x8xf32>, vector<256x8xf32> -> vector<256x8xf32>
    %107 = arith.addf %101, %106 : vector<256x8xf32>
    %c1_108 = arith.constant 1 : index
    %c1_109 = arith.constant 1 : index
    %c0_110 = arith.constant 0 : index
    %108 = vector.load %arg8[%c1_108, %c1_109, %c0_110] : memref<18x18x8xf32, #tpu.memory_space<vmem>>, vector<16x16x8xf32>
    %109 = vector.shape_cast %108 : vector<16x16x8xf32> to vector<256x8xf32>
    %c4_111 = arith.constant 4 : index
    %c0_112 = arith.constant 0 : index
    %c0_113 = arith.constant 0 : index
    %110 = vector.load %arg4[%c4_111, %c0_112, %c0_113] : memref<9x8x8xf32, #tpu.memory_space<vmem>>, vector<1x8x8xf32>
    %111 = vector.shape_cast %110 : vector<1x8x8xf32> to vector<8x8xf32>
    %cst_114 = arith.constant dense<0.000000e+00> : vector<256x8xf32>
    %112 = tpu.matmul %109, %111, %cst_114 {dimension_numbers = #tpu.dot_dimension_numbers<[1], [0], [0], [1], [0, 0, 1, 1], [], []>} : vector<256x8xf32>, vector<8x8xf32>, vector<256x8xf32> -> vector<256x8xf32>
    %113 = arith.addf %107, %112 : vector<256x8xf32>
    %c1_115 = arith.constant 1 : index
    %c2_116 = arith.constant 2 : index
    %c0_117 = arith.constant 0 : index
    %114 = vector.load %arg8[%c1_115, %c2_116, %c0_117] : memref<18x18x8xf32, #tpu.memory_space<vmem>>, vector<16x16x8xf32>
    %115 = vector.shape_cast %114 : vector<16x16x8xf32> to vector<256x8xf32>
    %c5_118 = arith.constant 5 : index
    %c0_119 = arith.constant 0 : index
    %c0_120 = arith.constant 0 : index
    %116 = vector.load %arg4[%c5_118, %c0_119, %c0_120] : memref<9x8x8xf32, #tpu.memory_space<vmem>>, vector<1x8x8xf32>
    %117 = vector.shape_cast %116 : vector<1x8x8xf32> to vector<8x8xf32>
    %cst_121 = arith.constant dense<0.000000e+00> : vector<256x8xf32>
    %118 = tpu.matmul %115, %117, %cst_121 {dimension_numbers = #tpu.dot_dimension_numbers<[1], [0], [0], [1], [0, 0, 1, 1], [], []>} : vector<256x8xf32>, vector<8x8xf32>, vector<256x8xf32> -> vector<256x8xf32>
    %119 = arith.addf %113, %118 : vector<256x8xf32>
    %c2_122 = arith.constant 2 : index
    %c0_123 = arith.constant 0 : index
    %c0_124 = arith.constant 0 : index
    %120 = vector.load %arg8[%c2_122, %c0_123, %c0_124] : memref<18x18x8xf32, #tpu.memory_space<vmem>>, vector<16x16x8xf32>
    %121 = vector.shape_cast %120 : vector<16x16x8xf32> to vector<256x8xf32>
    %c6_125 = arith.constant 6 : index
    %c0_126 = arith.constant 0 : index
    %c0_127 = arith.constant 0 : index
    %122 = vector.load %arg4[%c6_125, %c0_126, %c0_127] : memref<9x8x8xf32, #tpu.memory_space<vmem>>, vector<1x8x8xf32>
    %123 = vector.shape_cast %122 : vector<1x8x8xf32> to vector<8x8xf32>
    %cst_128 = arith.constant dense<0.000000e+00> : vector<256x8xf32>
    %124 = tpu.matmul %121, %123, %cst_128 {dimension_numbers = #tpu.dot_dimension_numbers<[1], [0], [0], [1], [0, 0, 1, 1], [], []>} : vector<256x8xf32>, vector<8x8xf32>, vector<256x8xf32> -> vector<256x8xf32>
    %125 = arith.addf %119, %124 : vector<256x8xf32>
    %c2_129 = arith.constant 2 : index
    %c1_130 = arith.constant 1 : index
    %c0_131 = arith.constant 0 : index
    %126 = vector.load %arg8[%c2_129, %c1_130, %c0_131] : memref<18x18x8xf32, #tpu.memory_space<vmem>>, vector<16x16x8xf32>
    %127 = vector.shape_cast %126 : vector<16x16x8xf32> to vector<256x8xf32>
    %c7_132 = arith.constant 7 : index
    %c0_133 = arith.constant 0 : index
    %c0_134 = arith.constant 0 : index
    %128 = vector.load %arg4[%c7_132, %c0_133, %c0_134] : memref<9x8x8xf32, #tpu.memory_space<vmem>>, vector<1x8x8xf32>
    %129 = vector.shape_cast %128 : vector<1x8x8xf32> to vector<8x8xf32>
    %cst_135 = arith.constant dense<0.000000e+00> : vector<256x8xf32>
    %130 = tpu.matmul %127, %129, %cst_135 {dimension_numbers = #tpu.dot_dimension_numbers<[1], [0], [0], [1], [0, 0, 1, 1], [], []>} : vector<256x8xf32>, vector<8x8xf32>, vector<256x8xf32> -> vector<256x8xf32>
    %131 = arith.addf %125, %130 : vector<256x8xf32>
    %c2_136 = arith.constant 2 : index
    %c2_137 = arith.constant 2 : index
    %c0_138 = arith.constant 0 : index
    %132 = vector.load %arg8[%c2_136, %c2_137, %c0_138] : memref<18x18x8xf32, #tpu.memory_space<vmem>>, vector<16x16x8xf32>
    %133 = vector.shape_cast %132 : vector<16x16x8xf32> to vector<256x8xf32>
    %c8_139 = arith.constant 8 : index
    %c0_140 = arith.constant 0 : index
    %c0_141 = arith.constant 0 : index
    %134 = vector.load %arg4[%c8_139, %c0_140, %c0_141] : memref<9x8x8xf32, #tpu.memory_space<vmem>>, vector<1x8x8xf32>
    %135 = vector.shape_cast %134 : vector<1x8x8xf32> to vector<8x8xf32>
    %cst_142 = arith.constant dense<0.000000e+00> : vector<256x8xf32>
    %136 = tpu.matmul %133, %135, %cst_142 {dimension_numbers = #tpu.dot_dimension_numbers<[1], [0], [0], [1], [0, 0, 1, 1], [], []>} : vector<256x8xf32>, vector<8x8xf32>, vector<256x8xf32> -> vector<256x8xf32>
    %137 = arith.addf %131, %136 : vector<256x8xf32>
    %cst_143 = arith.constant 0.000000e+00 : f32
    %138 = vector.broadcast %cst_143 : f32 to vector<256x8xf32>
    %139 = arith.cmpf oge, %137, %138 : vector<256x8xf32>
    %cst_144 = arith.constant 2.000000e-01 : f32
    %140 = vector.broadcast %cst_144 : f32 to vector<256x8xf32>
    %141 = arith.mulf %140, %137 : vector<256x8xf32>
    %142 = arith.select %139, %137, %141 : vector<256x8xi1>, vector<256x8xf32>
    %143 = arith.mulf %142, %142 : vector<256x8xf32>
    %cst_145 = arith.constant dense<0.000000e+00> : vector<256xf32>
    %144 = vector.multi_reduction <add>, %143, %cst_145 [1] : vector<256x8xf32> to vector<256xf32>
    %145 = vector.shape_cast %144 : vector<256xf32> to vector<256x1xf32>
    %cst_146 = arith.constant 8.000000e+00 : f32
    %146 = vector.broadcast %cst_146 : f32 to vector<256x1xf32>
    %147 = arith.divf %145, %146 : vector<256x1xf32>
    %cst_147 = arith.constant 9.99999993E-9 : f32
    %148 = vector.broadcast %cst_147 : f32 to vector<256x1xf32>
    %149 = arith.addf %147, %148 : vector<256x1xf32>
    %150 = math.rsqrt %149 : vector<256x1xf32>
    %151 = vector.broadcast %150 : vector<256x1xf32> to vector<256x8xf32>
    %152 = arith.mulf %142, %151 : vector<256x8xf32>
    %c0_148 = arith.constant 0 : index
    %c0_149 = arith.constant 0 : index
    %c0_150 = arith.constant 0 : index
    %153 = vector.load %arg6[%c0_148, %c0_149, %c0_150] : memref<1x256x8xf32, #tpu.memory_space<vmem>>, vector<1x256x8xf32>
    %154 = vector.shape_cast %153 : vector<1x256x8xf32> to vector<256x8xf32>
    %155 = vector.shape_cast %152 : vector<256x8xf32> to vector<1x256x8xf32>
    tpu.vector_store %arg6[%c0_148, %c0_149, %c0_150], %155 {strides = array<i32>} : memref<1x256x8xf32, #tpu.memory_space<vmem>>, vector<1x256x8xf32>,
    return
  }
  func.func @transform_0(%arg0: i32) -> (i32, i32, i32, i32) {
    %c0_i32 = arith.constant 0 : i32
    %c0_i32_0 = arith.constant 0 : i32
    %c0_i32_1 = arith.constant 0 : i32
    %c0_i32_2 = arith.constant 0 : i32
    return %arg0, %c0_i32, %c0_i32_0, %c0_i32_1 : i32, i32, i32, i32
  }
  func.func @transform_1(%arg0: i32) -> (i32, i32, i32) {
    %c0_i32 = arith.constant 0 : i32
    %c0_i32_0 = arith.constant 0 : i32
    %c0_i32_1 = arith.constant 0 : i32
    %c0_i32_2 = arith.constant 0 : i32
    return %c0_i32, %c0_i32_0, %c0_i32_1 : i32, i32, i32
  }
  func.func @transform_2(%arg0: i32) -> (i32, i32) {
    %c0_i32 = arith.constant 0 : i32
    %c0_i32_0 = arith.constant 0 : i32
    %c0_i32_1 = arith.constant 0 : i32
    return %c0_i32, %c0_i32_0 : i32, i32
  }
  func.func @transform_3(%arg0: i32) -> (i32, i32, i32) {
    %c0_i32 = arith.constant 0 : i32
    %c0_i32_0 = arith.constant 0 : i32
    %c0_i32_1 = arith.constant 0 : i32
    %c0_i32_2 = arith.constant 0 : i32
    return %c0_i32, %c0_i32_0, %c0_i32_1 : i32, i32, i32
  }
  func.func @transform_4(%arg0: i32) -> (i32, i32) {
    %c0_i32 = arith.constant 0 : i32
    %c0_i32_0 = arith.constant 0 : i32
    %c0_i32_1 = arith.constant 0 : i32
    return %c0_i32, %c0_i32_0 : i32, i32
  }
  func.func @transform_5(%arg0: i32) -> (i32, i32, i32) {
    %c0_i32 = arith.constant 0 : i32
    %c0_i32_0 = arith.constant 0 : i32
    %c0_i32_1 = arith.constant 0 : i32
    return %arg0, %c0_i32, %c0_i32_0 : i32, i32, i32
  }
}

</mosaic_0001>

<llo_original>
// kernel: conv2d_block_forward.1
$region0: #{conv2d_block_forward.1}
  #allocation0 [shape = 'u32[]', space=smem, size = 0x4, offset = 0x4, fixed_abs, tag = 'smem constant byte address 0x4 - core index']
  #allocation1 [shape = 'u32[144,128]{1,0:T(1,128)}', space=vmem, size = 0x12000, scoped, tag = 'internal scratch']
  #allocation2 [shape = 'f32[18,18,4]{2,1,0:T(8,128)}', space=vmem, size = 0x36000, scoped, tag = 'scratch operand']
  #allocation3 [shape = 'f32[18,18,8]{2,1,0:T(8,128)}', space=vmem, size = 0x36000, scoped, tag = 'scratch operand']
  %s0 = inlined_call_operand.vmem [shape: f32[2,16,16,4], index: 0, kind: input, shape index: {}]
  %s1 = inlined_call_operand.vmem [shape: f32[9,4,8], index: 1, kind: input, shape index: {}]
  %s2 = inlined_call_operand.vmem [shape: f32[1,8], index: 2, kind: input, shape index: {}]
  %s3 = inlined_call_operand.vmem [shape: f32[9,8,8], index: 3, kind: input, shape index: {}]
  %s4 = inlined_call_operand.vmem [shape: f32[1,8], index: 4, kind: input, shape index: {}]
  %s5 = inlined_call_operand.vmem [shape: f32[2,256,8], index: 5, kind: output, shape index: {}]
  %s6 = sld [smem:[#allocation0]]
  $region53: #{conv2d_block_forward.1} parent=0
    _
  %s8 = ssub.s32 1, %s6
  %s9 = scalar_select 0, %s8, %s6
  loop: start=0, step=1, limit=4
  $region2: #{conv2d_block_forward.1} parent=0 // loop_pre_header
    _
  $region3: #{conv2d_block_forward.1} parent=0 // loop_header
    %s11 = sphi 0, %s15
    %p12 = scmp.ge.s32.totalorder %s11, 4
    %s21 = sphi 0, %s23
    %s24 = sphi 0, %s21
    %s25 = sphi 0, %s24
    %s41 = sphi 0, %s25
    %s45 = sphi 0, %s45
    %s47 = sphi 0, %s45
    %s48 = sphi 0, %s47
    %s62 = sphi 0, %s48
    %s66 = sphi 0, %s66
    %s68 = sphi 0, %s66
    %s69 = sphi 0, %s68
    %s83 = sphi 0, %s69
    %s87 = sphi 0, %s87
    %s89 = sphi 0, %s87
    %s90 = sphi 0, %s89
    %s104 = sphi 0, %s90
    %s108 = sphi 0, %s108
    %s110 = sphi 0, %s108
    %s111 = sphi 0, %s110
    %s125 = sphi 0, %s111
    %s131 = sphi 0, %s133
    %s134 = sphi 0, %s131
    %s135 = sphi 0, %s134
    %s151 = sphi 0, %s135
  $region4: #{conv2d_block_forward.1} parent=0 // loop_header_branch
    %14 = sbr.rel (%p12) target = $region8
  $region5: #{conv2d_block_forward.1} parent=0 // loop_body
    %s16 = ssub.s32 %s11, 1
    %s17 = ssub.s32 %s11, 2
    %s18 = sadd.s32 %s11, 1
    %s19 = ssub.s32 %s11, %s18
    %p20 = scmp.eq.s32.totalorder %s19, 0
    %s22 = sadd.s32 %s21, 1
    %s23 = scalar_select %p20, %s21, %s22
    %p26 = pneg %p20
    %p27 = scmp.eq.s32.totalorder %s11, 1
    %p28 = por %p26, %p27
    %p29 = scmp.ne.s32.totalorder %s21, %s24
    %p30 = scmp.eq.s32.totalorder %s11, 0
    %p31 = por %p29, %p30
    %p32 = scmp.ne.s32.totalorder %s21, %s24
    %p33 = scmp.eq.s32.totalorder %s16, 1
    %p34 = por %p32, %p33
    %p35 = scmp.ne.s32.totalorder %s24, %s25
    %p36 = scmp.eq.s32.totalorder %s16, 0
    %p37 = por %p35, %p36
    %p38 = scmp.ne.s32.totalorder %s24, %s25
    %p39 = scmp.eq.s32.totalorder %s17, 1
    %p40 = por %p38, %p39
    %p42 = scmp.ne.s32.totalorder %s25, %s41
    %p43 = scmp.eq.s32.totalorder %s17, 0
    %p44 = por %p42, %p43
    %s46 = sadd.s32 %s45, 1
    %p49 = scmp.eq.s32.totalorder %s11, 1
    %p50 = scmp.ne.s32.totalorder %s45, %s47
    %p51 = scmp.eq.s32.totalorder %s11, 0
    %p52 = por %p50, %p51
    %p53 = scmp.ne.s32.totalorder %s45, %s47
    %p54 = scmp.eq.s32.totalorder %s16, 1
    %p55 = por %p53, %p54
    %p56 = scmp.ne.s32.totalorder %s47, %s48
    %p57 = scmp.eq.s32.totalorder %s16, 0
    %p58 = por %p56, %p57
    %p59 = scmp.ne.s32.totalorder %s47, %s48
    %p60 = scmp.eq.s32.totalorder %s17, 1
    %p61 = por %p59, %p60
    %p63 = scmp.ne.s32.totalorder %s48, %s62
    %p64 = scmp.eq.s32.totalorder %s17, 0
    %p65 = por %p63, %p64
    %s67 = sadd.s32 %s66, 1
    %p70 = scmp.eq.s32.totalorder %s11, 1
    %p71 = scmp.ne.s32.totalorder %s66, %s68
    %p72 = scmp.eq.s32.totalorder %s11, 0
    %p73 = por %p71, %p72
    %p74 = scmp.ne.s32.totalorder %s66, %s68
    %p75 = scmp.eq.s32.totalorder %s16, 1
    %p76 = por %p74, %p75
    %p77 = scmp.ne.s32.totalorder %s68, %s69
    %p78 = scmp.eq.s32.totalorder %s16, 0
    %p79 = por %p77, %p78
    %p80 = scmp.ne.s32.totalorder %s68, %s69
    %p81 = scmp.eq.s32.totalorder %s17, 1
    %p82 = por %p80, %p81
    %p84 = scmp.ne.s32.totalorder %s69, %s83
    %p85 = scmp.eq.s32.totalorder %s17, 0
    %p86 = por %p84, %p85
    %s88 = sadd.s32 %s87, 1
    %p91 = scmp.eq.s32.totalorder %s11, 1
    %p92 = scmp.ne.s32.totalorder %s87, %s89
    %p93 = scmp.eq.s32.totalorder %s11, 0
    %p94 = por %p92, %p93
    %p95 = scmp.ne.s32.totalorder %s87, %s89
    %p96 = scmp.eq.s32.totalorder %s16, 1
    %p97 = por %p95, %p96
    %p98 = scmp.ne.s32.totalorder %s89, %s90
    %p99 = scmp.eq.s32.totalorder %s16, 0
    %p100 = por %p98, %p99
    %p101 = scmp.ne.s32.totalorder %s89, %s90
    %p102 = scmp.eq.s32.totalorder %s17, 1
    %p103 = por %p101, %p102
    %p105 = scmp.ne.s32.totalorder %s90, %s104
    %p106 = scmp.eq.s32.totalorder %s17, 0
    %p107 = por %p105, %p106
    %s109 = sadd.s32 %s108, 1
    %p112 = scmp.eq.s32.totalorder %s11, 1
    %p113 = scmp.ne.s32.totalorder %s108, %s110
    %p114 = scmp.eq.s32.totalorder %s11, 0
    %p115 = por %p113, %p114
    %p116 = scmp.ne.s32.totalorder %s108, %s110
    %p117 = scmp.eq.s32.totalorder %s16, 1
    %p118 = por %p116, %p117
    %p119 = scmp.ne.s32.totalorder %s110, %s111
    %p120 = scmp.eq.s32.totalorder %s16, 0
    %p121 = por %p119, %p120
    %p122 = scmp.ne.s32.totalorder %s110, %s111
    %p123 = scmp.eq.s32.totalorder %s17, 1
    %p124 = por %p122, %p123
    %p126 = scmp.ne.s32.totalorder %s111, %s125
    %p127 = scmp.eq.s32.totalorder %s17, 0
    %p128 = por %p126, %p127
    %s129 = ssub.s32 %s11, %s18
    %p130 = scmp.eq.s32.totalorder %s129, 0
    %s132 = sadd.s32 %s131, 1
    %s133 = scalar_select %p130, %s131, %s132
    %p136 = pneg %p130
    %p137 = scmp.eq.s32.totalorder %s11, 1
    %p138 = por %p136, %p137
    %p139 = scmp.ne.s32.totalorder %s131, %s134
    %p140 = scmp.eq.s32.totalorder %s11, 0
    %p141 = por %p139, %p140
    %p142 = scmp.ne.s32.totalorder %s131, %s134
    %p143 = scmp.eq.s32.totalorder %s16, 1
    %p144 = por %p142, %p143
    %p145 = scmp.ne.s32.totalorder %s134, %s135
    %p146 = scmp.eq.s32.totalorder %s16, 0
    %p147 = por %p145, %p146
    %p148 = scmp.ne.s32.totalorder %s134, %s135
    %p149 = scmp.eq.s32.totalorder %s17, 1
    %p150 = por %p148, %p149
    %p152 = scmp.ne.s32.totalorder %s135, %s151
    %p153 = scmp.eq.s32.totalorder %s17, 0
    %p154 = por %p152, %p153
    %p155 = scmp.le.s32.totalorder 1, %s11
    %p156 = scmp.lt.s32.totalorder %s11, 3
    %p157 = pnand %p155, %p156
    %p158 = pneg %p157
    // Predicated region
    $region9: #{conv2d_block_forward.1} parent=5 // pred_check
      _
    $region10: #{conv2d_block_forward.1} parent=5 // pred_check_branch
      %160 = sbr.rel (%p157) target = $region12
    $region11: #{conv2d_block_forward.1} parent=5 // pred_region
      %s161 = ssub.s32 %s11, 1
      // Predicated region
      $region13: #{conv2d_block_forward.1} parent=11 // pred_check
        %p162 = pneg %p58
      $region14: #{conv2d_block_forward.1} parent=11 // pred_check_branch
        %164 = sbr.rel (%p162) target = $region16
      $region15: #{conv2d_block_forward.1} parent=11 // pred_region
        _
      $region16: #{conv2d_block_forward.1} parent=11 // pred_fallthru
        _
      // Predicated region
      $region17: #{conv2d_block_forward.1} parent=11 // pred_check
        %p165 = pneg %p79
      $region18: #{conv2d_block_forward.1} parent=11 // pred_check_branch
        %167 = sbr.rel (%p165) target = $region20
      $region19: #{conv2d_block_forward.1} parent=11 // pred_region
        _
      $region20: #{conv2d_block_forward.1} parent=11 // pred_fallthru
        _
      // Predicated region
      $region21: #{conv2d_block_forward.1} parent=11 // pred_check
        %p168 = pneg %p100
      $region22: #{conv2d_block_forward.1} parent=11 // pred_check_branch
        %170 = sbr.rel (%p168) target = $region24
      $region23: #{conv2d_block_forward.1} parent=11 // pred_region
        _
      $region24: #{conv2d_block_forward.1} parent=11 // pred_fallthru
        _
      // Predicated region
      $region25: #{conv2d_block_forward.1} parent=11 // pred_check
        %p171 = pneg %p121
      $region26: #{conv2d_block_forward.1} parent=11 // pred_check_branch
        %173 = sbr.rel (%p171) target = $region28
      $region27: #{conv2d_block_forward.1} parent=11 // pred_region
        _
      $region28: #{conv2d_block_forward.1} parent=11 // pred_fallthru
        _
    $region12: #{conv2d_block_forward.1} parent=5 // pred_fallthru
      _
    %p174 = scmp.lt.s32.totalorder %s11, 2
    // Predicated region
    $region29: #{conv2d_block_forward.1} parent=5 // pred_check
      %p175 = pneg %p174
    $region30: #{conv2d_block_forward.1} parent=5 // pred_check_branch
      %177 = sbr.rel (%p175) target = $region32
    $region31: #{conv2d_block_forward.1} parent=5 // pred_region
      // Predicated region
      $region33: #{conv2d_block_forward.1} parent=31 // pred_check
        %p178 = pneg %p31
      $region34: #{conv2d_block_forward.1} parent=31 // pred_check_branch
        %180 = sbr.rel (%p178) target = $region36
      $region35: #{conv2d_block_forward.1} parent=31 // pred_region
        %p181 = scmp.lt.s32.totalorder %s11, 1
        %s182 = scalar_select %p181, %s11, 1
        %s183 = smul.addr %s182, 32
        %s184 = smul.addr %s183, 8
        %s185 = scalar_lea.vmem %s0, %s184
      $region36: #{conv2d_block_forward.1} parent=31 // pred_fallthru
        _
    $region32: #{conv2d_block_forward.1} parent=5 // pred_fallthru
      _
    %p186 = scmp.le.s32.totalorder 1, %s11
    %p187 = scmp.lt.s32.totalorder %s11, 3
    %p188 = pnand %p186, %p187
    %p189 = pneg %p188
    // Predicated region
    $region37: #{conv2d_block_forward.1} parent=5 // pred_check
      _
    $region38: #{conv2d_block_forward.1} parent=5 // pred_check_branch
      %191 = sbr.rel (%p188) target = $region40
    $region39: #{conv2d_block_forward.1} parent=5 // pred_region
      %s192 = ssub.s32 %s11, 1
      %p193 = scmp.lt.s32.totalorder %s16, 1
      %s194 = scalar_select %p193, %s16, 1
      %s195 = smul.addr %s194, 32
      %s196 = smul.addr %s195, 8
      %s197 = scalar_lea.vmem %s0, %s196
      %p198 = pneg %p37
      %p199 = pneg %p34
      %p200 = pneg %p58
      %p201 = pneg %p55
      %p202 = pneg %p79
      %p203 = pneg %p76
      %p204 = pneg %p100
      %p205 = pneg %p97
      %p206 = pneg %p121
      %p207 = pneg %p118
      %p208 = pneg %p147
      %p209 = pneg %p144
      %p210 = scmp.lt.s32.totalorder %s16, 1
      %s211 = scalar_select %p210, %s16, 1
      %s212 = smul.addr %s211, 32
      %s213 = smul.addr %s212, 8
      %s214 = scalar_lea.vmem %s5, %s213
      %p215 = scmp.lt.s32.totalorder %s16, 1
      %s216 = scalar_select %p215, %s16, 1
      %s217 = smul.addr %s216, 32
      %s218 = smul.addr %s217, 8
      %s219 = scalar_lea.vmem %s0, %s218
      %p220 = scmp.lt.s32.totalorder %s16, 1
      %s221 = scalar_select %p220, %s16, 1
      %s222 = smul.addr %s221, 32
      %s223 = smul.addr %s222, 8
      %s224 = scalar_lea.vmem %s5, %s223
      %vm225 = vcmask 31744
      %226 = vst.msk [vmem:[#allocation2] sm:$0xff] %vm225, 0.0
      %227 = vst.msk [vmem:[#allocation2 + $0x8] sm:$0xff] %vm225, 0.0
      %vm228 = vcmask 25600
      %229 = vst.msk [vmem:[#allocation2 + $0x10] sm:$0x3] %vm228, 0.0
      %230 = vst.msk [vmem:[#allocation2 + $0x18] sm:$0xff] %vm225, 0.0
      %231 = vst.msk [vmem:[#allocation2 + $0x20] sm:$0xff] %vm225, 0.0
      %232 = vst.msk [vmem:[#allocation2 + $0x28] sm:$0x3] %vm228, 0.0
      %233 = vst.msk [vmem:[#allocation2 + $0x30] sm:$0xff] %vm225, 0.0
      %234 = vst.msk [vmem:[#allocation2 + $0x38] sm:$0xff] %vm225, 0.0
      %235 = vst.msk [vmem:[#allocation2 + $0x40] sm:$0x3] %vm228, 0.0
      %236 = vst.msk [vmem:[#allocation2 + $0x48] sm:$0xff] %vm225, 0.0
      %237 = vst.msk [vmem:[#allocation2 + $0x50] sm:$0xff] %vm225, 0.0
      %238 = vst.msk [vmem:[#allocation2 + $0x58] sm:$0x3] %vm228, 0.0
      %239 = vst.msk [vmem:[#allocation2 + $0x60] sm:$0xff] %vm225, 0.0
      %240 = vst.msk [vmem:[#allocation2 + $0x68] sm:$0xff] %vm225, 0.0
      %241 = vst.msk [vmem:[#allocation2 + $0x70] sm:$0x3] %vm228, 0.0
      %242 = vst.msk [vmem:[#allocation2 + $0x78] sm:$0xff] %vm225, 0.0
      %243 = vst.msk [vmem:[#allocation2 + $0x80] sm:$0xff] %vm225, 0.0
      %244 = vst.msk [vmem:[#allocation2 + $0x88] sm:$0x3] %vm228, 0.0
      %245 = vst.msk [vmem:[#allocation2 + $0x90] sm:$0xff] %vm225, 0.0
      %246 = vst.msk [vmem:[#allocation2 + $0x98] sm:$0xff] %vm225, 0.0
      %247 = vst.msk [vmem:[#allocation2 + $0xa0] sm:$0x3] %vm228, 0.0
      %248 = vst.msk [vmem:[#allocation2 + $0xa8] sm:$0xff] %vm225, 0.0
      %249 = vst.msk [vmem:[#allocation2 + $0xb0] sm:$0xff] %vm225, 0.0
      %250 = vst.msk [vmem:[#allocation2 + $0xb8] sm:$0x3] %vm228, 0.0
      %251 = vst.msk [vmem:[#allocation2 + $0xc0] sm:$0xff] %vm225, 0.0
      %252 = vst.msk [vmem:[#allocation2 + $0xc8] sm:$0xff] %vm225, 0.0
      %253 = vst.msk [vmem:[#allocation2 + $0xd0] sm:$0x3] %vm228, 0.0
      %254 = vst.msk [vmem:[#allocation2 + $0xd8] sm:$0xff] %vm225, 0.0
      %255 = vst.msk [vmem:[#allocation2 + $0xe0] sm:$0xff] %vm225, 0.0
      %256 = vst.msk [vmem:[#allocation2 + $0xe8] sm:$0x3] %vm228, 0.0
      %257 = vst.msk [vmem:[#allocation2 + $0xf0] sm:$0xff] %vm225, 0.0
      %258 = vst.msk [vmem:[#allocation2 + $0xf8] sm:$0xff] %vm225, 0.0
      %259 = vst.msk [vmem:[#allocation2 + $0x100] sm:$0x3] %vm228, 0.0
      %260 = vst.msk [vmem:[#allocation2 + $0x108] sm:$0xff] %vm225, 0.0
      %261 = vst.msk [vmem:[#allocation2 + $0x110] sm:$0xff] %vm225, 0.0
      %262 = vst.msk [vmem:[#allocation2 + $0x118] sm:$0x3] %vm228, 0.0
      %263 = vst.msk [vmem:[#allocation2 + $0x120] sm:$0xff] %vm225, 0.0
      %264 = vst.msk [vmem:[#allocation2 + $0x128] sm:$0xff] %vm225, 0.0
      %265 = vst.msk [vmem:[#allocation2 + $0x130] sm:$0x3] %vm228, 0.0
      %266 = vst.msk [vmem:[#allocation2 + $0x138] sm:$0xff] %vm225, 0.0
      %267 = vst.msk [vmem:[#allocation2 + $0x140] sm:$0xff] %vm225, 0.0
      %268 = vst.msk [vmem:[#allocation2 + $0x148] sm:$0x3] %vm228, 0.0
      %269 = vst.msk [vmem:[#allocation2 + $0x150] sm:$0xff] %vm225, 0.0
      %270 = vst.msk [vmem:[#allocation2 + $0x158] sm:$0xff] %vm225, 0.0
      %271 = vst.msk [vmem:[#allocation2 + $0x160] sm:$0x3] %vm228, 0.0
      %272 = vst.msk [vmem:[#allocation2 + $0x168] sm:$0xff] %vm225, 0.0
      %273 = vst.msk [vmem:[#allocation2 + $0x170] sm:$0xff] %vm225, 0.0
      %274 = vst.msk [vmem:[#allocation2 + $0x178] sm:$0x3] %vm228, 0.0
      %275 = vst.msk [vmem:[#allocation2 + $0x180] sm:$0xff] %vm225, 0.0
      %276 = vst.msk [vmem:[#allocation2 + $0x188] sm:$0xff] %vm225, 0.0
      %277 = vst.msk [vmem:[#allocation2 + $0x190] sm:$0x3] %vm228, 0.0
      %278 = vst.msk [vmem:[#allocation2 + $0x198] sm:$0xff] %vm225, 0.0
      %279 = vst.msk [vmem:[#allocation2 + $0x1a0] sm:$0xff] %vm225, 0.0
      %280 = vst.msk [vmem:[#allocation2 + $0x1a8] sm:$0x3] %vm228, 0.0
      %v281 = vld [vmem:[%s219] sm:$0xff]
      %v282 = vld [vmem:[%s219 + $0x8] sm:$0xff]
      %v283 = vld [vmem:[%s219 + $0x10] sm:$0xff]
      %v284 = vld [vmem:[%s219 + $0x18] sm:$0xff]
      %v285 = vld [vmem:[%s219 + $0x20] sm:$0xff]
      %v286 = vld [vmem:[%s219 + $0x28] sm:$0xff]
      %v287 = vld [vmem:[%s219 + $0x30] sm:$0xff]
      %v288 = vld [vmem:[%s219 + $0x38] sm:$0xff]
      %v289 = vld [vmem:[%s219 + $0x40] sm:$0xff]
      %v290 = vld [vmem:[%s219 + $0x48] sm:$0xff]
      %v291 = vld [vmem:[%s219 + $0x50] sm:$0xff]
      %v292 = vld [vmem:[%s219 + $0x58] sm:$0xff]
      %v293 = vld [vmem:[%s219 + $0x60] sm:$0xff]
      %v294 = vld [vmem:[%s219 + $0x68] sm:$0xff]
      %v295 = vld [vmem:[%s219 + $0x70] sm:$0xff]
      %v296 = vld [vmem:[%s219 + $0x78] sm:$0xff]
      %v297 = vld [vmem:[%s219 + $0x80] sm:$0xff]
      %v298 = vld [vmem:[%s219 + $0x88] sm:$0xff]
      %v299 = vld [vmem:[%s219 + $0x90] sm:$0xff]
      %v300 = vld [vmem:[%s219 + $0x98] sm:$0xff]
      %v301 = vld [vmem:[%s219 + $0xa0] sm:$0xff]
      %v302 = vld [vmem:[%s219 + $0xa8] sm:$0xff]
      %v303 = vld [vmem:[%s219 + $0xb0] sm:$0xff]
      %v304 = vld [vmem:[%s219 + $0xb8] sm:$0xff]
      %v305 = vld [vmem:[%s219 + $0xc0] sm:$0xff]
      %v306 = vld [vmem:[%s219 + $0xc8] sm:$0xff]
      %v307 = vld [vmem:[%s219 + $0xd0] sm:$0xff]
      %v308 = vld [vmem:[%s219 + $0xd8] sm:$0xff]
      %v309 = vld [vmem:[%s219 + $0xe0] sm:$0xff]
      %v310 = vld [vmem:[%s219 + $0xe8] sm:$0xff]
      %v311 = vld [vmem:[%s219 + $0xf0] sm:$0xff]
      %v312 = vld [vmem:[%s219 + $0xf8] sm:$0xff]
      %s313 = scalar_lea.vmem [#allocation2], 24
      %314 = vst.msk [vmem:[%s313 + $0x1] sm:$0xff] %vm225, %v281
      %315 = vst.msk [vmem:[%s313 + $0x9] sm:$0xff] %vm225, %v282
      %316 = vst.msk [vmem:[%s313 + $0x19] sm:$0xff] %vm225, %v283
      %317 = vst.msk [vmem:[%s313 + $0x21] sm:$0xff] %vm225, %v284
      %318 = vst.msk [vmem:[%s313 + $0x31] sm:$0xff] %vm225, %v285
      %319 = vst.msk [vmem:[%s313 + $0x39] sm:$0xff] %vm225, %v286
      %320 = vst.msk [vmem:[%s313 + $0x49] sm:$0xff] %vm225, %v287
      %321 = vst.msk [vmem:[%s313 + $0x51] sm:$0xff] %vm225, %v288
      %322 = vst.msk [vmem:[%s313 + $0x61] sm:$0xff] %vm225, %v289
      %323 = vst.msk [vmem:[%s313 + $0x69] sm:$0xff] %vm225, %v290
      %324 = vst.msk [vmem:[%s313 + $0x79] sm:$0xff] %vm225, %v291
      %325 = vst.msk [vmem:[%s313 + $0x81] sm:$0xff] %vm225, %v292
      %326 = vst.msk [vmem:[%s313 + $0x91] sm:$0xff] %vm225, %v293
      %327 = vst.msk [vmem:[%s313 + $0x99] sm:$0xff] %vm225, %v294
      %328 = vst.msk [vmem:[%s313 + $0xa9] sm:$0xff] %vm225, %v295
      %329 = vst.msk [vmem:[%s313 + $0xb1] sm:$0xff] %vm225, %v296
      %330 = vst.msk [vmem:[%s313 + $0xc1] sm:$0xff] %vm225, %v297
      %331 = vst.msk [vmem:[%s313 + $0xc9] sm:$0xff] %vm225, %v298
      %332 = vst.msk [vmem:[%s313 + $0xd9] sm:$0xff] %vm225, %v299
      %333 = vst.msk [vmem:[%s313 + $0xe1] sm:$0xff] %vm225, %v300
      %334 = vst.msk [vmem:[%s313 + $0xf1] sm:$0xff] %vm225, %v301
      %335 = vst.msk [vmem:[%s313 + $0xf9] sm:$0xff] %vm225, %v302
      %336 = vst.msk [vmem:[%s313 + $0x109] sm:$0xff] %vm225, %v303
      %337 = vst.msk [vmem:[%s313 + $0x111] sm:$0xff] %vm225, %v304
      %338 = vst.msk [vmem:[%s313 + $0x121] sm:$0xff] %vm225, %v305
      %339 = vst.msk [vmem:[%s313 + $0x129] sm:$0xff] %vm225, %v306
      %340 = vst.msk [vmem:[%s313 + $0x139] sm:$0xff] %vm225, %v307
      %341 = vst.msk [vmem:[%s313 + $0x141] sm:$0xff] %vm225, %v308
      %342 = vst.msk [vmem:[%s313 + $0x151] sm:$0xff] %vm225, %v309
      %343 = vst.msk [vmem:[%s313 + $0x159] sm:$0xff] %vm225, %v310
      %344 = vst.msk [vmem:[%s313 + $0x169] sm:$0xff] %vm225, %v311
      %345 = vst.msk [vmem:[%s313 + $0x171] sm:$0xff] %vm225, %v312
      %v346 = vld [vmem:[%s2] sm:$0x1]
      %v348 = vlaneseq
      %v349 = vshrl.u32 %v348, 7
      %v350 = vsub.s32 0, %v349
      %v351 = vrot.slane %v346, %v350
      %v353 = vld [vmem:[#allocation2] sm:$0xff]
      %v354 = vld [vmem:[#allocation2 + $0x8] sm:$0xff]
      %v355 = vld [vmem:[#allocation2 + $0x18] sm:$0xff]
      %v356 = vld [vmem:[#allocation2 + $0x20] sm:$0xff]
      %v357 = vld [vmem:[#allocation2 + $0x30] sm:$0xff]
      %v358 = vld [vmem:[#allocation2 + $0x38] sm:$0xff]
      %v359 = vld [vmem:[#allocation2 + $0x48] sm:$0xff]
      %v360 = vld [vmem:[#allocation2 + $0x50] sm:$0xff]
      %v361 = vld [vmem:[#allocation2 + $0x60] sm:$0xff]
      %v362 = vld [vmem:[#allocation2 + $0x68] sm:$0xff]
      %v363 = vld [vmem:[#allocation2 + $0x78] sm:$0xff]
      %v364 = vld [vmem:[#allocation2 + $0x80] sm:$0xff]
      %v365 = vld [vmem:[#allocation2 + $0x90] sm:$0xff]
      %v366 = vld [vmem:[#allocation2 + $0x98] sm:$0xff]
      %v367 = vld [vmem:[#allocation2 + $0xa8] sm:$0xff]
      %v368 = vld [vmem:[#allocation2 + $0xb0] sm:$0xff]
      %v369 = vld [vmem:[#allocation2 + $0xc0] sm:$0xff]
      %v370 = vld [vmem:[#allocation2 + $0xc8] sm:$0xff]
      %v371 = vld [vmem:[#allocation2 + $0xd8] sm:$0xff]
      %v372 = vld [vmem:[#allocation2 + $0xe0] sm:$0xff]
      %v373 = vld [vmem:[#allocation2 + $0xf0] sm:$0xff]
      %v374 = vld [vmem:[#allocation2 + $0xf8] sm:$0xff]
      %v375 = vld [vmem:[#allocation2 + $0x108] sm:$0xff]
      %v376 = vld [vmem:[#allocation2 + $0x110] sm:$0xff]
      %v377 = vld [vmem:[#allocation2 + $0x120] sm:$0xff]
      %v378 = vld [vmem:[#allocation2 + $0x128] sm:$0xff]
      %v379 = vld [vmem:[#allocation2 + $0x138] sm:$0xff]
      %v380 = vld [vmem:[#allocation2 + $0x140] sm:$0xff]
      %v381 = vld [vmem:[#allocation2 + $0x150] sm:$0xff]
      %v382 = vld [vmem:[#allocation2 + $0x158] sm:$0xff]
      %v383 = vld [vmem:[#allocation2 + $0x168] sm:$0xff]
      %v384 = vld [vmem:[#allocation2 + $0x170] sm:$0xff]
      %v385 = vld [vmem:[%s1] sm:$0xf]
      %v387 = vsel %vm225, %v353, 0
      %v390 = vsel %vm225, %v354, 0
      %v393 = vsel %vm225, %v355, 0
      %v396 = vsel %vm225, %v356, 0
      %v399 = vsel %vm225, %v357, 0
      %v402 = vsel %vm225, %v358, 0
      %v405 = vsel %vm225, %v359, 0
      %v408 = vsel %vm225, %v360, 0
      %v411 = vsel %vm225, %v361, 0
      %v414 = vsel %vm225, %v362, 0
      %v417 = vsel %vm225, %v363, 0
      %v420 = vsel %vm225, %v364, 0
      %v423 = vsel %vm225, %v365, 0
      %v426 = vsel %vm225, %v366, 0
      %v429 = vsel %vm225, %v367, 0
      %v432 = vsel %vm225, %v368, 0
      %v435 = vsel %vm225, %v369, 0
      %v438 = vsel %vm225, %v370, 0
      %v441 = vsel %vm225, %v371, 0
      %v444 = vsel %vm225, %v372, 0
      %v447 = vsel %vm225, %v373, 0
      %v450 = vsel %vm225, %v374, 0
      %v453 = vsel %vm225, %v375, 0
      %v456 = vsel %vm225, %v376, 0
      %v459 = vsel %vm225, %v377, 0
      %v462 = vsel %vm225, %v378, 0
      %v465 = vsel %vm225, %v379, 0
      %v468 = vsel %vm225, %v380, 0
      %v471 = vsel %vm225, %v381, 0
      %v474 = vsel %vm225, %v382, 0
      %v477 = vsel %vm225, %v383, 0
      %v480 = vsel %vm225, %v384, 0
      %vm482 = vcmask 1043456
      %v484 = vsel %vm482, %v385, 0
      %486 = vmatprep.subr.mxu0 0.0
      %487 = vmatpush1.msra.mxu0 %v484
      %488 = vmatprep.subr.mxu0 0.0
      %489 = vmatpush1.msra.mxu0 0.0
      %490 = vmatprep.subr.mxu0 0.0
      %491 = vmatpush1.msra.mxu0 0.0
      %492 = vmatprep.subr.mxu0 0.0
      %493 = vmatpush1.msra.mxu0 0.0
      %494 = vmatprep.subr.mxu0 0.0
      %495 = vmatpush1.msra.mxu0 0.0
      %496 = vmatprep.subr.mxu0 0.0
      %497 = vmatpush1.msra.mxu0 0.0
      %498 = vmatprep.subr.mxu0 0.0
      %499 = vmatpush1.msra.mxu0 0.0
      %500 = vmatprep.subr.mxu0 0.0
      %501 = vmatpush1.msra.mxu0 0.0
      %502 = vmatprep.subr.mxu0 0.0
      %503 = vmatpush1.msra.mxu0 0.0
      %504 = vmatprep.subr.mxu0 0.0
      %505 = vmatpush1.msra.mxu0 0.0
      %506 = vmatprep.subr.mxu0 0.0
      %507 = vmatpush1.msra.mxu0 0.0
      %508 = vmatprep.subr.mxu0 0.0
      %509 = vmatpush1.msra.mxu0 0.0
      %510 = vmatprep.subr.mxu0 0.0
      %511 = vmatpush1.msra.mxu0 0.0
      %512 = vmatprep.subr.mxu0 0.0
      %513 = vmatpush1.msra.mxu0 0.0
      %514 = vmatprep.subr.mxu0 0.0
      %515 = vmatpush1.msra.mxu0 0.0
      %516 = vmatprep.subr.mxu0 0.0
      %517 = vmatpush1.msra.mxu0 0.0
      %518 = vmatprep.subr.mxu0 0.0
      %519 = vmatpush1.msra.mxu0 0.0
      %520 = vmatprep.subr.mxu0 0.0
      %521 = vmatpush1.msra.mxu0 0.0
      %522 = vmatprep.subr.mxu0 0.0
      %523 = vmatpush1.msra.mxu0 0.0
      %524 = vmatprep.subr.mxu0 0.0
      %525 = vmatpush1.msra.mxu0 0.0
      %526 = vmatprep.subr.mxu0 0.0
      %527 = vmatpush1.msra.mxu0 0.0
      %528 = vmatprep.subr.mxu0 0.0
      %529 = vmatpush1.msra.mxu0 0.0
      %530 = vmatprep.subr.mxu0 0.0
      %531 = vmatpush1.msra.mxu0 0.0
      %532 = vmatprep.subr.mxu0 0.0
      %533 = vmatpush1.msra.mxu0 0.0
      %534 = vmatprep.subr.mxu0 0.0
      %535 = vmatpush1.msra.mxu0 0.0
      %536 = vmatprep.subr.mxu0 0.0
      %537 = vmatpush1.msra.mxu0 0.0
      %538 = vmatprep.subr.mxu0 0.0
      %539 = vmatpush1.msra.mxu0 0.0
      %540 = vmatprep.subr.mxu0 0.0
      %541 = vmatpush1.msra.mxu0 0.0
      %542 = vmatprep.subr.mxu0 0.0
      %543 = vmatpush1.msra.mxu0 0.0
      %544 = vmatprep.subr.mxu0 0.0
      %545 = vmatpush1.msra.mxu0 0.0
      %546 = vmatprep.subr.mxu0 0.0
      %547 = vmatpush1.msra.mxu0 0.0
      %548 = vmatprep.subr.mxu0 0.0
      %549 = vmatpush1.msra.mxu0 0.0
      %550 = vmatprep.mubr.f32.mxu0 0.0
      %551 = vmatmul.mubr.f32.gmra.mrb[0].mxu0 %v387
      %v552 = vpop.f32.mrb[0].mxu0
      %v553 = vadd.f32 0.0, %v552
      %v554 = vpop.f32.mrb[0].mxu0
      %555 = vmatprep.mubr.f32.mxu0 0.0
      %556 = vmatmul.mubr.f32.gmra.mrb[0].mxu0 %v390
      %v557 = vpop.f32.mrb[0].mxu0
      %v558 = vadd.f32 0.0, %v557
      %v559 = vpop.f32.mrb[0].mxu0
      %560 = vmatprep.mubr.f32.mxu0 0.0
      %561 = vmatmul.mubr.f32.gmra.mrb[0].mxu0 %v393
      %v562 = vpop.f32.mrb[0].mxu0
      %v563 = vadd.f32 0.0, %v562
      %v564 = vpop.f32.mrb[0].mxu0
      %565 = vmatprep.mubr.f32.mxu0 0.0
      %566 = vmatmul.mubr.f32.gmra.mrb[0].mxu0 %v396
      %v567 = vpop.f32.mrb[0].mxu0
      %v568 = vadd.f32 0.0, %v567
      %v569 = vpop.f32.mrb[0].mxu0
      %570 = vmatprep.mubr.f32.mxu0 0.0
      %571 = vmatmul.mubr.f32.gmra.mrb[0].mxu0 %v399
      %v572 = vpop.f32.mrb[0].mxu0
      %v573 = vadd.f32 0.0, %v572
      %v574 = vpop.f32.mrb[0].mxu0
      %575 = vmatprep.mubr.f32.mxu0 0.0
      %576 = vmatmul.mubr.f32.gmra.mrb[0].mxu0 %v402
      %v577 = vpop.f32.mrb[0].mxu0
      %v578 = vadd.f32 0.0, %v577
      %v579 = vpop.f32.mrb[0].mxu0
      %580 = vmatprep.mubr.f32.mxu0 0.0
      %581 = vmatmul.mubr.f32.gmra.mrb[0].mxu0 %v405
      %v582 = vpop.f32.mrb[0].mxu0
      %v583 = vadd.f32 0.0, %v582
      %v584 = vpop.f32.mrb[0].mxu0
      %585 = vmatprep.mubr.f32.mxu0 0.0
      %586 = vmatmul.mubr.f32.gmra.mrb[0].mxu0 %v408
      %v587 = vpop.f32.mrb[0].mxu0
      %v588 = vadd.f32 0.0, %v587
      %v589 = vpop.f32.mrb[0].mxu0
      %590 = vmatprep.mubr.f32.mxu0 0.0
      %591 = vmatmul.mubr.f32.gmra.mrb[0].mxu0 %v411
      %v592 = vpop.f32.mrb[0].mxu0
      %v593 = vadd.f32 0.0, %v592
      %v594 = vpop.f32.mrb[0].mxu0
      %595 = vmatprep.mubr.f32.mxu0 0.0
      %596 = vmatmul.mubr.f32.gmra.mrb[0].mxu0 %v414
      %v597 = vpop.f32.mrb[0].mxu0
      %v598 = vadd.f32 0.0, %v597
      %v599 = vpop.f32.mrb[0].mxu0
      %600 = vmatprep.mubr.f32.mxu0 0.0
      %601 = vmatmul.mubr.f32.gmra.mrb[0].mxu0 %v417
      %v602 = vpop.f32.mrb[0].mxu0
      %v603 = vadd.f32 0.0, %v602
      %v604 = vpop.f32.mrb[0].mxu0
      %605 = vmatprep.mubr.f32.mxu0 0.0
      %606 = vmatmul.mubr.f32.gmra.mrb[0].mxu0 %v420
      %v607 = vpop.f32.mrb[0].mxu0
      %v608 = vadd.f32 0.0, %v607
      %v609 = vpop.f32.mrb[0].mxu0
      %610 = vmatprep.mubr.f32.mxu0 0.0
      %611 = vmatmul.mubr.f32.gmra.mrb[0].mxu0 %v423
      %v612 = vpop.f32.mrb[0].mxu0
      %v613 = vadd.f32 0.0, %v612
      %v614 = vpop.f32.mrb[0].mxu0
      %615 = vmatprep.mubr.f32.mxu0 0.0
      %616 = vmatmul.mubr.f32.gmra.mrb[0].mxu0 %v426
      %v617 = vpop.f32.mrb[0].mxu0
      %v618 = vadd.f32 0.0, %v617
      %v619 = vpop.f32.mrb[0].mxu0
      %620 = vmatprep.mubr.f32.mxu0 0.0
      %621 = vmatmul.mubr.f32.gmra.mrb[0].mxu0 %v429
      %v622 = vpop.f32.mrb[0].mxu0
      %v623 = vadd.f32 0.0, %v622
      %v624 = vpop.f32.mrb[0].mxu0
      %625 = vmatprep.mubr.f32.mxu0 0.0
      %626 = vmatmul.mubr.f32.gmra.mrb[0].mxu0 %v432
      %v627 = vpop.f32.mrb[0].mxu0
      %v628 = vadd.f32 0.0, %v627
      %v629 = vpop.f32.mrb[0].mxu0
      %630 = vmatprep.mubr.f32.mxu0 0.0
      %631 = vmatmul.mubr.f32.gmra.mrb[0].mxu0 %v435
      %v632 = vpop.f32.mrb[0].mxu0
      %v633 = vadd.f32 0.0, %v632
      %v634 = vpop.f32.mrb[0].mxu0
      %635 = vmatprep.mubr.f32.mxu0 0.0
      %636 = vmatmul.mubr.f32.gmra.mrb[0].mxu0 %v438
      %v637 = vpop.f32.mrb[0].mxu0
      %v638 = vadd.f32 0.0, %v637
      %v639 = vpop.f32.mrb[0].mxu0
      %640 = vmatprep.mubr.f32.mxu0 0.0
      %641 = vmatmul.mubr.f32.gmra.mrb[0].mxu0 %v441
      %v642 = vpop.f32.mrb[0].mxu0
      %v643 = vadd.f32 0.0, %v642
      %v644 = vpop.f32.mrb[0].mxu0
      %645 = vmatprep.mubr.f32.mxu0 0.0
      %646 = vmatmul.mubr.f32.gmra.mrb[0].mxu0 %v444
      %v647 = vpop.f32.mrb[0].mxu0
      %v648 = vadd.f32 0.0, %v647
      %v649 = vpop.f32.mrb[0].mxu0
      %650 = vmatprep.mubr.f32.mxu0 0.0
      %651 = vmatmul.mubr.f32.gmra.mrb[0].mxu0 %v447
      %v652 = vpop.f32.mrb[0].mxu0
      %v653 = vadd.f32 0.0, %v652
      %v654 = vpop.f32.mrb[0].mxu0
      %655 = vmatprep.mubr.f32.mxu0 0.0
      %656 = vmatmul.mubr.f32.gmra.mrb[0].mxu0 %v450
      %v657 = vpop.f32.mrb[0].mxu0
      %v658 = vadd.f32 0.0, %v657
      %v659 = vpop.f32.mrb[0].mxu0
      %660 = vmatprep.mubr.f32.mxu0 0.0
      %661 = vmatmul.mubr.f32.gmra.mrb[0].mxu0 %v453
      %v662 = vpop.f32.mrb[0].mxu0
      %v663 = vadd.f32 0.0, %v662
      %v664 = vpop.f32.mrb[0].mxu0
      %665 = vmatprep.mubr.f32.mxu0 0.0
      %666 = vmatmul.mubr.f32.gmra.mrb[0].mxu0 %v456
      %v667 = vpop.f32.mrb[0].mxu0
      %v668 = vadd.f32 0.0, %v667
      %v669 = vpop.f32.mrb[0].mxu0
      %670 = vmatprep.mubr.f32.mxu0 0.0
      %671 = vmatmul.mubr.f32.gmra.mrb[0].mxu0 %v459
      %v672 = vpop.f32.mrb[0].mxu0
      %v673 = vadd.f32 0.0, %v672
      %v674 = vpop.f32.mrb[0].mxu0
      %675 = vmatprep.mubr.f32.mxu0 0.0
      %676 = vmatmul.mubr.f32.gmra.mrb[0].mxu0 %v462
      %v677 = vpop.f32.mrb[0].mxu0
      %v678 = vadd.f32 0.0, %v677
      %v679 = vpop.f32.mrb[0].mxu0
      %680 = vmatprep.mubr.f32.mxu0 0.0
      %681 = vmatmul.mubr.f32.gmra.mrb[0].mxu0 %v465
      %v682 = vpop.f32.mrb[0].mxu0
      %v683 = vadd.f32 0.0, %v682
      %v684 = vpop.f32.mrb[0].mxu0
      %685 = vmatprep.mubr.f32.mxu0 0.0
      %686 = vmatmul.mubr.f32.gmra.mrb[0].mxu0 %v468
      %v687 = vpop.f32.mrb[0].mxu0
      %v688 = vadd.f32 0.0, %v687
      %v689 = vpop.f32.mrb[0].mxu0
      %690 = vmatprep.mubr.f32.mxu0 0.0
      %691 = vmatmul.mubr.f32.gmra.mrb[0].mxu0 %v471
      %v692 = vpop.f32.mrb[0].mxu0
      %v693 = vadd.f32 0.0, %v692
      %v694 = vpop.f32.mrb[0].mxu0
      %695 = vmatprep.mubr.f32.mxu0 0.0
      %696 = vmatmul.mubr.f32.gmra.mrb[0].mxu0 %v474
      %v697 = vpop.f32.mrb[0].mxu0
      %v698 = vadd.f32 0.0, %v697
      %v699 = vpop.f32.mrb[0].mxu0
      %700 = vmatprep.mubr.f32.mxu0 0.0
      %701 = vmatmul.mubr.f32.gmra.mrb[0].mxu0 %v477
      %v702 = vpop.f32.mrb[0].mxu0
      %v703 = vadd.f32 0.0, %v702
      %v704 = vpop.f32.mrb[0].mxu0
      %705 = vmatprep.mubr.f32.mxu0 0.0
      %706 = vmatmul.mubr.f32.gmra.mrb[0].mxu0 %v480
      %v707 = vpop.f32.mrb[0].mxu0
      %v708 = vadd.f32 0.0, %v707
      %v709 = vpop.f32.mrb[0].mxu0
      %710 = vdwg.mxu0
      %v711 = vadd.f32 %v351, %v553
      %v712 = vadd.f32 %v351, %v558
      %v713 = vadd.f32 %v351, %v563
      %v714 = vadd.f32 %v351, %v568
      %v715 = vadd.f32 %v351, %v573
      %v716 = vadd.f32 %v351, %v578
      %v717 = vadd.f32 %v351, %v583
      %v718 = vadd.f32 %v351, %v588
      %v719 = vadd.f32 %v351, %v593
      %v720 = vadd.f32 %v351, %v598
      %v721 = vadd.f32 %v351, %v603
      %v722 = vadd.f32 %v351, %v608
      %v723 = vadd.f32 %v351, %v613
      %v724 = vadd.f32 %v351, %v618
      %v725 = vadd.f32 %v351, %v623
      %v726 = vadd.f32 %v351, %v628
      %v727 = vadd.f32 %v351, %v633
      %v728 = vadd.f32 %v351, %v638
      %v729 = vadd.f32 %v351, %v643
      %v730 = vadd.f32 %v351, %v648
      %v731 = vadd.f32 %v351, %v653
      %v732 = vadd.f32 %v351, %v658
      %v733 = vadd.f32 %v351, %v663
      %v734 = vadd.f32 %v351, %v668
      %v735 = vadd.f32 %v351, %v673
      %v736 = vadd.f32 %v351, %v678
      %v737 = vadd.f32 %v351, %v683
      %v738 = vadd.f32 %v351, %v688
      %v739 = vadd.f32 %v351, %v693
      %v740 = vadd.f32 %v351, %v698
      %v741 = vadd.f32 %v351, %v703
      %v742 = vadd.f32 %v351, %v708
      %v743 = vld [vmem:[#allocation2 + $0x1] sm:$0xff]
      %v744 = vld [vmem:[#allocation2 + $0x9] sm:$0xff]
      %v745 = vld [vmem:[#allocation2 + $0x19] sm:$0xff]
      %v746 = vld [vmem:[#allocation2 + $0x21] sm:$0xff]
      %v747 = vld [vmem:[#allocation2 + $0x31] sm:$0xff]
      %v748 = vld [vmem:[#allocation2 + $0x39] sm:$0xff]
      %v749 = vld [vmem:[#allocation2 + $0x49] sm:$0xff]
      %v750 = vld [vmem:[#allocation2 + $0x51] sm:$0xff]
      %v751 = vld [vmem:[#allocation2 + $0x61] sm:$0xff]
      %v752 = vld [vmem:[#allocation2 + $0x69] sm:$0xff]
      %v753 = vld [vmem:[#allocation2 + $0x79] sm:$0xff]
      %v754 = vld [vmem:[#allocation2 + $0x81] sm:$0xff]
      %v755 = vld [vmem:[#allocation2 + $0x91] sm:$0xff]
      %v756 = vld [vmem:[#allocation2 + $0x99] sm:$0xff]
      %v757 = vld [vmem:[#allocation2 + $0xa9] sm:$0xff]
      %v758 = vld [vmem:[#allocation2 + $0xb1] sm:$0xff]
      %v759 = vld [vmem:[#allocation2 + $0xc1] sm:$0xff]
      %v760 = vld [vmem:[#allocation2 + $0xc9] sm:$0xff]
      %v761 = vld [vmem:[#allocation2 + $0xd9] sm:$0xff]
      %v762 = vld [vmem:[#allocation2 + $0xe1] sm:$0xff]
      %v763 = vld [vmem:[#allocation2 + $0xf1] sm:$0xff]
      %v764 = vld [vmem:[#allocation2 + $0xf9] sm:$0xff]
      %v765 = vld [vmem:[#allocation2 + $0x109] sm:$0xff]
      %v766 = vld [vmem:[#allocation2 + $0x111] sm:$0xff]
      %v767 = vld [vmem:[#allocation2 + $0x121] sm:$0xff]
      %v768 = vld [vmem:[#allocation2 + $0x129] sm:$0xff]
      %v769 = vld [vmem:[#allocation2 + $0x139] sm:$0xff]
      %v770 = vld [vmem:[#allocation2 + $0x141] sm:$0xff]
      %v771 = vld [vmem:[#allocation2 + $0x151] sm:$0xff]
      %v772 = vld [vmem:[#allocation2 + $0x159] sm:$0xff]
      %v773 = vld [vmem:[#allocation2 + $0x169] sm:$0xff]
      %v774 = vld [vmem:[#allocation2 + $0x171] sm:$0xff]
      %s775 = scalar_lea.vmem %s1, 4
      %v776 = vld [vmem:[%s775] sm:$0xf]
      %v778 = vsel %vm225, %v743, 0
      %v781 = vsel %vm225, %v744, 0
      %v784 = vsel %vm225, %v745, 0
      %v787 = vsel %vm225, %v746, 0
      %v790 = vsel %vm225, %v747, 0
      %v793 = vsel %vm225, %v748, 0
      %v796 = vsel %vm225, %v749, 0
      %v799 = vsel %vm225, %v750, 0
      %v802 = vsel %vm225, %v751, 0
      %v805 = vsel %vm225, %v752, 0
      %v808 = vsel %vm225, %v753, 0
      %v811 = vsel %vm225, %v754, 0
      %v814 = vsel %vm225, %v755, 0
      %v817 = vsel %vm225, %v756, 0
      %v820 = vsel %vm225, %v757, 0
      %v823 = vsel %vm225, %v758, 0
      %v826 = vsel %vm225, %v759, 0
      %v829 = vsel %vm225, %v760, 0
      %v832 = vsel %vm225, %v761, 0
      %v835 = vsel %vm225, %v762, 0
      %v838 = vsel %vm225, %v763, 0
      %v841 = vsel %vm225, %v764, 0
      %v844 = vsel %vm225, %v765, 0
      %v847 = vsel %vm225, %v766, 0
      %v850 = vsel %vm225, %v767, 0
      %v853 = vsel %vm225, %v768, 0
      %v856 = vsel %vm225, %v769, 0
      %v859 = vsel %vm225, %v770, 0
      %v862 = vsel %vm225, %v771, 0
      %v865 = vsel %vm225, %v772, 0
      %v868 = vsel %vm225, %v773, 0
      %v871 = vsel %vm225, %v774, 0
      %v874 = vsel %vm482, %v776, 0
      %876 = vmatprep.subr.mxu0 0.0
      %877 = vmatpush1.msra.mxu0 %v874
      %878 = vmatprep.subr.mxu0 0.0
      %879 = vmatpush1.msra.mxu0 0.0
      %880 = vmatprep.subr.mxu0 0.0
      %881 = vmatpush1.msra.mxu0 0.0
      %882 = vmatprep.subr.mxu0 0.0
      %883 = vmatpush1.msra.mxu0 0.0
      %884 = vmatprep.subr.mxu0 0.0
      %885 = vmatpush1.msra.mxu0 0.0
      %886 = vmatprep.subr.mxu0 0.0
      %887 = vmatpush1.msra.mxu0 0.0
      %888 = vmatprep.subr.mxu0 0.0
      %889 = vmatpush1.msra.mxu0 0.0
      %890 = vmatprep.subr.mxu0 0.0
      %891 = vmatpush1.msra.mxu0 0.0
      %892 = vmatprep.subr.mxu0 0.0
      %893 = vmatpush1.msra.mxu0 0.0
      %894 = vmatprep.subr.mxu0 0.0
      %895 = vmatpush1.msra.mxu0 0.0
      %896 = vmatprep.subr.mxu0 0.0
      %897 = vmatpush1.msra.mxu0 0.0
      %898 = vmatprep.subr.mxu0 0.0
      %899 = vmatpush1.msra.mxu0 0.0
      %900 = vmatprep.subr.mxu0 0.0
      %901 = vmatpush1.msra.mxu0 0.0
      %902 = vmatprep.subr.mxu0 0.0
      %903 = vmatpush1.msra.mxu0 0.0
      %904 = vmatprep.subr.mxu0 0.0
      %905 = vmatpush1.msra.mxu0 0.0
      %906 = vmatprep.subr.mxu0 0.0
      %907 = vmatpush1.msra.mxu0 0.0
      %908 = vmatprep.subr.mxu0 0.0
      %909 = vmatpush1.msra.mxu0 0.0
      %910 = vmatprep.subr.mxu0 0.0
      %911 = vmatpush1.msra.mxu0 0.0
      %912 = vmatprep.subr.mxu0 0.0
      %913 = vmatpush1.msra.mxu0 0.0
      %914 = vmatprep.subr.mxu0 0.0
      %915 = vmatpush1.msra.mxu0 0.0
      %916 = vmatprep.subr.mxu0 0.0
      %917 = vmatpush1.msra.mxu0 0.0
      %918 = vmatprep.subr.mxu0 0.0
      %919 = vmatpush1.msra.mxu0 0.0
      %920 = vmatprep.subr.mxu0 0.0
      %921 = vmatpush1.msra.mxu0 0.0
      %922 = vmatprep.subr.mxu0 0.0
      %923 = vmatpush1.msra.mxu0 0.0
      %924 = vmatprep.subr.mxu0 0.0
      %925 = vmatpush1.msra.mxu0 0.0
      %926 = vmatprep.subr.mxu0 0.0
      %927 = vmatpush1.msra.mxu0 0.0
      %928 = vmatprep.subr.mxu0 0.0
      %929 = vmatpush1.msra.mxu0 0.0
      %930 = vmatprep.subr.mxu0 0.0
      %931 = vmatpush1.msra.mxu0 0.0
      %932 = vmatprep.subr.mxu0 0.0
      %933 = vmatpush1.msra.mxu0 0.0
      %934 = vmatprep.subr.mxu0 0.0
      %935 = vmatpush1.msra.mxu0 0.0
      %936 = vmatprep.subr.mxu0 0.0
      %937 = vmatpush1.msra.mxu0 0.0
      %938 = vmatprep.subr.mxu0 0.0
      %939 = vmatpush1.msra.mxu0 0.0
      %940 = vmatprep.mubr.f32.mxu0 0.0
      %941 = vmatmul.mubr.f32.gmra.mrb[0].mxu0 %v778
      %v942 = vpop.f32.mrb[0].mxu0
      %v943 = vadd.f32 0.0, %v942
      %v944 = vpop.f32.mrb[0].mxu0
      %945 = vmatprep.mubr.f32.mxu0 0.0
      %946 = vmatmul.mubr.f32.gmra.mrb[0].mxu0 %v781
      %v947 = vpop.f32.mrb[0].mxu0
      %v948 = vadd.f32 0.0, %v947
      %v949 = vpop.f32.mrb[0].mxu0
      %950 = vmatprep.mubr.f32.mxu0 0.0
      %951 = vmatmul.mubr.f32.gmra.mrb[0].mxu0 %v784
      %v952 = vpop.f32.mrb[0].mxu0
      %v953 = vadd.f32 0.0, %v952
      %v954 = vpop.f32.mrb[0].mxu0
      %955 = vmatprep.mubr.f32.mxu0 0.0
      %956 = vmatmul.mubr.f32.gmra.mrb[0].mxu0 %v787
      %v957 = vpop.f32.mrb[0].mxu0
      %v958 = vadd.f32 0.0, %v957
      %v959 = vpop.f32.mrb[0].mxu0
      %960 = vmatprep.mubr.f32.mxu0 0.0
      %961 = vmatmul.mubr.f32.gmra.mrb[0].mxu0 %v790
      %v962 = vpop.f32.mrb[0].mxu0
      %v963 = vadd.f32 0.0, %v962
      %v964 = vpop.f32.mrb[0].mxu0
      %965 = vmatprep.mubr.f32.mxu0 0.0
      %966 = vmatmul.mubr.f32.gmra.mrb[0].mxu0 %v793
      %v967 = vpop.f32.mrb[0].mxu0
      %v968 = vadd.f32 0.0, %v967
      %v969 = vpop.f32.mrb[0].mxu0
      %970 = vmatprep.mubr.f32.mxu0 0.0
      %971 = vmatmul.mubr.f32.gmra.mrb[0].mxu0 %v796
      %v972 = vpop.f32.mrb[0].mxu0
      %v973 = vadd.f32 0.0, %v972
      %v974 = vpop.f32.mrb[0].mxu0
      %975 = vmatprep.mubr.f32.mxu0 0.0
      %976 = vmatmul.mubr.f32.gmra.mrb[0].mxu0 %v799
      %v977 = vpop.f32.mrb[0].mxu0
      %v978 = vadd.f32 0.0, %v977
      %v979 = vpop.f32.mrb[0].mxu0
      %980 = vmatprep.mubr.f32.mxu0 0.0
      %981 = vmatmul.mubr.f32.gmra.mrb[0].mxu0 %v802
      %v982 = vpop.f32.mrb[0].mxu0
      %v983 = vadd.f32 0.0, %v982
      %v984 = vpop.f32.mrb[0].mxu0
      %985 = vmatprep.mubr.f32.mxu0 0.0
      %986 = vmatmul.mubr.f32.gmra.mrb[0].mxu0 %v805
      %v987 = vpop.f32.mrb[0].mxu0
      %v988 = vadd.f32 0.0, %v987
      %v989 = vpop.f32.mrb[0].mxu0
      %990 = vmatprep.mubr.f32.mxu0 0.0
      %991 = vmatmul.mubr.f32.gmra.mrb[0].mxu0 %v808
      %v992 = vpop.f32.mrb[0].mxu0
      %v993 = vadd.f32 0.0, %v992
      %v994 = vpop.f32.mrb[0].mxu0
      %995 = vmatprep.mubr.f32.mxu0 0.0
      %996 = vmatmul.mubr.f32.gmra.mrb[0].mxu0 %v811
      %v997 = vpop.f32.mrb[0].mxu0
      %v998 = vadd.f32 0.0, %v997
      %v999 = vpop.f32.mrb[0].mxu0
      %1000 = vmatprep.mubr.f32.mxu0 0.0
      %1001 = vmatmul.mubr.f32.gmra.mrb[0].mxu0 %v814
      %v1002 = vpop.f32.mrb[0].mxu0
      %v1003 = vadd.f32 0.0, %v1002
      %v1004 = vpop.f32.mrb[0].mxu0
      %1005 = vmatprep.mubr.f32.mxu0 0.0
      %1006 = vmatmul.mubr.f32.gmra.mrb[0].mxu0 %v817
      %v1007 = vpop.f32.mrb[0].mxu0
      %v1008 = vadd.f32 0.0, %v1007
      %v1009 = vpop.f32.mrb[0].mxu0
      %1010 = vmatprep.mubr.f32.mxu0 0.0
      %1011 = vmatmul.mubr.f32.gmra.mrb[0].mxu0 %v820
      %v1012 = vpop.f32.mrb[0].mxu0
      %v1013 = vadd.f32 0.0, %v1012
      %v1014 = vpop.f32.mrb[0].mxu0
      %1015 = vmatprep.mubr.f32.mxu0 0.0
      %1016 = vmatmul.mubr.f32.gmra.mrb[0].mxu0 %v823
      %v1017 = vpop.f32.mrb[0].mxu0
      %v1018 = vadd.f32 0.0, %v1017
      %v1019 = vpop.f32.mrb[0].mxu0
      %1020 = vmatprep.mubr.f32.mxu0 0.0
      %1021 = vmatmul.mubr.f32.gmra.mrb[0].mxu0 %v826
      %v1022 = vpop.f32.mrb[0].mxu0
      %v1023 = vadd.f32 0.0, %v1022
      %v1024 = vpop.f32.mrb[0].mxu0
      %1025 = vmatprep.mubr.f32.mxu0 0.0
      %1026 = vmatmul.mubr.f32.gmra.mrb[0].mxu0 %v829
      %v1027 = vpop.f32.mrb[0].mxu0
      %v1028 = vadd.f32 0.0, %v1027
      %v1029 = vpop.f32.mrb[0].mxu0
      %1030 = vmatprep.mubr.f32.mxu0 0.0
      %1031 = vmatmul.mubr.f32.gmra.mrb[0].mxu0 %v832
      %v1032 = vpop.f32.mrb[0].mxu0
      %v1033 = vadd.f32 0.0, %v1032
      %v1034 = vpop.f32.mrb[0].mxu0
      %1035 = vmatprep.mubr.f32.mxu0 0.0
      %1036 = vmatmul.mubr.f32.gmra.mrb[0].mxu0 %v835
      %v1037 = vpop.f32.mrb[0].mxu0
      %v1038 = vadd.f32 0.0, %v1037
      %v1039 = vpop.f32.mrb[0].mxu0
      %1040 = vmatprep.mubr.f32.mxu0 0.0
      %1041 = vmatmul.mubr.f32.gmra.mrb[0].mxu0 %v838
      %v1042 = vpop.f32.mrb[0].mxu0
      %v1043 = vadd.f32 0.0, %v1042
      %v1044 = vpop.f32.mrb[0].mxu0
      %1045 = vmatprep.mubr.f32.mxu0 0.0
      %1046 = vmatmul.mubr.f32.gmra.mrb[0].mxu0 %v841
      %v1047 = vpop.f32.mrb[0].mxu0
      %v1048 = vadd.f32 0.0, %v1047
      %v1049 = vpop.f32.mrb[0].mxu0
      %1050 = vmatprep.mubr.f32.mxu0 0.0
      %1051 = vmatmul.mubr.f32.gmra.mrb[0].mxu0 %v844
      %v1052 = vpop.f32.mrb[0].mxu0
      %v1053 = vadd.f32 0.0, %v1052
      %v1054 = vpop.f32.mrb[0].mxu0
      %1055 = vmatprep.mubr.f32.mxu0 0.0
      %1056 = vmatmul.mubr.f32.gmra.mrb[0].mxu0 %v847
      %v1057 = vpop.f32.mrb[0].mxu0
      %v1058 = vadd.f32 0.0, %v1057
      %v1059 = vpop.f32.mrb[0].mxu0
      %1060 = vmatprep.mubr.f32.mxu0 0.0
      %1061 = vmatmul.mubr.f32.gmra.mrb[0].mxu0 %v850
      %v1062 = vpop.f32.mrb[0].mxu0
      %v1063 = vadd.f32 0.0, %v1062
      %v1064 = vpop.f32.mrb[0].mxu0
      %1065 = vmatprep.mubr.f32.mxu0 0.0
      %1066 = vmatmul.mubr.f32.gmra.mrb[0].mxu0 %v853
      %v1067 = vpop.f32.mrb[0].mxu0
      %v1068 = vadd.f32 0.0, %v1067
      %v1069 = vpop.f32.mrb[0].mxu0
      %1070 = vmatprep.mubr.f32.mxu0 0.0
      %1071 = vmatmul.mubr.f32.gmra.mrb[0].mxu0 %v856
      %v1072 = vpop.f32.mrb[0].mxu0
      %v1073 = vadd.f32 0.0, %v1072
      %v1074 = vpop.f32.mrb[0].mxu0
      %1075 = vmatprep.mubr.f32.mxu0 0.0
      %1076 = vmatmul.mubr.f32.gmra.mrb[0].mxu0 %v859
      %v1077 = vpop.f32.mrb[0].mxu0
      %v1078 = vadd.f32 0.0, %v1077
      %v1079 = vpop.f32.mrb[0].mxu0
      %1080 = vmatprep.mubr.f32.mxu0 0.0
      %1081 = vmatmul.mubr.f32.gmra.mrb[0].mxu0 %v862
      %v1082 = vpop.f32.mrb[0].mxu0
      %v1083 = vadd.f32 0.0, %v1082
      %v1084 = vpop.f32.mrb[0].mxu0
      %1085 = vmatprep.mubr.f32.mxu0 0.0
      %1086 = vmatmul.mubr.f32.gmra.mrb[0].mxu0 %v865
      %v1087 = vpop.f32.mrb[0].mxu0
      %v1088 = vadd.f32 0.0, %v1087
      %v1089 = vpop.f32.mrb[0].mxu0
      %1090 = vmatprep.mubr.f32.mxu0 0.0
      %1091 = vmatmul.mubr.f32.gmra.mrb[0].mxu0 %v868
      %v1092 = vpop.f32.mrb[0].mxu0
      %v1093 = vadd.f32 0.0, %v1092
      %v1094 = vpop.f32.mrb[0].mxu0
      %1095 = vmatprep.mubr.f32.mxu0 0.0
      %1096 = vmatmul.mubr.f32.gmra.mrb[0].mxu0 %v871
      %v1097 = vpop.f32.mrb[0].mxu0
      %v1098 = vadd.f32 0.0, %v1097
      %v1099 = vpop.f32.mrb[0].mxu0
      %1100 = vdwg.mxu0
      %v1101 = vadd.f32 %v711, %v943
      %v1102 = vadd.f32 %v712, %v948
      %v1103 = vadd.f32 %v713, %v953
      %v1104 = vadd.f32 %v714, %v958
      %v1105 = vadd.f32 %v715, %v963
      %v1106 = vadd.f32 %v716, %v968
      %v1107 = vadd.f32 %v717, %v973
      %v1108 = vadd.f32 %v718, %v978
      %v1109 = vadd.f32 %v719, %v983
      %v1110 = vadd.f32 %v720, %v988
      %v1111 = vadd.f32 %v721, %v993
      %v1112 = vadd.f32 %v722, %v998
      %v1113 = vadd.f32 %v723, %v1003
      %v1114 = vadd.f32 %v724, %v1008
      %v1115 = vadd.f32 %v725, %v1013
      %v1116 = vadd.f32 %v726, %v1018
      %v1117 = vadd.f32 %v727, %v1023
      %v1118 = vadd.f32 %v728, %v1028
      %v1119 = vadd.f32 %v729, %v1033
      %v1120 = vadd.f32 %v730, %v1038
      %v1121 = vadd.f32 %v731, %v1043
      %v1122 = vadd.f32 %v732, %v1048
      %v1123 = vadd.f32 %v733, %v1053
      %v1124 = vadd.f32 %v734, %v1058
      %v1125 = vadd.f32 %v735, %v1063
      %v1126 = vadd.f32 %v736, %v1068
      %v1127 = vadd.f32 %v737, %v1073
      %v1128 = vadd.f32 %v738, %v1078
      %v1129 = vadd.f32 %v739, %v1083
      %v1130 = vadd.f32 %v740, %v1088
      %v1131 = vadd.f32 %v741, %v1093
      %v1132 = vadd.f32 %v742, %v1098
      %v1133 = vld [vmem:[#allocation2 + $0x2] sm:$0xff]
      %v1134 = vld [vmem:[#allocation2 + $0xa] sm:$0xff]
      %v1135 = vld [vmem:[#allocation2 + $0x1a] sm:$0xff]
      %v1136 = vld [vmem:[#allocation2 + $0x22] sm:$0xff]
      %v1137 = vld [vmem:[#allocation2 + $0x32] sm:$0xff]
      %v1138 = vld [vmem:[#allocation2 + $0x3a] sm:$0xff]
      %v1139 = vld [vmem:[#allocation2 + $0x4a] sm:$0xff]
      %v1140 = vld [vmem:[#allocation2 + $0x52] sm:$0xff]
      %v1141 = vld [vmem:[#allocation2 + $0x62] sm:$0xff]
      %v1142 = vld [vmem:[#allocation2 + $0x6a] sm:$0xff]
      %v1143 = vld [vmem:[#allocation2 + $0x7a] sm:$0xff]
      %v1144 = vld [vmem:[#allocation2 + $0x82] sm:$0xff]
      %v1145 = vld [vmem:[#allocation2 + $0x92] sm:$0xff]
      %v1146 = vld [vmem:[#allocation2 + $0x9a] sm:$0xff]
      %v1147 = vld [vmem:[#allocation2 + $0xaa] sm:$0xff]
      %v1148 = vld [vmem:[#allocation2 + $0xb2] sm:$0xff]
      %v1149 = vld [vmem:[#allocation2 + $0xc2] sm:$0xff]
      %v1150 = vld [vmem:[#allocation2 + $0xca] sm:$0xff]
      %v1151 = vld [vmem:[#allocation2 + $0xda] sm:$0xff]
      %v1152 = vld [vmem:[#allocation2 + $0xe2] sm:$0xff]
      %v1153 = vld [vmem:[#allocation2 + $0xf2] sm:$0xff]
      %v1154 = vld [vmem:[#allocation2 + $0xfa] sm:$0xff]
      %v1155 = vld [vmem:[#allocation2 + $0x10a] sm:$0xff]
      %v1156 = vld [vmem:[#allocation2 + $0x112] sm:$0xff]
      %v1157 = vld [vmem:[#allocation2 + $0x122] sm:$0xff]
      %v1158 = vld [vmem:[#allocation2 + $0x12a] sm:$0xff]
      %v1159 = vld [vmem:[#allocation2 + $0x13a] sm:$0xff]
      %v1160 = vld [vmem:[#allocation2 + $0x142] sm:$0xff]
      %v1161 = vld [vmem:[#allocation2 + $0x152] sm:$0xff]
      %v1162 = vld [vmem:[#allocation2 + $0x15a] sm:$0xff]
      %v1163 = vld [vmem:[#allocation2 + $0x16a] sm:$0xff]
      %v1164 = vld [vmem:[#allocation2 + $0x172] sm:$0xff]
      %s1165 = scalar_lea.vmem %s1, 8
      %v1166 = vld [vmem:[%s1165] sm:$0xf]
      %v1168 = vsel %vm225, %v1133, 0
      %v1171 = vsel %vm225, %v1134, 0
      %v1174 = vsel %vm225, %v1135, 0
      %v1177 = vsel %vm225, %v1136, 0
      %v1180 = vsel %vm225, %v1137, 0
      %v1183 = vsel %vm225, %v1138, 0
      %v1186 = vsel %vm225, %v1139, 0
      %v1189 = vsel %vm225, %v1140, 0
      %v1192 = vsel %vm225, %v1141, 0
      %v1195 = vsel %vm225, %v1142, 0
      %v1198 = vsel %vm225, %v1143, 0
      %v1201 = vsel %vm225, %v1144, 0
      %v1204 = vsel %vm225, %v1145, 0
      %v1207 = vsel %vm225, %v1146, 0
      %v1210 = vsel %vm225, %v1147, 0
      %v1213 = vsel %vm225, %v1148, 0
      %v1216 = vsel %vm225, %v1149, 0
      %v1219 = vsel %vm225, %v1150, 0
      %v1222 = vsel %vm225, %v1151, 0
      %v1225 = vsel %vm225, %v1152, 0
      %v1228 = vsel %vm225, %v1153, 0
      %v1231 = vsel %vm225, %v1154, 0
      %v1234 = vsel %vm225, %v1155, 0
      %v1237 = vsel %vm225, %v1156, 0
      %v1240 = vsel %vm225, %v1157, 0
      %v1243 = vsel %vm225, %v1158, 0
      %v1246 = vsel %vm225, %v1159, 0
      %v1249 = vsel %vm225, %v1160, 0
      %v1252 = vsel %vm225, %v1161, 0
      %v1255 = vsel %vm225, %v1162, 0
      %v1258 = vsel %vm225, %v1163, 0
      %v1261 = vsel %vm225, %v1164, 0
      %v1264 = vsel %vm482, %v1166, 0
      %1266 = vmatprep.subr.mxu0 0.0
      %1267 = vmatpush1.msra.mxu0 %v1264
      %1268 = vmatprep.subr.mxu0 0.0
      %1269 = vmatpush1.msra.mxu0 0.0
      %1270 = vmatprep.subr.mxu0 0.0
      %1271 = vmatpush1.msra.mxu0 0.0
      %1272 = vmatprep.subr.mxu0 0.0
      %1273 = vmatpush1.msra.mxu0 0.0
      %1274 = vmatprep.subr.mxu0 0.0
      %1275 = vmatpush1.msra.mxu0 0.0
      %1276 = vmatprep.subr.mxu0 0.0
      %1277 = vmatpush1.msra.mxu0 0.0
      %1278 = vmatprep.subr.mxu0 0.0
      %1279 = vmatpush1.msra.mxu0 0.0
      %1280 = vmatprep.subr.mxu0 0.0
      %1281 = vmatpush1.msra.mxu0 0.0
      %1282 = vmatprep.subr.mxu0 0.0
      %1283 = vmatpush1.msra.mxu0 0.0
      %1284 = vmatprep.subr.mxu0 0.0
      %1285 = vmatpush1.msra.mxu0 0.0
      %1286 = vmatprep.subr.mxu0 0.0
      %1287 = vmatpush1.msra.mxu0 0.0
      %1288 = vmatprep.subr.mxu0 0.0
      %1289 = vmatpush1.msra.mxu0 0.0
      %1290 = vmatprep.subr.mxu0 0.0
      %1291 = vmatpush1.msra.mxu0 0.0
      %1292 = vmatprep.subr.mxu0 0.0
      %1293 = vmatpush1.msra.mxu0 0.0
      %1294 = vmatprep.subr.mxu0 0.0
      %1295 = vmatpush1.msra.mxu0 0.0
      %1296 = vmatprep.subr.mxu0 0.0
      %1297 = vmatpush1.msra.mxu0 0.0
      %1298 = vmatprep.subr.mxu0 0.0
      %1299 = vmatpush1.msra.mxu0 0.0
      %1300 = vmatprep.subr.mxu0 0.0
      %1301 = vmatpush1.msra.mxu0 0.0
      %1302 = vmatprep.subr.mxu0 0.0
      %1303 = vmatpush1.msra.mxu0 0.0
      %1304 = vmatprep.subr.mxu0 0.0
      %1305 = vmatpush1.msra.mxu0 0.0
      %1306 = vmatprep.subr.mxu0 0.0
      %1307 = vmatpush1.msra.mxu0 0.0
      %1308 = vmatprep.subr.mxu0 0.0
      %1309 = vmatpush1.msra.mxu0 0.0
      %1310 = vmatprep.subr.mxu0 0.0
      %1311 = vmatpush1.msra.mxu0 0.0
      %1312 = vmatprep.subr.mxu0 0.0
      %1313 = vmatpush1.msra.mxu0 0.0
      %1314 = vmatprep.subr.mxu0 0.0
      %1315 = vmatpush1.msra.mxu0 0.0
      %1316 = vmatprep.subr.mxu0 0.0
      %1317 = vmatpush1.msra.mxu0 0.0
      %1318 = vmatprep.subr.mxu0 0.0
      %1319 = vmatpush1.msra.mxu0 0.0
      %1320 = vmatprep.subr.mxu0 0.0
      %1321 = vmatpush1.msra.mxu0 0.0
      %1322 = vmatprep.subr.mxu0 0.0
      %1323 = vmatpush1.msra.mxu0 0.0
      %1324 = vmatprep.subr.mxu0 0.0
      %1325 = vmatpush1.msra.mxu0 0.0
      %1326 = vmatprep.subr.mxu0 0.0
      %1327 = vmatpush1.msra.mxu0 0.0
      %1328 = vmatprep.subr.mxu0 0.0
      %1329 = vmatpush1.msra.mxu0 0.0
      %1330 = vmatprep.mubr.f32.mxu0 0.0
      %1331 = vmatmul.mubr.f32.gmra.mrb[0].mxu0 %v1168
      %v1332 = vpop.f32.mrb[0].mxu0
      %v1333 = vadd.f32 0.0, %v1332
      %v1334 = vpop.f32.mrb[0].mxu0
      %1335 = vmatprep.mubr.f32.mxu0 0.0
      %1336 = vmatmul.mubr.f32.gmra.mrb[0].mxu0 %v1171
      %v1337 = vpop.f32.mrb[0].mxu0
      %v1338 = vadd.f32 0.0, %v1337
      %v1339 = vpop.f32.mrb[0].mxu0
      %1340 = vmatprep.mubr.f32.mxu0 0.0
      %1341 = vmatmul.mubr.f32.gmra.mrb[0].mxu0 %v1174
      %v1342 = vpop.f32.mrb[0].mxu0
      %v1343 = vadd.f32 0.0, %v1342
      %v1344 = vpop.f32.mrb[0].mxu0
      %1345 = vmatprep.mubr.f32.mxu0 0.0
      %1346 = vmatmul.mubr.f32.gmra.mrb[0].mxu0 %v1177
      %v1347 = vpop.f32.mrb[0].mxu0
      %v1348 = vadd.f32 0.0, %v1347
      %v1349 = vpop.f32.mrb[0].mxu0
      %1350 = vmatprep.mubr.f32.mxu0 0.0
      %1351 = vmatmul.mubr.f32.gmra.mrb[0].mxu0 %v1180
      %v1352 = vpop.f32.mrb[0].mxu0
      %v1353 = vadd.f32 0.0, %v1352
      %v1354 = vpop.f32.mrb[0].mxu0
      %1355 = vmatprep.mubr.f32.mxu0 0.0
      %1356 = vmatmul.mubr.f32.gmra.mrb[0].mxu0 %v1183
      %v1357 = vpop.f32.mrb[0].mxu0
      %v1358 = vadd.f32 0.0, %v1357
      %v1359 = vpop.f32.mrb[0].mxu0
      %1360 = vmatprep.mubr.f32.mxu0 0.0
      %1361 = vmatmul.mubr.f32.gmra.mrb[0].mxu0 %v1186
      %v1362 = vpop.f32.mrb[0].mxu0
      %v1363 = vadd.f32 0.0, %v1362
      %v1364 = vpop.f32.mrb[0].mxu0
      %1365 = vmatprep.mubr.f32.mxu0 0.0
      %1366 = vmatmul.mubr.f32.gmra.mrb[0].mxu0 %v1189
      %v1367 = vpop.f32.mrb[0].mxu0
      %v1368 = vadd.f32 0.0, %v1367
      %v1369 = vpop.f32.mrb[0].mxu0
      %1370 = vmatprep.mubr.f32.mxu0 0.0
      %1371 = vmatmul.mubr.f32.gmra.mrb[0].mxu0 %v1192
      %v1372 = vpop.f32.mrb[0].mxu0
      %v1373 = vadd.f32 0.0, %v1372
      %v1374 = vpop.f32.mrb[0].mxu0
      %1375 = vmatprep.mubr.f32.mxu0 0.0
      %1376 = vmatmul.mubr.f32.gmra.mrb[0].mxu0 %v1195
      %v1377 = vpop.f32.mrb[0].mxu0
      %v1378 = vadd.f32 0.0, %v1377
      %v1379 = vpop.f32.mrb[0].mxu0
      %1380 = vmatprep.mubr.f32.mxu0 0.0
      %1381 = vmatmul.mubr.f32.gmra.mrb[0].mxu0 %v1198
      %v1382 = vpop.f32.mrb[0].mxu0
      %v1383 = vadd.f32 0.0, %v1382
      %v1384 = vpop.f32.mrb[0].mxu0
      %1385 = vmatprep.mubr.f32.mxu0 0.0
      %1386 = vmatmul.mubr.f32.gmra.mrb[0].mxu0 %v1201
      %v1387 = vpop.f32.mrb[0].mxu0
      %v1388 = vadd.f32 0.0, %v1387
      %v1389 = vpop.f32.mrb[0].mxu0
      %1390 = vmatprep.mubr.f32.mxu0 0.0
      %1391 = vmatmul.mubr.f32.gmra.mrb[0].mxu0 %v1204
      %v1392 = vpop.f32.mrb[0].mxu0
      %v1393 = vadd.f32 0.0, %v1392
      %v1394 = vpop.f32.mrb[0].mxu0
      %1395 = vmatprep.mubr.f32.mxu0 0.0
      %1396 = vmatmul.mubr.f32.gmra.mrb[0].mxu0 %v1207
      %v1397 = vpop.f32.mrb[0].mxu0
      %v1398 = vadd.f32 0.0, %v1397
      %v1399 = vpop.f32.mrb[0].mxu0
      %1400 = vmatprep.mubr.f32.mxu0 0.0
      %1401 = vmatmul.mubr.f32.gmra.mrb[0].mxu0 %v1210
      %v1402 = vpop.f32.mrb[0].mxu0
      %v1403 = vadd.f32 0.0, %v1402
      %v1404 = vpop.f32.mrb[0].mxu0
      %1405 = vmatprep.mubr.f32.mxu0 0.0
      %1406 = vmatmul.mubr.f32.gmra.mrb[0].mxu0 %v1213
      %v1407 = vpop.f32.mrb[0].mxu0
      %v1408 = vadd.f32 0.0, %v1407
      %v1409 = vpop.f32.mrb[0].mxu0
      %1410 = vmatprep.mubr.f32.mxu0 0.0
      %1411 = vmatmul.mubr.f32.gmra.mrb[0].mxu0 %v1216
      %v1412 = vpop.f32.mrb[0].mxu0
      %v1413 = vadd.f32 0.0, %v1412
      %v1414 = vpop.f32.mrb[0].mxu0
      %1415 = vmatprep.mubr.f32.mxu0 0.0
      %1416 = vmatmul.mubr.f32.gmra.mrb[0].mxu0 %v1219
      %v1417 = vpop.f32.mrb[0].mxu0
      %v1418 = vadd.f32 0.0, %v1417
      %v1419 = vpop.f32.mrb[0].mxu0
      %1420 = vmatprep.mubr.f32.mxu0 0.0
      %1421 = vmatmul.mubr.f32.gmra.mrb[0].mxu0 %v1222
      %v1422 = vpop.f32.mrb[0].mxu0
      %v1423 = vadd.f32 0.0, %v1422
      %v1424 = vpop.f32.mrb[0].mxu0
      %1425 = vmatprep.mubr.f32.mxu0 0.0
      %1426 = vmatmul.mubr.f32.gmra.mrb[0].mxu0 %v1225
      %v1427 = vpop.f32.mrb[0].mxu0
      %v1428 = vadd.f32 0.0, %v1427
      %v1429 = vpop.f32.mrb[0].mxu0
      %1430 = vmatprep.mubr.f32.mxu0 0.0
      %1431 = vmatmul.mubr.f32.gmra.mrb[0].mxu0 %v1228
      %v1432 = vpop.f32.mrb[0].mxu0
      %v1433 = vadd.f32 0.0, %v1432
      %v1434 = vpop.f32.mrb[0].mxu0
      %1435 = vmatprep.mubr.f32.mxu0 0.0
      %1436 = vmatmul.mubr.f32.gmra.mrb[0].mxu0 %v1231
      %v1437 = vpop.f32.mrb[0].mxu0
      %v1438 = vadd.f32 0.0, %v1437
      %v1439 = vpop.f32.mrb[0].mxu0
      %1440 = vmatprep.mubr.f32.mxu0 0.0
      %1441 = vmatmul.mubr.f32.gmra.mrb[0].mxu0 %v1234
      %v1442 = vpop.f32.mrb[0].mxu0
      %v1443 = vadd.f32 0.0, %v1442
      %v1444 = vpop.f32.mrb[0].mxu0
      %1445 = vmatprep.mubr.f32.mxu0 0.0
      %1446 = vmatmul.mubr.f32.gmra.mrb[0].mxu0 %v1237
      %v1447 = vpop.f32.mrb[0].mxu0
      %v1448 = vadd.f32 0.0, %v1447
      %v1449 = vpop.f32.mrb[0].mxu0
      %1450 = vmatprep.mubr.f32.mxu0 0.0
      %1451 = vmatmul.mubr.f32.gmra.mrb[0].mxu0 %v1240
      %v1452 = vpop.f32.mrb[0].mxu0
      %v1453 = vadd.f32 0.0, %v1452
      %v1454 = vpop.f32.mrb[0].mxu0
      %1455 = vmatprep.mubr.f32.mxu0 0.0
      %1456 = vmatmul.mubr.f32.gmra.mrb[0].mxu0 %v1243
      %v1457 = vpop.f32.mrb[0].mxu0
      %v1458 = vadd.f32 0.0, %v1457
      %v1459 = vpop.f32.mrb[0].mxu0
      %1460 = vmatprep.mubr.f32.mxu0 0.0
      %1461 = vmatmul.mubr.f32.gmra.mrb[0].mxu0 %v1246
      %v1462 = vpop.f32.mrb[0].mxu0
      %v1463 = vadd.f32 0.0, %v1462
      %v1464 = vpop.f32.mrb[0].mxu0
      %1465 = vmatprep.mubr.f32.mxu0 0.0
      %1466 = vmatmul.mubr.f32.gmra.mrb[0].mxu0 %v1249
      %v1467 = vpop.f32.mrb[0].mxu0
      %v1468 = vadd.f32 0.0, %v1467
      %v1469 = vpop.f32.mrb[0].mxu0
      %1470 = vmatprep.mubr.f32.mxu0 0.0
      %1471 = vmatmul.mubr.f32.gmra.mrb[0].mxu0 %v1252
      %v1472 = vpop.f32.mrb[0].mxu0
      %v1473 = vadd.f32 0.0, %v1472
      %v1474 = vpop.f32.mrb[0].mxu0
      %1475 = vmatprep.mubr.f32.mxu0 0.0
      %1476 = vmatmul.mubr.f32.gmra.mrb[0].mxu0 %v1255
      %v1477 = vpop.f32.mrb[0].mxu0
      %v1478 = vadd.f32 0.0, %v1477
      %v1479 = vpop.f32.mrb[0].mxu0
      %1480 = vmatprep.mubr.f32.mxu0 0.0
      %1481 = vmatmul.mubr.f32.gmra.mrb[0].mxu0 %v1258
      %v1482 = vpop.f32.mrb[0].mxu0
      %v1483 = vadd.f32 0.0, %v1482
      %v1484 = vpop.f32.mrb[0].mxu0
      %1485 = vmatprep.mubr.f32.mxu0 0.0
      %1486 = vmatmul.mubr.f32.gmra.mrb[0].mxu0 %v1261
      %v1487 = vpop.f32.mrb[0].mxu0
      %v1488 = vadd.f32 0.0, %v1487
      %v1489 = vpop.f32.mrb[0].mxu0
      %1490 = vdwg.mxu0
      %v1491 = vadd.f32 %v1101, %v1333
      %v1492 = vadd.f32 %v1102, %v1338
      %v1493 = vadd.f32 %v1103, %v1343
      %v1494 = vadd.f32 %v1104, %v1348
      %v1495 = vadd.f32 %v1105, %v1353
      %v1496 = vadd.f32 %v1106, %v1358
      %v1497 = vadd.f32 %v1107, %v1363
      %v1498 = vadd.f32 %v1108, %v1368
      %v1499 = vadd.f32 %v1109, %v1373
      %v1500 = vadd.f32 %v1110, %v1378
      %v1501 = vadd.f32 %v1111, %v1383
      %v1502 = vadd.f32 %v1112, %v1388
      %v1503 = vadd.f32 %v1113, %v1393
      %v1504 = vadd.f32 %v1114, %v1398
      %v1505 = vadd.f32 %v1115, %v1403
      %v1506 = vadd.f32 %v1116, %v1408
      %v1507 = vadd.f32 %v1117, %v1413
      %v1508 = vadd.f32 %v1118, %v1418
      %v1509 = vadd.f32 %v1119, %v1423
      %v1510 = vadd.f32 %v1120, %v1428
      %v1511 = vadd.f32 %v1121, %v1433
      %v1512 = vadd.f32 %v1122, %v1438
      %v1513 = vadd.f32 %v1123, %v1443
      %v1514 = vadd.f32 %v1124, %v1448
      %v1515 = vadd.f32 %v1125, %v1453
      %v1516 = vadd.f32 %v1126, %v1458
      %v1517 = vadd.f32 %v1127, %v1463
      %v1518 = vadd.f32 %v1128, %v1468
      %v1519 = vadd.f32 %v1129, %v1473
      %v1520 = vadd.f32 %v1130, %v1478
      %v1521 = vadd.f32 %v1131, %v1483
      %v1522 = vadd.f32 %v1132, %v1488
      %v1523 = vld [vmem:[%s313] sm:$0xff]
      %v1524 = vld [vmem:[%s313 + $0x8] sm:$0xff]
      %v1525 = vld [vmem:[%s313 + $0x18] sm:$0xff]
      %v1526 = vld [vmem:[%s313 + $0x20] sm:$0xff]
      %v1527 = vld [vmem:[%s313 + $0x30] sm:$0xff]
      %v1528 = vld [vmem:[%s313 + $0x38] sm:$0xff]
      %v1529 = vld [vmem:[%s313 + $0x48] sm:$0xff]
      %v1530 = vld [vmem:[%s313 + $0x50] sm:$0xff]
      %v1531 = vld [vmem:[%s313 + $0x60] sm:$0xff]
      %v1532 = vld [vmem:[%s313 + $0x68] sm:$0xff]
      %v1533 = vld [vmem:[%s313 + $0x78] sm:$0xff]
      %v1534 = vld [vmem:[%s313 + $0x80] sm:$0xff]
      %v1535 = vld [vmem:[%s313 + $0x90] sm:$0xff]
      %v1536 = vld [vmem:[%s313 + $0x98] sm:$0xff]
      %v1537 = vld [vmem:[%s313 + $0xa8] sm:$0xff]
      %v1538 = vld [vmem:[%s313 + $0xb0] sm:$0xff]
      %v1539 = vld [vmem:[%s313 + $0xc0] sm:$0xff]
      %v1540 = vld [vmem:[%s313 + $0xc8] sm:$0xff]
      %v1541 = vld [vmem:[%s313 + $0xd8] sm:$0xff]
      %v1542 = vld [vmem:[%s313 + $0xe0] sm:$0xff]
      %v1543 = vld [vmem:[%s313 + $0xf0] sm:$0xff]
      %v1544 = vld [vmem:[%s313 + $0xf8] sm:$0xff]
      %v1545 = vld [vmem:[%s313 + $0x108] sm:$0xff]
      %v1546 = vld [vmem:[%s313 + $0x110] sm:$0xff]
      %v1547 = vld [vmem:[%s313 + $0x120] sm:$0xff]
      %v1548 = vld [vmem:[%s313 + $0x128] sm:$0xff]
      %v1549 = vld [vmem:[%s313 + $0x138] sm:$0xff]
      %v1550 = vld [vmem:[%s313 + $0x140] sm:$0xff]
      %v1551 = vld [vmem:[%s313 + $0x150] sm:$0xff]
      %v1552 = vld [vmem:[%s313 + $0x158] sm:$0xff]
      %v1553 = vld [vmem:[%s313 + $0x168] sm:$0xff]
      %v1554 = vld [vmem:[%s313 + $0x170] sm:$0xff]
      %s1555 = scalar_lea.vmem %s1, 12
      %v1556 = vld [vmem:[%s1555] sm:$0xf]
      %v1558 = vsel %vm225, %v1523, 0
      %v1561 = vsel %vm225, %v1524, 0
      %v1564 = vsel %vm225, %v1525, 0
      %v1567 = vsel %vm225, %v1526, 0
      %v1570 = vsel %vm225, %v1527, 0
      %v1573 = vsel %vm225, %v1528, 0
      %v1576 = vsel %vm225, %v1529, 0
      %v1579 = vsel %vm225, %v1530, 0
      %v1582 = vsel %vm225, %v1531, 0
      %v1585 = vsel %vm225, %v1532, 0
      %v1588 = vsel %vm225, %v1533, 0
      %v1591 = vsel %vm225, %v1534, 0
      %v1594 = vsel %vm225, %v1535, 0
      %v1597 = vsel %vm225, %v1536, 0
      %v1600 = vsel %vm225, %v1537, 0
      %v1603 = vsel %vm225, %v1538, 0
      %v1606 = vsel %vm225, %v1539, 0
      %v1609 = vsel %vm225, %v1540, 0
      %v1612 = vsel %vm225, %v1541, 0
      %v1615 = vsel %vm225, %v1542, 0
      %v1618 = vsel %vm225, %v1543, 0
      %v1621 = vsel %vm225, %v1544, 0
      %v1624 = vsel %vm225, %v1545, 0
      %v1627 = vsel %vm225, %v1546, 0
      %v1630 = vsel %vm225, %v1547, 0
      %v1633 = vsel %vm225, %v1548, 0
      %v1636 = vsel %vm225, %v1549, 0
      %v1639 = vsel %vm225, %v1550, 0
      %v1642 = vsel %vm225, %v1551, 0
      %v1645 = vsel %vm225, %v1552, 0
      %v1648 = vsel %vm225, %v1553, 0
      %v1651 = vsel %vm225, %v1554, 0
      %v1654 = vsel %vm482, %v1556, 0
      %1656 = vmatprep.subr.mxu0 0.0
      %1657 = vmatpush1.msra.mxu0 %v1654
      %1658 = vmatprep.subr.mxu0 0.0
      %1659 = vmatpush1.msra.mxu0 0.0
      %1660 = vmatprep.subr.mxu0 0.0
      %1661 = vmatpush1.msra.mxu0 0.0
      %1662 = vmatprep.subr.mxu0 0.0
      %1663 = vmatpush1.msra.mxu0 0.0
      %1664 = vmatprep.subr.mxu0 0.0
      %1665 = vmatpush1.msra.mxu0 0.0
      %1666 = vmatprep.subr.mxu0 0.0
      %1667 = vmatpush1.msra.mxu0 0.0
      %1668 = vmatprep.subr.mxu0 0.0
      %1669 = vmatpush1.msra.mxu0 0.0
      %1670 = vmatprep.subr.mxu0 0.0
      %1671 = vmatpush1.msra.mxu0 0.0
      %1672 = vmatprep.subr.mxu0 0.0
      %1673 = vmatpush1.msra.mxu0 0.0
      %1674 = vmatprep.subr.mxu0 0.0
      %1675 = vmatpush1.msra.mxu0 0.0
      %1676 = vmatprep.subr.mxu0 0.0
      %1677 = vmatpush1.msra.mxu0 0.0
      %1678 = vmatprep.subr.mxu0 0.0
      %1679 = vmatpush1.msra.mxu0 0.0
      %1680 = vmatprep.subr.mxu0 0.0
      %1681 = vmatpush1.msra.mxu0 0.0
      %1682 = vmatprep.subr.mxu0 0.0
      %1683 = vmatpush1.msra.mxu0 0.0
      %1684 = vmatprep.subr.mxu0 0.0
      %1685 = vmatpush1.msra.mxu0 0.0
      %1686 = vmatprep.subr.mxu0 0.0
      %1687 = vmatpush1.msra.mxu0 0.0
      %1688 = vmatprep.subr.mxu0 0.0
      %1689 = vmatpush1.msra.mxu0 0.0
      %1690 = vmatprep.subr.mxu0 0.0
      %1691 = vmatpush1.msra.mxu0 0.0
      %1692 = vmatprep.subr.mxu0 0.0
      %1693 = vmatpush1.msra.mxu0 0.0
      %1694 = vmatprep.subr.mxu0 0.0
      %1695 = vmatpush1.msra.mxu0 0.0
      %1696 = vmatprep.subr.mxu0 0.0
      %1697 = vmatpush1.msra.mxu0 0.0
      %1698 = vmatprep.subr.mxu0 0.0
      %1699 = vmatpush1.msra.mxu0 0.0
      %1700 = vmatprep.subr.mxu0 0.0
      %1701 = vmatpush1.msra.mxu0 0.0
      %1702 = vmatprep.subr.mxu0 0.0
      %1703 = vmatpush1.msra.mxu0 0.0
      %1704 = vmatprep.subr.mxu0 0.0
      %1705 = vmatpush1.msra.mxu0 0.0
      %1706 = vmatprep.subr.mxu0 0.0
      %1707 = vmatpush1.msra.mxu0 0.0
      %1708 = vmatprep.subr.mxu0 0.0
      %1709 = vmatpush1.msra.mxu0 0.0
      %1710 = vmatprep.subr.mxu0 0.0
      %1711 = vmatpush1.msra.mxu0 0.0
      %1712 = vmatprep.subr.mxu0 0.0
      %1713 = vmatpush1.msra.mxu0 0.0
      %1714 = vmatprep.subr.mxu0 0.0
      %1715 = vmatpush1.msra.mxu0 0.0
      %1716 = vmatprep.subr.mxu0 0.0
      %1717 = vmatpush1.msra.mxu0 0.0
      %1718 = vmatprep.subr.mxu0 0.0
      %1719 = vmatpush1.msra.mxu0 0.0
      %1720 = vmatprep.mubr.f32.mxu0 0.0
      %1721 = vmatmul.mubr.f32.gmra.mrb[0].mxu0 %v1558
      %v1722 = vpop.f32.mrb[0].mxu0
      %v1723 = vadd.f32 0.0, %v1722
      %v1724 = vpop.f32.mrb[0].mxu0
      %1725 = vmatprep.mubr.f32.mxu0 0.0
      %1726 = vmatmul.mubr.f32.gmra.mrb[0].mxu0 %v1561
      %v1727 = vpop.f32.mrb[0].mxu0
      %v1728 = vadd.f32 0.0, %v1727
      %v1729 = vpop.f32.mrb[0].mxu0
      %1730 = vmatprep.mubr.f32.mxu0 0.0
      %1731 = vmatmul.mubr.f32.gmra.mrb[0].mxu0 %v1564
      %v1732 = vpop.f32.mrb[0].mxu0
      %v1733 = vadd.f32 0.0, %v1732
      %v1734 = vpop.f32.mrb[0].mxu0
      %1735 = vmatprep.mubr.f32.mxu0 0.0
      %1736 = vmatmul.mubr.f32.gmra.mrb[0].mxu0 %v1567
      %v1737 = vpop.f32.mrb[0].mxu0
      %v1738 = vadd.f32 0.0, %v1737
      %v1739 = vpop.f32.mrb[0].mxu0
      %1740 = vmatprep.mubr.f32.mxu0 0.0
      %1741 = vmatmul.mubr.f32.gmra.mrb[0].mxu0 %v1570
      %v1742 = vpop.f32.mrb[0].mxu0
      %v1743 = vadd.f32 0.0, %v1742
      %v1744 = vpop.f32.mrb[0].mxu0
      %1745 = vmatprep.mubr.f32.mxu0 0.0
      %1746 = vmatmul.mubr.f32.gmra.mrb[0].mxu0 %v1573
      %v1747 = vpop.f32.mrb[0].mxu0
      %v1748 = vadd.f32 0.0, %v1747
      %v1749 = vpop.f32.mrb[0].mxu0
      %1750 = vmatprep.mubr.f32.mxu0 0.0
      %1751 = vmatmul.mubr.f32.gmra.mrb[0].mxu0 %v1576
      %v1752 = vpop.f32.mrb[0].mxu0
      %v1753 = vadd.f32 0.0, %v1752
      %v1754 = vpop.f32.mrb[0].mxu0
      %1755 = vmatprep.mubr.f32.mxu0 0.0
      %1756 = vmatmul.mubr.f32.gmra.mrb[0].mxu0 %v1579
      %v1757 = vpop.f32.mrb[0].mxu0
      %v1758 = vadd.f32 0.0, %v1757
      %v1759 = vpop.f32.mrb[0].mxu0
      %1760 = vmatprep.mubr.f32.mxu0 0.0
      %1761 = vmatmul.mubr.f32.gmra.mrb[0].mxu0 %v1582
      %v1762 = vpop.f32.mrb[0].mxu0
      %v1763 = vadd.f32 0.0, %v1762
      %v1764 = vpop.f32.mrb[0].mxu0
      %1765 = vmatprep.mubr.f32.mxu0 0.0
      %1766 = vmatmul.mubr.f32.gmra.mrb[0].mxu0 %v1585
      %v1767 = vpop.f32.mrb[0].mxu0
      %v1768 = vadd.f32 0.0, %v1767
      %v1769 = vpop.f32.mrb[0].mxu0
      %1770 = vmatprep.mubr.f32.mxu0 0.0
      %1771 = vmatmul.mubr.f32.gmra.mrb[0].mxu0 %v1588
      %v1772 = vpop.f32.mrb[0].mxu0
      %v1773 = vadd.f32 0.0, %v1772
      %v1774 = vpop.f32.mrb[0].mxu0
      %1775 = vmatprep.mubr.f32.mxu0 0.0
      %1776 = vmatmul.mubr.f32.gmra.mrb[0].mxu0 %v1591
      %v1777 = vpop.f32.mrb[0].mxu0
      %v1778 = vadd.f32 0.0, %v1777
      %v1779 = vpop.f32.mrb[0].mxu0
      %1780 = vmatprep.mubr.f32.mxu0 0.0
      %1781 = vmatmul.mubr.f32.gmra.mrb[0].mxu0 %v1594
      %v1782 = vpop.f32.mrb[0].mxu0
      %v1783 = vadd.f32 0.0, %v1782
      %v1784 = vpop.f32.mrb[0].mxu0
      %1785 = vmatprep.mubr.f32.mxu0 0.0
      %1786 = vmatmul.mubr.f32.gmra.mrb[0].mxu0 %v1597
      %v1787 = vpop.f32.mrb[0].mxu0
      %v1788 = vadd.f32 0.0, %v1787
      %v1789 = vpop.f32.mrb[0].mxu0
      %1790 = vmatprep.mubr.f32.mxu0 0.0
      %1791 = vmatmul.mubr.f32.gmra.mrb[0].mxu0 %v1600
      %v1792 = vpop.f32.mrb[0].mxu0
      %v1793 = vadd.f32 0.0, %v1792
      %v1794 = vpop.f32.mrb[0].mxu0
      %1795 = vmatprep.mubr.f32.mxu0 0.0
      %1796 = vmatmul.mubr.f32.gmra.mrb[0].mxu0 %v1603
      %v1797 = vpop.f32.mrb[0].mxu0
      %v1798 = vadd.f32 0.0, %v1797
      %v1799 = vpop.f32.mrb[0].mxu0
      %1800 = vmatprep.mubr.f32.mxu0 0.0
      %1801 = vmatmul.mubr.f32.gmra.mrb[0].mxu0 %v1606
      %v1802 = vpop.f32.mrb[0].mxu0
      %v1803 = vadd.f32 0.0, %v1802
      %v1804 = vpop.f32.mrb[0].mxu0
      %1805 = vmatprep.mubr.f32.mxu0 0.0
      %1806 = vmatmul.mubr.f32.gmra.mrb[0].mxu0 %v1609
      %v1807 = vpop.f32.mrb[0].mxu0
      %v1808 = vadd.f32 0.0, %v1807
      %v1809 = vpop.f32.mrb[0].mxu0
      %1810 = vmatprep.mubr.f32.mxu0 0.0
      %1811 = vmatmul.mubr.f32.gmra.mrb[0].mxu0 %v1612
      %v1812 = vpop.f32.mrb[0].mxu0
      %v1813 = vadd.f32 0.0, %v1812
      %v1814 = vpop.f32.mrb[0].mxu0
      %1815 = vmatprep.mubr.f32.mxu0 0.0
      %1816 = vmatmul.mubr.f32.gmra.mrb[0].mxu0 %v1615
      %v1817 = vpop.f32.mrb[0].mxu0
      %v1818 = vadd.f32 0.0, %v1817
      %v1819 = vpop.f32.mrb[0].mxu0
      %1820 = vmatprep.mubr.f32.mxu0 0.0
      %1821 = vmatmul.mubr.f32.gmra.mrb[0].mxu0 %v1618
      %v1822 = vpop.f32.mrb[0].mxu0
      %v1823 = vadd.f32 0.0, %v1822
      %v1824 = vpop.f32.mrb[0].mxu0
      %1825 = vmatprep.mubr.f32.mxu0 0.0
      %1826 = vmatmul.mubr.f32.gmra.mrb[0].mxu0 %v1621
      %v1827 = vpop.f32.mrb[0].mxu0
      %v1828 = vadd.f32 0.0, %v1827
      %v1829 = vpop.f32.mrb[0].mxu0
      %1830 = vmatprep.mubr.f32.mxu0 0.0
      %1831 = vmatmul.mubr.f32.gmra.mrb[0].mxu0 %v1624
      %v1832 = vpop.f32.mrb[0].mxu0
      %v1833 = vadd.f32 0.0, %v1832
      %v1834 = vpop.f32.mrb[0].mxu0
      %1835 = vmatprep.mubr.f32.mxu0 0.0
      %1836 = vmatmul.mubr.f32.gmra.mrb[0].mxu0 %v1627
      %v1837 = vpop.f32.mrb[0].mxu0
      %v1838 = vadd.f32 0.0, %v1837
      %v1839 = vpop.f32.mrb[0].mxu0
      %1840 = vmatprep.mubr.f32.mxu0 0.0
      %1841 = vmatmul.mubr.f32.gmra.mrb[0].mxu0 %v1630
      %v1842 = vpop.f32.mrb[0].mxu0
      %v1843 = vadd.f32 0.0, %v1842
      %v1844 = vpop.f32.mrb[0].mxu0
      %1845 = vmatprep.mubr.f32.mxu0 0.0
      %1846 = vmatmul.mubr.f32.gmra.mrb[0].mxu0 %v1633
      %v1847 = vpop.f32.mrb[0].mxu0
      %v1848 = vadd.f32 0.0, %v1847
      %v1849 = vpop.f32.mrb[0].mxu0
      %1850 = vmatprep.mubr.f32.mxu0 0.0
      %1851 = vmatmul.mubr.f32.gmra.mrb[0].mxu0 %v1636
      %v1852 = vpop.f32.mrb[0].mxu0
      %v1853 = vadd.f32 0.0, %v1852
      %v1854 = vpop.f32.mrb[0].mxu0
      %1855 = vmatprep.mubr.f32.mxu0 0.0
      %1856 = vmatmul.mubr.f32.gmra.mrb[0].mxu0 %v1639
      %v1857 = vpop.f32.mrb[0].mxu0
      %v1858 = vadd.f32 0.0, %v1857
      %v1859 = vpop.f32.mrb[0].mxu0
      %1860 = vmatprep.mubr.f32.mxu0 0.0
      %1861 = vmatmul.mubr.f32.gmra.mrb[0].mxu0 %v1642
      %v1862 = vpop.f32.mrb[0].mxu0
      %v1863 = vadd.f32 0.0, %v1862
      %v1864 = vpop.f32.mrb[0].mxu0
      %1865 = vmatprep.mubr.f32.mxu0 0.0
      %1866 = vmatmul.mubr.f32.gmra.mrb[0].mxu0 %v1645
      %v1867 = vpop.f32.mrb[0].mxu0
      %v1868 = vadd.f32 0.0, %v1867
      %v1869 = vpop.f32.mrb[0].mxu0
      %1870 = vmatprep.mubr.f32.mxu0 0.0
      %1871 = vmatmul.mubr.f32.gmra.mrb[0].mxu0 %v1648
      %v1872 = vpop.f32.mrb[0].mxu0
      %v1873 = vadd.f32 0.0, %v1872
      %v1874 = vpop.f32.mrb[0].mxu0
      %1875 = vmatprep.mubr.f32.mxu0 0.0
      %1876 = vmatmul.mubr.f32.gmra.mrb[0].mxu0 %v1651
      %v1877 = vpop.f32.mrb[0].mxu0
      %v1878 = vadd.f32 0.0, %v1877
      %v1879 = vpop.f32.mrb[0].mxu0
      %1880 = vdwg.mxu0
      %v1881 = vadd.f32 %v1491, %v1723
      %v1882 = vadd.f32 %v1492, %v1728
      %v1883 = vadd.f32 %v1493, %v1733
      %v1884 = vadd.f32 %v1494, %v1738
      %v1885 = vadd.f32 %v1495, %v1743
      %v1886 = vadd.f32 %v1496, %v1748
      %v1887 = vadd.f32 %v1497, %v1753
      %v1888 = vadd.f32 %v1498, %v1758
      %v1889 = vadd.f32 %v1499, %v1763
      %v1890 = vadd.f32 %v1500, %v1768
      %v1891 = vadd.f32 %v1501, %v1773
      %v1892 = vadd.f32 %v1502, %v1778
      %v1893 = vadd.f32 %v1503, %v1783
      %v1894 = vadd.f32 %v1504, %v1788
      %v1895 = vadd.f32 %v1505, %v1793
      %v1896 = vadd.f32 %v1506, %v1798
      %v1897 = vadd.f32 %v1507, %v1803
      %v1898 = vadd.f32 %v1508, %v1808
      %v1899 = vadd.f32 %v1509, %v1813
      %v1900 = vadd.f32 %v1510, %v1818
      %v1901 = vadd.f32 %v1511, %v1823
      %v1902 = vadd.f32 %v1512, %v1828
      %v1903 = vadd.f32 %v1513, %v1833
      %v1904 = vadd.f32 %v1514, %v1838
      %v1905 = vadd.f32 %v1515, %v1843
      %v1906 = vadd.f32 %v1516, %v1848
      %v1907 = vadd.f32 %v1517, %v1853
      %v1908 = vadd.f32 %v1518, %v1858
      %v1909 = vadd.f32 %v1519, %v1863
      %v1910 = vadd.f32 %v1520, %v1868
      %v1911 = vadd.f32 %v1521, %v1873
      %v1912 = vadd.f32 %v1522, %v1878
      %v1913 = vld [vmem:[%s313 + $0x1] sm:$0xff]
      %v1914 = vld [vmem:[%s313 + $0x9] sm:$0xff]
      %v1915 = vld [vmem:[%s313 + $0x19] sm:$0xff]
      %v1916 = vld [vmem:[%s313 + $0x21] sm:$0xff]
      %v1917 = vld [vmem:[%s313 + $0x31] sm:$0xff]
      %v1918 = vld [vmem:[%s313 + $0x39] sm:$0xff]
      %v1919 = vld [vmem:[%s313 + $0x49] sm:$0xff]
      %v1920 = vld [vmem:[%s313 + $0x51] sm:$0xff]
      %v1921 = vld [vmem:[%s313 + $0x61] sm:$0xff]
      %v1922 = vld [vmem:[%s313 + $0x69] sm:$0xff]
      %v1923 = vld [vmem:[%s313 + $0x79] sm:$0xff]
      %v1924 = vld [vmem:[%s313 + $0x81] sm:$0xff]
      %v1925 = vld [vmem:[%s313 + $0x91] sm:$0xff]
      %v1926 = vld [vmem:[%s313 + $0x99] sm:$0xff]
      %v1927 = vld [vmem:[%s313 + $0xa9] sm:$0xff]
      %v1928 = vld [vmem:[%s313 + $0xb1] sm:$0xff]
      %v1929 = vld [vmem:[%s313 + $0xc1] sm:$0xff]
      %v1930 = vld [vmem:[%s313 + $0xc9] sm:$0xff]
      %v1931 = vld [vmem:[%s313 + $0xd9] sm:$0xff]
      %v1932 = vld [vmem:[%s313 + $0xe1] sm:$0xff]
      %v1933 = vld [vmem:[%s313 + $0xf1] sm:$0xff]
      %v1934 = vld [vmem:[%s313 + $0xf9] sm:$0xff]
      %v1935 = vld [vmem:[%s313 + $0x109] sm:$0xff]
      %v1936 = vld [vmem:[%s313 + $0x111] sm:$0xff]
      %v1937 = vld [vmem:[%s313 + $0x121] sm:$0xff]
      %v1938 = vld [vmem:[%s313 + $0x129] sm:$0xff]
      %v1939 = vld [vmem:[%s313 + $0x139] sm:$0xff]
      %v1940 = vld [vmem:[%s313 + $0x141] sm:$0xff]
      %v1941 = vld [vmem:[%s313 + $0x151] sm:$0xff]
      %v1942 = vld [vmem:[%s313 + $0x159] sm:$0xff]
      %v1943 = vld [vmem:[%s313 + $0x169] sm:$0xff]
      %v1944 = vld [vmem:[%s313 + $0x171] sm:$0xff]
      %s1945 = scalar_lea.vmem %s1, 16
      %v1946 = vld [vmem:[%s1945] sm:$0xf]
      %v1948 = vsel %vm225, %v1913, 0
      %v1951 = vsel %vm225, %v1914, 0
      %v1954 = vsel %vm225, %v1915, 0
      %v1957 = vsel %vm225, %v1916, 0
      %v1960 = vsel %vm225, %v1917, 0
      %v1963 = vsel %vm225, %v1918, 0
      %v1966 = vsel %vm225, %v1919, 0
      %v1969 = vsel %vm225, %v1920, 0
      %v1972 = vsel %vm225, %v1921, 0
      %v1975 = vsel %vm225, %v1922, 0
      %v1978 = vsel %vm225, %v1923, 0
      %v1981 = vsel %vm225, %v1924, 0
      %v1984 = vsel %vm225, %v1925, 0
      %v1987 = vsel %vm225, %v1926, 0
      %v1990 = vsel %vm225, %v1927, 0
      %v1993 = vsel %vm225, %v1928, 0
      %v1996 = vsel %vm225, %v1929, 0
      %v1999 = vsel %vm225, %v1930, 0
      %v2002 = vsel %vm225, %v1931, 0
      %v2005 = vsel %vm225, %v1932, 0
      %v2008 = vsel %vm225, %v1933, 0
      %v2011 = vsel %vm225, %v1934, 0
      %v2014 = vsel %vm225, %v1935, 0
      %v2017 = vsel %vm225, %v1936, 0
      %v2020 = vsel %vm225, %v1937, 0
      %v2023 = vsel %vm225, %v1938, 0
      %v2026 = vsel %vm225, %v1939, 0
      %v2029 = vsel %vm225, %v1940, 0
      %v2032 = vsel %vm225, %v1941, 0
      %v2035 = vsel %vm225, %v1942, 0
      %v2038 = vsel %vm225, %v1943, 0
      %v2041 = vsel %vm225, %v1944, 0
      %v2044 = vsel %vm482, %v1946, 0
      %2046 = vmatprep.subr.mxu0 0.0
      %2047 = vmatpush1.msra.mxu0 %v2044
      %2048 = vmatprep.subr.mxu0 0.0
      %2049 = vmatpush1.msra.mxu0 0.0
      %2050 = vmatprep.subr.mxu0 0.0
      %2051 = vmatpush1.msra.mxu0 0.0
      %2052 = vmatprep.subr.mxu0 0.0
      %2053 = vmatpush1.msra.mxu0 0.0
      %2054 = vmatprep.subr.mxu0 0.0
      %2055 = vmatpush1.msra.mxu0 0.0
      %2056 = vmatprep.subr.mxu0 0.0
      %2057 = vmatpush1.msra.mxu0 0.0
      %2058 = vmatprep.subr.mxu0 0.0
      %2059 = vmatpush1.msra.mxu0 0.0
      %2060 = vmatprep.subr.mxu0 0.0
      %2061 = vmatpush1.msra.mxu0 0.0
      %2062 = vmatprep.subr.mxu0 0.0
      %2063 = vmatpush1.msra.mxu0 0.0
      %2064 = vmatprep.subr.mxu0 0.0
      %2065 = vmatpush1.msra.mxu0 0.0
      %2066 = vmatprep.subr.mxu0 0.0
      %2067 = vmatpush1.msra.mxu0 0.0
      %2068 = vmatprep.subr.mxu0 0.0
      %2069 = vmatpush1.msra.mxu0 0.0
      %2070 = vmatprep.subr.mxu0 0.0
      %2071 = vmatpush1.msra.mxu0 0.0
      %2072 = vmatprep.subr.mxu0 0.0
      %2073 = vmatpush1.msra.mxu0 0.0
      %2074 = vmatprep.subr.mxu0 0.0
      %2075 = vmatpush1.msra.mxu0 0.0
      %2076 = vmatprep.subr.mxu0 0.0
      %2077 = vmatpush1.msra.mxu0 0.0
      %2078 = vmatprep.subr.mxu0 0.0
      %2079 = vmatpush1.msra.mxu0 0.0
      %2080 = vmatprep.subr.mxu0 0.0
      %2081 = vmatpush1.msra.mxu0 0.0
      %2082 = vmatprep.subr.mxu0 0.0
      %2083 = vmatpush1.msra.mxu0 0.0
      %2084 = vmatprep.subr.mxu0 0.0
      %2085 = vmatpush1.msra.mxu0 0.0
      %2086 = vmatprep.subr.mxu0 0.0
      %2087 = vmatpush1.msra.mxu0 0.0
      %2088 = vmatprep.subr.mxu0 0.0
      %2089 = vmatpush1.msra.mxu0 0.0
      %2090 = vmatprep.subr.mxu0 0.0
      %2091 = vmatpush1.msra.mxu0 0.0
      %2092 = vmatprep.subr.mxu0 0.0
      %2093 = vmatpush1.msra.mxu0 0.0
      %2094 = vmatprep.subr.mxu0 0.0
      %2095 = vmatpush1.msra.mxu0 0.0
      %2096 = vmatprep.subr.mxu0 0.0
      %2097 = vmatpush1.msra.mxu0 0.0
      %2098 = vmatprep.subr.mxu0 0.0
      %2099 = vmatpush1.msra.mxu0 0.0
      %2100 = vmatprep.subr.mxu0 0.0
      %2101 = vmatpush1.msra.mxu0 0.0
      %2102 = vmatprep.subr.mxu0 0.0
      %2103 = vmatpush1.msra.mxu0 0.0
      %2104 = vmatprep.subr.mxu0 0.0
      %2105 = vmatpush1.msra.mxu0 0.0
      %2106 = vmatprep.subr.mxu0 0.0
      %2107 = vmatpush1.msra.mxu0 0.0
      %2108 = vmatprep.subr.mxu0 0.0
      %2109 = vmatpush1.msra.mxu0 0.0
      %2110 = vmatprep.mubr.f32.mxu0 0.0
      %2111 = vmatmul.mubr.f32.gmra.mrb[0].mxu0 %v1948
      %v2112 = vpop.f32.mrb[0].mxu0
      %v2113 = vadd.f32 0.0, %v2112
      %v2114 = vpop.f32.mrb[0].mxu0
      %2115 = vmatprep.mubr.f32.mxu0 0.0
      %2116 = vmatmul.mubr.f32.gmra.mrb[0].mxu0 %v1951
      %v2117 = vpop.f32.mrb[0].mxu0
      %v2118 = vadd.f32 0.0, %v2117
      %v2119 = vpop.f32.mrb[0].mxu0
      %2120 = vmatprep.mubr.f32.mxu0 0.0
      %2121 = vmatmul.mubr.f32.gmra.mrb[0].mxu0 %v1954
      %v2122 = vpop.f32.mrb[0].mxu0
      %v2123 = vadd.f32 0.0, %v2122
      %v2124 = vpop.f32.mrb[0].mxu0
      %2125 = vmatprep.mubr.f32.mxu0 0.0
      %2126 = vmatmul.mubr.f32.gmra.mrb[0].mxu0 %v1957
      %v2127 = vpop.f32.mrb[0].mxu0
      %v2128 = vadd.f32 0.0, %v2127
      %v2129 = vpop.f32.mrb[0].mxu0
      %2130 = vmatprep.mubr.f32.mxu0 0.0
      %2131 = vmatmul.mubr.f32.gmra.mrb[0].mxu0 %v1960
      %v2132 = vpop.f32.mrb[0].mxu0
      %v2133 = vadd.f32 0.0, %v2132
      %v2134 = vpop.f32.mrb[0].mxu0
      %2135 = vmatprep.mubr.f32.mxu0 0.0
      %2136 = vmatmul.mubr.f32.gmra.mrb[0].mxu0 %v1963
      %v2137 = vpop.f32.mrb[0].mxu0
      %v2138 = vadd.f32 0.0, %v2137
      %v2139 = vpop.f32.mrb[0].mxu0
      %2140 = vmatprep.mubr.f32.mxu0 0.0
      %2141 = vmatmul.mubr.f32.gmra.mrb[0].mxu0 %v1966
      %v2142 = vpop.f32.mrb[0].mxu0
      %v2143 = vadd.f32 0.0, %v2142
      %v2144 = vpop.f32.mrb[0].mxu0
      %2145 = vmatprep.mubr.f32.mxu0 0.0
      %2146 = vmatmul.mubr.f32.gmra.mrb[0].mxu0 %v1969
      %v2147 = vpop.f32.mrb[0].mxu0
      %v2148 = vadd.f32 0.0, %v2147
      %v2149 = vpop.f32.mrb[0].mxu0
      %2150 = vmatprep.mubr.f32.mxu0 0.0
      %2151 = vmatmul.mubr.f32.gmra.mrb[0].mxu0 %v1972
      %v2152 = vpop.f32.mrb[0].mxu0
      %v2153 = vadd.f32 0.0, %v2152
      %v2154 = vpop.f32.mrb[0].mxu0
      %2155 = vmatprep.mubr.f32.mxu0 0.0
      %2156 = vmatmul.mubr.f32.gmra.mrb[0].mxu0 %v1975
      %v2157 = vpop.f32.mrb[0].mxu0
      %v2158 = vadd.f32 0.0, %v2157
      %v2159 = vpop.f32.mrb[0].mxu0
      %2160 = vmatprep.mubr.f32.mxu0 0.0
      %2161 = vmatmul.mubr.f32.gmra.mrb[0].mxu0 %v1978
      %v2162 = vpop.f32.mrb[0].mxu0
      %v2163 = vadd.f32 0.0, %v2162
      %v2164 = vpop.f32.mrb[0].mxu0
      %2165 = vmatprep.mubr.f32.mxu0 0.0
      %2166 = vmatmul.mubr.f32.gmra.mrb[0].mxu0 %v1981
      %v2167 = vpop.f32.mrb[0].mxu0
      %v2168 = vadd.f32 0.0, %v2167
      %v2169 = vpop.f32.mrb[0].mxu0
      %2170 = vmatprep.mubr.f32.mxu0 0.0
      %2171 = vmatmul.mubr.f32.gmra.mrb[0].mxu0 %v1984
      %v2172 = vpop.f32.mrb[0].mxu0
      %v2173 = vadd.f32 0.0, %v2172
      %v2174 = vpop.f32.mrb[0].mxu0
      %2175 = vmatprep.mubr.f32.mxu0 0.0
      %2176 = vmatmul.mubr.f32.gmra.mrb[0].mxu0 %v1987
      %v2177 = vpop.f32.mrb[0].mxu0
      %v2178 = vadd.f32 0.0, %v2177
      %v2179 = vpop.f32.mrb[0].mxu0
      %2180 = vmatprep.mubr.f32.mxu0 0.0
      %2181 = vmatmul.mubr.f32.gmra.mrb[0].mxu0 %v1990
      %v2182 = vpop.f32.mrb[0].mxu0
      %v2183 = vadd.f32 0.0, %v2182
      %v2184 = vpop.f32.mrb[0].mxu0
      %2185 = vmatprep.mubr.f32.mxu0 0.0
      %2186 = vmatmul.mubr.f32.gmra.mrb[0].mxu0 %v1993
      %v2187 = vpop.f32.mrb[0].mxu0
      %v2188 = vadd.f32 0.0, %v2187
      %v2189 = vpop.f32.mrb[0].mxu0
      %2190 = vmatprep.mubr.f32.mxu0 0.0
      %2191 = vmatmul.mubr.f32.gmra.mrb[0].mxu0 %v1996
      %v2192 = vpop.f32.mrb[0].mxu0
      %v2193 = vadd.f32 0.0, %v2192
      %v2194 = vpop.f32.mrb[0].mxu0
      %2195 = vmatprep.mubr.f32.mxu0 0.0
      %2196 = vmatmul.mubr.f32.gmra.mrb[0].mxu0 %v1999
      %v2197 = vpop.f32.mrb[0].mxu0
      %v2198 = vadd.f32 0.0, %v2197
      %v2199 = vpop.f32.mrb[0].mxu0
      %2200 = vmatprep.mubr.f32.mxu0 0.0
      %2201 = vmatmul.mubr.f32.gmra.mrb[0].mxu0 %v2002
      %v2202 = vpop.f32.mrb[0].mxu0
      %v2203 = vadd.f32 0.0, %v2202
      %v2204 = vpop.f32.mrb[0].mxu0
      %2205 = vmatprep.mubr.f32.mxu0 0.0
      %2206 = vmatmul.mubr.f32.gmra.mrb[0].mxu0 %v2005
      %v2207 = vpop.f32.mrb[0].mxu0
      %v2208 = vadd.f32 0.0, %v2207
      %v2209 = vpop.f32.mrb[0].mxu0
      %2210 = vmatprep.mubr.f32.mxu0 0.0
      %2211 = vmatmul.mubr.f32.gmra.mrb[0].mxu0 %v2008
      %v2212 = vpop.f32.mrb[0].mxu0
      %v2213 = vadd.f32 0.0, %v2212
      %v2214 = vpop.f32.mrb[0].mxu0
      %2215 = vmatprep.mubr.f32.mxu0 0.0
      %2216 = vmatmul.mubr.f32.gmra.mrb[0].mxu0 %v2011
      %v2217 = vpop.f32.mrb[0].mxu0
      %v2218 = vadd.f32 0.0, %v2217
      %v2219 = vpop.f32.mrb[0].mxu0
      %2220 = vmatprep.mubr.f32.mxu0 0.0
      %2221 = vmatmul.mubr.f32.gmra.mrb[0].mxu0 %v2014
      %v2222 = vpop.f32.mrb[0].mxu0
      %v2223 = vadd.f32 0.0, %v2222
      %v2224 = vpop.f32.mrb[0].mxu0
      %2225 = vmatprep.mubr.f32.mxu0 0.0
      %2226 = vmatmul.mubr.f32.gmra.mrb[0].mxu0 %v2017
      %v2227 = vpop.f32.mrb[0].mxu0
      %v2228 = vadd.f32 0.0, %v2227
      %v2229 = vpop.f32.mrb[0].mxu0
      %2230 = vmatprep.mubr.f32.mxu0 0.0
      %2231 = vmatmul.mubr.f32.gmra.mrb[0].mxu0 %v2020
      %v2232 = vpop.f32.mrb[0].mxu0
      %v2233 = vadd.f32 0.0, %v2232
      %v2234 = vpop.f32.mrb[0].mxu0
      %2235 = vmatprep.mubr.f32.mxu0 0.0
      %2236 = vmatmul.mubr.f32.gmra.mrb[0].mxu0 %v2023
      %v2237 = vpop.f32.mrb[0].mxu0
      %v2238 = vadd.f32 0.0, %v2237
      %v2239 = vpop.f32.mrb[0].mxu0
      %2240 = vmatprep.mubr.f32.mxu0 0.0
      %2241 = vmatmul.mubr.f32.gmra.mrb[0].mxu0 %v2026
      %v2242 = vpop.f32.mrb[0].mxu0
      %v2243 = vadd.f32 0.0, %v2242
      %v2244 = vpop.f32.mrb[0].mxu0
      %2245 = vmatprep.mubr.f32.mxu0 0.0
      %2246 = vmatmul.mubr.f32.gmra.mrb[0].mxu0 %v2029
      %v2247 = vpop.f32.mrb[0].mxu0
      %v2248 = vadd.f32 0.0, %v2247
      %v2249 = vpop.f32.mrb[0].mxu0
      %2250 = vmatprep.mubr.f32.mxu0 0.0
      %2251 = vmatmul.mubr.f32.gmra.mrb[0].mxu0 %v2032
      %v2252 = vpop.f32.mrb[0].mxu0
      %v2253 = vadd.f32 0.0, %v2252
      %v2254 = vpop.f32.mrb[0].mxu0
      %2255 = vmatprep.mubr.f32.mxu0 0.0
      %2256 = vmatmul.mubr.f32.gmra.mrb[0].mxu0 %v2035
      %v2257 = vpop.f32.mrb[0].mxu0
      %v2258 = vadd.f32 0.0, %v2257
      %v2259 = vpop.f32.mrb[0].mxu0
      %2260 = vmatprep.mubr.f32.mxu0 0.0
      %2261 = vmatmul.mubr.f32.gmra.mrb[0].mxu0 %v2038
      %v2262 = vpop.f32.mrb[0].mxu0
      %v2263 = vadd.f32 0.0, %v2262
      %v2264 = vpop.f32.mrb[0].mxu0
      %2265 = vmatprep.mubr.f32.mxu0 0.0
      %2266 = vmatmul.mubr.f32.gmra.mrb[0].mxu0 %v2041
      %v2267 = vpop.f32.mrb[0].mxu0
      %v2268 = vadd.f32 0.0, %v2267
      %v2269 = vpop.f32.mrb[0].mxu0
      %2270 = vdwg.mxu0
      %v2271 = vadd.f32 %v1881, %v2113
      %v2272 = vadd.f32 %v1882, %v2118
      %v2273 = vadd.f32 %v1883, %v2123
      %v2274 = vadd.f32 %v1884, %v2128
      %v2275 = vadd.f32 %v1885, %v2133
      %v2276 = vadd.f32 %v1886, %v2138
      %v2277 = vadd.f32 %v1887, %v2143
      %v2278 = vadd.f32 %v1888, %v2148
      %v2279 = vadd.f32 %v1889, %v2153
      %v2280 = vadd.f32 %v1890, %v2158
      %v2281 = vadd.f32 %v1891, %v2163
      %v2282 = vadd.f32 %v1892, %v2168
      %v2283 = vadd.f32 %v1893, %v2173
      %v2284 = vadd.f32 %v1894, %v2178
      %v2285 = vadd.f32 %v1895, %v2183
      %v2286 = vadd.f32 %v1896, %v2188
      %v2287 = vadd.f32 %v1897, %v2193
      %v2288 = vadd.f32 %v1898, %v2198
      %v2289 = vadd.f32 %v1899, %v2203
      %v2290 = vadd.f32 %v1900, %v2208
      %v2291 = vadd.f32 %v1901, %v2213
      %v2292 = vadd.f32 %v1902, %v2218
      %v2293 = vadd.f32 %v1903, %v2223
      %v2294 = vadd.f32 %v1904, %v2228
      %v2295 = vadd.f32 %v1905, %v2233
      %v2296 = vadd.f32 %v1906, %v2238
      %v2297 = vadd.f32 %v1907, %v2243
      %v2298 = vadd.f32 %v1908, %v2248
      %v2299 = vadd.f32 %v1909, %v2253
      %v2300 = vadd.f32 %v1910, %v2258
      %v2301 = vadd.f32 %v1911, %v2263
      %v2302 = vadd.f32 %v1912, %v2268
      %v2303 = vld [vmem:[%s313 + $0x2] sm:$0xff]
      %v2304 = vld [vmem:[%s313 + $0xa] sm:$0xff]
      %v2305 = vld [vmem:[%s313 + $0x1a] sm:$0xff]
      %v2306 = vld [vmem:[%s313 + $0x22] sm:$0xff]
      %v2307 = vld [vmem:[%s313 + $0x32] sm:$0xff]
      %v2308 = vld [vmem:[%s313 + $0x3a] sm:$0xff]
      %v2309 = vld [vmem:[%s313 + $0x4a] sm:$0xff]
      %v2310 = vld [vmem:[%s313 + $0x52] sm:$0xff]
      %v2311 = vld [vmem:[%s313 + $0x62] sm:$0xff]
      %v2312 = vld [vmem:[%s313 + $0x6a] sm:$0xff]
      %v2313 = vld [vmem:[%s313 + $0x7a] sm:$0xff]
      %v2314 = vld [vmem:[%s313 + $0x82] sm:$0xff]
      %v2315 = vld [vmem:[%s313 + $0x92] sm:$0xff]
      %v2316 = vld [vmem:[%s313 + $0x9a] sm:$0xff]
      %v2317 = vld [vmem:[%s313 + $0xaa] sm:$0xff]
      %v2318 = vld [vmem:[%s313 + $0xb2] sm:$0xff]
      %v2319 = vld [vmem:[%s313 + $0xc2] sm:$0xff]
      %v2320 = vld [vmem:[%s313 + $0xca] sm:$0xff]
      %v2321 = vld [vmem:[%s313 + $0xda] sm:$0xff]
      %v2322 = vld [vmem:[%s313 + $0xe2] sm:$0xff]
      %v2323 = vld [vmem:[%s313 + $0xf2] sm:$0xff]
      %v2324 = vld [vmem:[%s313 + $0xfa] sm:$0xff]
      %v2325 = vld [vmem:[%s313 + $0x10a] sm:$0xff]
      %v2326 = vld [vmem:[%s313 + $0x112] sm:$0xff]
      %v2327 = vld [vmem:[%s313 + $0x122] sm:$0xff]
      %v2328 = vld [vmem:[%s313 + $0x12a] sm:$0xff]
      %v2329 = vld [vmem:[%s313 + $0x13a] sm:$0xff]
      %v2330 = vld [vmem:[%s313 + $0x142] sm:$0xff]
      %v2331 = vld [vmem:[%s313 + $0x152] sm:$0xff]
      %v2332 = vld [vmem:[%s313 + $0x15a] sm:$0xff]
      %v2333 = vld [vmem:[%s313 + $0x16a] sm:$0xff]
      %v2334 = vld [vmem:[%s313 + $0x172] sm:$0xff]
      %s2335 = scalar_lea.vmem %s1, 20
      %v2336 = vld [vmem:[%s2335] sm:$0xf]
      %v2338 = vsel %vm225, %v2303, 0
      %v2341 = vsel %vm225, %v2304, 0
      %v2344 = vsel %vm225, %v2305, 0
      %v2347 = vsel %vm225, %v2306, 0
      %v2350 = vsel %vm225, %v2307, 0
      %v2353 = vsel %vm225, %v2308, 0
      %v2356 = vsel %vm225, %v2309, 0
      %v2359 = vsel %vm225, %v2310, 0
      %v2362 = vsel %vm225, %v2311, 0
      %v2365 = vsel %vm225, %v2312, 0
      %v2368 = vsel %vm225, %v2313, 0
      %v2371 = vsel %vm225, %v2314, 0
      %v2374 = vsel %vm225, %v2315, 0
      %v2377 = vsel %vm225, %v2316, 0
      %v2380 = vsel %vm225, %v2317, 0
      %v2383 = vsel %vm225, %v2318, 0
      %v2386 = vsel %vm225, %v2319, 0
      %v2389 = vsel %vm225, %v2320, 0
      %v2392 = vsel %vm225, %v2321, 0
      %v2395 = vsel %vm225, %v2322, 0
      %v2398 = vsel %vm225, %v2323, 0
      %v2401 = vsel %vm225, %v2324, 0
      %v2404 = vsel %vm225, %v2325, 0
      %v2407 = vsel %vm225, %v2326, 0
      %v2410 = vsel %vm225, %v2327, 0
      %v2413 = vsel %vm225, %v2328, 0
      %v2416 = vsel %vm225, %v2329, 0
      %v2419 = vsel %vm225, %v2330, 0
      %v2422 = vsel %vm225, %v2331, 0
      %v2425 = vsel %vm225, %v2332, 0
      %v2428 = vsel %vm225, %v2333, 0
      %v2431 = vsel %vm225, %v2334, 0
      %v2434 = vsel %vm482, %v2336, 0
      %2436 = vmatprep.subr.mxu0 0.0
      %2437 = vmatpush1.msra.mxu0 %v2434
      %2438 = vmatprep.subr.mxu0 0.0
      %2439 = vmatpush1.msra.mxu0 0.0
      %2440 = vmatprep.subr.mxu0 0.0
      %2441 = vmatpush1.msra.mxu0 0.0
      %2442 = vmatprep.subr.mxu0 0.0
      %2443 = vmatpush1.msra.mxu0 0.0
      %2444 = vmatprep.subr.mxu0 0.0
      %2445 = vmatpush1.msra.mxu0 0.0
      %2446 = vmatprep.subr.mxu0 0.0
      %2447 = vmatpush1.msra.mxu0 0.0
      %2448 = vmatprep.subr.mxu0 0.0
      %2449 = vmatpush1.msra.mxu0 0.0
      %2450 = vmatprep.subr.mxu0 0.0
      %2451 = vmatpush1.msra.mxu0 0.0
      %2452 = vmatprep.subr.mxu0 0.0
      %2453 = vmatpush1.msra.mxu0 0.0
      %2454 = vmatprep.subr.mxu0 0.0
      %2455 = vmatpush1.msra.mxu0 0.0
      %2456 = vmatprep.subr.mxu0 0.0
      %2457 = vmatpush1.msra.mxu0 0.0
      %2458 = vmatprep.subr.mxu0 0.0
      %2459 = vmatpush1.msra.mxu0 0.0
      %2460 = vmatprep.subr.mxu0 0.0
      %2461 = vmatpush1.msra.mxu0 0.0
      %2462 = vmatprep.subr.mxu0 0.0
      %2463 = vmatpush1.msra.mxu0 0.0
      %2464 = vmatprep.subr.mxu0 0.0
      %2465 = vmatpush1.msra.mxu0 0.0
      %2466 = vmatprep.subr.mxu0 0.0
      %2467 = vmatpush1.msra.mxu0 0.0
      %2468 = vmatprep.subr.mxu0 0.0
      %2469 = vmatpush1.msra.mxu0 0.0
      %2470 = vmatprep.subr.mxu0 0.0
      %2471 = vmatpush1.msra.mxu0 0.0
      %2472 = vmatprep.subr.mxu0 0.0
      %2473 = vmatpush1.msra.mxu0 0.0
      %2474 = vmatprep.subr.mxu0 0.0
      %2475 = vmatpush1.msra.mxu0 0.0
      %2476 = vmatprep.subr.mxu0 0.0
      %2477 = vmatpush1.msra.mxu0 0.0
      %2478 = vmatprep.subr.mxu0 0.0
      %2479 = vmatpush1.msra.mxu0 0.0
      %2480 = vmatprep.subr.mxu0 0.0
      %2481 = vmatpush1.msra.mxu0 0.0
      %2482 = vmatprep.subr.mxu0 0.0
      %2483 = vmatpush1.msra.mxu0 0.0
      %2484 = vmatprep.subr.mxu0 0.0
      %2485 = vmatpush1.msra.mxu0 0.0
      %2486 = vmatprep.subr.mxu0 0.0
      %2487 = vmatpush1.msra.mxu0 0.0
      %2488 = vmatprep.subr.mxu0 0.0
      %2489 = vmatpush1.msra.mxu0 0.0
      %2490 = vmatprep.subr.mxu0 0.0
      %2491 = vmatpush1.msra.mxu0 0.0
      %2492 = vmatprep.subr.mxu0 0.0
      %2493 = vmatpush1.msra.mxu0 0.0
      %2494 = vmatprep.subr.mxu0 0.0
      %2495 = vmatpush1.msra.mxu0 0.0
      %2496 = vmatprep.subr.mxu0 0.0
      %2497 = vmatpush1.msra.mxu0 0.0
      %2498 = vmatprep.subr.mxu0 0.0
      %2499 = vmatpush1.msra.mxu0 0.0
      %2500 = vmatprep.mubr.f32.mxu0 0.0
      %2501 = vmatmul.mubr.f32.gmra.mrb[0].mxu0 %v2338
      %v2502 = vpop.f32.mrb[0].mxu0
      %v2503 = vadd.f32 0.0, %v2502
      %v2504 = vpop.f32.mrb[0].mxu0
      %2505 = vmatprep.mubr.f32.mxu0 0.0
      %2506 = vmatmul.mubr.f32.gmra.mrb[0].mxu0 %v2341
      %v2507 = vpop.f32.mrb[0].mxu0
      %v2508 = vadd.f32 0.0, %v2507
      %v2509 = vpop.f32.mrb[0].mxu0
      %2510 = vmatprep.mubr.f32.mxu0 0.0
      %2511 = vmatmul.mubr.f32.gmra.mrb[0].mxu0 %v2344
      %v2512 = vpop.f32.mrb[0].mxu0
      %v2513 = vadd.f32 0.0, %v2512
      %v2514 = vpop.f32.mrb[0].mxu0
      %2515 = vmatprep.mubr.f32.mxu0 0.0
      %2516 = vmatmul.mubr.f32.gmra.mrb[0].mxu0 %v2347
      %v2517 = vpop.f32.mrb[0].mxu0
      %v2518 = vadd.f32 0.0, %v2517
      %v2519 = vpop.f32.mrb[0].mxu0
      %2520 = vmatprep.mubr.f32.mxu0 0.0
      %2521 = vmatmul.mubr.f32.gmra.mrb[0].mxu0 %v2350
      %v2522 = vpop.f32.mrb[0].mxu0
      %v2523 = vadd.f32 0.0, %v2522
      %v2524 = vpop.f32.mrb[0].mxu0
      %2525 = vmatprep.mubr.f32.mxu0 0.0
      %2526 = vmatmul.mubr.f32.gmra.mrb[0].mxu0 %v2353
      %v2527 = vpop.f32.mrb[0].mxu0
      %v2528 = vadd.f32 0.0, %v2527
      %v2529 = vpop.f32.mrb[0].mxu0
      %2530 = vmatprep.mubr.f32.mxu0 0.0
      %2531 = vmatmul.mubr.f32.gmra.mrb[0].mxu0 %v2356
      %v2532 = vpop.f32.mrb[0].mxu0
      %v2533 = vadd.f32 0.0, %v2532
      %v2534 = vpop.f32.mrb[0].mxu0
      %2535 = vmatprep.mubr.f32.mxu0 0.0
      %2536 = vmatmul.mubr.f32.gmra.mrb[0].mxu0 %v2359
      %v2537 = vpop.f32.mrb[0].mxu0
      %v2538 = vadd.f32 0.0, %v2537
      %v2539 = vpop.f32.mrb[0].mxu0
      %2540 = vmatprep.mubr.f32.mxu0 0.0
      %2541 = vmatmul.mubr.f32.gmra.mrb[0].mxu0 %v2362
      %v2542 = vpop.f32.mrb[0].mxu0
      %v2543 = vadd.f32 0.0, %v2542
      %v2544 = vpop.f32.mrb[0].mxu0
      %2545 = vmatprep.mubr.f32.mxu0 0.0
      %2546 = vmatmul.mubr.f32.gmra.mrb[0].mxu0 %v2365
      %v2547 = vpop.f32.mrb[0].mxu0
      %v2548 = vadd.f32 0.0, %v2547
      %v2549 = vpop.f32.mrb[0].mxu0
      %2550 = vmatprep.mubr.f32.mxu0 0.0
      %2551 = vmatmul.mubr.f32.gmra.mrb[0].mxu0 %v2368
      %v2552 = vpop.f32.mrb[0].mxu0
      %v2553 = vadd.f32 0.0, %v2552
      %v2554 = vpop.f32.mrb[0].mxu0
      %2555 = vmatprep.mubr.f32.mxu0 0.0
      %2556 = vmatmul.mubr.f32.gmra.mrb[0].mxu0 %v2371
      %v2557 = vpop.f32.mrb[0].mxu0
      %v2558 = vadd.f32 0.0, %v2557
      %v2559 = vpop.f32.mrb[0].mxu0
      %2560 = vmatprep.mubr.f32.mxu0 0.0
      %2561 = vmatmul.mubr.f32.gmra.mrb[0].mxu0 %v2374
      %v2562 = vpop.f32.mrb[0].mxu0
      %v2563 = vadd.f32 0.0, %v2562
      %v2564 = vpop.f32.mrb[0].mxu0
      %2565 = vmatprep.mubr.f32.mxu0 0.0
      %2566 = vmatmul.mubr.f32.gmra.mrb[0].mxu0 %v2377
      %v2567 = vpop.f32.mrb[0].mxu0
      %v2568 = vadd.f32 0.0, %v2567
      %v2569 = vpop.f32.mrb[0].mxu0
      %2570 = vmatprep.mubr.f32.mxu0 0.0
      %2571 = vmatmul.mubr.f32.gmra.mrb[0].mxu0 %v2380
      %v2572 = vpop.f32.mrb[0].mxu0
      %v2573 = vadd.f32 0.0, %v2572
      %v2574 = vpop.f32.mrb[0].mxu0
      %2575 = vmatprep.mubr.f32.mxu0 0.0
      %2576 = vmatmul.mubr.f32.gmra.mrb[0].mxu0 %v2383
      %v2577 = vpop.f32.mrb[0].mxu0
      %v2578 = vadd.f32 0.0, %v2577
      %v2579 = vpop.f32.mrb[0].mxu0
      %2580 = vmatprep.mubr.f32.mxu0 0.0
      %2581 = vmatmul.mubr.f32.gmra.mrb[0].mxu0 %v2386
      %v2582 = vpop.f32.mrb[0].mxu0
      %v2583 = vadd.f32 0.0, %v2582
      %v2584 = vpop.f32.mrb[0].mxu0
      %2585 = vmatprep.mubr.f32.mxu0 0.0
      %2586 = vmatmul.mubr.f32.gmra.mrb[0].mxu0 %v2389
      %v2587 = vpop.f32.mrb[0].mxu0
      %v2588 = vadd.f32 0.0, %v2587
      %v2589 = vpop.f32.mrb[0].mxu0
      %2590 = vmatprep.mubr.f32.mxu0 0.0
      %2591 = vmatmul.mubr.f32.gmra.mrb[0].mxu0 %v2392
      %v2592 = vpop.f32.mrb[0].mxu0
      %v2593 = vadd.f32 0.0, %v2592
      %v2594 = vpop.f32.mrb[0].mxu0
      %2595 = vmatprep.mubr.f32.mxu0 0.0
      %2596 = vmatmul.mubr.f32.gmra.mrb[0].mxu0 %v2395
      %v2597 = vpop.f32.mrb[0].mxu0
      %v2598 = vadd.f32 0.0, %v2597
      %v2599 = vpop.f32.mrb[0].mxu0
      %2600 = vmatprep.mubr.f32.mxu0 0.0
      %2601 = vmatmul.mubr.f32.gmra.mrb[0].mxu0 %v2398
      %v2602 = vpop.f32.mrb[0].mxu0
      %v2603 = vadd.f32 0.0, %v2602
      %v2604 = vpop.f32.mrb[0].mxu0
      %2605 = vmatprep.mubr.f32.mxu0 0.0
      %2606 = vmatmul.mubr.f32.gmra.mrb[0].mxu0 %v2401
      %v2607 = vpop.f32.mrb[0].mxu0
      %v2608 = vadd.f32 0.0, %v2607
      %v2609 = vpop.f32.mrb[0].mxu0
      %2610 = vmatprep.mubr.f32.mxu0 0.0
      %2611 = vmatmul.mubr.f32.gmra.mrb[0].mxu0 %v2404
      %v2612 = vpop.f32.mrb[0].mxu0
      %v2613 = vadd.f32 0.0, %v2612
      %v2614 = vpop.f32.mrb[0].mxu0
      %2615 = vmatprep.mubr.f32.mxu0 0.0
      %2616 = vmatmul.mubr.f32.gmra.mrb[0].mxu0 %v2407
      %v2617 = vpop.f32.mrb[0].mxu0
      %v2618 = vadd.f32 0.0, %v2617
      %v2619 = vpop.f32.mrb[0].mxu0
      %2620 = vmatprep.mubr.f32.mxu0 0.0
      %2621 = vmatmul.mubr.f32.gmra.mrb[0].mxu0 %v2410
      %v2622 = vpop.f32.mrb[0].mxu0
      %v2623 = vadd.f32 0.0, %v2622
      %v2624 = vpop.f32.mrb[0].mxu0
      %2625 = vmatprep.mubr.f32.mxu0 0.0
      %2626 = vmatmul.mubr.f32.gmra.mrb[0].mxu0 %v2413
      %v2627 = vpop.f32.mrb[0].mxu0
      %v2628 = vadd.f32 0.0, %v2627
      %v2629 = vpop.f32.mrb[0].mxu0
      %2630 = vmatprep.mubr.f32.mxu0 0.0
      %2631 = vmatmul.mubr.f32.gmra.mrb[0].mxu0 %v2416
      %v2632 = vpop.f32.mrb[0].mxu0
      %v2633 = vadd.f32 0.0, %v2632
      %v2634 = vpop.f32.mrb[0].mxu0
      %2635 = vmatprep.mubr.f32.mxu0 0.0
      %2636 = vmatmul.mubr.f32.gmra.mrb[0].mxu0 %v2419
      %v2637 = vpop.f32.mrb[0].mxu0
      %v2638 = vadd.f32 0.0, %v2637
      %v2639 = vpop.f32.mrb[0].mxu0
      %2640 = vmatprep.mubr.f32.mxu0 0.0
      %2641 = vmatmul.mubr.f32.gmra.mrb[0].mxu0 %v2422
      %v2642 = vpop.f32.mrb[0].mxu0
      %v2643 = vadd.f32 0.0, %v2642
      %v2644 = vpop.f32.mrb[0].mxu0
      %2645 = vmatprep.mubr.f32.mxu0 0.0
      %2646 = vmatmul.mubr.f32.gmra.mrb[0].mxu0 %v2425
      %v2647 = vpop.f32.mrb[0].mxu0
      %v2648 = vadd.f32 0.0, %v2647
      %v2649 = vpop.f32.mrb[0].mxu0
      %2650 = vmatprep.mubr.f32.mxu0 0.0
      %2651 = vmatmul.mubr.f32.gmra.mrb[0].mxu0 %v2428
      %v2652 = vpop.f32.mrb[0].mxu0
      %v2653 = vadd.f32 0.0, %v2652
      %v2654 = vpop.f32.mrb[0].mxu0
      %2655 = vmatprep.mubr.f32.mxu0 0.0
      %2656 = vmatmul.mubr.f32.gmra.mrb[0].mxu0 %v2431
      %v2657 = vpop.f32.mrb[0].mxu0
      %v2658 = vadd.f32 0.0, %v2657
      %v2659 = vpop.f32.mrb[0].mxu0
      %2660 = vdwg.mxu0
      %v2661 = vadd.f32 %v2271, %v2503
      %v2662 = vadd.f32 %v2272, %v2508
      %v2663 = vadd.f32 %v2273, %v2513
      %v2664 = vadd.f32 %v2274, %v2518
      %v2665 = vadd.f32 %v2275, %v2523
      %v2666 = vadd.f32 %v2276, %v2528
      %v2667 = vadd.f32 %v2277, %v2533
      %v2668 = vadd.f32 %v2278, %v2538
      %v2669 = vadd.f32 %v2279, %v2543
      %v2670 = vadd.f32 %v2280, %v2548
      %v2671 = vadd.f32 %v2281, %v2553
      %v2672 = vadd.f32 %v2282, %v2558
      %v2673 = vadd.f32 %v2283, %v2563
      %v2674 = vadd.f32 %v2284, %v2568
      %v2675 = vadd.f32 %v2285, %v2573
      %v2676 = vadd.f32 %v2286, %v2578
      %v2677 = vadd.f32 %v2287, %v2583
      %v2678 = vadd.f32 %v2288, %v2588
      %v2679 = vadd.f32 %v2289, %v2593
      %v2680 = vadd.f32 %v2290, %v2598
      %v2681 = vadd.f32 %v2291, %v2603
      %v2682 = vadd.f32 %v2292, %v2608
      %v2683 = vadd.f32 %v2293, %v2613
      %v2684 = vadd.f32 %v2294, %v2618
      %v2685 = vadd.f32 %v2295, %v2623
      %v2686 = vadd.f32 %v2296, %v2628
      %v2687 = vadd.f32 %v2297, %v2633
      %v2688 = vadd.f32 %v2298, %v2638
      %v2689 = vadd.f32 %v2299, %v2643
      %v2690 = vadd.f32 %v2300, %v2648
      %v2691 = vadd.f32 %v2301, %v2653
      %v2692 = vadd.f32 %v2302, %v2658
      %s2693 = scalar_lea.vmem [#allocation2], 48
      %v2694 = vld [vmem:[%s2693] sm:$0xff]
      %v2695 = vld [vmem:[%s2693 + $0x8] sm:$0xff]
      %v2696 = vld [vmem:[%s2693 + $0x18] sm:$0xff]
      %v2697 = vld [vmem:[%s2693 + $0x20] sm:$0xff]
      %v2698 = vld [vmem:[%s2693 + $0x30] sm:$0xff]
      %v2699 = vld [vmem:[%s2693 + $0x38] sm:$0xff]
      %v2700 = vld [vmem:[%s2693 + $0x48] sm:$0xff]
      %v2701 = vld [vmem:[%s2693 + $0x50] sm:$0xff]
      %v2702 = vld [vmem:[%s2693 + $0x60] sm:$0xff]
      %v2703 = vld [vmem:[%s2693 + $0x68] sm:$0xff]
      %v2704 = vld [vmem:[%s2693 + $0x78] sm:$0xff]
      %v2705 = vld [vmem:[%s2693 + $0x80] sm:$0xff]
      %v2706 = vld [vmem:[%s2693 + $0x90] sm:$0xff]
      %v2707 = vld [vmem:[%s2693 + $0x98] sm:$0xff]
      %v2708 = vld [vmem:[%s2693 + $0xa8] sm:$0xff]
      %v2709 = vld [vmem:[%s2693 + $0xb0] sm:$0xff]
      %v2710 = vld [vmem:[%s2693 + $0xc0] sm:$0xff]
      %v2711 = vld [vmem:[%s2693 + $0xc8] sm:$0xff]
      %v2712 = vld [vmem:[%s2693 + $0xd8] sm:$0xff]
      %v2713 = vld [vmem:[%s2693 + $0xe0] sm:$0xff]
      %v2714 = vld [vmem:[%s2693 + $0xf0] sm:$0xff]
      %v2715 = vld [vmem:[%s2693 + $0xf8] sm:$0xff]
      %v2716 = vld [vmem:[%s2693 + $0x108] sm:$0xff]
      %v2717 = vld [vmem:[%s2693 + $0x110] sm:$0xff]
      %v2718 = vld [vmem:[%s2693 + $0x120] sm:$0xff]
      %v2719 = vld [vmem:[%s2693 + $0x128] sm:$0xff]
      %v2720 = vld [vmem:[%s2693 + $0x138] sm:$0xff]
      %v2721 = vld [vmem:[%s2693 + $0x140] sm:$0xff]
      %v2722 = vld [vmem:[%s2693 + $0x150] sm:$0xff]
      %v2723 = vld [vmem:[%s2693 + $0x158] sm:$0xff]
      %v2724 = vld [vmem:[%s2693 + $0x168] sm:$0xff]
      %v2725 = vld [vmem:[%s2693 + $0x170] sm:$0xff]
      %s2726 = scalar_lea.vmem %s1, 24
      %v2727 = vld [vmem:[%s2726] sm:$0xf]
      %v2729 = vsel %vm225, %v2694, 0
      %v2732 = vsel %vm225, %v2695, 0
      %v2735 = vsel %vm225, %v2696, 0
      %v2738 = vsel %vm225, %v2697, 0
      %v2741 = vsel %vm225, %v2698, 0
      %v2744 = vsel %vm225, %v2699, 0
      %v2747 = vsel %vm225, %v2700, 0
      %v2750 = vsel %vm225, %v2701, 0
      %v2753 = vsel %vm225, %v2702, 0
      %v2756 = vsel %vm225, %v2703, 0
      %v2759 = vsel %vm225, %v2704, 0
      %v2762 = vsel %vm225, %v2705, 0
      %v2765 = vsel %vm225, %v2706, 0
      %v2768 = vsel %vm225, %v2707, 0
      %v2771 = vsel %vm225, %v2708, 0
      %v2774 = vsel %vm225, %v2709, 0
      %v2777 = vsel %vm225, %v2710, 0
      %v2780 = vsel %vm225, %v2711, 0
      %v2783 = vsel %vm225, %v2712, 0
      %v2786 = vsel %vm225, %v2713, 0
      %v2789 = vsel %vm225, %v2714, 0
      %v2792 = vsel %vm225, %v2715, 0
      %v2795 = vsel %vm225, %v2716, 0
      %v2798 = vsel %vm225, %v2717, 0
      %v2801 = vsel %vm225, %v2718, 0
      %v2804 = vsel %vm225, %v2719, 0
      %v2807 = vsel %vm225, %v2720, 0
      %v2810 = vsel %vm225, %v2721, 0
      %v2813 = vsel %vm225, %v2722, 0
      %v2816 = vsel %vm225, %v2723, 0
      %v2819 = vsel %vm225, %v2724, 0
      %v2822 = vsel %vm225, %v2725, 0
      %v2825 = vsel %vm482, %v2727, 0
      %2827 = vmatprep.subr.mxu0 0.0
      %2828 = vmatpush1.msra.mxu0 %v2825
      %2829 = vmatprep.subr.mxu0 0.0
      %2830 = vmatpush1.msra.mxu0 0.0
      %2831 = vmatprep.subr.mxu0 0.0
      %2832 = vmatpush1.msra.mxu0 0.0
      %2833 = vmatprep.subr.mxu0 0.0
      %2834 = vmatpush1.msra.mxu0 0.0
      %2835 = vmatprep.subr.mxu0 0.0
      %2836 = vmatpush1.msra.mxu0 0.0
      %2837 = vmatprep.subr.mxu0 0.0
      %2838 = vmatpush1.msra.mxu0 0.0
      %2839 = vmatprep.subr.mxu0 0.0
      %2840 = vmatpush1.msra.mxu0 0.0
      %2841 = vmatprep.subr.mxu0 0.0
      %2842 = vmatpush1.msra.mxu0 0.0
      %2843 = vmatprep.subr.mxu0 0.0
      %2844 = vmatpush1.msra.mxu0 0.0
      %2845 = vmatprep.subr.mxu0 0.0
      %2846 = vmatpush1.msra.mxu0 0.0
      %2847 = vmatprep.subr.mxu0 0.0
      %2848 = vmatpush1.msra.mxu0 0.0
      %2849 = vmatprep.subr.mxu0 0.0
      %2850 = vmatpush1.msra.mxu0 0.0
      %2851 = vmatprep.subr.mxu0 0.0
      %2852 = vmatpush1.msra.mxu0 0.0
      %2853 = vmatprep.subr.mxu0 0.0
      %2854 = vmatpush1.msra.mxu0 0.0
      %2855 = vmatprep.subr.mxu0 0.0
      %2856 = vmatpush1.msra.mxu0 0.0
      %2857 = vmatprep.subr.mxu0 0.0
      %2858 = vmatpush1.msra.mxu0 0.0
      %2859 = vmatprep.subr.mxu0 0.0
      %2860 = vmatpush1.msra.mxu0 0.0
      %2861 = vmatprep.subr.mxu0 0.0
      %2862 = vmatpush1.msra.mxu0 0.0
      %2863 = vmatprep.subr.mxu0 0.0
      %2864 = vmatpush1.msra.mxu0 0.0
      %2865 = vmatprep.subr.mxu0 0.0
      %2866 = vmatpush1.msra.mxu0 0.0
      %2867 = vmatprep.subr.mxu0 0.0
      %2868 = vmatpush1.msra.mxu0 0.0
      %2869 = vmatprep.subr.mxu0 0.0
      %2870 = vmatpush1.msra.mxu0 0.0
      %2871 = vmatprep.subr.mxu0 0.0
      %2872 = vmatpush1.msra.mxu0 0.0
      %2873 = vmatprep.subr.mxu0 0.0
      %2874 = vmatpush1.msra.mxu0 0.0
      %2875 = vmatprep.subr.mxu0 0.0
      %2876 = vmatpush1.msra.mxu0 0.0
      %2877 = vmatprep.subr.mxu0 0.0
      %2878 = vmatpush1.msra.mxu0 0.0
      %2879 = vmatprep.subr.mxu0 0.0
      %2880 = vmatpush1.msra.mxu0 0.0
      %2881 = vmatprep.subr.mxu0 0.0
      %2882 = vmatpush1.msra.mxu0 0.0
      %2883 = vmatprep.subr.mxu0 0.0
      %2884 = vmatpush1.msra.mxu0 0.0
      %2885 = vmatprep.subr.mxu0 0.0
      %2886 = vmatpush1.msra.mxu0 0.0
      %2887 = vmatprep.subr.mxu0 0.0
      %2888 = vmatpush1.msra.mxu0 0.0
      %2889 = vmatprep.subr.mxu0 0.0
      %2890 = vmatpush1.msra.mxu0 0.0
      %2891 = vmatprep.mubr.f32.mxu0 0.0
      %2892 = vmatmul.mubr.f32.gmra.mrb[0].mxu0 %v2729
      %v2893 = vpop.f32.mrb[0].mxu0
      %v2894 = vadd.f32 0.0, %v2893
      %v2895 = vpop.f32.mrb[0].mxu0
      %2896 = vmatprep.mubr.f32.mxu0 0.0
      %2897 = vmatmul.mubr.f32.gmra.mrb[0].mxu0 %v2732
      %v2898 = vpop.f32.mrb[0].mxu0
      %v2899 = vadd.f32 0.0, %v2898
      %v2900 = vpop.f32.mrb[0].mxu0
      %2901 = vmatprep.mubr.f32.mxu0 0.0
      %2902 = vmatmul.mubr.f32.gmra.mrb[0].mxu0 %v2735
      %v2903 = vpop.f32.mrb[0].mxu0
      %v2904 = vadd.f32 0.0, %v2903
      %v2905 = vpop.f32.mrb[0].mxu0
      %2906 = vmatprep.mubr.f32.mxu0 0.0
      %2907 = vmatmul.mubr.f32.gmra.mrb[0].mxu0 %v2738
      %v2908 = vpop.f32.mrb[0].mxu0
      %v2909 = vadd.f32 0.0, %v2908
      %v2910 = vpop.f32.mrb[0].mxu0
      %2911 = vmatprep.mubr.f32.mxu0 0.0
      %2912 = vmatmul.mubr.f32.gmra.mrb[0].mxu0 %v2741
      %v2913 = vpop.f32.mrb[0].mxu0
      %v2914 = vadd.f32 0.0, %v2913
      %v2915 = vpop.f32.mrb[0].mxu0
      %2916 = vmatprep.mubr.f32.mxu0 0.0
      %2917 = vmatmul.mubr.f32.gmra.mrb[0].mxu0 %v2744
      %v2918 = vpop.f32.mrb[0].mxu0
      %v2919 = vadd.f32 0.0, %v2918
      %v2920 = vpop.f32.mrb[0].mxu0
      %2921 = vmatprep.mubr.f32.mxu0 0.0
      %2922 = vmatmul.mubr.f32.gmra.mrb[0].mxu0 %v2747
      %v2923 = vpop.f32.mrb[0].mxu0
      %v2924 = vadd.f32 0.0, %v2923
      %v2925 = vpop.f32.mrb[0].mxu0
      %2926 = vmatprep.mubr.f32.mxu0 0.0
      %2927 = vmatmul.mubr.f32.gmra.mrb[0].mxu0 %v2750
      %v2928 = vpop.f32.mrb[0].mxu0
      %v2929 = vadd.f32 0.0, %v2928
      %v2930 = vpop.f32.mrb[0].mxu0
      %2931 = vmatprep.mubr.f32.mxu0 0.0
      %2932 = vmatmul.mubr.f32.gmra.mrb[0].mxu0 %v2753
      %v2933 = vpop.f32.mrb[0].mxu0
      %v2934 = vadd.f32 0.0, %v2933
      %v2935 = vpop.f32.mrb[0].mxu0
      %2936 = vmatprep.mubr.f32.mxu0 0.0
      %2937 = vmatmul.mubr.f32.gmra.mrb[0].mxu0 %v2756
      %v2938 = vpop.f32.mrb[0].mxu0
      %v2939 = vadd.f32 0.0, %v2938
      %v2940 = vpop.f32.mrb[0].mxu0
      %2941 = vmatprep.mubr.f32.mxu0 0.0
      %2942 = vmatmul.mubr.f32.gmra.mrb[0].mxu0 %v2759
      %v2943 = vpop.f32.mrb[0].mxu0
      %v2944 = vadd.f32 0.0, %v2943
      %v2945 = vpop.f32.mrb[0].mxu0
      %2946 = vmatprep.mubr.f32.mxu0 0.0
      %2947 = vmatmul.mubr.f32.gmra.mrb[0].mxu0 %v2762
      %v2948 = vpop.f32.mrb[0].mxu0
      %v2949 = vadd.f32 0.0, %v2948
      %v2950 = vpop.f32.mrb[0].mxu0
      %2951 = vmatprep.mubr.f32.mxu0 0.0
      %2952 = vmatmul.mubr.f32.gmra.mrb[0].mxu0 %v2765
      %v2953 = vpop.f32.mrb[0].mxu0
      %v2954 = vadd.f32 0.0, %v2953
      %v2955 = vpop.f32.mrb[0].mxu0
      %2956 = vmatprep.mubr.f32.mxu0 0.0
      %2957 = vmatmul.mubr.f32.gmra.mrb[0].mxu0 %v2768
      %v2958 = vpop.f32.mrb[0].mxu0
      %v2959 = vadd.f32 0.0, %v2958
      %v2960 = vpop.f32.mrb[0].mxu0
      %2961 = vmatprep.mubr.f32.mxu0 0.0
      %2962 = vmatmul.mubr.f32.gmra.mrb[0].mxu0 %v2771
      %v2963 = vpop.f32.mrb[0].mxu0
      %v2964 = vadd.f32 0.0, %v2963
      %v2965 = vpop.f32.mrb[0].mxu0
      %2966 = vmatprep.mubr.f32.mxu0 0.0
      %2967 = vmatmul.mubr.f32.gmra.mrb[0].mxu0 %v2774
      %v2968 = vpop.f32.mrb[0].mxu0
      %v2969 = vadd.f32 0.0, %v2968
      %v2970 = vpop.f32.mrb[0].mxu0
      %2971 = vmatprep.mubr.f32.mxu0 0.0
      %2972 = vmatmul.mubr.f32.gmra.mrb[0].mxu0 %v2777
      %v2973 = vpop.f32.mrb[0].mxu0
      %v2974 = vadd.f32 0.0, %v2973
      %v2975 = vpop.f32.mrb[0].mxu0
      %2976 = vmatprep.mubr.f32.mxu0 0.0
      %2977 = vmatmul.mubr.f32.gmra.mrb[0].mxu0 %v2780
      %v2978 = vpop.f32.mrb[0].mxu0
      %v2979 = vadd.f32 0.0, %v2978
      %v2980 = vpop.f32.mrb[0].mxu0
      %2981 = vmatprep.mubr.f32.mxu0 0.0
      %2982 = vmatmul.mubr.f32.gmra.mrb[0].mxu0 %v2783
      %v2983 = vpop.f32.mrb[0].mxu0
      %v2984 = vadd.f32 0.0, %v2983
      %v2985 = vpop.f32.mrb[0].mxu0
      %2986 = vmatprep.mubr.f32.mxu0 0.0
      %2987 = vmatmul.mubr.f32.gmra.mrb[0].mxu0 %v2786
      %v2988 = vpop.f32.mrb[0].mxu0
      %v2989 = vadd.f32 0.0, %v2988
      %v2990 = vpop.f32.mrb[0].mxu0
      %2991 = vmatprep.mubr.f32.mxu0 0.0
      %2992 = vmatmul.mubr.f32.gmra.mrb[0].mxu0 %v2789
      %v2993 = vpop.f32.mrb[0].mxu0
      %v2994 = vadd.f32 0.0, %v2993
      %v2995 = vpop.f32.mrb[0].mxu0
      %2996 = vmatprep.mubr.f32.mxu0 0.0
      %2997 = vmatmul.mubr.f32.gmra.mrb[0].mxu0 %v2792
      %v2998 = vpop.f32.mrb[0].mxu0
      %v2999 = vadd.f32 0.0, %v2998
      %v3000 = vpop.f32.mrb[0].mxu0
      %3001 = vmatprep.mubr.f32.mxu0 0.0
      %3002 = vmatmul.mubr.f32.gmra.mrb[0].mxu0 %v2795
      %v3003 = vpop.f32.mrb[0].mxu0
      %v3004 = vadd.f32 0.0, %v3003
      %v3005 = vpop.f32.mrb[0].mxu0
      %3006 = vmatprep.mubr.f32.mxu0 0.0
      %3007 = vmatmul.mubr.f32.gmra.mrb[0].mxu0 %v2798
      %v3008 = vpop.f32.mrb[0].mxu0
      %v3009 = vadd.f32 0.0, %v3008
      %v3010 = vpop.f32.mrb[0].mxu0
      %3011 = vmatprep.mubr.f32.mxu0 0.0
      %3012 = vmatmul.mubr.f32.gmra.mrb[0].mxu0 %v2801
      %v3013 = vpop.f32.mrb[0].mxu0
      %v3014 = vadd.f32 0.0, %v3013
      %v3015 = vpop.f32.mrb[0].mxu0
      %3016 = vmatprep.mubr.f32.mxu0 0.0
      %3017 = vmatmul.mubr.f32.gmra.mrb[0].mxu0 %v2804
      %v3018 = vpop.f32.mrb[0].mxu0
      %v3019 = vadd.f32 0.0, %v3018
      %v3020 = vpop.f32.mrb[0].mxu0
      %3021 = vmatprep.mubr.f32.mxu0 0.0
      %3022 = vmatmul.mubr.f32.gmra.mrb[0].mxu0 %v2807
      %v3023 = vpop.f32.mrb[0].mxu0
      %v3024 = vadd.f32 0.0, %v3023
      %v3025 = vpop.f32.mrb[0].mxu0
      %3026 = vmatprep.mubr.f32.mxu0 0.0
      %3027 = vmatmul.mubr.f32.gmra.mrb[0].mxu0 %v2810
      %v3028 = vpop.f32.mrb[0].mxu0
      %v3029 = vadd.f32 0.0, %v3028
      %v3030 = vpop.f32.mrb[0].mxu0
      %3031 = vmatprep.mubr.f32.mxu0 0.0
      %3032 = vmatmul.mubr.f32.gmra.mrb[0].mxu0 %v2813
      %v3033 = vpop.f32.mrb[0].mxu0
      %v3034 = vadd.f32 0.0, %v3033
      %v3035 = vpop.f32.mrb[0].mxu0
      %3036 = vmatprep.mubr.f32.mxu0 0.0
      %3037 = vmatmul.mubr.f32.gmra.mrb[0].mxu0 %v2816
      %v3038 = vpop.f32.mrb[0].mxu0
      %v3039 = vadd.f32 0.0, %v3038
      %v3040 = vpop.f32.mrb[0].mxu0
      %3041 = vmatprep.mubr.f32.mxu0 0.0
      %3042 = vmatmul.mubr.f32.gmra.mrb[0].mxu0 %v2819
      %v3043 = vpop.f32.mrb[0].mxu0
      %v3044 = vadd.f32 0.0, %v3043
      %v3045 = vpop.f32.mrb[0].mxu0
      %3046 = vmatprep.mubr.f32.mxu0 0.0
      %3047 = vmatmul.mubr.f32.gmra.mrb[0].mxu0 %v2822
      %v3048 = vpop.f32.mrb[0].mxu0
      %v3049 = vadd.f32 0.0, %v3048
      %v3050 = vpop.f32.mrb[0].mxu0
      %3051 = vdwg.mxu0
      %v3052 = vadd.f32 %v2661, %v2894
      %v3053 = vadd.f32 %v2662, %v2899
      %v3054 = vadd.f32 %v2663, %v2904
      %v3055 = vadd.f32 %v2664, %v2909
      %v3056 = vadd.f32 %v2665, %v2914
      %v3057 = vadd.f32 %v2666, %v2919
      %v3058 = vadd.f32 %v2667, %v2924
      %v3059 = vadd.f32 %v2668, %v2929
      %v3060 = vadd.f32 %v2669, %v2934
      %v3061 = vadd.f32 %v2670, %v2939
      %v3062 = vadd.f32 %v2671, %v2944
      %v3063 = vadd.f32 %v2672, %v2949
      %v3064 = vadd.f32 %v2673, %v2954
      %v3065 = vadd.f32 %v2674, %v2959
      %v3066 = vadd.f32 %v2675, %v2964
      %v3067 = vadd.f32 %v2676, %v2969
      %v3068 = vadd.f32 %v2677, %v2974
      %v3069 = vadd.f32 %v2678, %v2979
      %v3070 = vadd.f32 %v2679, %v2984
      %v3071 = vadd.f32 %v2680, %v2989
      %v3072 = vadd.f32 %v2681, %v2994
      %v3073 = vadd.f32 %v2682, %v2999
      %v3074 = vadd.f32 %v2683, %v3004
      %v3075 = vadd.f32 %v2684, %v3009
      %v3076 = vadd.f32 %v2685, %v3014
      %v3077 = vadd.f32 %v2686, %v3019
      %v3078 = vadd.f32 %v2687, %v3024
      %v3079 = vadd.f32 %v2688, %v3029
      %v3080 = vadd.f32 %v2689, %v3034
      %v3081 = vadd.f32 %v2690, %v3039
      %v3082 = vadd.f32 %v2691, %v3044
      %v3083 = vadd.f32 %v2692, %v3049
      %v3084 = vld [vmem:[%s2693 + $0x1] sm:$0xff]
      %v3085 = vld [vmem:[%s2693 + $0x9] sm:$0xff]
      %v3086 = vld [vmem:[%s2693 + $0x19] sm:$0xff]
      %v3087 = vld [vmem:[%s2693 + $0x21] sm:$0xff]
      %v3088 = vld [vmem:[%s2693 + $0x31] sm:$0xff]
      %v3089 = vld [vmem:[%s2693 + $0x39] sm:$0xff]
      %v3090 = vld [vmem:[%s2693 + $0x49] sm:$0xff]
      %v3091 = vld [vmem:[%s2693 + $0x51] sm:$0xff]
      %v3092 = vld [vmem:[%s2693 + $0x61] sm:$0xff]
      %v3093 = vld [vmem:[%s2693 + $0x69] sm:$0xff]
      %v3094 = vld [vmem:[%s2693 + $0x79] sm:$0xff]
      %v3095 = vld [vmem:[%s2693 + $0x81] sm:$0xff]
      %v3096 = vld [vmem:[%s2693 + $0x91] sm:$0xff]
      %v3097 = vld [vmem:[%s2693 + $0x99] sm:$0xff]
      %v3098 = vld [vmem:[%s2693 + $0xa9] sm:$0xff]
      %v3099 = vld [vmem:[%s2693 + $0xb1] sm:$0xff]
      %v3100 = vld [vmem:[%s2693 + $0xc1] sm:$0xff]
      %v3101 = vld [vmem:[%s2693 + $0xc9] sm:$0xff]
      %v3102 = vld [vmem:[%s2693 + $0xd9] sm:$0xff]
      %v3103 = vld [vmem:[%s2693 + $0xe1] sm:$0xff]
      %v3104 = vld [vmem:[%s2693 + $0xf1] sm:$0xff]
      %v3105 = vld [vmem:[%s2693 + $0xf9] sm:$0xff]
      %v3106 = vld [vmem:[%s2693 + $0x109] sm:$0xff]
      %v3107 = vld [vmem:[%s2693 + $0x111] sm:$0xff]
      %v3108 = vld [vmem:[%s2693 + $0x121] sm:$0xff]
      %v3109 = vld [vmem:[%s2693 + $0x129] sm:$0xff]
      %v3110 = vld [vmem:[%s2693 + $0x139] sm:$0xff]
      %v3111 = vld [vmem:[%s2693 + $0x141] sm:$0xff]
      %v3112 = vld [vmem:[%s2693 + $0x151] sm:$0xff]
      %v3113 = vld [vmem:[%s2693 + $0x159] sm:$0xff]
      %v3114 = vld [vmem:[%s2693 + $0x169] sm:$0xff]
      %v3115 = vld [vmem:[%s2693 + $0x171] sm:$0xff]
      %s3116 = scalar_lea.vmem %s1, 28
      %v3117 = vld [vmem:[%s3116] sm:$0xf]
      %v3119 = vsel %vm225, %v3084, 0
      %v3122 = vsel %vm225, %v3085, 0
      %v3125 = vsel %vm225, %v3086, 0
      %v3128 = vsel %vm225, %v3087, 0
      %v3131 = vsel %vm225, %v3088, 0
      %v3134 = vsel %vm225, %v3089, 0
      %v3137 = vsel %vm225, %v3090, 0
      %v3140 = vsel %vm225, %v3091, 0
      %v3143 = vsel %vm225, %v3092, 0
      %v3146 = vsel %vm225, %v3093, 0
      %v3149 = vsel %vm225, %v3094, 0
      %v3152 = vsel %vm225, %v3095, 0
      %v3155 = vsel %vm225, %v3096, 0
      %v3158 = vsel %vm225, %v3097, 0
      %v3161 = vsel %vm225, %v3098, 0
      %v3164 = vsel %vm225, %v3099, 0
      %v3167 = vsel %vm225, %v3100, 0
      %v3170 = vsel %vm225, %v3101, 0
      %v3173 = vsel %vm225, %v3102, 0
      %v3176 = vsel %vm225, %v3103, 0
      %v3179 = vsel %vm225, %v3104, 0
      %v3182 = vsel %vm225, %v3105, 0
      %v3185 = vsel %vm225, %v3106, 0
      %v3188 = vsel %vm225, %v3107, 0
      %v3191 = vsel %vm225, %v3108, 0
      %v3194 = vsel %vm225, %v3109, 0
      %v3197 = vsel %vm225, %v3110, 0
      %v3200 = vsel %vm225, %v3111, 0
      %v3203 = vsel %vm225, %v3112, 0
      %v3206 = vsel %vm225, %v3113, 0
      %v3209 = vsel %vm225, %v3114, 0
      %v3212 = vsel %vm225, %v3115, 0
      %v3215 = vsel %vm482, %v3117, 0
      %3217 = vmatprep.subr.mxu0 0.0
      %3218 = vmatpush1.msra.mxu0 %v3215
      %3219 = vmatprep.subr.mxu0 0.0
      %3220 = vmatpush1.msra.mxu0 0.0
      %3221 = vmatprep.subr.mxu0 0.0
      %3222 = vmatpush1.msra.mxu0 0.0
      %3223 = vmatprep.subr.mxu0 0.0
      %3224 = vmatpush1.msra.mxu0 0.0
      %3225 = vmatprep.subr.mxu0 0.0
      %3226 = vmatpush1.msra.mxu0 0.0
      %3227 = vmatprep.subr.mxu0 0.0
      %3228 = vmatpush1.msra.mxu0 0.0
      %3229 = vmatprep.subr.mxu0 0.0
      %3230 = vmatpush1.msra.mxu0 0.0
      %3231 = vmatprep.subr.mxu0 0.0
      %3232 = vmatpush1.msra.mxu0 0.0
      %3233 = vmatprep.subr.mxu0 0.0
      %3234 = vmatpush1.msra.mxu0 0.0
      %3235 = vmatprep.subr.mxu0 0.0
      %3236 = vmatpush1.msra.mxu0 0.0
      %3237 = vmatprep.subr.mxu0 0.0
      %3238 = vmatpush1.msra.mxu0 0.0
      %3239 = vmatprep.subr.mxu0 0.0
      %3240 = vmatpush1.msra.mxu0 0.0
      %3241 = vmatprep.subr.mxu0 0.0
      %3242 = vmatpush1.msra.mxu0 0.0
      %3243 = vmatprep.subr.mxu0 0.0
      %3244 = vmatpush1.msra.mxu0 0.0
      %3245 = vmatprep.subr.mxu0 0.0
      %3246 = vmatpush1.msra.mxu0 0.0
      %3247 = vmatprep.subr.mxu0 0.0
      %3248 = vmatpush1.msra.mxu0 0.0
      %3249 = vmatprep.subr.mxu0 0.0
      %3250 = vmatpush1.msra.mxu0 0.0
      %3251 = vmatprep.subr.mxu0 0.0
      %3252 = vmatpush1.msra.mxu0 0.0
      %3253 = vmatprep.subr.mxu0 0.0
      %3254 = vmatpush1.msra.mxu0 0.0
      %3255 = vmatprep.subr.mxu0 0.0
      %3256 = vmatpush1.msra.mxu0 0.0
      %3257 = vmatprep.subr.mxu0 0.0
      %3258 = vmatpush1.msra.mxu0 0.0
      %3259 = vmatprep.subr.mxu0 0.0
      %3260 = vmatpush1.msra.mxu0 0.0
      %3261 = vmatprep.subr.mxu0 0.0
      %3262 = vmatpush1.msra.mxu0 0.0
      %3263 = vmatprep.subr.mxu0 0.0
      %3264 = vmatpush1.msra.mxu0 0.0
      %3265 = vmatprep.subr.mxu0 0.0
      %3266 = vmatpush1.msra.mxu0 0.0
      %3267 = vmatprep.subr.mxu0 0.0
      %3268 = vmatpush1.msra.mxu0 0.0
      %3269 = vmatprep.subr.mxu0 0.0
      %3270 = vmatpush1.msra.mxu0 0.0
      %3271 = vmatprep.subr.mxu0 0.0
      %3272 = vmatpush1.msra.mxu0 0.0
      %3273 = vmatprep.subr.mxu0 0.0
      %3274 = vmatpush1.msra.mxu0 0.0
      %3275 = vmatprep.subr.mxu0 0.0
      %3276 = vmatpush1.msra.mxu0 0.0
      %3277 = vmatprep.subr.mxu0 0.0
      %3278 = vmatpush1.msra.mxu0 0.0
      %3279 = vmatprep.subr.mxu0 0.0
      %3280 = vmatpush1.msra.mxu0 0.0
      %3281 = vmatprep.mubr.f32.mxu0 0.0
      %3282 = vmatmul.mubr.f32.gmra.mrb[0].mxu0 %v3119
      %v3283 = vpop.f32.mrb[0].mxu0
      %v3284 = vadd.f32 0.0, %v3283
      %v3285 = vpop.f32.mrb[0].mxu0
      %3286 = vmatprep.mubr.f32.mxu0 0.0
      %3287 = vmatmul.mubr.f32.gmra.mrb[0].mxu0 %v3122
      %v3288 = vpop.f32.mrb[0].mxu0
      %v3289 = vadd.f32 0.0, %v3288
      %v3290 = vpop.f32.mrb[0].mxu0
      %3291 = vmatprep.mubr.f32.mxu0 0.0
      %3292 = vmatmul.mubr.f32.gmra.mrb[0].mxu0 %v3125
      %v3293 = vpop.f32.mrb[0].mxu0
      %v3294 = vadd.f32 0.0, %v3293
      %v3295 = vpop.f32.mrb[0].mxu0
      %3296 = vmatprep.mubr.f32.mxu0 0.0
      %3297 = vmatmul.mubr.f32.gmra.mrb[0].mxu0 %v3128
      %v3298 = vpop.f32.mrb[0].mxu0
      %v3299 = vadd.f32 0.0, %v3298
      %v3300 = vpop.f32.mrb[0].mxu0
      %3301 = vmatprep.mubr.f32.mxu0 0.0
      %3302 = vmatmul.mubr.f32.gmra.mrb[0].mxu0 %v3131
      %v3303 = vpop.f32.mrb[0].mxu0
      %v3304 = vadd.f32 0.0, %v3303
      %v3305 = vpop.f32.mrb[0].mxu0
      %3306 = vmatprep.mubr.f32.mxu0 0.0
      %3307 = vmatmul.mubr.f32.gmra.mrb[0].mxu0 %v3134
      %v3308 = vpop.f32.mrb[0].mxu0
      %v3309 = vadd.f32 0.0, %v3308
      %v3310 = vpop.f32.mrb[0].mxu0
      %3311 = vmatprep.mubr.f32.mxu0 0.0
      %3312 = vmatmul.mubr.f32.gmra.mrb[0].mxu0 %v3137
      %v3313 = vpop.f32.mrb[0].mxu0
      %v3314 = vadd.f32 0.0, %v3313
      %v3315 = vpop.f32.mrb[0].mxu0
      %3316 = vmatprep.mubr.f32.mxu0 0.0
      %3317 = vmatmul.mubr.f32.gmra.mrb[0].mxu0 %v3140
      %v3318 = vpop.f32.mrb[0].mxu0
      %v3319 = vadd.f32 0.0, %v3318
      %v3320 = vpop.f32.mrb[0].mxu0
      %3321 = vmatprep.mubr.f32.mxu0 0.0
      %3322 = vmatmul.mubr.f32.gmra.mrb[0].mxu0 %v3143
      %v3323 = vpop.f32.mrb[0].mxu0
      %v3324 = vadd.f32 0.0, %v3323
      %v3325 = vpop.f32.mrb[0].mxu0
      %3326 = vmatprep.mubr.f32.mxu0 0.0
      %3327 = vmatmul.mubr.f32.gmra.mrb[0].mxu0 %v3146
      %v3328 = vpop.f32.mrb[0].mxu0
      %v3329 = vadd.f32 0.0, %v3328
      %v3330 = vpop.f32.mrb[0].mxu0
      %3331 = vmatprep.mubr.f32.mxu0 0.0
      %3332 = vmatmul.mubr.f32.gmra.mrb[0].mxu0 %v3149
      %v3333 = vpop.f32.mrb[0].mxu0
      %v3334 = vadd.f32 0.0, %v3333
      %v3335 = vpop.f32.mrb[0].mxu0
      %3336 = vmatprep.mubr.f32.mxu0 0.0
      %3337 = vmatmul.mubr.f32.gmra.mrb[0].mxu0 %v3152
      %v3338 = vpop.f32.mrb[0].mxu0
      %v3339 = vadd.f32 0.0, %v3338
      %v3340 = vpop.f32.mrb[0].mxu0
      %3341 = vmatprep.mubr.f32.mxu0 0.0
      %3342 = vmatmul.mubr.f32.gmra.mrb[0].mxu0 %v3155
      %v3343 = vpop.f32.mrb[0].mxu0
      %v3344 = vadd.f32 0.0, %v3343
      %v3345 = vpop.f32.mrb[0].mxu0
      %3346 = vmatprep.mubr.f32.mxu0 0.0
      %3347 = vmatmul.mubr.f32.gmra.mrb[0].mxu0 %v3158
      %v3348 = vpop.f32.mrb[0].mxu0
      %v3349 = vadd.f32 0.0, %v3348
      %v3350 = vpop.f32.mrb[0].mxu0
      %3351 = vmatprep.mubr.f32.mxu0 0.0
      %3352 = vmatmul.mubr.f32.gmra.mrb[0].mxu0 %v3161
      %v3353 = vpop.f32.mrb[0].mxu0
      %v3354 = vadd.f32 0.0, %v3353
      %v3355 = vpop.f32.mrb[0].mxu0
      %3356 = vmatprep.mubr.f32.mxu0 0.0
      %3357 = vmatmul.mubr.f32.gmra.mrb[0].mxu0 %v3164
      %v3358 = vpop.f32.mrb[0].mxu0
      %v3359 = vadd.f32 0.0, %v3358
      %v3360 = vpop.f32.mrb[0].mxu0
      %3361 = vmatprep.mubr.f32.mxu0 0.0
      %3362 = vmatmul.mubr.f32.gmra.mrb[0].mxu0 %v3167
      %v3363 = vpop.f32.mrb[0].mxu0
      %v3364 = vadd.f32 0.0, %v3363
      %v3365 = vpop.f32.mrb[0].mxu0
      %3366 = vmatprep.mubr.f32.mxu0 0.0
      %3367 = vmatmul.mubr.f32.gmra.mrb[0].mxu0 %v3170
      %v3368 = vpop.f32.mrb[0].mxu0
      %v3369 = vadd.f32 0.0, %v3368
      %v3370 = vpop.f32.mrb[0].mxu0
      %3371 = vmatprep.mubr.f32.mxu0 0.0
      %3372 = vmatmul.mubr.f32.gmra.mrb[0].mxu0 %v3173
      %v3373 = vpop.f32.mrb[0].mxu0
      %v3374 = vadd.f32 0.0, %v3373
      %v3375 = vpop.f32.mrb[0].mxu0
      %3376 = vmatprep.mubr.f32.mxu0 0.0
      %3377 = vmatmul.mubr.f32.gmra.mrb[0].mxu0 %v3176
      %v3378 = vpop.f32.mrb[0].mxu0
      %v3379 = vadd.f32 0.0, %v3378
      %v3380 = vpop.f32.mrb[0].mxu0
      %3381 = vmatprep.mubr.f32.mxu0 0.0
      %3382 = vmatmul.mubr.f32.gmra.mrb[0].mxu0 %v3179
      %v3383 = vpop.f32.mrb[0].mxu0
      %v3384 = vadd.f32 0.0, %v3383
      %v3385 = vpop.f32.mrb[0].mxu0
      %3386 = vmatprep.mubr.f32.mxu0 0.0
      %3387 = vmatmul.mubr.f32.gmra.mrb[0].mxu0 %v3182
      %v3388 = vpop.f32.mrb[0].mxu0
      %v3389 = vadd.f32 0.0, %v3388
      %v3390 = vpop.f32.mrb[0].mxu0
      %3391 = vmatprep.mubr.f32.mxu0 0.0
      %3392 = vmatmul.mubr.f32.gmra.mrb[0].mxu0 %v3185
      %v3393 = vpop.f32.mrb[0].mxu0
      %v3394 = vadd.f32 0.0, %v3393
      %v3395 = vpop.f32.mrb[0].mxu0
      %3396 = vmatprep.mubr.f32.mxu0 0.0
      %3397 = vmatmul.mubr.f32.gmra.mrb[0].mxu0 %v3188
      %v3398 = vpop.f32.mrb[0].mxu0
      %v3399 = vadd.f32 0.0, %v3398
      %v3400 = vpop.f32.mrb[0].mxu0
      %3401 = vmatprep.mubr.f32.mxu0 0.0
      %3402 = vmatmul.mubr.f32.gmra.mrb[0].mxu0 %v3191
      %v3403 = vpop.f32.mrb[0].mxu0
      %v3404 = vadd.f32 0.0, %v3403
      %v3405 = vpop.f32.mrb[0].mxu0
      %3406 = vmatprep.mubr.f32.mxu0 0.0
      %3407 = vmatmul.mubr.f32.gmra.mrb[0].mxu0 %v3194
      %v3408 = vpop.f32.mrb[0].mxu0
      %v3409 = vadd.f32 0.0, %v3408
      %v3410 = vpop.f32.mrb[0].mxu0
      %3411 = vmatprep.mubr.f32.mxu0 0.0
      %3412 = vmatmul.mubr.f32.gmra.mrb[0].mxu0 %v3197
      %v3413 = vpop.f32.mrb[0].mxu0
      %v3414 = vadd.f32 0.0, %v3413
      %v3415 = vpop.f32.mrb[0].mxu0
      %3416 = vmatprep.mubr.f32.mxu0 0.0
      %3417 = vmatmul.mubr.f32.gmra.mrb[0].mxu0 %v3200
      %v3418 = vpop.f32.mrb[0].mxu0
      %v3419 = vadd.f32 0.0, %v3418
      %v3420 = vpop.f32.mrb[0].mxu0
      %3421 = vmatprep.mubr.f32.mxu0 0.0
      %3422 = vmatmul.mubr.f32.gmra.mrb[0].mxu0 %v3203
      %v3423 = vpop.f32.mrb[0].mxu0
      %v3424 = vadd.f32 0.0, %v3423
      %v3425 = vpop.f32.mrb[0].mxu0
      %3426 = vmatprep.mubr.f32.mxu0 0.0
      %3427 = vmatmul.mubr.f32.gmra.mrb[0].mxu0 %v3206
      %v3428 = vpop.f32.mrb[0].mxu0
      %v3429 = vadd.f32 0.0, %v3428
      %v3430 = vpop.f32.mrb[0].mxu0
      %3431 = vmatprep.mubr.f32.mxu0 0.0
      %3432 = vmatmul.mubr.f32.gmra.mrb[0].mxu0 %v3209
      %v3433 = vpop.f32.mrb[0].mxu0
      %v3434 = vadd.f32 0.0, %v3433
      %v3435 = vpop.f32.mrb[0].mxu0
      %3436 = vmatprep.mubr.f32.mxu0 0.0
      %3437 = vmatmul.mubr.f32.gmra.mrb[0].mxu0 %v3212
      %v3438 = vpop.f32.mrb[0].mxu0
      %v3439 = vadd.f32 0.0, %v3438
      %v3440 = vpop.f32.mrb[0].mxu0
      %3441 = vdwg.mxu0
      %v3442 = vadd.f32 %v3052, %v3284
      %v3443 = vadd.f32 %v3053, %v3289
      %v3444 = vadd.f32 %v3054, %v3294
      %v3445 = vadd.f32 %v3055, %v3299
      %v3446 = vadd.f32 %v3056, %v3304
      %v3447 = vadd.f32 %v3057, %v3309
      %v3448 = vadd.f32 %v3058, %v3314
      %v3449 = vadd.f32 %v3059, %v3319
      %v3450 = vadd.f32 %v3060, %v3324
      %v3451 = vadd.f32 %v3061, %v3329
      %v3452 = vadd.f32 %v3062, %v3334
      %v3453 = vadd.f32 %v3063, %v3339
      %v3454 = vadd.f32 %v3064, %v3344
      %v3455 = vadd.f32 %v3065, %v3349
      %v3456 = vadd.f32 %v3066, %v3354
      %v3457 = vadd.f32 %v3067, %v3359
      %v3458 = vadd.f32 %v3068, %v3364
      %v3459 = vadd.f32 %v3069, %v3369
      %v3460 = vadd.f32 %v3070, %v3374
      %v3461 = vadd.f32 %v3071, %v3379
      %v3462 = vadd.f32 %v3072, %v3384
      %v3463 = vadd.f32 %v3073, %v3389
      %v3464 = vadd.f32 %v3074, %v3394
      %v3465 = vadd.f32 %v3075, %v3399
      %v3466 = vadd.f32 %v3076, %v3404
      %v3467 = vadd.f32 %v3077, %v3409
      %v3468 = vadd.f32 %v3078, %v3414
      %v3469 = vadd.f32 %v3079, %v3419
      %v3470 = vadd.f32 %v3080, %v3424
      %v3471 = vadd.f32 %v3081, %v3429
      %v3472 = vadd.f32 %v3082, %v3434
      %v3473 = vadd.f32 %v3083, %v3439
      %v3474 = vld [vmem:[%s2693 + $0x2] sm:$0xff]
      %v3475 = vld [vmem:[%s2693 + $0xa] sm:$0xff]
      %v3476 = vld [vmem:[%s2693 + $0x1a] sm:$0xff]
      %v3477 = vld [vmem:[%s2693 + $0x22] sm:$0xff]
      %v3478 = vld [vmem:[%s2693 + $0x32] sm:$0xff]
      %v3479 = vld [vmem:[%s2693 + $0x3a] sm:$0xff]
      %v3480 = vld [vmem:[%s2693 + $0x4a] sm:$0xff]
      %v3481 = vld [vmem:[%s2693 + $0x52] sm:$0xff]
      %v3482 = vld [vmem:[%s2693 + $0x62] sm:$0xff]
      %v3483 = vld [vmem:[%s2693 + $0x6a] sm:$0xff]
      %v3484 = vld [vmem:[%s2693 + $0x7a] sm:$0xff]
      %v3485 = vld [vmem:[%s2693 + $0x82] sm:$0xff]
      %v3486 = vld [vmem:[%s2693 + $0x92] sm:$0xff]
      %v3487 = vld [vmem:[%s2693 + $0x9a] sm:$0xff]
      %v3488 = vld [vmem:[%s2693 + $0xaa] sm:$0xff]
      %v3489 = vld [vmem:[%s2693 + $0xb2] sm:$0xff]
      %v3490 = vld [vmem:[%s2693 + $0xc2] sm:$0xff]
      %v3491 = vld [vmem:[%s2693 + $0xca] sm:$0xff]
      %v3492 = vld [vmem:[%s2693 + $0xda] sm:$0xff]
      %v3493 = vld [vmem:[%s2693 + $0xe2] sm:$0xff]
      %v3494 = vld [vmem:[%s2693 + $0xf2] sm:$0xff]
      %v3495 = vld [vmem:[%s2693 + $0xfa] sm:$0xff]
      %v3496 = vld [vmem:[%s2693 + $0x10a] sm:$0xff]
      %v3497 = vld [vmem:[%s2693 + $0x112] sm:$0xff]
      %v3498 = vld [vmem:[%s2693 + $0x122] sm:$0xff]
      %v3499 = vld [vmem:[%s2693 + $0x12a] sm:$0xff]
      %v3500 = vld [vmem:[%s2693 + $0x13a] sm:$0xff]
      %v3501 = vld [vmem:[%s2693 + $0x142] sm:$0xff]
      %v3502 = vld [vmem:[%s2693 + $0x152] sm:$0xff]
      %v3503 = vld [vmem:[%s2693 + $0x15a] sm:$0xff]
      %v3504 = vld [vmem:[%s2693 + $0x16a] sm:$0xff]
      %v3505 = vld [vmem:[%s2693 + $0x172] sm:$0xff]
      %s3506 = scalar_lea.vmem %s1, 32
      %v3507 = vld [vmem:[%s3506] sm:$0xf]
      %v3509 = vsel %vm225, %v3474, 0
      %v3512 = vsel %vm225, %v3475, 0
      %v3515 = vsel %vm225, %v3476, 0
      %v3518 = vsel %vm225, %v3477, 0
      %v3521 = vsel %vm225, %v3478, 0
      %v3524 = vsel %vm225, %v3479, 0
      %v3527 = vsel %vm225, %v3480, 0
      %v3530 = vsel %vm225, %v3481, 0
      %v3533 = vsel %vm225, %v3482, 0
      %v3536 = vsel %vm225, %v3483, 0
      %v3539 = vsel %vm225, %v3484, 0
      %v3542 = vsel %vm225, %v3485, 0
      %v3545 = vsel %vm225, %v3486, 0
      %v3548 = vsel %vm225, %v3487, 0
      %v3551 = vsel %vm225, %v3488, 0
      %v3554 = vsel %vm225, %v3489, 0
      %v3557 = vsel %vm225, %v3490, 0
      %v3560 = vsel %vm225, %v3491, 0
      %v3563 = vsel %vm225, %v3492, 0
      %v3566 = vsel %vm225, %v3493, 0
      %v3569 = vsel %vm225, %v3494, 0
      %v3572 = vsel %vm225, %v3495, 0
      %v3575 = vsel %vm225, %v3496, 0
      %v3578 = vsel %vm225, %v3497, 0
      %v3581 = vsel %vm225, %v3498, 0
      %v3584 = vsel %vm225, %v3499, 0
      %v3587 = vsel %vm225, %v3500, 0
      %v3590 = vsel %vm225, %v3501, 0
      %v3593 = vsel %vm225, %v3502, 0
      %v3596 = vsel %vm225, %v3503, 0
      %v3599 = vsel %vm225, %v3504, 0
      %v3602 = vsel %vm225, %v3505, 0
      %v3605 = vsel %vm482, %v3507, 0
      %3607 = vmatprep.subr.mxu0 0.0
      %3608 = vmatpush1.msra.mxu0 %v3605
      %3609 = vmatprep.subr.mxu0 0.0
      %3610 = vmatpush1.msra.mxu0 0.0
      %3611 = vmatprep.subr.mxu0 0.0
      %3612 = vmatpush1.msra.mxu0 0.0
      %3613 = vmatprep.subr.mxu0 0.0
      %3614 = vmatpush1.msra.mxu0 0.0
      %3615 = vmatprep.subr.mxu0 0.0
      %3616 = vmatpush1.msra.mxu0 0.0
      %3617 = vmatprep.subr.mxu0 0.0
      %3618 = vmatpush1.msra.mxu0 0.0
      %3619 = vmatprep.subr.mxu0 0.0
      %3620 = vmatpush1.msra.mxu0 0.0
      %3621 = vmatprep.subr.mxu0 0.0
      %3622 = vmatpush1.msra.mxu0 0.0
      %3623 = vmatprep.subr.mxu0 0.0
      %3624 = vmatpush1.msra.mxu0 0.0
      %3625 = vmatprep.subr.mxu0 0.0
      %3626 = vmatpush1.msra.mxu0 0.0
      %3627 = vmatprep.subr.mxu0 0.0
      %3628 = vmatpush1.msra.mxu0 0.0
      %3629 = vmatprep.subr.mxu0 0.0
      %3630 = vmatpush1.msra.mxu0 0.0
      %3631 = vmatprep.subr.mxu0 0.0
      %3632 = vmatpush1.msra.mxu0 0.0
      %3633 = vmatprep.subr.mxu0 0.0
      %3634 = vmatpush1.msra.mxu0 0.0
      %3635 = vmatprep.subr.mxu0 0.0
      %3636 = vmatpush1.msra.mxu0 0.0
      %3637 = vmatprep.subr.mxu0 0.0
      %3638 = vmatpush1.msra.mxu0 0.0
      %3639 = vmatprep.subr.mxu0 0.0
      %3640 = vmatpush1.msra.mxu0 0.0
      %3641 = vmatprep.subr.mxu0 0.0
      %3642 = vmatpush1.msra.mxu0 0.0
      %3643 = vmatprep.subr.mxu0 0.0
      %3644 = vmatpush1.msra.mxu0 0.0
      %3645 = vmatprep.subr.mxu0 0.0
      %3646 = vmatpush1.msra.mxu0 0.0
      %3647 = vmatprep.subr.mxu0 0.0
      %3648 = vmatpush1.msra.mxu0 0.0
      %3649 = vmatprep.subr.mxu0 0.0
      %3650 = vmatpush1.msra.mxu0 0.0
      %3651 = vmatprep.subr.mxu0 0.0
      %3652 = vmatpush1.msra.mxu0 0.0
      %3653 = vmatprep.subr.mxu0 0.0
      %3654 = vmatpush1.msra.mxu0 0.0
      %3655 = vmatprep.subr.mxu0 0.0
      %3656 = vmatpush1.msra.mxu0 0.0
      %3657 = vmatprep.subr.mxu0 0.0
      %3658 = vmatpush1.msra.mxu0 0.0
      %3659 = vmatprep.subr.mxu0 0.0
      %3660 = vmatpush1.msra.mxu0 0.0
      %3661 = vmatprep.subr.mxu0 0.0
      %3662 = vmatpush1.msra.mxu0 0.0
      %3663 = vmatprep.subr.mxu0 0.0
      %3664 = vmatpush1.msra.mxu0 0.0
      %3665 = vmatprep.subr.mxu0 0.0
      %3666 = vmatpush1.msra.mxu0 0.0
      %3667 = vmatprep.subr.mxu0 0.0
      %3668 = vmatpush1.msra.mxu0 0.0
      %3669 = vmatprep.subr.mxu0 0.0
      %3670 = vmatpush1.msra.mxu0 0.0
      %3671 = vmatprep.mubr.f32.mxu0 0.0
      %3672 = vmatmul.mubr.f32.gmra.mrb[0].mxu0 %v3509
      %v3673 = vpop.f32.mrb[0].mxu0
      %v3674 = vadd.f32 0.0, %v3673
      %v3675 = vpop.f32.mrb[0].mxu0
      %3676 = vmatprep.mubr.f32.mxu0 0.0
      %3677 = vmatmul.mubr.f32.gmra.mrb[0].mxu0 %v3512
      %v3678 = vpop.f32.mrb[0].mxu0
      %v3679 = vadd.f32 0.0, %v3678
      %v3680 = vpop.f32.mrb[0].mxu0
      %3681 = vmatprep.mubr.f32.mxu0 0.0
      %3682 = vmatmul.mubr.f32.gmra.mrb[0].mxu0 %v3515
      %v3683 = vpop.f32.mrb[0].mxu0
      %v3684 = vadd.f32 0.0, %v3683
      %v3685 = vpop.f32.mrb[0].mxu0
      %3686 = vmatprep.mubr.f32.mxu0 0.0
      %3687 = vmatmul.mubr.f32.gmra.mrb[0].mxu0 %v3518
      %v3688 = vpop.f32.mrb[0].mxu0
      %v3689 = vadd.f32 0.0, %v3688
      %v3690 = vpop.f32.mrb[0].mxu0
      %3691 = vmatprep.mubr.f32.mxu0 0.0
      %3692 = vmatmul.mubr.f32.gmra.mrb[0].mxu0 %v3521
      %v3693 = vpop.f32.mrb[0].mxu0
      %v3694 = vadd.f32 0.0, %v3693
      %v3695 = vpop.f32.mrb[0].mxu0
      %3696 = vmatprep.mubr.f32.mxu0 0.0
      %3697 = vmatmul.mubr.f32.gmra.mrb[0].mxu0 %v3524
      %v3698 = vpop.f32.mrb[0].mxu0
      %v3699 = vadd.f32 0.0, %v3698
      %v3700 = vpop.f32.mrb[0].mxu0
      %3701 = vmatprep.mubr.f32.mxu0 0.0
      %3702 = vmatmul.mubr.f32.gmra.mrb[0].mxu0 %v3527
      %v3703 = vpop.f32.mrb[0].mxu0
      %v3704 = vadd.f32 0.0, %v3703
      %v3705 = vpop.f32.mrb[0].mxu0
      %3706 = vmatprep.mubr.f32.mxu0 0.0
      %3707 = vmatmul.mubr.f32.gmra.mrb[0].mxu0 %v3530
      %v3708 = vpop.f32.mrb[0].mxu0
      %v3709 = vadd.f32 0.0, %v3708
      %v3710 = vpop.f32.mrb[0].mxu0
      %3711 = vmatprep.mubr.f32.mxu0 0.0
      %3712 = vmatmul.mubr.f32.gmra.mrb[0].mxu0 %v3533
      %v3713 = vpop.f32.mrb[0].mxu0
      %v3714 = vadd.f32 0.0, %v3713
      %v3715 = vpop.f32.mrb[0].mxu0
      %3716 = vmatprep.mubr.f32.mxu0 0.0
      %3717 = vmatmul.mubr.f32.gmra.mrb[0].mxu0 %v3536
      %v3718 = vpop.f32.mrb[0].mxu0
      %v3719 = vadd.f32 0.0, %v3718
      %v3720 = vpop.f32.mrb[0].mxu0
      %3721 = vmatprep.mubr.f32.mxu0 0.0
      %3722 = vmatmul.mubr.f32.gmra.mrb[0].mxu0 %v3539
      %v3723 = vpop.f32.mrb[0].mxu0
      %v3724 = vadd.f32 0.0, %v3723
      %v3725 = vpop.f32.mrb[0].mxu0
      %3726 = vmatprep.mubr.f32.mxu0 0.0
      %3727 = vmatmul.mubr.f32.gmra.mrb[0].mxu0 %v3542
      %v3728 = vpop.f32.mrb[0].mxu0
      %v3729 = vadd.f32 0.0, %v3728
      %v3730 = vpop.f32.mrb[0].mxu0
      %3731 = vmatprep.mubr.f32.mxu0 0.0
      %3732 = vmatmul.mubr.f32.gmra.mrb[0].mxu0 %v3545
      %v3733 = vpop.f32.mrb[0].mxu0
      %v3734 = vadd.f32 0.0, %v3733
      %v3735 = vpop.f32.mrb[0].mxu0
      %3736 = vmatprep.mubr.f32.mxu0 0.0
      %3737 = vmatmul.mubr.f32.gmra.mrb[0].mxu0 %v3548
      %v3738 = vpop.f32.mrb[0].mxu0
      %v3739 = vadd.f32 0.0, %v3738
      %v3740 = vpop.f32.mrb[0].mxu0
      %3741 = vmatprep.mubr.f32.mxu0 0.0
      %3742 = vmatmul.mubr.f32.gmra.mrb[0].mxu0 %v3551
      %v3743 = vpop.f32.mrb[0].mxu0
      %v3744 = vadd.f32 0.0, %v3743
      %v3745 = vpop.f32.mrb[0].mxu0
      %3746 = vmatprep.mubr.f32.mxu0 0.0
      %3747 = vmatmul.mubr.f32.gmra.mrb[0].mxu0 %v3554
      %v3748 = vpop.f32.mrb[0].mxu0
      %v3749 = vadd.f32 0.0, %v3748
      %v3750 = vpop.f32.mrb[0].mxu0
      %3751 = vmatprep.mubr.f32.mxu0 0.0
      %3752 = vmatmul.mubr.f32.gmra.mrb[0].mxu0 %v3557
      %v3753 = vpop.f32.mrb[0].mxu0
      %v3754 = vadd.f32 0.0, %v3753
      %v3755 = vpop.f32.mrb[0].mxu0
      %3756 = vmatprep.mubr.f32.mxu0 0.0
      %3757 = vmatmul.mubr.f32.gmra.mrb[0].mxu0 %v3560
      %v3758 = vpop.f32.mrb[0].mxu0
      %v3759 = vadd.f32 0.0, %v3758
      %v3760 = vpop.f32.mrb[0].mxu0
      %3761 = vmatprep.mubr.f32.mxu0 0.0
      %3762 = vmatmul.mubr.f32.gmra.mrb[0].mxu0 %v3563
      %v3763 = vpop.f32.mrb[0].mxu0
      %v3764 = vadd.f32 0.0, %v3763
      %v3765 = vpop.f32.mrb[0].mxu0
      %3766 = vmatprep.mubr.f32.mxu0 0.0
      %3767 = vmatmul.mubr.f32.gmra.mrb[0].mxu0 %v3566
      %v3768 = vpop.f32.mrb[0].mxu0
      %v3769 = vadd.f32 0.0, %v3768
      %v3770 = vpop.f32.mrb[0].mxu0
      %3771 = vmatprep.mubr.f32.mxu0 0.0
      %3772 = vmatmul.mubr.f32.gmra.mrb[0].mxu0 %v3569
      %v3773 = vpop.f32.mrb[0].mxu0
      %v3774 = vadd.f32 0.0, %v3773
      %v3775 = vpop.f32.mrb[0].mxu0
      %3776 = vmatprep.mubr.f32.mxu0 0.0
      %3777 = vmatmul.mubr.f32.gmra.mrb[0].mxu0 %v3572
      %v3778 = vpop.f32.mrb[0].mxu0
      %v3779 = vadd.f32 0.0, %v3778
      %v3780 = vpop.f32.mrb[0].mxu0
      %3781 = vmatprep.mubr.f32.mxu0 0.0
      %3782 = vmatmul.mubr.f32.gmra.mrb[0].mxu0 %v3575
      %v3783 = vpop.f32.mrb[0].mxu0
      %v3784 = vadd.f32 0.0, %v3783
      %v3785 = vpop.f32.mrb[0].mxu0
      %3786 = vmatprep.mubr.f32.mxu0 0.0
      %3787 = vmatmul.mubr.f32.gmra.mrb[0].mxu0 %v3578
      %v3788 = vpop.f32.mrb[0].mxu0
      %v3789 = vadd.f32 0.0, %v3788
      %v3790 = vpop.f32.mrb[0].mxu0
      %3791 = vmatprep.mubr.f32.mxu0 0.0
      %3792 = vmatmul.mubr.f32.gmra.mrb[0].mxu0 %v3581
      %v3793 = vpop.f32.mrb[0].mxu0
      %v3794 = vadd.f32 0.0, %v3793
      %v3795 = vpop.f32.mrb[0].mxu0
      %3796 = vmatprep.mubr.f32.mxu0 0.0
      %3797 = vmatmul.mubr.f32.gmra.mrb[0].mxu0 %v3584
      %v3798 = vpop.f32.mrb[0].mxu0
      %v3799 = vadd.f32 0.0, %v3798
      %v3800 = vpop.f32.mrb[0].mxu0
      %3801 = vmatprep.mubr.f32.mxu0 0.0
      %3802 = vmatmul.mubr.f32.gmra.mrb[0].mxu0 %v3587
      %v3803 = vpop.f32.mrb[0].mxu0
      %v3804 = vadd.f32 0.0, %v3803
      %v3805 = vpop.f32.mrb[0].mxu0
      %3806 = vmatprep.mubr.f32.mxu0 0.0
      %3807 = vmatmul.mubr.f32.gmra.mrb[0].mxu0 %v3590
      %v3808 = vpop.f32.mrb[0].mxu0
      %v3809 = vadd.f32 0.0, %v3808
      %v3810 = vpop.f32.mrb[0].mxu0
      %3811 = vmatprep.mubr.f32.mxu0 0.0
      %3812 = vmatmul.mubr.f32.gmra.mrb[0].mxu0 %v3593
      %v3813 = vpop.f32.mrb[0].mxu0
      %v3814 = vadd.f32 0.0, %v3813
      %v3815 = vpop.f32.mrb[0].mxu0
      %3816 = vmatprep.mubr.f32.mxu0 0.0
      %3817 = vmatmul.mubr.f32.gmra.mrb[0].mxu0 %v3596
      %v3818 = vpop.f32.mrb[0].mxu0
      %v3819 = vadd.f32 0.0, %v3818
      %v3820 = vpop.f32.mrb[0].mxu0
      %3821 = vmatprep.mubr.f32.mxu0 0.0
      %3822 = vmatmul.mubr.f32.gmra.mrb[0].mxu0 %v3599
      %v3823 = vpop.f32.mrb[0].mxu0
      %v3824 = vadd.f32 0.0, %v3823
      %v3825 = vpop.f32.mrb[0].mxu0
      %3826 = vmatprep.mubr.f32.mxu0 0.0
      %3827 = vmatmul.mubr.f32.gmra.mrb[0].mxu0 %v3602
      %v3828 = vpop.f32.mrb[0].mxu0
      %v3829 = vadd.f32 0.0, %v3828
      %v3830 = vpop.f32.mrb[0].mxu0
      %3831 = vdwg.mxu0
      %v3832 = vadd.f32 %v3442, %v3674
      %v3833 = vadd.f32 %v3443, %v3679
      %v3834 = vadd.f32 %v3444, %v3684
      %v3835 = vadd.f32 %v3445, %v3689
      %v3836 = vadd.f32 %v3446, %v3694
      %v3837 = vadd.f32 %v3447, %v3699
      %v3838 = vadd.f32 %v3448, %v3704
      %v3839 = vadd.f32 %v3449, %v3709
      %v3840 = vadd.f32 %v3450, %v3714
      %v3841 = vadd.f32 %v3451, %v3719
      %v3842 = vadd.f32 %v3452, %v3724
      %v3843 = vadd.f32 %v3453, %v3729
      %v3844 = vadd.f32 %v3454, %v3734
      %v3845 = vadd.f32 %v3455, %v3739
      %v3846 = vadd.f32 %v3456, %v3744
      %v3847 = vadd.f32 %v3457, %v3749
      %v3848 = vadd.f32 %v3458, %v3754
      %v3849 = vadd.f32 %v3459, %v3759
      %v3850 = vadd.f32 %v3460, %v3764
      %v3851 = vadd.f32 %v3461, %v3769
      %v3852 = vadd.f32 %v3462, %v3774
      %v3853 = vadd.f32 %v3463, %v3779
      %v3854 = vadd.f32 %v3464, %v3784
      %v3855 = vadd.f32 %v3465, %v3789
      %v3856 = vadd.f32 %v3466, %v3794
      %v3857 = vadd.f32 %v3467, %v3799
      %v3858 = vadd.f32 %v3468, %v3804
      %v3859 = vadd.f32 %v3469, %v3809
      %v3860 = vadd.f32 %v3470, %v3814
      %v3861 = vadd.f32 %v3471, %v3819
      %v3862 = vadd.f32 %v3472, %v3824
      %v3863 = vadd.f32 %v3473, %v3829
      %vm3864 = vcmp.ge.f32.partialorder %v3832, 0.0
      %vm3865 = vcmp.ge.f32.partialorder %v3833, 0.0
      %vm3866 = vcmp.ge.f32.partialorder %v3834, 0.0
      %vm3867 = vcmp.ge.f32.partialorder %v3835, 0.0
      %vm3868 = vcmp.ge.f32.partialorder %v3836, 0.0
      %vm3869 = vcmp.ge.f32.partialorder %v3837, 0.0
      %vm3870 = vcmp.ge.f32.partialorder %v3838, 0.0
      %vm3871 = vcmp.ge.f32.partialorder %v3839, 0.0
      %vm3872 = vcmp.ge.f32.partialorder %v3840, 0.0
      %vm3873 = vcmp.ge.f32.partialorder %v3841, 0.0
      %vm3874 = vcmp.ge.f32.partialorder %v3842, 0.0
      %vm3875 = vcmp.ge.f32.partialorder %v3843, 0.0
      %vm3876 = vcmp.ge.f32.partialorder %v3844, 0.0
      %vm3877 = vcmp.ge.f32.partialorder %v3845, 0.0
      %vm3878 = vcmp.ge.f32.partialorder %v3846, 0.0
      %vm3879 = vcmp.ge.f32.partialorder %v3847, 0.0
      %vm3880 = vcmp.ge.f32.partialorder %v3848, 0.0
      %vm3881 = vcmp.ge.f32.partialorder %v3849, 0.0
      %vm3882 = vcmp.ge.f32.partialorder %v3850, 0.0
      %vm3883 = vcmp.ge.f32.partialorder %v3851, 0.0
      %vm3884 = vcmp.ge.f32.partialorder %v3852, 0.0
      %vm3885 = vcmp.ge.f32.partialorder %v3853, 0.0
      %vm3886 = vcmp.ge.f32.partialorder %v3854, 0.0
      %vm3887 = vcmp.ge.f32.partialorder %v3855, 0.0
      %vm3888 = vcmp.ge.f32.partialorder %v3856, 0.0
      %vm3889 = vcmp.ge.f32.partialorder %v3857, 0.0
      %vm3890 = vcmp.ge.f32.partialorder %v3858, 0.0
      %vm3891 = vcmp.ge.f32.partialorder %v3859, 0.0
      %vm3892 = vcmp.ge.f32.partialorder %v3860, 0.0
      %vm3893 = vcmp.ge.f32.partialorder %v3861, 0.0
      %vm3894 = vcmp.ge.f32.partialorder %v3862, 0.0
      %vm3895 = vcmp.ge.f32.partialorder %v3863, 0.0
      %v3896 = vmul.f32 %v3832, 0.2
      %v3897 = vmul.f32 %v3833, 0.2
      %v3898 = vmul.f32 %v3834, 0.2
      %v3899 = vmul.f32 %v3835, 0.2
      %v3900 = vmul.f32 %v3836, 0.2
      %v3901 = vmul.f32 %v3837, 0.2
      %v3902 = vmul.f32 %v3838, 0.2
      %v3903 = vmul.f32 %v3839, 0.2
      %v3904 = vmul.f32 %v3840, 0.2
      %v3905 = vmul.f32 %v3841, 0.2
      %v3906 = vmul.f32 %v3842, 0.2
      %v3907 = vmul.f32 %v3843, 0.2
      %v3908 = vmul.f32 %v3844, 0.2
      %v3909 = vmul.f32 %v3845, 0.2
      %v3910 = vmul.f32 %v3846, 0.2
      %v3911 = vmul.f32 %v3847, 0.2
      %v3912 = vmul.f32 %v3848, 0.2
      %v3913 = vmul.f32 %v3849, 0.2
      %v3914 = vmul.f32 %v3850, 0.2
      %v3915 = vmul.f32 %v3851, 0.2
      %v3916 = vmul.f32 %v3852, 0.2
      %v3917 = vmul.f32 %v3853, 0.2
      %v3918 = vmul.f32 %v3854, 0.2
      %v3919 = vmul.f32 %v3855, 0.2
      %v3920 = vmul.f32 %v3856, 0.2
      %v3921 = vmul.f32 %v3857, 0.2
      %v3922 = vmul.f32 %v3858, 0.2
      %v3923 = vmul.f32 %v3859, 0.2
      %v3924 = vmul.f32 %v3860, 0.2
      %v3925 = vmul.f32 %v3861, 0.2
      %v3926 = vmul.f32 %v3862, 0.2
      %v3927 = vmul.f32 %v3863, 0.2
      %v3928 = vsel %vm3864, %v3832, %v3896
      %v3929 = vsel %vm3865, %v3833, %v3897
      %v3930 = vsel %vm3866, %v3834, %v3898
      %v3931 = vsel %vm3867, %v3835, %v3899
      %v3932 = vsel %vm3868, %v3836, %v3900
      %v3933 = vsel %vm3869, %v3837, %v3901
      %v3934 = vsel %vm3870, %v3838, %v3902
      %v3935 = vsel %vm3871, %v3839, %v3903
      %v3936 = vsel %vm3872, %v3840, %v3904
      %v3937 = vsel %vm3873, %v3841, %v3905
      %v3938 = vsel %vm3874, %v3842, %v3906
      %v3939 = vsel %vm3875, %v3843, %v3907
      %v3940 = vsel %vm3876, %v3844, %v3908
      %v3941 = vsel %vm3877, %v3845, %v3909
      %v3942 = vsel %vm3878, %v3846, %v3910
      %v3943 = vsel %vm3879, %v3847, %v3911
      %v3944 = vsel %vm3880, %v3848, %v3912
      %v3945 = vsel %vm3881, %v3849, %v3913
      %v3946 = vsel %vm3882, %v3850, %v3914
      %v3947 = vsel %vm3883, %v3851, %v3915
      %v3948 = vsel %vm3884, %v3852, %v3916
      %v3949 = vsel %vm3885, %v3853, %v3917
      %v3950 = vsel %vm3886, %v3854, %v3918
      %v3951 = vsel %vm3887, %v3855, %v3919
      %v3952 = vsel %vm3888, %v3856, %v3920
      %v3953 = vsel %vm3889, %v3857, %v3921
      %v3954 = vsel %vm3890, %v3858, %v3922
      %v3955 = vsel %vm3891, %v3859, %v3923
      %v3956 = vsel %vm3892, %v3860, %v3924
      %v3957 = vsel %vm3893, %v3861, %v3925
      %v3958 = vsel %vm3894, %v3862, %v3926
      %v3959 = vsel %vm3895, %v3863, %v3927
      %v3960 = vmul.f32 %v3928, %v3928
      %v3961 = vmul.f32 %v3929, %v3929
      %v3962 = vmul.f32 %v3930, %v3930
      %v3963 = vmul.f32 %v3931, %v3931
      %v3964 = vmul.f32 %v3932, %v3932
      %v3965 = vmul.f32 %v3933, %v3933
      %v3966 = vmul.f32 %v3934, %v3934
      %v3967 = vmul.f32 %v3935, %v3935
      %v3968 = vmul.f32 %v3936, %v3936
      %v3969 = vmul.f32 %v3937, %v3937
      %v3970 = vmul.f32 %v3938, %v3938
      %v3971 = vmul.f32 %v3939, %v3939
      %v3972 = vmul.f32 %v3940, %v3940
      %v3973 = vmul.f32 %v3941, %v3941
      %v3974 = vmul.f32 %v3942, %v3942
      %v3975 = vmul.f32 %v3943, %v3943
      %v3976 = vmul.f32 %v3944, %v3944
      %v3977 = vmul.f32 %v3945, %v3945
      %v3978 = vmul.f32 %v3946, %v3946
      %v3979 = vmul.f32 %v3947, %v3947
      %v3980 = vmul.f32 %v3948, %v3948
      %v3981 = vmul.f32 %v3949, %v3949
      %v3982 = vmul.f32 %v3950, %v3950
      %v3983 = vmul.f32 %v3951, %v3951
      %v3984 = vmul.f32 %v3952, %v3952
      %v3985 = vmul.f32 %v3953, %v3953
      %v3986 = vmul.f32 %v3954, %v3954
      %v3987 = vmul.f32 %v3955, %v3955
      %v3988 = vmul.f32 %v3956, %v3956
      %v3989 = vmul.f32 %v3957, %v3957
      %v3990 = vmul.f32 %v3958, %v3958
      %v3991 = vmul.f32 %v3959, %v3959
      %vm3992 = vcmask 64512
      %v3993 = vsel %vm3992, %v3960, 0.0
      %3994 = vadd.xlane.f32.xlu0 %v3993
      %v3995 = vpop.xlane.xlu0 %3994
      %v3996 = vsel %vm3992, %v3961, 0.0
      %3997 = vadd.xlane.f32.xlu0 %v3996
      %v3998 = vpop.xlane.xlu0 %3997
      %v3999 = vsel %vm3992, %v3962, 0.0
      %4000 = vadd.xlane.f32.xlu0 %v3999
      %v4001 = vpop.xlane.xlu0 %4000
      %v4002 = vsel %vm3992, %v3963, 0.0
      %4003 = vadd.xlane.f32.xlu0 %v4002
      %v4004 = vpop.xlane.xlu0 %4003
      %v4005 = vsel %vm3992, %v3964, 0.0
      %4006 = vadd.xlane.f32.xlu0 %v4005
      %v4007 = vpop.xlane.xlu0 %4006
      %v4008 = vsel %vm3992, %v3965, 0.0
      %4009 = vadd.xlane.f32.xlu0 %v4008
      %v4010 = vpop.xlane.xlu0 %4009
      %v4011 = vsel %vm3992, %v3966, 0.0
      %4012 = vadd.xlane.f32.xlu0 %v4011
      %v4013 = vpop.xlane.xlu0 %4012
      %v4014 = vsel %vm3992, %v3967, 0.0
      %4015 = vadd.xlane.f32.xlu0 %v4014
      %v4016 = vpop.xlane.xlu0 %4015
      %v4017 = vsel %vm3992, %v3968, 0.0
      %4018 = vadd.xlane.f32.xlu0 %v4017
      %v4019 = vpop.xlane.xlu0 %4018
      %v4020 = vsel %vm3992, %v3969, 0.0
      %4021 = vadd.xlane.f32.xlu0 %v4020
      %v4022 = vpop.xlane.xlu0 %4021
      %v4023 = vsel %vm3992, %v3970, 0.0
      %4024 = vadd.xlane.f32.xlu0 %v4023
      %v4025 = vpop.xlane.xlu0 %4024
      %v4026 = vsel %vm3992, %v3971, 0.0
      %4027 = vadd.xlane.f32.xlu0 %v4026
      %v4028 = vpop.xlane.xlu0 %4027
      %v4029 = vsel %vm3992, %v3972, 0.0
      %4030 = vadd.xlane.f32.xlu0 %v4029
      %v4031 = vpop.xlane.xlu0 %4030
      %v4032 = vsel %vm3992, %v3973, 0.0
      %4033 = vadd.xlane.f32.xlu0 %v4032
      %v4034 = vpop.xlane.xlu0 %4033
      %v4035 = vsel %vm3992, %v3974, 0.0
      %4036 = vadd.xlane.f32.xlu0 %v4035
      %v4037 = vpop.xlane.xlu0 %4036
      %v4038 = vsel %vm3992, %v3975, 0.0
      %4039 = vadd.xlane.f32.xlu0 %v4038
      %v4040 = vpop.xlane.xlu0 %4039
      %v4041 = vsel %vm3992, %v3976, 0.0
      %4042 = vadd.xlane.f32.xlu0 %v4041
      %v4043 = vpop.xlane.xlu0 %4042
      %v4044 = vsel %vm3992, %v3977, 0.0
      %4045 = vadd.xlane.f32.xlu0 %v4044
      %v4046 = vpop.xlane.xlu0 %4045
      %v4047 = vsel %vm3992, %v3978, 0.0
      %4048 = vadd.xlane.f32.xlu0 %v4047
      %v4049 = vpop.xlane.xlu0 %4048
      %v4050 = vsel %vm3992, %v3979, 0.0
      %4051 = vadd.xlane.f32.xlu0 %v4050
      %v4052 = vpop.xlane.xlu0 %4051
      %v4053 = vsel %vm3992, %v3980, 0.0
      %4054 = vadd.xlane.f32.xlu0 %v4053
      %v4055 = vpop.xlane.xlu0 %4054
      %v4056 = vsel %vm3992, %v3981, 0.0
      %4057 = vadd.xlane.f32.xlu0 %v4056
      %v4058 = vpop.xlane.xlu0 %4057
      %v4059 = vsel %vm3992, %v3982, 0.0
      %4060 = vadd.xlane.f32.xlu0 %v4059
      %v4061 = vpop.xlane.xlu0 %4060
      %v4062 = vsel %vm3992, %v3983, 0.0
      %4063 = vadd.xlane.f32.xlu0 %v4062
      %v4064 = vpop.xlane.xlu0 %4063
      %v4065 = vsel %vm3992, %v3984, 0.0
      %4066 = vadd.xlane.f32.xlu0 %v4065
      %v4067 = vpop.xlane.xlu0 %4066
      %v4068 = vsel %vm3992, %v3985, 0.0
      %4069 = vadd.xlane.f32.xlu0 %v4068
      %v4070 = vpop.xlane.xlu0 %4069
      %v4071 = vsel %vm3992, %v3986, 0.0
      %4072 = vadd.xlane.f32.xlu0 %v4071
      %v4073 = vpop.xlane.xlu0 %4072
      %v4074 = vsel %vm3992, %v3987, 0.0
      %4075 = vadd.xlane.f32.xlu0 %v4074
      %v4076 = vpop.xlane.xlu0 %4075
      %v4077 = vsel %vm3992, %v3988, 0.0
      %4078 = vadd.xlane.f32.xlu0 %v4077
      %v4079 = vpop.xlane.xlu0 %4078
      %v4080 = vsel %vm3992, %v3989, 0.0
      %4081 = vadd.xlane.f32.xlu0 %v4080
      %v4082 = vpop.xlane.xlu0 %4081
      %v4083 = vsel %vm3992, %v3990, 0.0
      %4084 = vadd.xlane.f32.xlu0 %v4083
      %v4085 = vpop.xlane.xlu0 %4084
      %v4086 = vsel %vm3992, %v3991, 0.0
      %4087 = vadd.xlane.f32.xlu0 %v4086
      %v4088 = vpop.xlane.xlu0 %4087
      %v4089 = vrcp.pop 8.0
      %v4090 = vmul.f32 %v3995, %v4089
      %v4091 = vmul.f32 %v3998, %v4089
      %v4092 = vmul.f32 %v4001, %v4089
      %v4093 = vmul.f32 %v4004, %v4089
      %v4094 = vmul.f32 %v4007, %v4089
      %v4095 = vmul.f32 %v4010, %v4089
      %v4096 = vmul.f32 %v4013, %v4089
      %v4097 = vmul.f32 %v4016, %v4089
      %v4098 = vmul.f32 %v4019, %v4089
      %v4099 = vmul.f32 %v4022, %v4089
      %v4100 = vmul.f32 %v4025, %v4089
      %v4101 = vmul.f32 %v4028, %v4089
      %v4102 = vmul.f32 %v4031, %v4089
      %v4103 = vmul.f32 %v4034, %v4089
      %v4104 = vmul.f32 %v4037, %v4089
      %v4105 = vmul.f32 %v4040, %v4089
      %v4106 = vmul.f32 %v4043, %v4089
      %v4107 = vmul.f32 %v4046, %v4089
      %v4108 = vmul.f32 %v4049, %v4089
      %v4109 = vmul.f32 %v4052, %v4089
      %v4110 = vmul.f32 %v4055, %v4089
      %v4111 = vmul.f32 %v4058, %v4089
      %v4112 = vmul.f32 %v4061, %v4089
      %v4113 = vmul.f32 %v4064, %v4089
      %v4114 = vmul.f32 %v4067, %v4089
      %v4115 = vmul.f32 %v4070, %v4089
      %v4116 = vmul.f32 %v4073, %v4089
      %v4117 = vmul.f32 %v4076, %v4089
      %v4118 = vmul.f32 %v4079, %v4089
      %v4119 = vmul.f32 %v4082, %v4089
      %v4120 = vmul.f32 %v4085, %v4089
      %v4121 = vmul.f32 %v4088, %v4089
      %v4122 = vadd.f32 %v4090, 1e-08
      %v4123 = vadd.f32 %v4091, 1e-08
      %v4124 = vadd.f32 %v4092, 1e-08
      %v4125 = vadd.f32 %v4093, 1e-08
      %v4126 = vadd.f32 %v4094, 1e-08
      %v4127 = vadd.f32 %v4095, 1e-08
      %v4128 = vadd.f32 %v4096, 1e-08
      %v4129 = vadd.f32 %v4097, 1e-08
      %v4130 = vadd.f32 %v4098, 1e-08
      %v4131 = vadd.f32 %v4099, 1e-08
      %v4132 = vadd.f32 %v4100, 1e-08
      %v4133 = vadd.f32 %v4101, 1e-08
      %v4134 = vadd.f32 %v4102, 1e-08
      %v4135 = vadd.f32 %v4103, 1e-08
      %v4136 = vadd.f32 %v4104, 1e-08
      %v4137 = vadd.f32 %v4105, 1e-08
      %v4138 = vadd.f32 %v4106, 1e-08
      %v4139 = vadd.f32 %v4107, 1e-08
      %v4140 = vadd.f32 %v4108, 1e-08
      %v4141 = vadd.f32 %v4109, 1e-08
      %v4142 = vadd.f32 %v4110, 1e-08
      %v4143 = vadd.f32 %v4111, 1e-08
      %v4144 = vadd.f32 %v4112, 1e-08
      %v4145 = vadd.f32 %v4113, 1e-08
      %v4146 = vadd.f32 %v4114, 1e-08
      %v4147 = vadd.f32 %v4115, 1e-08
      %v4148 = vadd.f32 %v4116, 1e-08
      %v4149 = vadd.f32 %v4117, 1e-08
      %v4150 = vadd.f32 %v4118, 1e-08
      %v4151 = vadd.f32 %v4119, 1e-08
      %v4152 = vadd.f32 %v4120, 1e-08
      %v4153 = vadd.f32 %v4121, 1e-08
      %v4154 = vrsqrt.pop %v4122
      %v4155 = vrsqrt.pop %v4123
      %v4156 = vrsqrt.pop %v4124
      %v4157 = vrsqrt.pop %v4125
      %v4158 = vrsqrt.pop %v4126
      %v4159 = vrsqrt.pop %v4127
      %v4160 = vrsqrt.pop %v4128
      %v4161 = vrsqrt.pop %v4129
      %v4162 = vrsqrt.pop %v4130
      %v4163 = vrsqrt.pop %v4131
      %v4164 = vrsqrt.pop %v4132
      %v4165 = vrsqrt.pop %v4133
      %v4166 = vrsqrt.pop %v4134
      %v4167 = vrsqrt.pop %v4135
      %v4168 = vrsqrt.pop %v4136
      %v4169 = vrsqrt.pop %v4137
      %v4170 = vrsqrt.pop %v4138
      %v4171 = vrsqrt.pop %v4139
      %v4172 = vrsqrt.pop %v4140
      %v4173 = vrsqrt.pop %v4141
      %v4174 = vrsqrt.pop %v4142
      %v4175 = vrsqrt.pop %v4143
      %v4176 = vrsqrt.pop %v4144
      %v4177 = vrsqrt.pop %v4145
      %v4178 = vrsqrt.pop %v4146
      %v4179 = vrsqrt.pop %v4147
      %v4180 = vrsqrt.pop %v4148
      %v4181 = vrsqrt.pop %v4149
      %v4182 = vrsqrt.pop %v4150
      %v4183 = vrsqrt.pop %v4151
      %v4184 = vrsqrt.pop %v4152
      %v4185 = vrsqrt.pop %v4153
      %v4186 = vmul.f32 %v3928, %v4154
      %v4187 = vmul.f32 %v3929, %v4155
      %v4188 = vmul.f32 %v3930, %v4156
      %v4189 = vmul.f32 %v3931, %v4157
      %v4190 = vmul.f32 %v3932, %v4158
      %v4191 = vmul.f32 %v3933, %v4159
      %v4192 = vmul.f32 %v3934, %v4160
      %v4193 = vmul.f32 %v3935, %v4161
      %v4194 = vmul.f32 %v3936, %v4162
      %v4195 = vmul.f32 %v3937, %v4163
      %v4196 = vmul.f32 %v3938, %v4164
      %v4197 = vmul.f32 %v3939, %v4165
      %v4198 = vmul.f32 %v3940, %v4166
      %v4199 = vmul.f32 %v3941, %v4167
      %v4200 = vmul.f32 %v3942, %v4168
      %v4201 = vmul.f32 %v3943, %v4169
      %v4202 = vmul.f32 %v3944, %v4170
      %v4203 = vmul.f32 %v3945, %v4171
      %v4204 = vmul.f32 %v3946, %v4172
      %v4205 = vmul.f32 %v3947, %v4173
      %v4206 = vmul.f32 %v3948, %v4174
      %v4207 = vmul.f32 %v3949, %v4175
      %v4208 = vmul.f32 %v3950, %v4176
      %v4209 = vmul.f32 %v3951, %v4177
      %v4210 = vmul.f32 %v3952, %v4178
      %v4211 = vmul.f32 %v3953, %v4179
      %v4212 = vmul.f32 %v3954, %v4180
      %v4213 = vmul.f32 %v3955, %v4181
      %v4214 = vmul.f32 %v3956, %v4182
      %v4215 = vmul.f32 %v3957, %v4183
      %v4216 = vmul.f32 %v3958, %v4184
      %v4217 = vmul.f32 %v3959, %v4185
      %4218 = vst.msk [vmem:[#allocation3] sm:$0xff] %vm3992, 0.0
      %4219 = vst.msk [vmem:[#allocation3 + $0x8] sm:$0xff] %vm3992, 0.0
      %vm4220 = vcmask 58368
      %4221 = vst.msk [vmem:[#allocation3 + $0x10] sm:$0x3] %vm4220, 0.0
      %4222 = vst.msk [vmem:[#allocation3 + $0x18] sm:$0xff] %vm3992, 0.0
      %4223 = vst.msk [vmem:[#allocation3 + $0x20] sm:$0xff] %vm3992, 0.0
      %4224 = vst.msk [vmem:[#allocation3 + $0x28] sm:$0x3] %vm4220, 0.0
      %4225 = vst.msk [vmem:[#allocation3 + $0x30] sm:$0xff] %vm3992, 0.0
      %4226 = vst.msk [vmem:[#allocation3 + $0x38] sm:$0xff] %vm3992, 0.0
      %4227 = vst.msk [vmem:[#allocation3 + $0x40] sm:$0x3] %vm4220, 0.0
      %4228 = vst.msk [vmem:[#allocation3 + $0x48] sm:$0xff] %vm3992, 0.0
      %4229 = vst.msk [vmem:[#allocation3 + $0x50] sm:$0xff] %vm3992, 0.0
      %4230 = vst.msk [vmem:[#allocation3 + $0x58] sm:$0x3] %vm4220, 0.0
      %4231 = vst.msk [vmem:[#allocation3 + $0x60] sm:$0xff] %vm3992, 0.0
      %4232 = vst.msk [vmem:[#allocation3 + $0x68] sm:$0xff] %vm3992, 0.0
      %4233 = vst.msk [vmem:[#allocation3 + $0x70] sm:$0x3] %vm4220, 0.0
      %4234 = vst.msk [vmem:[#allocation3 + $0x78] sm:$0xff] %vm3992, 0.0
      %4235 = vst.msk [vmem:[#allocation3 + $0x80] sm:$0xff] %vm3992, 0.0
      %4236 = vst.msk [vmem:[#allocation3 + $0x88] sm:$0x3] %vm4220, 0.0
      %4237 = vst.msk [vmem:[#allocation3 + $0x90] sm:$0xff] %vm3992, 0.0
      %4238 = vst.msk [vmem:[#allocation3 + $0x98] sm:$0xff] %vm3992, 0.0
      %4239 = vst.msk [vmem:[#allocation3 + $0xa0] sm:$0x3] %vm4220, 0.0
      %4240 = vst.msk [vmem:[#allocation3 + $0xa8] sm:$0xff] %vm3992, 0.0
      %4241 = vst.msk [vmem:[#allocation3 + $0xb0] sm:$0xff] %vm3992, 0.0
      %4242 = vst.msk [vmem:[#allocation3 + $0xb8] sm:$0x3] %vm4220, 0.0
      %4243 = vst.msk [vmem:[#allocation3 + $0xc0] sm:$0xff] %vm3992, 0.0
      %4244 = vst.msk [vmem:[#allocation3 + $0xc8] sm:$0xff] %vm3992, 0.0
      %4245 = vst.msk [vmem:[#allocation3 + $0xd0] sm:$0x3] %vm4220, 0.0
      %4246 = vst.msk [vmem:[#allocation3 + $0xd8] sm:$0xff] %vm3992, 0.0
      %4247 = vst.msk [vmem:[#allocation3 + $0xe0] sm:$0xff] %vm3992, 0.0
      %4248 = vst.msk [vmem:[#allocation3 + $0xe8] sm:$0x3] %vm4220, 0.0
      %4249 = vst.msk [vmem:[#allocation3 + $0xf0] sm:$0xff] %vm3992, 0.0
      %4250 = vst.msk [vmem:[#allocation3 + $0xf8] sm:$0xff] %vm3992, 0.0
      %4251 = vst.msk [vmem:[#allocation3 + $0x100] sm:$0x3] %vm4220, 0.0
      %4252 = vst.msk [vmem:[#allocation3 + $0x108] sm:$0xff] %vm3992, 0.0
      %4253 = vst.msk [vmem:[#allocation3 + $0x110] sm:$0xff] %vm3992, 0.0
      %4254 = vst.msk [vmem:[#allocation3 + $0x118] sm:$0x3] %vm4220, 0.0
      %4255 = vst.msk [vmem:[#allocation3 + $0x120] sm:$0xff] %vm3992, 0.0
      %4256 = vst.msk [vmem:[#allocation3 + $0x128] sm:$0xff] %vm3992, 0.0
      %4257 = vst.msk [vmem:[#allocation3 + $0x130] sm:$0x3] %vm4220, 0.0
      %4258 = vst.msk [vmem:[#allocation3 + $0x138] sm:$0xff] %vm3992, 0.0
      %4259 = vst.msk [vmem:[#allocation3 + $0x140] sm:$0xff] %vm3992, 0.0
      %4260 = vst.msk [vmem:[#allocation3 + $0x148] sm:$0x3] %vm4220, 0.0
      %4261 = vst.msk [vmem:[#allocation3 + $0x150] sm:$0xff] %vm3992, 0.0
      %4262 = vst.msk [vmem:[#allocation3 + $0x158] sm:$0xff] %vm3992, 0.0
      %4263 = vst.msk [vmem:[#allocation3 + $0x160] sm:$0x3] %vm4220, 0.0
      %4264 = vst.msk [vmem:[#allocation3 + $0x168] sm:$0xff] %vm3992, 0.0
      %4265 = vst.msk [vmem:[#allocation3 + $0x170] sm:$0xff] %vm3992, 0.0
      %4266 = vst.msk [vmem:[#allocation3 + $0x178] sm:$0x3] %vm4220, 0.0
      %4267 = vst.msk [vmem:[#allocation3 + $0x180] sm:$0xff] %vm3992, 0.0
      %4268 = vst.msk [vmem:[#allocation3 + $0x188] sm:$0xff] %vm3992, 0.0
      %4269 = vst.msk [vmem:[#allocation3 + $0x190] sm:$0x3] %vm4220, 0.0
      %4270 = vst.msk [vmem:[#allocation3 + $0x198] sm:$0xff] %vm3992, 0.0
      %4271 = vst.msk [vmem:[#allocation3 + $0x1a0] sm:$0xff] %vm3992, 0.0
      %4272 = vst.msk [vmem:[#allocation3 + $0x1a8] sm:$0x3] %vm4220, 0.0
      %s4273 = scalar_lea.vmem [#allocation3], 24
      %4274 = vst.msk [vmem:[%s4273 + $0x1] sm:$0xff] %vm3992, %v4186
      %4275 = vst.msk [vmem:[%s4273 + $0x9] sm:$0xff] %vm3992, %v4187
      %4276 = vst.msk [vmem:[%s4273 + $0x19] sm:$0xff] %vm3992, %v4188
      %4277 = vst.msk [vmem:[%s4273 + $0x21] sm:$0xff] %vm3992, %v4189
      %4278 = vst.msk [vmem:[%s4273 + $0x31] sm:$0xff] %vm3992, %v4190
      %4279 = vst.msk [vmem:[%s4273 + $0x39] sm:$0xff] %vm3992, %v4191
      %4280 = vst.msk [vmem:[%s4273 + $0x49] sm:$0xff] %vm3992, %v4192
      %4281 = vst.msk [vmem:[%s4273 + $0x51] sm:$0xff] %vm3992, %v4193
      %4282 = vst.msk [vmem:[%s4273 + $0x61] sm:$0xff] %vm3992, %v4194
      %4283 = vst.msk [vmem:[%s4273 + $0x69] sm:$0xff] %vm3992, %v4195
      %4284 = vst.msk [vmem:[%s4273 + $0x79] sm:$0xff] %vm3992, %v4196
      %4285 = vst.msk [vmem:[%s4273 + $0x81] sm:$0xff] %vm3992, %v4197
      %4286 = vst.msk [vmem:[%s4273 + $0x91] sm:$0xff] %vm3992, %v4198
      %4287 = vst.msk [vmem:[%s4273 + $0x99] sm:$0xff] %vm3992, %v4199
      %4288 = vst.msk [vmem:[%s4273 + $0xa9] sm:$0xff] %vm3992, %v4200
      %4289 = vst.msk [vmem:[%s4273 + $0xb1] sm:$0xff] %vm3992, %v4201
      %4290 = vst.msk [vmem:[%s4273 + $0xc1] sm:$0xff] %vm3992, %v4202
      %4291 = vst.msk [vmem:[%s4273 + $0xc9] sm:$0xff] %vm3992, %v4203
      %4292 = vst.msk [vmem:[%s4273 + $0xd9] sm:$0xff] %vm3992, %v4204
      %4293 = vst.msk [vmem:[%s4273 + $0xe1] sm:$0xff] %vm3992, %v4205
      %4294 = vst.msk [vmem:[%s4273 + $0xf1] sm:$0xff] %vm3992, %v4206
      %4295 = vst.msk [vmem:[%s4273 + $0xf9] sm:$0xff] %vm3992, %v4207
      %4296 = vst.msk [vmem:[%s4273 + $0x109] sm:$0xff] %vm3992, %v4208
      %4297 = vst.msk [vmem:[%s4273 + $0x111] sm:$0xff] %vm3992, %v4209
      %4298 = vst.msk [vmem:[%s4273 + $0x121] sm:$0xff] %vm3992, %v4210
      %4299 = vst.msk [vmem:[%s4273 + $0x129] sm:$0xff] %vm3992, %v4211
      %4300 = vst.msk [vmem:[%s4273 + $0x139] sm:$0xff] %vm3992, %v4212
      %4301 = vst.msk [vmem:[%s4273 + $0x141] sm:$0xff] %vm3992, %v4213
      %4302 = vst.msk [vmem:[%s4273 + $0x151] sm:$0xff] %vm3992, %v4214
      %4303 = vst.msk [vmem:[%s4273 + $0x159] sm:$0xff] %vm3992, %v4215
      %4304 = vst.msk [vmem:[%s4273 + $0x169] sm:$0xff] %vm3992, %v4216
      %4305 = vst.msk [vmem:[%s4273 + $0x171] sm:$0xff] %vm3992, %v4217
      %v4306 = vld [vmem:[%s4] sm:$0x1]
      %v4308 = vlaneseq
      %v4309 = vshrl.u32 %v4308, 7
      %v4310 = vsub.s32 0, %v4309
      %v4311 = vrot.slane %v4306, %v4310
      %v4313 = vld [vmem:[#allocation3] sm:$0xff]
      %v4314 = vld [vmem:[#allocation3 + $0x8] sm:$0xff]
      %v4315 = vld [vmem:[#allocation3 + $0x18] sm:$0xff]
      %v4316 = vld [vmem:[#allocation3 + $0x20] sm:$0xff]
      %v4317 = vld [vmem:[#allocation3 + $0x30] sm:$0xff]
      %v4318 = vld [vmem:[#allocation3 + $0x38] sm:$0xff]
      %v4319 = vld [vmem:[#allocation3 + $0x48] sm:$0xff]
      %v4320 = vld [vmem:[#allocation3 + $0x50] sm:$0xff]
      %v4321 = vld [vmem:[#allocation3 + $0x60] sm:$0xff]
      %v4322 = vld [vmem:[#allocation3 + $0x68] sm:$0xff]
      %v4323 = vld [vmem:[#allocation3 + $0x78] sm:$0xff]
      %v4324 = vld [vmem:[#allocation3 + $0x80] sm:$0xff]
      %v4325 = vld [vmem:[#allocation3 + $0x90] sm:$0xff]
      %v4326 = vld [vmem:[#allocation3 + $0x98] sm:$0xff]
      %v4327 = vld [vmem:[#allocation3 + $0xa8] sm:$0xff]
      %v4328 = vld [vmem:[#allocation3 + $0xb0] sm:$0xff]
      %v4329 = vld [vmem:[#allocation3 + $0xc0] sm:$0xff]
      %v4330 = vld [vmem:[#allocation3 + $0xc8] sm:$0xff]
      %v4331 = vld [vmem:[#allocation3 + $0xd8] sm:$0xff]
      %v4332 = vld [vmem:[#allocation3 + $0xe0] sm:$0xff]
      %v4333 = vld [vmem:[#allocation3 + $0xf0] sm:$0xff]
      %v4334 = vld [vmem:[#allocation3 + $0xf8] sm:$0xff]
      %v4335 = vld [vmem:[#allocation3 + $0x108] sm:$0xff]
      %v4336 = vld [vmem:[#allocation3 + $0x110] sm:$0xff]
      %v4337 = vld [vmem:[#allocation3 + $0x120] sm:$0xff]
      %v4338 = vld [vmem:[#allocation3 + $0x128] sm:$0xff]
      %v4339 = vld [vmem:[#allocation3 + $0x138] sm:$0xff]
      %v4340 = vld [vmem:[#allocation3 + $0x140] sm:$0xff]
      %v4341 = vld [vmem:[#allocation3 + $0x150] sm:$0xff]
      %v4342 = vld [vmem:[#allocation3 + $0x158] sm:$0xff]
      %v4343 = vld [vmem:[#allocation3 + $0x168] sm:$0xff]
      %v4344 = vld [vmem:[#allocation3 + $0x170] sm:$0xff]
      %v4345 = vld [vmem:[%s3] sm:$0xff]
      %v4347 = vsel %vm3992, %v4313, 0
      %v4350 = vsel %vm3992, %v4314, 0
      %v4353 = vsel %vm3992, %v4315, 0
      %v4356 = vsel %vm3992, %v4316, 0
      %v4359 = vsel %vm3992, %v4317, 0
      %v4362 = vsel %vm3992, %v4318, 0
      %v4365 = vsel %vm3992, %v4319, 0
      %v4368 = vsel %vm3992, %v4320, 0
      %v4371 = vsel %vm3992, %v4321, 0
      %v4374 = vsel %vm3992, %v4322, 0
      %v4377 = vsel %vm3992, %v4323, 0
      %v4380 = vsel %vm3992, %v4324, 0
      %v4383 = vsel %vm3992, %v4325, 0
      %v4386 = vsel %vm3992, %v4326, 0
      %v4389 = vsel %vm3992, %v4327, 0
      %v4392 = vsel %vm3992, %v4328, 0
      %v4395 = vsel %vm3992, %v4329, 0
      %v4398 = vsel %vm3992, %v4330, 0
      %v4401 = vsel %vm3992, %v4331, 0
      %v4404 = vsel %vm3992, %v4332, 0
      %v4407 = vsel %vm3992, %v4333, 0
      %v4410 = vsel %vm3992, %v4334, 0
      %v4413 = vsel %vm3992, %v4335, 0
      %v4416 = vsel %vm3992, %v4336, 0
      %v4419 = vsel %vm3992, %v4337, 0
      %v4422 = vsel %vm3992, %v4338, 0
      %v4425 = vsel %vm3992, %v4339, 0
      %v4428 = vsel %vm3992, %v4340, 0
      %v4431 = vsel %vm3992, %v4341, 0
      %v4434 = vsel %vm3992, %v4342, 0
      %v4437 = vsel %vm3992, %v4343, 0
      %v4440 = vsel %vm3992, %v4344, 0
      %4442 = vmatprep.subr.mxu0 0.0
      %4443 = vmatpush1.msra.mxu0 %v4345
      %4444 = vmatprep.subr.mxu0 0.0
      %4445 = vmatpush1.msra.mxu0 0.0
      %4446 = vmatprep.subr.mxu0 0.0
      %4447 = vmatpush1.msra.mxu0 0.0
      %4448 = vmatprep.subr.mxu0 0.0
      %4449 = vmatpush1.msra.mxu0 0.0
      %4450 = vmatprep.subr.mxu0 0.0
      %4451 = vmatpush1.msra.mxu0 0.0
      %4452 = vmatprep.subr.mxu0 0.0
      %4453 = vmatpush1.msra.mxu0 0.0
      %4454 = vmatprep.subr.mxu0 0.0
      %4455 = vmatpush1.msra.mxu0 0.0
      %4456 = vmatprep.subr.mxu0 0.0
      %4457 = vmatpush1.msra.mxu0 0.0
      %4458 = vmatprep.subr.mxu0 0.0
      %4459 = vmatpush1.msra.mxu0 0.0
      %4460 = vmatprep.subr.mxu0 0.0
      %4461 = vmatpush1.msra.mxu0 0.0
      %4462 = vmatprep.subr.mxu0 0.0
      %4463 = vmatpush1.msra.mxu0 0.0
      %4464 = vmatprep.subr.mxu0 0.0
      %4465 = vmatpush1.msra.mxu0 0.0
      %4466 = vmatprep.subr.mxu0 0.0
      %4467 = vmatpush1.msra.mxu0 0.0
      %4468 = vmatprep.subr.mxu0 0.0
      %4469 = vmatpush1.msra.mxu0 0.0
      %4470 = vmatprep.subr.mxu0 0.0
      %4471 = vmatpush1.msra.mxu0 0.0
      %4472 = vmatprep.subr.mxu0 0.0
      %4473 = vmatpush1.msra.mxu0 0.0
      %4474 = vmatprep.subr.mxu0 0.0
      %4475 = vmatpush1.msra.mxu0 0.0
      %4476 = vmatprep.subr.mxu0 0.0
      %4477 = vmatpush1.msra.mxu0 0.0
      %4478 = vmatprep.subr.mxu0 0.0
      %4479 = vmatpush1.msra.mxu0 0.0
      %4480 = vmatprep.subr.mxu0 0.0
      %4481 = vmatpush1.msra.mxu0 0.0
      %4482 = vmatprep.subr.mxu0 0.0
      %4483 = vmatpush1.msra.mxu0 0.0
      %4484 = vmatprep.subr.mxu0 0.0
      %4485 = vmatpush1.msra.mxu0 0.0
      %4486 = vmatprep.subr.mxu0 0.0
      %4487 = vmatpush1.msra.mxu0 0.0
      %4488 = vmatprep.subr.mxu0 0.0
      %4489 = vmatpush1.msra.mxu0 0.0
      %4490 = vmatprep.subr.mxu0 0.0
      %4491 = vmatpush1.msra.mxu0 0.0
      %4492 = vmatprep.subr.mxu0 0.0
      %4493 = vmatpush1.msra.mxu0 0.0
      %4494 = vmatprep.subr.mxu0 0.0
      %4495 = vmatpush1.msra.mxu0 0.0
      %4496 = vmatprep.subr.mxu0 0.0
      %4497 = vmatpush1.msra.mxu0 0.0
      %4498 = vmatprep.subr.mxu0 0.0
      %4499 = vmatpush1.msra.mxu0 0.0
      %4500 = vmatprep.subr.mxu0 0.0
      %4501 = vmatpush1.msra.mxu0 0.0
      %4502 = vmatprep.subr.mxu0 0.0
      %4503 = vmatpush1.msra.mxu0 0.0
      %4504 = vmatprep.subr.mxu0 0.0
      %4505 = vmatpush1.msra.mxu0 0.0
      %4506 = vmatprep.mubr.f32.mxu0 0.0
      %4507 = vmatmul.mubr.f32.gmra.mrb[0].mxu0 %v4347
      %v4508 = vpop.f32.mrb[0].mxu0
      %v4509 = vadd.f32 0.0, %v4508
      %v4510 = vpop.f32.mrb[0].mxu0
      %4511 = vmatprep.mubr.f32.mxu0 0.0
      %4512 = vmatmul.mubr.f32.gmra.mrb[0].mxu0 %v4350
      %v4513 = vpop.f32.mrb[0].mxu0
      %v4514 = vadd.f32 0.0, %v4513
      %v4515 = vpop.f32.mrb[0].mxu0
      %4516 = vmatprep.mubr.f32.mxu0 0.0
      %4517 = vmatmul.mubr.f32.gmra.mrb[0].mxu0 %v4353
      %v4518 = vpop.f32.mrb[0].mxu0
      %v4519 = vadd.f32 0.0, %v4518
      %v4520 = vpop.f32.mrb[0].mxu0
      %4521 = vmatprep.mubr.f32.mxu0 0.0
      %4522 = vmatmul.mubr.f32.gmra.mrb[0].mxu0 %v4356
      %v4523 = vpop.f32.mrb[0].mxu0
      %v4524 = vadd.f32 0.0, %v4523
      %v4525 = vpop.f32.mrb[0].mxu0
      %4526 = vmatprep.mubr.f32.mxu0 0.0
      %4527 = vmatmul.mubr.f32.gmra.mrb[0].mxu0 %v4359
      %v4528 = vpop.f32.mrb[0].mxu0
      %v4529 = vadd.f32 0.0, %v4528
      %v4530 = vpop.f32.mrb[0].mxu0
      %4531 = vmatprep.mubr.f32.mxu0 0.0
      %4532 = vmatmul.mubr.f32.gmra.mrb[0].mxu0 %v4362
      %v4533 = vpop.f32.mrb[0].mxu0
      %v4534 = vadd.f32 0.0, %v4533
      %v4535 = vpop.f32.mrb[0].mxu0
      %4536 = vmatprep.mubr.f32.mxu0 0.0
      %4537 = vmatmul.mubr.f32.gmra.mrb[0].mxu0 %v4365
      %v4538 = vpop.f32.mrb[0].mxu0
      %v4539 = vadd.f32 0.0, %v4538
      %v4540 = vpop.f32.mrb[0].mxu0
      %4541 = vmatprep.mubr.f32.mxu0 0.0
      %4542 = vmatmul.mubr.f32.gmra.mrb[0].mxu0 %v4368
      %v4543 = vpop.f32.mrb[0].mxu0
      %v4544 = vadd.f32 0.0, %v4543
      %v4545 = vpop.f32.mrb[0].mxu0
      %4546 = vmatprep.mubr.f32.mxu0 0.0
      %4547 = vmatmul.mubr.f32.gmra.mrb[0].mxu0 %v4371
      %v4548 = vpop.f32.mrb[0].mxu0
      %v4549 = vadd.f32 0.0, %v4548
      %v4550 = vpop.f32.mrb[0].mxu0
      %4551 = vmatprep.mubr.f32.mxu0 0.0
      %4552 = vmatmul.mubr.f32.gmra.mrb[0].mxu0 %v4374
      %v4553 = vpop.f32.mrb[0].mxu0
      %v4554 = vadd.f32 0.0, %v4553
      %v4555 = vpop.f32.mrb[0].mxu0
      %4556 = vmatprep.mubr.f32.mxu0 0.0
      %4557 = vmatmul.mubr.f32.gmra.mrb[0].mxu0 %v4377
      %v4558 = vpop.f32.mrb[0].mxu0
      %v4559 = vadd.f32 0.0, %v4558
      %v4560 = vpop.f32.mrb[0].mxu0
      %4561 = vmatprep.mubr.f32.mxu0 0.0
      %4562 = vmatmul.mubr.f32.gmra.mrb[0].mxu0 %v4380
      %v4563 = vpop.f32.mrb[0].mxu0
      %v4564 = vadd.f32 0.0, %v4563
      %v4565 = vpop.f32.mrb[0].mxu0
      %4566 = vmatprep.mubr.f32.mxu0 0.0
      %4567 = vmatmul.mubr.f32.gmra.mrb[0].mxu0 %v4383
      %v4568 = vpop.f32.mrb[0].mxu0
      %v4569 = vadd.f32 0.0, %v4568
      %v4570 = vpop.f32.mrb[0].mxu0
      %4571 = vmatprep.mubr.f32.mxu0 0.0
      %4572 = vmatmul.mubr.f32.gmra.mrb[0].mxu0 %v4386
      %v4573 = vpop.f32.mrb[0].mxu0
      %v4574 = vadd.f32 0.0, %v4573
      %v4575 = vpop.f32.mrb[0].mxu0
      %4576 = vmatprep.mubr.f32.mxu0 0.0
      %4577 = vmatmul.mubr.f32.gmra.mrb[0].mxu0 %v4389
      %v4578 = vpop.f32.mrb[0].mxu0
      %v4579 = vadd.f32 0.0, %v4578
      %v4580 = vpop.f32.mrb[0].mxu0
      %4581 = vmatprep.mubr.f32.mxu0 0.0
      %4582 = vmatmul.mubr.f32.gmra.mrb[0].mxu0 %v4392
      %v4583 = vpop.f32.mrb[0].mxu0
      %v4584 = vadd.f32 0.0, %v4583
      %v4585 = vpop.f32.mrb[0].mxu0
      %4586 = vmatprep.mubr.f32.mxu0 0.0
      %4587 = vmatmul.mubr.f32.gmra.mrb[0].mxu0 %v4395
      %v4588 = vpop.f32.mrb[0].mxu0
      %v4589 = vadd.f32 0.0, %v4588
      %v4590 = vpop.f32.mrb[0].mxu0
      %4591 = vmatprep.mubr.f32.mxu0 0.0
      %4592 = vmatmul.mubr.f32.gmra.mrb[0].mxu0 %v4398
      %v4593 = vpop.f32.mrb[0].mxu0
      %v4594 = vadd.f32 0.0, %v4593
      %v4595 = vpop.f32.mrb[0].mxu0
      %4596 = vmatprep.mubr.f32.mxu0 0.0
      %4597 = vmatmul.mubr.f32.gmra.mrb[0].mxu0 %v4401
      %v4598 = vpop.f32.mrb[0].mxu0
      %v4599 = vadd.f32 0.0, %v4598
      %v4600 = vpop.f32.mrb[0].mxu0
      %4601 = vmatprep.mubr.f32.mxu0 0.0
      %4602 = vmatmul.mubr.f32.gmra.mrb[0].mxu0 %v4404
      %v4603 = vpop.f32.mrb[0].mxu0
      %v4604 = vadd.f32 0.0, %v4603
      %v4605 = vpop.f32.mrb[0].mxu0
      %4606 = vmatprep.mubr.f32.mxu0 0.0
      %4607 = vmatmul.mubr.f32.gmra.mrb[0].mxu0 %v4407
      %v4608 = vpop.f32.mrb[0].mxu0
      %v4609 = vadd.f32 0.0, %v4608
      %v4610 = vpop.f32.mrb[0].mxu0
      %4611 = vmatprep.mubr.f32.mxu0 0.0
      %4612 = vmatmul.mubr.f32.gmra.mrb[0].mxu0 %v4410
      %v4613 = vpop.f32.mrb[0].mxu0
      %v4614 = vadd.f32 0.0, %v4613
      %v4615 = vpop.f32.mrb[0].mxu0
      %4616 = vmatprep.mubr.f32.mxu0 0.0
      %4617 = vmatmul.mubr.f32.gmra.mrb[0].mxu0 %v4413
      %v4618 = vpop.f32.mrb[0].mxu0
      %v4619 = vadd.f32 0.0, %v4618
      %v4620 = vpop.f32.mrb[0].mxu0
      %4621 = vmatprep.mubr.f32.mxu0 0.0
      %4622 = vmatmul.mubr.f32.gmra.mrb[0].mxu0 %v4416
      %v4623 = vpop.f32.mrb[0].mxu0
      %v4624 = vadd.f32 0.0, %v4623
      %v4625 = vpop.f32.mrb[0].mxu0
      %4626 = vmatprep.mubr.f32.mxu0 0.0
      %4627 = vmatmul.mubr.f32.gmra.mrb[0].mxu0 %v4419
      %v4628 = vpop.f32.mrb[0].mxu0
      %v4629 = vadd.f32 0.0, %v4628
      %v4630 = vpop.f32.mrb[0].mxu0
      %4631 = vmatprep.mubr.f32.mxu0 0.0
      %4632 = vmatmul.mubr.f32.gmra.mrb[0].mxu0 %v4422
      %v4633 = vpop.f32.mrb[0].mxu0
      %v4634 = vadd.f32 0.0, %v4633
      %v4635 = vpop.f32.mrb[0].mxu0
      %4636 = vmatprep.mubr.f32.mxu0 0.0
      %4637 = vmatmul.mubr.f32.gmra.mrb[0].mxu0 %v4425
      %v4638 = vpop.f32.mrb[0].mxu0
      %v4639 = vadd.f32 0.0, %v4638
      %v4640 = vpop.f32.mrb[0].mxu0
      %4641 = vmatprep.mubr.f32.mxu0 0.0
      %4642 = vmatmul.mubr.f32.gmra.mrb[0].mxu0 %v4428
      %v4643 = vpop.f32.mrb[0].mxu0
      %v4644 = vadd.f32 0.0, %v4643
      %v4645 = vpop.f32.mrb[0].mxu0
      %4646 = vmatprep.mubr.f32.mxu0 0.0
      %4647 = vmatmul.mubr.f32.gmra.mrb[0].mxu0 %v4431
      %v4648 = vpop.f32.mrb[0].mxu0
      %v4649 = vadd.f32 0.0, %v4648
      %v4650 = vpop.f32.mrb[0].mxu0
      %4651 = vmatprep.mubr.f32.mxu0 0.0
      %4652 = vmatmul.mubr.f32.gmra.mrb[0].mxu0 %v4434
      %v4653 = vpop.f32.mrb[0].mxu0
      %v4654 = vadd.f32 0.0, %v4653
      %v4655 = vpop.f32.mrb[0].mxu0
      %4656 = vmatprep.mubr.f32.mxu0 0.0
      %4657 = vmatmul.mubr.f32.gmra.mrb[0].mxu0 %v4437
      %v4658 = vpop.f32.mrb[0].mxu0
      %v4659 = vadd.f32 0.0, %v4658
      %v4660 = vpop.f32.mrb[0].mxu0
      %4661 = vmatprep.mubr.f32.mxu0 0.0
      %4662 = vmatmul.mubr.f32.gmra.mrb[0].mxu0 %v4440
      %v4663 = vpop.f32.mrb[0].mxu0
      %v4664 = vadd.f32 0.0, %v4663
      %v4665 = vpop.f32.mrb[0].mxu0
      %4666 = vdwg.mxu0
      %v4667 = vadd.f32 %v4311, %v4509
      %v4668 = vadd.f32 %v4311, %v4514
      %v4669 = vadd.f32 %v4311, %v4519
      %v4670 = vadd.f32 %v4311, %v4524
      %v4671 = vadd.f32 %v4311, %v4529
      %v4672 = vadd.f32 %v4311, %v4534
      %v4673 = vadd.f32 %v4311, %v4539
      %v4674 = vadd.f32 %v4311, %v4544
      %v4675 = vadd.f32 %v4311, %v4549
      %v4676 = vadd.f32 %v4311, %v4554
      %v4677 = vadd.f32 %v4311, %v4559
      %v4678 = vadd.f32 %v4311, %v4564
      %v4679 = vadd.f32 %v4311, %v4569
      %v4680 = vadd.f32 %v4311, %v4574
      %v4681 = vadd.f32 %v4311, %v4579
      %v4682 = vadd.f32 %v4311, %v4584
      %v4683 = vadd.f32 %v4311, %v4589
      %v4684 = vadd.f32 %v4311, %v4594
      %v4685 = vadd.f32 %v4311, %v4599
      %v4686 = vadd.f32 %v4311, %v4604
      %v4687 = vadd.f32 %v4311, %v4609
      %v4688 = vadd.f32 %v4311, %v4614
      %v4689 = vadd.f32 %v4311, %v4619
      %v4690 = vadd.f32 %v4311, %v4624
      %v4691 = vadd.f32 %v4311, %v4629
      %v4692 = vadd.f32 %v4311, %v4634
      %v4693 = vadd.f32 %v4311, %v4639
      %v4694 = vadd.f32 %v4311, %v4644
      %v4695 = vadd.f32 %v4311, %v4649
      %v4696 = vadd.f32 %v4311, %v4654
      %v4697 = vadd.f32 %v4311, %v4659
      %v4698 = vadd.f32 %v4311, %v4664
      %v4699 = vld [vmem:[#allocation3 + $0x1] sm:$0xff]
      %v4700 = vld [vmem:[#allocation3 + $0x9] sm:$0xff]
      %v4701 = vld [vmem:[#allocation3 + $0x19] sm:$0xff]
      %v4702 = vld [vmem:[#allocation3 + $0x21] sm:$0xff]
      %v4703 = vld [vmem:[#allocation3 + $0x31] sm:$0xff]
      %v4704 = vld [vmem:[#allocation3 + $0x39] sm:$0xff]
      %v4705 = vld [vmem:[#allocation3 + $0x49] sm:$0xff]
      %v4706 = vld [vmem:[#allocation3 + $0x51] sm:$0xff]
      %v4707 = vld [vmem:[#allocation3 + $0x61] sm:$0xff]
      %v4708 = vld [vmem:[#allocation3 + $0x69] sm:$0xff]
      %v4709 = vld [vmem:[#allocation3 + $0x79] sm:$0xff]
      %v4710 = vld [vmem:[#allocation3 + $0x81] sm:$0xff]
      %v4711 = vld [vmem:[#allocation3 + $0x91] sm:$0xff]
      %v4712 = vld [vmem:[#allocation3 + $0x99] sm:$0xff]
      %v4713 = vld [vmem:[#allocation3 + $0xa9] sm:$0xff]
      %v4714 = vld [vmem:[#allocation3 + $0xb1] sm:$0xff]
      %v4715 = vld [vmem:[#allocation3 + $0xc1] sm:$0xff]
      %v4716 = vld [vmem:[#allocation3 + $0xc9] sm:$0xff]
      %v4717 = vld [vmem:[#allocation3 + $0xd9] sm:$0xff]
      %v4718 = vld [vmem:[#allocation3 + $0xe1] sm:$0xff]
      %v4719 = vld [vmem:[#allocation3 + $0xf1] sm:$0xff]
      %v4720 = vld [vmem:[#allocation3 + $0xf9] sm:$0xff]
      %v4721 = vld [vmem:[#allocation3 + $0x109] sm:$0xff]
      %v4722 = vld [vmem:[#allocation3 + $0x111] sm:$0xff]
      %v4723 = vld [vmem:[#allocation3 + $0x121] sm:$0xff]
      %v4724 = vld [vmem:[#allocation3 + $0x129] sm:$0xff]
      %v4725 = vld [vmem:[#allocation3 + $0x139] sm:$0xff]
      %v4726 = vld [vmem:[#allocation3 + $0x141] sm:$0xff]
      %v4727 = vld [vmem:[#allocation3 + $0x151] sm:$0xff]
      %v4728 = vld [vmem:[#allocation3 + $0x159] sm:$0xff]
      %v4729 = vld [vmem:[#allocation3 + $0x169] sm:$0xff]
      %v4730 = vld [vmem:[#allocation3 + $0x171] sm:$0xff]
      %s4731 = scalar_lea.vmem %s3, 8
      %v4732 = vld [vmem:[%s4731] sm:$0xff]
      %v4734 = vsel %vm3992, %v4699, 0
      %v4737 = vsel %vm3992, %v4700, 0
      %v4740 = vsel %vm3992, %v4701, 0
      %v4743 = vsel %vm3992, %v4702, 0
      %v4746 = vsel %vm3992, %v4703, 0
      %v4749 = vsel %vm3992, %v4704, 0
      %v4752 = vsel %vm3992, %v4705, 0
      %v4755 = vsel %vm3992, %v4706, 0
      %v4758 = vsel %vm3992, %v4707, 0
      %v4761 = vsel %vm3992, %v4708, 0
      %v4764 = vsel %vm3992, %v4709, 0
      %v4767 = vsel %vm3992, %v4710, 0
      %v4770 = vsel %vm3992, %v4711, 0
      %v4773 = vsel %vm3992, %v4712, 0
      %v4776 = vsel %vm3992, %v4713, 0
      %v4779 = vsel %vm3992, %v4714, 0
      %v4782 = vsel %vm3992, %v4715, 0
      %v4785 = vsel %vm3992, %v4716, 0
      %v4788 = vsel %vm3992, %v4717, 0
      %v4791 = vsel %vm3992, %v4718, 0
      %v4794 = vsel %vm3992, %v4719, 0
      %v4797 = vsel %vm3992, %v4720, 0
      %v4800 = vsel %vm3992, %v4721, 0
      %v4803 = vsel %vm3992, %v4722, 0
      %v4806 = vsel %vm3992, %v4723, 0
      %v4809 = vsel %vm3992, %v4724, 0
      %v4812 = vsel %vm3992, %v4725, 0
      %v4815 = vsel %vm3992, %v4726, 0
      %v4818 = vsel %vm3992, %v4727, 0
      %v4821 = vsel %vm3992, %v4728, 0
      %v4824 = vsel %vm3992, %v4729, 0
      %v4827 = vsel %vm3992, %v4730, 0
      %4829 = vmatprep.subr.mxu0 0.0
      %4830 = vmatpush1.msra.mxu0 %v4732
      %4831 = vmatprep.subr.mxu0 0.0
      %4832 = vmatpush1.msra.mxu0 0.0
      %4833 = vmatprep.subr.mxu0 0.0
      %4834 = vmatpush1.msra.mxu0 0.0
      %4835 = vmatprep.subr.mxu0 0.0
      %4836 = vmatpush1.msra.mxu0 0.0
      %4837 = vmatprep.subr.mxu0 0.0
      %4838 = vmatpush1.msra.mxu0 0.0
      %4839 = vmatprep.subr.mxu0 0.0
      %4840 = vmatpush1.msra.mxu0 0.0
      %4841 = vmatprep.subr.mxu0 0.0
      %4842 = vmatpush1.msra.mxu0 0.0
      %4843 = vmatprep.subr.mxu0 0.0
      %4844 = vmatpush1.msra.mxu0 0.0
      %4845 = vmatprep.subr.mxu0 0.0
      %4846 = vmatpush1.msra.mxu0 0.0
      %4847 = vmatprep.subr.mxu0 0.0
      %4848 = vmatpush1.msra.mxu0 0.0
      %4849 = vmatprep.subr.mxu0 0.0
      %4850 = vmatpush1.msra.mxu0 0.0
      %4851 = vmatprep.subr.mxu0 0.0
      %4852 = vmatpush1.msra.mxu0 0.0
      %4853 = vmatprep.subr.mxu0 0.0
      %4854 = vmatpush1.msra.mxu0 0.0
      %4855 = vmatprep.subr.mxu0 0.0
      %4856 = vmatpush1.msra.mxu0 0.0
      %4857 = vmatprep.subr.mxu0 0.0
      %4858 = vmatpush1.msra.mxu0 0.0
      %4859 = vmatprep.subr.mxu0 0.0
      %4860 = vmatpush1.msra.mxu0 0.0
      %4861 = vmatprep.subr.mxu0 0.0
      %4862 = vmatpush1.msra.mxu0 0.0
      %4863 = vmatprep.subr.mxu0 0.0
      %4864 = vmatpush1.msra.mxu0 0.0
      %4865 = vmatprep.subr.mxu0 0.0
      %4866 = vmatpush1.msra.mxu0 0.0
      %4867 = vmatprep.subr.mxu0 0.0
      %4868 = vmatpush1.msra.mxu0 0.0
      %4869 = vmatprep.subr.mxu0 0.0
      %4870 = vmatpush1.msra.mxu0 0.0
      %4871 = vmatprep.subr.mxu0 0.0
      %4872 = vmatpush1.msra.mxu0 0.0
      %4873 = vmatprep.subr.mxu0 0.0
      %4874 = vmatpush1.msra.mxu0 0.0
      %4875 = vmatprep.subr.mxu0 0.0
      %4876 = vmatpush1.msra.mxu0 0.0
      %4877 = vmatprep.subr.mxu0 0.0
      %4878 = vmatpush1.msra.mxu0 0.0
      %4879 = vmatprep.subr.mxu0 0.0
      %4880 = vmatpush1.msra.mxu0 0.0
      %4881 = vmatprep.subr.mxu0 0.0
      %4882 = vmatpush1.msra.mxu0 0.0
      %4883 = vmatprep.subr.mxu0 0.0
      %4884 = vmatpush1.msra.mxu0 0.0
      %4885 = vmatprep.subr.mxu0 0.0
      %4886 = vmatpush1.msra.mxu0 0.0
      %4887 = vmatprep.subr.mxu0 0.0
      %4888 = vmatpush1.msra.mxu0 0.0
      %4889 = vmatprep.subr.mxu0 0.0
      %4890 = vmatpush1.msra.mxu0 0.0
      %4891 = vmatprep.subr.mxu0 0.0
      %4892 = vmatpush1.msra.mxu0 0.0
      %4893 = vmatprep.mubr.f32.mxu0 0.0
      %4894 = vmatmul.mubr.f32.gmra.mrb[0].mxu0 %v4734
      %v4895 = vpop.f32.mrb[0].mxu0
      %v4896 = vadd.f32 0.0, %v4895
      %v4897 = vpop.f32.mrb[0].mxu0
      %4898 = vmatprep.mubr.f32.mxu0 0.0
      %4899 = vmatmul.mubr.f32.gmra.mrb[0].mxu0 %v4737
      %v4900 = vpop.f32.mrb[0].mxu0
      %v4901 = vadd.f32 0.0, %v4900
      %v4902 = vpop.f32.mrb[0].mxu0
      %4903 = vmatprep.mubr.f32.mxu0 0.0
      %4904 = vmatmul.mubr.f32.gmra.mrb[0].mxu0 %v4740
      %v4905 = vpop.f32.mrb[0].mxu0
      %v4906 = vadd.f32 0.0, %v4905
      %v4907 = vpop.f32.mrb[0].mxu0
      %4908 = vmatprep.mubr.f32.mxu0 0.0
      %4909 = vmatmul.mubr.f32.gmra.mrb[0].mxu0 %v4743
      %v4910 = vpop.f32.mrb[0].mxu0
      %v4911 = vadd.f32 0.0, %v4910
      %v4912 = vpop.f32.mrb[0].mxu0
      %4913 = vmatprep.mubr.f32.mxu0 0.0
      %4914 = vmatmul.mubr.f32.gmra.mrb[0].mxu0 %v4746
      %v4915 = vpop.f32.mrb[0].mxu0
      %v4916 = vadd.f32 0.0, %v4915
      %v4917 = vpop.f32.mrb[0].mxu0
      %4918 = vmatprep.mubr.f32.mxu0 0.0
      %4919 = vmatmul.mubr.f32.gmra.mrb[0].mxu0 %v4749
      %v4920 = vpop.f32.mrb[0].mxu0
      %v4921 = vadd.f32 0.0, %v4920
      %v4922 = vpop.f32.mrb[0].mxu0
      %4923 = vmatprep.mubr.f32.mxu0 0.0
      %4924 = vmatmul.mubr.f32.gmra.mrb[0].mxu0 %v4752
      %v4925 = vpop.f32.mrb[0].mxu0
      %v4926 = vadd.f32 0.0, %v4925
      %v4927 = vpop.f32.mrb[0].mxu0
      %4928 = vmatprep.mubr.f32.mxu0 0.0
      %4929 = vmatmul.mubr.f32.gmra.mrb[0].mxu0 %v4755
      %v4930 = vpop.f32.mrb[0].mxu0
      %v4931 = vadd.f32 0.0, %v4930
      %v4932 = vpop.f32.mrb[0].mxu0
      %4933 = vmatprep.mubr.f32.mxu0 0.0
      %4934 = vmatmul.mubr.f32.gmra.mrb[0].mxu0 %v4758
      %v4935 = vpop.f32.mrb[0].mxu0
      %v4936 = vadd.f32 0.0, %v4935
      %v4937 = vpop.f32.mrb[0].mxu0
      %4938 = vmatprep.mubr.f32.mxu0 0.0
      %4939 = vmatmul.mubr.f32.gmra.mrb[0].mxu0 %v4761
      %v4940 = vpop.f32.mrb[0].mxu0
      %v4941 = vadd.f32 0.0, %v4940
      %v4942 = vpop.f32.mrb[0].mxu0
      %4943 = vmatprep.mubr.f32.mxu0 0.0
      %4944 = vmatmul.mubr.f32.gmra.mrb[0].mxu0 %v4764
      %v4945 = vpop.f32.mrb[0].mxu0
      %v4946 = vadd.f32 0.0, %v4945
      %v4947 = vpop.f32.mrb[0].mxu0
      %4948 = vmatprep.mubr.f32.mxu0 0.0
      %4949 = vmatmul.mubr.f32.gmra.mrb[0].mxu0 %v4767
      %v4950 = vpop.f32.mrb[0].mxu0
      %v4951 = vadd.f32 0.0, %v4950
      %v4952 = vpop.f32.mrb[0].mxu0
      %4953 = vmatprep.mubr.f32.mxu0 0.0
      %4954 = vmatmul.mubr.f32.gmra.mrb[0].mxu0 %v4770
      %v4955 = vpop.f32.mrb[0].mxu0
      %v4956 = vadd.f32 0.0, %v4955
      %v4957 = vpop.f32.mrb[0].mxu0
      %4958 = vmatprep.mubr.f32.mxu0 0.0
      %4959 = vmatmul.mubr.f32.gmra.mrb[0].mxu0 %v4773
      %v4960 = vpop.f32.mrb[0].mxu0
      %v4961 = vadd.f32 0.0, %v4960
      %v4962 = vpop.f32.mrb[0].mxu0
      %4963 = vmatprep.mubr.f32.mxu0 0.0
      %4964 = vmatmul.mubr.f32.gmra.mrb[0].mxu0 %v4776
      %v4965 = vpop.f32.mrb[0].mxu0
      %v4966 = vadd.f32 0.0, %v4965
      %v4967 = vpop.f32.mrb[0].mxu0
      %4968 = vmatprep.mubr.f32.mxu0 0.0
      %4969 = vmatmul.mubr.f32.gmra.mrb[0].mxu0 %v4779
      %v4970 = vpop.f32.mrb[0].mxu0
      %v4971 = vadd.f32 0.0, %v4970
      %v4972 = vpop.f32.mrb[0].mxu0
      %4973 = vmatprep.mubr.f32.mxu0 0.0
      %4974 = vmatmul.mubr.f32.gmra.mrb[0].mxu0 %v4782
      %v4975 = vpop.f32.mrb[0].mxu0
      %v4976 = vadd.f32 0.0, %v4975
      %v4977 = vpop.f32.mrb[0].mxu0
      %4978 = vmatprep.mubr.f32.mxu0 0.0
      %4979 = vmatmul.mubr.f32.gmra.mrb[0].mxu0 %v4785
      %v4980 = vpop.f32.mrb[0].mxu0
      %v4981 = vadd.f32 0.0, %v4980
      %v4982 = vpop.f32.mrb[0].mxu0
      %4983 = vmatprep.mubr.f32.mxu0 0.0
      %4984 = vmatmul.mubr.f32.gmra.mrb[0].mxu0 %v4788
      %v4985 = vpop.f32.mrb[0].mxu0
      %v4986 = vadd.f32 0.0, %v4985
      %v4987 = vpop.f32.mrb[0].mxu0
      %4988 = vmatprep.mubr.f32.mxu0 0.0
      %4989 = vmatmul.mubr.f32.gmra.mrb[0].mxu0 %v4791
      %v4990 = vpop.f32.mrb[0].mxu0
      %v4991 = vadd.f32 0.0, %v4990
      %v4992 = vpop.f32.mrb[0].mxu0
      %4993 = vmatprep.mubr.f32.mxu0 0.0
      %4994 = vmatmul.mubr.f32.gmra.mrb[0].mxu0 %v4794
      %v4995 = vpop.f32.mrb[0].mxu0
      %v4996 = vadd.f32 0.0, %v4995
      %v4997 = vpop.f32.mrb[0].mxu0
      %4998 = vmatprep.mubr.f32.mxu0 0.0
      %4999 = vmatmul.mubr.f32.gmra.mrb[0].mxu0 %v4797
      %v5000 = vpop.f32.mrb[0].mxu0
      %v5001 = vadd.f32 0.0, %v5000
      %v5002 = vpop.f32.mrb[0].mxu0
      %5003 = vmatprep.mubr.f32.mxu0 0.0
      %5004 = vmatmul.mubr.f32.gmra.mrb[0].mxu0 %v4800
      %v5005 = vpop.f32.mrb[0].mxu0
      %v5006 = vadd.f32 0.0, %v5005
      %v5007 = vpop.f32.mrb[0].mxu0
      %5008 = vmatprep.mubr.f32.mxu0 0.0
      %5009 = vmatmul.mubr.f32.gmra.mrb[0].mxu0 %v4803
      %v5010 = vpop.f32.mrb[0].mxu0
      %v5011 = vadd.f32 0.0, %v5010
      %v5012 = vpop.f32.mrb[0].mxu0
      %5013 = vmatprep.mubr.f32.mxu0 0.0
      %5014 = vmatmul.mubr.f32.gmra.mrb[0].mxu0 %v4806
      %v5015 = vpop.f32.mrb[0].mxu0
      %v5016 = vadd.f32 0.0, %v5015
      %v5017 = vpop.f32.mrb[0].mxu0
      %5018 = vmatprep.mubr.f32.mxu0 0.0
      %5019 = vmatmul.mubr.f32.gmra.mrb[0].mxu0 %v4809
      %v5020 = vpop.f32.mrb[0].mxu0
      %v5021 = vadd.f32 0.0, %v5020
      %v5022 = vpop.f32.mrb[0].mxu0
      %5023 = vmatprep.mubr.f32.mxu0 0.0
      %5024 = vmatmul.mubr.f32.gmra.mrb[0].mxu0 %v4812
      %v5025 = vpop.f32.mrb[0].mxu0
      %v5026 = vadd.f32 0.0, %v5025
      %v5027 = vpop.f32.mrb[0].mxu0
      %5028 = vmatprep.mubr.f32.mxu0 0.0
      %5029 = vmatmul.mubr.f32.gmra.mrb[0].mxu0 %v4815
      %v5030 = vpop.f32.mrb[0].mxu0
      %v5031 = vadd.f32 0.0, %v5030
      %v5032 = vpop.f32.mrb[0].mxu0
      %5033 = vmatprep.mubr.f32.mxu0 0.0
      %5034 = vmatmul.mubr.f32.gmra.mrb[0].mxu0 %v4818
      %v5035 = vpop.f32.mrb[0].mxu0
      %v5036 = vadd.f32 0.0, %v5035
      %v5037 = vpop.f32.mrb[0].mxu0
      %5038 = vmatprep.mubr.f32.mxu0 0.0
      %5039 = vmatmul.mubr.f32.gmra.mrb[0].mxu0 %v4821
      %v5040 = vpop.f32.mrb[0].mxu0
      %v5041 = vadd.f32 0.0, %v5040
      %v5042 = vpop.f32.mrb[0].mxu0
      %5043 = vmatprep.mubr.f32.mxu0 0.0
      %5044 = vmatmul.mubr.f32.gmra.mrb[0].mxu0 %v4824
      %v5045 = vpop.f32.mrb[0].mxu0
      %v5046 = vadd.f32 0.0, %v5045
      %v5047 = vpop.f32.mrb[0].mxu0
      %5048 = vmatprep.mubr.f32.mxu0 0.0
      %5049 = vmatmul.mubr.f32.gmra.mrb[0].mxu0 %v4827
      %v5050 = vpop.f32.mrb[0].mxu0
      %v5051 = vadd.f32 0.0, %v5050
      %v5052 = vpop.f32.mrb[0].mxu0
      %5053 = vdwg.mxu0
      %v5054 = vadd.f32 %v4667, %v4896
      %v5055 = vadd.f32 %v4668, %v4901
      %v5056 = vadd.f32 %v4669, %v4906
      %v5057 = vadd.f32 %v4670, %v4911
      %v5058 = vadd.f32 %v4671, %v4916
      %v5059 = vadd.f32 %v4672, %v4921
      %v5060 = vadd.f32 %v4673, %v4926
      %v5061 = vadd.f32 %v4674, %v4931
      %v5062 = vadd.f32 %v4675, %v4936
      %v5063 = vadd.f32 %v4676, %v4941
      %v5064 = vadd.f32 %v4677, %v4946
      %v5065 = vadd.f32 %v4678, %v4951
      %v5066 = vadd.f32 %v4679, %v4956
      %v5067 = vadd.f32 %v4680, %v4961
      %v5068 = vadd.f32 %v4681, %v4966
      %v5069 = vadd.f32 %v4682, %v4971
      %v5070 = vadd.f32 %v4683, %v4976
      %v5071 = vadd.f32 %v4684, %v4981
      %v5072 = vadd.f32 %v4685, %v4986
      %v5073 = vadd.f32 %v4686, %v4991
      %v5074 = vadd.f32 %v4687, %v4996
      %v5075 = vadd.f32 %v4688, %v5001
      %v5076 = vadd.f32 %v4689, %v5006
      %v5077 = vadd.f32 %v4690, %v5011
      %v5078 = vadd.f32 %v4691, %v5016
      %v5079 = vadd.f32 %v4692, %v5021
      %v5080 = vadd.f32 %v4693, %v5026
      %v5081 = vadd.f32 %v4694, %v5031
      %v5082 = vadd.f32 %v4695, %v5036
      %v5083 = vadd.f32 %v4696, %v5041
      %v5084 = vadd.f32 %v4697, %v5046
      %v5085 = vadd.f32 %v4698, %v5051
      %v5086 = vld [vmem:[#allocation3 + $0x2] sm:$0xff]
      %v5087 = vld [vmem:[#allocation3 + $0xa] sm:$0xff]
      %v5088 = vld [vmem:[#allocation3 + $0x1a] sm:$0xff]
      %v5089 = vld [vmem:[#allocation3 + $0x22] sm:$0xff]
      %v5090 = vld [vmem:[#allocation3 + $0x32] sm:$0xff]
      %v5091 = vld [vmem:[#allocation3 + $0x3a] sm:$0xff]
      %v5092 = vld [vmem:[#allocation3 + $0x4a] sm:$0xff]
      %v5093 = vld [vmem:[#allocation3 + $0x52] sm:$0xff]
      %v5094 = vld [vmem:[#allocation3 + $0x62] sm:$0xff]
      %v5095 = vld [vmem:[#allocation3 + $0x6a] sm:$0xff]
      %v5096 = vld [vmem:[#allocation3 + $0x7a] sm:$0xff]
      %v5097 = vld [vmem:[#allocation3 + $0x82] sm:$0xff]
      %v5098 = vld [vmem:[#allocation3 + $0x92] sm:$0xff]
      %v5099 = vld [vmem:[#allocation3 + $0x9a] sm:$0xff]
      %v5100 = vld [vmem:[#allocation3 + $0xaa] sm:$0xff]
      %v5101 = vld [vmem:[#allocation3 + $0xb2] sm:$0xff]
      %v5102 = vld [vmem:[#allocation3 + $0xc2] sm:$0xff]
      %v5103 = vld [vmem:[#allocation3 + $0xca] sm:$0xff]
      %v5104 = vld [vmem:[#allocation3 + $0xda] sm:$0xff]
      %v5105 = vld [vmem:[#allocation3 + $0xe2] sm:$0xff]
      %v5106 = vld [vmem:[#allocation3 + $0xf2] sm:$0xff]
      %v5107 = vld [vmem:[#allocation3 + $0xfa] sm:$0xff]
      %v5108 = vld [vmem:[#allocation3 + $0x10a] sm:$0xff]
      %v5109 = vld [vmem:[#allocation3 + $0x112] sm:$0xff]
      %v5110 = vld [vmem:[#allocation3 + $0x122] sm:$0xff]
      %v5111 = vld [vmem:[#allocation3 + $0x12a] sm:$0xff]
      %v5112 = vld [vmem:[#allocation3 + $0x13a] sm:$0xff]
      %v5113 = vld [vmem:[#allocation3 + $0x142] sm:$0xff]
      %v5114 = vld [vmem:[#allocation3 + $0x152] sm:$0xff]
      %v5115 = vld [vmem:[#allocation3 + $0x15a] sm:$0xff]
      %v5116 = vld [vmem:[#allocation3 + $0x16a] sm:$0xff]
      %v5117 = vld [vmem:[#allocation3 + $0x172] sm:$0xff]
      %s5118 = scalar_lea.vmem %s3, 16
      %v5119 = vld [vmem:[%s5118] sm:$0xff]
      %v5121 = vsel %vm3992, %v5086, 0
      %v5124 = vsel %vm3992, %v5087, 0
      %v5127 = vsel %vm3992, %v5088, 0
      %v5130 = vsel %vm3992, %v5089, 0
      %v5133 = vsel %vm3992, %v5090, 0
      %v5136 = vsel %vm3992, %v5091, 0
      %v5139 = vsel %vm3992, %v5092, 0
      %v5142 = vsel %vm3992, %v5093, 0
      %v5145 = vsel %vm3992, %v5094, 0
      %v5148 = vsel %vm3992, %v5095, 0
      %v5151 = vsel %vm3992, %v5096, 0
      %v5154 = vsel %vm3992, %v5097, 0
      %v5157 = vsel %vm3992, %v5098, 0
      %v5160 = vsel %vm3992, %v5099, 0
      %v5163 = vsel %vm3992, %v5100, 0
      %v5166 = vsel %vm3992, %v5101, 0
      %v5169 = vsel %vm3992, %v5102, 0
      %v5172 = vsel %vm3992, %v5103, 0
      %v5175 = vsel %vm3992, %v5104, 0
      %v5178 = vsel %vm3992, %v5105, 0
      %v5181 = vsel %vm3992, %v5106, 0
      %v5184 = vsel %vm3992, %v5107, 0
      %v5187 = vsel %vm3992, %v5108, 0
      %v5190 = vsel %vm3992, %v5109, 0
      %v5193 = vsel %vm3992, %v5110, 0
      %v5196 = vsel %vm3992, %v5111, 0
      %v5199 = vsel %vm3992, %v5112, 0
      %v5202 = vsel %vm3992, %v5113, 0
      %v5205 = vsel %vm3992, %v5114, 0
      %v5208 = vsel %vm3992, %v5115, 0
      %v5211 = vsel %vm3992, %v5116, 0
      %v5214 = vsel %vm3992, %v5117, 0
      %5216 = vmatprep.subr.mxu0 0.0
      %5217 = vmatpush1.msra.mxu0 %v5119
      %5218 = vmatprep.subr.mxu0 0.0
      %5219 = vmatpush1.msra.mxu0 0.0
      %5220 = vmatprep.subr.mxu0 0.0
      %5221 = vmatpush1.msra.mxu0 0.0
      %5222 = vmatprep.subr.mxu0 0.0
      %5223 = vmatpush1.msra.mxu0 0.0
      %5224 = vmatprep.subr.mxu0 0.0
      %5225 = vmatpush1.msra.mxu0 0.0
      %5226 = vmatprep.subr.mxu0 0.0
      %5227 = vmatpush1.msra.mxu0 0.0
      %5228 = vmatprep.subr.mxu0 0.0
      %5229 = vmatpush1.msra.mxu0 0.0
      %5230 = vmatprep.subr.mxu0 0.0
      %5231 = vmatpush1.msra.mxu0 0.0
      %5232 = vmatprep.subr.mxu0 0.0
      %5233 = vmatpush1.msra.mxu0 0.0
      %5234 = vmatprep.subr.mxu0 0.0
      %5235 = vmatpush1.msra.mxu0 0.0
      %5236 = vmatprep.subr.mxu0 0.0
      %5237 = vmatpush1.msra.mxu0 0.0
      %5238 = vmatprep.subr.mxu0 0.0
      %5239 = vmatpush1.msra.mxu0 0.0
      %5240 = vmatprep.subr.mxu0 0.0
      %5241 = vmatpush1.msra.mxu0 0.0
      %5242 = vmatprep.subr.mxu0 0.0
      %5243 = vmatpush1.msra.mxu0 0.0
      %5244 = vmatprep.subr.mxu0 0.0
      %5245 = vmatpush1.msra.mxu0 0.0
      %5246 = vmatprep.subr.mxu0 0.0
      %5247 = vmatpush1.msra.mxu0 0.0
      %5248 = vmatprep.subr.mxu0 0.0
      %5249 = vmatpush1.msra.mxu0 0.0
      %5250 = vmatprep.subr.mxu0 0.0
      %5251 = vmatpush1.msra.mxu0 0.0
      %5252 = vmatprep.subr.mxu0 0.0
      %5253 = vmatpush1.msra.mxu0 0.0
      %5254 = vmatprep.subr.mxu0 0.0
      %5255 = vmatpush1.msra.mxu0 0.0
      %5256 = vmatprep.subr.mxu0 0.0
      %5257 = vmatpush1.msra.mxu0 0.0
      %5258 = vmatprep.subr.mxu0 0.0
      %5259 = vmatpush1.msra.mxu0 0.0
      %5260 = vmatprep.subr.mxu0 0.0
      %5261 = vmatpush1.msra.mxu0 0.0
      %5262 = vmatprep.subr.mxu0 0.0
      %5263 = vmatpush1.msra.mxu0 0.0
      %5264 = vmatprep.subr.mxu0 0.0
      %5265 = vmatpush1.msra.mxu0 0.0
      %5266 = vmatprep.subr.mxu0 0.0
      %5267 = vmatpush1.msra.mxu0 0.0
      %5268 = vmatprep.subr.mxu0 0.0
      %5269 = vmatpush1.msra.mxu0 0.0
      %5270 = vmatprep.subr.mxu0 0.0
      %5271 = vmatpush1.msra.mxu0 0.0
      %5272 = vmatprep.subr.mxu0 0.0
      %5273 = vmatpush1.msra.mxu0 0.0
      %5274 = vmatprep.subr.mxu0 0.0
      %5275 = vmatpush1.msra.mxu0 0.0
      %5276 = vmatprep.subr.mxu0 0.0
      %5277 = vmatpush1.msra.mxu0 0.0
      %5278 = vmatprep.subr.mxu0 0.0
      %5279 = vmatpush1.msra.mxu0 0.0
      %5280 = vmatprep.mubr.f32.mxu0 0.0
      %5281 = vmatmul.mubr.f32.gmra.mrb[0].mxu0 %v5121
      %v5282 = vpop.f32.mrb[0].mxu0
      %v5283 = vadd.f32 0.0, %v5282
      %v5284 = vpop.f32.mrb[0].mxu0
      %5285 = vmatprep.mubr.f32.mxu0 0.0
      %5286 = vmatmul.mubr.f32.gmra.mrb[0].mxu0 %v5124
      %v5287 = vpop.f32.mrb[0].mxu0
      %v5288 = vadd.f32 0.0, %v5287
      %v5289 = vpop.f32.mrb[0].mxu0
      %5290 = vmatprep.mubr.f32.mxu0 0.0
      %5291 = vmatmul.mubr.f32.gmra.mrb[0].mxu0 %v5127
      %v5292 = vpop.f32.mrb[0].mxu0
      %v5293 = vadd.f32 0.0, %v5292
      %v5294 = vpop.f32.mrb[0].mxu0
      %5295 = vmatprep.mubr.f32.mxu0 0.0
      %5296 = vmatmul.mubr.f32.gmra.mrb[0].mxu0 %v5130
      %v5297 = vpop.f32.mrb[0].mxu0
      %v5298 = vadd.f32 0.0, %v5297
      %v5299 = vpop.f32.mrb[0].mxu0
      %5300 = vmatprep.mubr.f32.mxu0 0.0
      %5301 = vmatmul.mubr.f32.gmra.mrb[0].mxu0 %v5133
      %v5302 = vpop.f32.mrb[0].mxu0
      %v5303 = vadd.f32 0.0, %v5302
      %v5304 = vpop.f32.mrb[0].mxu0
      %5305 = vmatprep.mubr.f32.mxu0 0.0
      %5306 = vmatmul.mubr.f32.gmra.mrb[0].mxu0 %v5136
      %v5307 = vpop.f32.mrb[0].mxu0
      %v5308 = vadd.f32 0.0, %v5307
      %v5309 = vpop.f32.mrb[0].mxu0
      %5310 = vmatprep.mubr.f32.mxu0 0.0
      %5311 = vmatmul.mubr.f32.gmra.mrb[0].mxu0 %v5139
      %v5312 = vpop.f32.mrb[0].mxu0
      %v5313 = vadd.f32 0.0, %v5312
      %v5314 = vpop.f32.mrb[0].mxu0
      %5315 = vmatprep.mubr.f32.mxu0 0.0
      %5316 = vmatmul.mubr.f32.gmra.mrb[0].mxu0 %v5142
      %v5317 = vpop.f32.mrb[0].mxu0
      %v5318 = vadd.f32 0.0, %v5317
      %v5319 = vpop.f32.mrb[0].mxu0
      %5320 = vmatprep.mubr.f32.mxu0 0.0
      %5321 = vmatmul.mubr.f32.gmra.mrb[0].mxu0 %v5145
      %v5322 = vpop.f32.mrb[0].mxu0
      %v5323 = vadd.f32 0.0, %v5322
      %v5324 = vpop.f32.mrb[0].mxu0
      %5325 = vmatprep.mubr.f32.mxu0 0.0
      %5326 = vmatmul.mubr.f32.gmra.mrb[0].mxu0 %v5148
      %v5327 = vpop.f32.mrb[0].mxu0
      %v5328 = vadd.f32 0.0, %v5327
      %v5329 = vpop.f32.mrb[0].mxu0
      %5330 = vmatprep.mubr.f32.mxu0 0.0
      %5331 = vmatmul.mubr.f32.gmra.mrb[0].mxu0 %v5151
      %v5332 = vpop.f32.mrb[0].mxu0
      %v5333 = vadd.f32 0.0, %v5332
      %v5334 = vpop.f32.mrb[0].mxu0
      %5335 = vmatprep.mubr.f32.mxu0 0.0
      %5336 = vmatmul.mubr.f32.gmra.mrb[0].mxu0 %v5154
      %v5337 = vpop.f32.mrb[0].mxu0
      %v5338 = vadd.f32 0.0, %v5337
      %v5339 = vpop.f32.mrb[0].mxu0
      %5340 = vmatprep.mubr.f32.mxu0 0.0
      %5341 = vmatmul.mubr.f32.gmra.mrb[0].mxu0 %v5157
      %v5342 = vpop.f32.mrb[0].mxu0
      %v5343 = vadd.f32 0.0, %v5342
      %v5344 = vpop.f32.mrb[0].mxu0
      %5345 = vmatprep.mubr.f32.mxu0 0.0
      %5346 = vmatmul.mubr.f32.gmra.mrb[0].mxu0 %v5160
      %v5347 = vpop.f32.mrb[0].mxu0
      %v5348 = vadd.f32 0.0, %v5347
      %v5349 = vpop.f32.mrb[0].mxu0
      %5350 = vmatprep.mubr.f32.mxu0 0.0
      %5351 = vmatmul.mubr.f32.gmra.mrb[0].mxu0 %v5163
      %v5352 = vpop.f32.mrb[0].mxu0
      %v5353 = vadd.f32 0.0, %v5352
      %v5354 = vpop.f32.mrb[0].mxu0
      %5355 = vmatprep.mubr.f32.mxu0 0.0
      %5356 = vmatmul.mubr.f32.gmra.mrb[0].mxu0 %v5166
      %v5357 = vpop.f32.mrb[0].mxu0
      %v5358 = vadd.f32 0.0, %v5357
      %v5359 = vpop.f32.mrb[0].mxu0
      %5360 = vmatprep.mubr.f32.mxu0 0.0
      %5361 = vmatmul.mubr.f32.gmra.mrb[0].mxu0 %v5169
      %v5362 = vpop.f32.mrb[0].mxu0
      %v5363 = vadd.f32 0.0, %v5362
      %v5364 = vpop.f32.mrb[0].mxu0
      %5365 = vmatprep.mubr.f32.mxu0 0.0
      %5366 = vmatmul.mubr.f32.gmra.mrb[0].mxu0 %v5172
      %v5367 = vpop.f32.mrb[0].mxu0
      %v5368 = vadd.f32 0.0, %v5367
      %v5369 = vpop.f32.mrb[0].mxu0
      %5370 = vmatprep.mubr.f32.mxu0 0.0
      %5371 = vmatmul.mubr.f32.gmra.mrb[0].mxu0 %v5175
      %v5372 = vpop.f32.mrb[0].mxu0
      %v5373 = vadd.f32 0.0, %v5372
      %v5374 = vpop.f32.mrb[0].mxu0
      %5375 = vmatprep.mubr.f32.mxu0 0.0
      %5376 = vmatmul.mubr.f32.gmra.mrb[0].mxu0 %v5178
      %v5377 = vpop.f32.mrb[0].mxu0
      %v5378 = vadd.f32 0.0, %v5377
      %v5379 = vpop.f32.mrb[0].mxu0
      %5380 = vmatprep.mubr.f32.mxu0 0.0
      %5381 = vmatmul.mubr.f32.gmra.mrb[0].mxu0 %v5181
      %v5382 = vpop.f32.mrb[0].mxu0
      %v5383 = vadd.f32 0.0, %v5382
      %v5384 = vpop.f32.mrb[0].mxu0
      %5385 = vmatprep.mubr.f32.mxu0 0.0
      %5386 = vmatmul.mubr.f32.gmra.mrb[0].mxu0 %v5184
      %v5387 = vpop.f32.mrb[0].mxu0
      %v5388 = vadd.f32 0.0, %v5387
      %v5389 = vpop.f32.mrb[0].mxu0
      %5390 = vmatprep.mubr.f32.mxu0 0.0
      %5391 = vmatmul.mubr.f32.gmra.mrb[0].mxu0 %v5187
      %v5392 = vpop.f32.mrb[0].mxu0
      %v5393 = vadd.f32 0.0, %v5392
      %v5394 = vpop.f32.mrb[0].mxu0
      %5395 = vmatprep.mubr.f32.mxu0 0.0
      %5396 = vmatmul.mubr.f32.gmra.mrb[0].mxu0 %v5190
      %v5397 = vpop.f32.mrb[0].mxu0
      %v5398 = vadd.f32 0.0, %v5397
      %v5399 = vpop.f32.mrb[0].mxu0
      %5400 = vmatprep.mubr.f32.mxu0 0.0
      %5401 = vmatmul.mubr.f32.gmra.mrb[0].mxu0 %v5193
      %v5402 = vpop.f32.mrb[0].mxu0
      %v5403 = vadd.f32 0.0, %v5402
      %v5404 = vpop.f32.mrb[0].mxu0
      %5405 = vmatprep.mubr.f32.mxu0 0.0
      %5406 = vmatmul.mubr.f32.gmra.mrb[0].mxu0 %v5196
      %v5407 = vpop.f32.mrb[0].mxu0
      %v5408 = vadd.f32 0.0, %v5407
      %v5409 = vpop.f32.mrb[0].mxu0
      %5410 = vmatprep.mubr.f32.mxu0 0.0
      %5411 = vmatmul.mubr.f32.gmra.mrb[0].mxu0 %v5199
      %v5412 = vpop.f32.mrb[0].mxu0
      %v5413 = vadd.f32 0.0, %v5412
      %v5414 = vpop.f32.mrb[0].mxu0
      %5415 = vmatprep.mubr.f32.mxu0 0.0
      %5416 = vmatmul.mubr.f32.gmra.mrb[0].mxu0 %v5202
      %v5417 = vpop.f32.mrb[0].mxu0
      %v5418 = vadd.f32 0.0, %v5417
      %v5419 = vpop.f32.mrb[0].mxu0
      %5420 = vmatprep.mubr.f32.mxu0 0.0
      %5421 = vmatmul.mubr.f32.gmra.mrb[0].mxu0 %v5205
      %v5422 = vpop.f32.mrb[0].mxu0
      %v5423 = vadd.f32 0.0, %v5422
      %v5424 = vpop.f32.mrb[0].mxu0
      %5425 = vmatprep.mubr.f32.mxu0 0.0
      %5426 = vmatmul.mubr.f32.gmra.mrb[0].mxu0 %v5208
      %v5427 = vpop.f32.mrb[0].mxu0
      %v5428 = vadd.f32 0.0, %v5427
      %v5429 = vpop.f32.mrb[0].mxu0
      %5430 = vmatprep.mubr.f32.mxu0 0.0
      %5431 = vmatmul.mubr.f32.gmra.mrb[0].mxu0 %v5211
      %v5432 = vpop.f32.mrb[0].mxu0
      %v5433 = vadd.f32 0.0, %v5432
      %v5434 = vpop.f32.mrb[0].mxu0
      %5435 = vmatprep.mubr.f32.mxu0 0.0
      %5436 = vmatmul.mubr.f32.gmra.mrb[0].mxu0 %v5214
      %v5437 = vpop.f32.mrb[0].mxu0
      %v5438 = vadd.f32 0.0, %v5437
      %v5439 = vpop.f32.mrb[0].mxu0
      %5440 = vdwg.mxu0
      %v5441 = vadd.f32 %v5054, %v5283
      %v5442 = vadd.f32 %v5055, %v5288
      %v5443 = vadd.f32 %v5056, %v5293
      %v5444 = vadd.f32 %v5057, %v5298
      %v5445 = vadd.f32 %v5058, %v5303
      %v5446 = vadd.f32 %v5059, %v5308
      %v5447 = vadd.f32 %v5060, %v5313
      %v5448 = vadd.f32 %v5061, %v5318
      %v5449 = vadd.f32 %v5062, %v5323
      %v5450 = vadd.f32 %v5063, %v5328
      %v5451 = vadd.f32 %v5064, %v5333
      %v5452 = vadd.f32 %v5065, %v5338
      %v5453 = vadd.f32 %v5066, %v5343
      %v5454 = vadd.f32 %v5067, %v5348
      %v5455 = vadd.f32 %v5068, %v5353
      %v5456 = vadd.f32 %v5069, %v5358
      %v5457 = vadd.f32 %v5070, %v5363
      %v5458 = vadd.f32 %v5071, %v5368
      %v5459 = vadd.f32 %v5072, %v5373
      %v5460 = vadd.f32 %v5073, %v5378
      %v5461 = vadd.f32 %v5074, %v5383
      %v5462 = vadd.f32 %v5075, %v5388
      %v5463 = vadd.f32 %v5076, %v5393
      %v5464 = vadd.f32 %v5077, %v5398
      %v5465 = vadd.f32 %v5078, %v5403
      %v5466 = vadd.f32 %v5079, %v5408
      %v5467 = vadd.f32 %v5080, %v5413
      %v5468 = vadd.f32 %v5081, %v5418
      %v5469 = vadd.f32 %v5082, %v5423
      %v5470 = vadd.f32 %v5083, %v5428
      %v5471 = vadd.f32 %v5084, %v5433
      %v5472 = vadd.f32 %v5085, %v5438
      %v5473 = vld [vmem:[%s4273] sm:$0xff]
      %v5474 = vld [vmem:[%s4273 + $0x8] sm:$0xff]
      %v5475 = vld [vmem:[%s4273 + $0x18] sm:$0xff]
      %v5476 = vld [vmem:[%s4273 + $0x20] sm:$0xff]
      %v5477 = vld [vmem:[%s4273 + $0x30] sm:$0xff]
      %v5478 = vld [vmem:[%s4273 + $0x38] sm:$0xff]
      %v5479 = vld [vmem:[%s4273 + $0x48] sm:$0xff]
      %v5480 = vld [vmem:[%s4273 + $0x50] sm:$0xff]
      %v5481 = vld [vmem:[%s4273 + $0x60] sm:$0xff]
      %v5482 = vld [vmem:[%s4273 + $0x68] sm:$0xff]
      %v5483 = vld [vmem:[%s4273 + $0x78] sm:$0xff]
      %v5484 = vld [vmem:[%s4273 + $0x80] sm:$0xff]
      %v5485 = vld [vmem:[%s4273 + $0x90] sm:$0xff]
      %v5486 = vld [vmem:[%s4273 + $0x98] sm:$0xff]
      %v5487 = vld [vmem:[%s4273 + $0xa8] sm:$0xff]
      %v5488 = vld [vmem:[%s4273 + $0xb0] sm:$0xff]
      %v5489 = vld [vmem:[%s4273 + $0xc0] sm:$0xff]
      %v5490 = vld [vmem:[%s4273 + $0xc8] sm:$0xff]
      %v5491 = vld [vmem:[%s4273 + $0xd8] sm:$0xff]
      %v5492 = vld [vmem:[%s4273 + $0xe0] sm:$0xff]
      %v5493 = vld [vmem:[%s4273 + $0xf0] sm:$0xff]
      %v5494 = vld [vmem:[%s4273 + $0xf8] sm:$0xff]
      %v5495 = vld [vmem:[%s4273 + $0x108] sm:$0xff]
      %v5496 = vld [vmem:[%s4273 + $0x110] sm:$0xff]
      %v5497 = vld [vmem:[%s4273 + $0x120] sm:$0xff]
      %v5498 = vld [vmem:[%s4273 + $0x128] sm:$0xff]
      %v5499 = vld [vmem:[%s4273 + $0x138] sm:$0xff]
      %v5500 = vld [vmem:[%s4273 + $0x140] sm:$0xff]
      %v5501 = vld [vmem:[%s4273 + $0x150] sm:$0xff]
      %v5502 = vld [vmem:[%s4273 + $0x158] sm:$0xff]
      %v5503 = vld [vmem:[%s4273 + $0x168] sm:$0xff]
      %v5504 = vld [vmem:[%s4273 + $0x170] sm:$0xff]
      %s5505 = scalar_lea.vmem %s3, 24
      %v5506 = vld [vmem:[%s5505] sm:$0xff]
      %v5508 = vsel %vm3992, %v5473, 0
      %v5511 = vsel %vm3992, %v5474, 0
      %v5514 = vsel %vm3992, %v5475, 0
      %v5517 = vsel %vm3992, %v5476, 0
      %v5520 = vsel %vm3992, %v5477, 0
      %v5523 = vsel %vm3992, %v5478, 0
      %v5526 = vsel %vm3992, %v5479, 0
      %v5529 = vsel %vm3992, %v5480, 0
      %v5532 = vsel %vm3992, %v5481, 0
      %v5535 = vsel %vm3992, %v5482, 0
      %v5538 = vsel %vm3992, %v5483, 0
      %v5541 = vsel %vm3992, %v5484, 0
      %v5544 = vsel %vm3992, %v5485, 0
      %v5547 = vsel %vm3992, %v5486, 0
      %v5550 = vsel %vm3992, %v5487, 0
      %v5553 = vsel %vm3992, %v5488, 0
      %v5556 = vsel %vm3992, %v5489, 0
      %v5559 = vsel %vm3992, %v5490, 0
      %v5562 = vsel %vm3992, %v5491, 0
      %v5565 = vsel %vm3992, %v5492, 0
      %v5568 = vsel %vm3992, %v5493, 0
      %v5571 = vsel %vm3992, %v5494, 0
      %v5574 = vsel %vm3992, %v5495, 0
      %v5577 = vsel %vm3992, %v5496, 0
      %v5580 = vsel %vm3992, %v5497, 0
      %v5583 = vsel %vm3992, %v5498, 0
      %v5586 = vsel %vm3992, %v5499, 0
      %v5589 = vsel %vm3992, %v5500, 0
      %v5592 = vsel %vm3992, %v5501, 0
      %v5595 = vsel %vm3992, %v5502, 0
      %v5598 = vsel %vm3992, %v5503, 0
      %v5601 = vsel %vm3992, %v5504, 0
      %5603 = vmatprep.subr.mxu0 0.0
      %5604 = vmatpush1.msra.mxu0 %v5506
      %5605 = vmatprep.subr.mxu0 0.0
      %5606 = vmatpush1.msra.mxu0 0.0
      %5607 = vmatprep.subr.mxu0 0.0
      %5608 = vmatpush1.msra.mxu0 0.0
      %5609 = vmatprep.subr.mxu0 0.0
      %5610 = vmatpush1.msra.mxu0 0.0
      %5611 = vmatprep.subr.mxu0 0.0
      %5612 = vmatpush1.msra.mxu0 0.0
      %5613 = vmatprep.subr.mxu0 0.0
      %5614 = vmatpush1.msra.mxu0 0.0
      %5615 = vmatprep.subr.mxu0 0.0
      %5616 = vmatpush1.msra.mxu0 0.0
      %5617 = vmatprep.subr.mxu0 0.0
      %5618 = vmatpush1.msra.mxu0 0.0
      %5619 = vmatprep.subr.mxu0 0.0
      %5620 = vmatpush1.msra.mxu0 0.0
      %5621 = vmatprep.subr.mxu0 0.0
      %5622 = vmatpush1.msra.mxu0 0.0
      %5623 = vmatprep.subr.mxu0 0.0
      %5624 = vmatpush1.msra.mxu0 0.0
      %5625 = vmatprep.subr.mxu0 0.0
      %5626 = vmatpush1.msra.mxu0 0.0
      %5627 = vmatprep.subr.mxu0 0.0
      %5628 = vmatpush1.msra.mxu0 0.0
      %5629 = vmatprep.subr.mxu0 0.0
      %5630 = vmatpush1.msra.mxu0 0.0
      %5631 = vmatprep.subr.mxu0 0.0
      %5632 = vmatpush1.msra.mxu0 0.0
      %5633 = vmatprep.subr.mxu0 0.0
      %5634 = vmatpush1.msra.mxu0 0.0
      %5635 = vmatprep.subr.mxu0 0.0
      %5636 = vmatpush1.msra.mxu0 0.0
      %5637 = vmatprep.subr.mxu0 0.0
      %5638 = vmatpush1.msra.mxu0 0.0
      %5639 = vmatprep.subr.mxu0 0.0
      %5640 = vmatpush1.msra.mxu0 0.0
      %5641 = vmatprep.subr.mxu0 0.0
      %5642 = vmatpush1.msra.mxu0 0.0
      %5643 = vmatprep.subr.mxu0 0.0
      %5644 = vmatpush1.msra.mxu0 0.0
      %5645 = vmatprep.subr.mxu0 0.0
      %5646 = vmatpush1.msra.mxu0 0.0
      %5647 = vmatprep.subr.mxu0 0.0
      %5648 = vmatpush1.msra.mxu0 0.0
      %5649 = vmatprep.subr.mxu0 0.0
      %5650 = vmatpush1.msra.mxu0 0.0
      %5651 = vmatprep.subr.mxu0 0.0
      %5652 = vmatpush1.msra.mxu0 0.0
      %5653 = vmatprep.subr.mxu0 0.0
      %5654 = vmatpush1.msra.mxu0 0.0
      %5655 = vmatprep.subr.mxu0 0.0
      %5656 = vmatpush1.msra.mxu0 0.0
      %5657 = vmatprep.subr.mxu0 0.0
      %5658 = vmatpush1.msra.mxu0 0.0
      %5659 = vmatprep.subr.mxu0 0.0
      %5660 = vmatpush1.msra.mxu0 0.0
      %5661 = vmatprep.subr.mxu0 0.0
      %5662 = vmatpush1.msra.mxu0 0.0
      %5663 = vmatprep.subr.mxu0 0.0
      %5664 = vmatpush1.msra.mxu0 0.0
      %5665 = vmatprep.subr.mxu0 0.0
      %5666 = vmatpush1.msra.mxu0 0.0
      %5667 = vmatprep.mubr.f32.mxu0 0.0
      %5668 = vmatmul.mubr.f32.gmra.mrb[0].mxu0 %v5508
      %v5669 = vpop.f32.mrb[0].mxu0
      %v5670 = vadd.f32 0.0, %v5669
      %v5671 = vpop.f32.mrb[0].mxu0
      %5672 = vmatprep.mubr.f32.mxu0 0.0
      %5673 = vmatmul.mubr.f32.gmra.mrb[0].mxu0 %v5511
      %v5674 = vpop.f32.mrb[0].mxu0
      %v5675 = vadd.f32 0.0, %v5674
      %v5676 = vpop.f32.mrb[0].mxu0
      %5677 = vmatprep.mubr.f32.mxu0 0.0
      %5678 = vmatmul.mubr.f32.gmra.mrb[0].mxu0 %v5514
      %v5679 = vpop.f32.mrb[0].mxu0
      %v5680 = vadd.f32 0.0, %v5679
      %v5681 = vpop.f32.mrb[0].mxu0
      %5682 = vmatprep.mubr.f32.mxu0 0.0
      %5683 = vmatmul.mubr.f32.gmra.mrb[0].mxu0 %v5517
      %v5684 = vpop.f32.mrb[0].mxu0
      %v5685 = vadd.f32 0.0, %v5684
      %v5686 = vpop.f32.mrb[0].mxu0
      %5687 = vmatprep.mubr.f32.mxu0 0.0
      %5688 = vmatmul.mubr.f32.gmra.mrb[0].mxu0 %v5520
      %v5689 = vpop.f32.mrb[0].mxu0
      %v5690 = vadd.f32 0.0, %v5689
      %v5691 = vpop.f32.mrb[0].mxu0
      %5692 = vmatprep.mubr.f32.mxu0 0.0
      %5693 = vmatmul.mubr.f32.gmra.mrb[0].mxu0 %v5523
      %v5694 = vpop.f32.mrb[0].mxu0
      %v5695 = vadd.f32 0.0, %v5694
      %v5696 = vpop.f32.mrb[0].mxu0
      %5697 = vmatprep.mubr.f32.mxu0 0.0
      %5698 = vmatmul.mubr.f32.gmra.mrb[0].mxu0 %v5526
      %v5699 = vpop.f32.mrb[0].mxu0
      %v5700 = vadd.f32 0.0, %v5699
      %v5701 = vpop.f32.mrb[0].mxu0
      %5702 = vmatprep.mubr.f32.mxu0 0.0
      %5703 = vmatmul.mubr.f32.gmra.mrb[0].mxu0 %v5529
      %v5704 = vpop.f32.mrb[0].mxu0
      %v5705 = vadd.f32 0.0, %v5704
      %v5706 = vpop.f32.mrb[0].mxu0
      %5707 = vmatprep.mubr.f32.mxu0 0.0
      %5708 = vmatmul.mubr.f32.gmra.mrb[0].mxu0 %v5532
      %v5709 = vpop.f32.mrb[0].mxu0
      %v5710 = vadd.f32 0.0, %v5709
      %v5711 = vpop.f32.mrb[0].mxu0
      %5712 = vmatprep.mubr.f32.mxu0 0.0
      %5713 = vmatmul.mubr.f32.gmra.mrb[0].mxu0 %v5535
      %v5714 = vpop.f32.mrb[0].mxu0
      %v5715 = vadd.f32 0.0, %v5714
      %v5716 = vpop.f32.mrb[0].mxu0
      %5717 = vmatprep.mubr.f32.mxu0 0.0
      %5718 = vmatmul.mubr.f32.gmra.mrb[0].mxu0 %v5538
      %v5719 = vpop.f32.mrb[0].mxu0
      %v5720 = vadd.f32 0.0, %v5719
      %v5721 = vpop.f32.mrb[0].mxu0
      %5722 = vmatprep.mubr.f32.mxu0 0.0
      %5723 = vmatmul.mubr.f32.gmra.mrb[0].mxu0 %v5541
      %v5724 = vpop.f32.mrb[0].mxu0
      %v5725 = vadd.f32 0.0, %v5724
      %v5726 = vpop.f32.mrb[0].mxu0
      %5727 = vmatprep.mubr.f32.mxu0 0.0
      %5728 = vmatmul.mubr.f32.gmra.mrb[0].mxu0 %v5544
      %v5729 = vpop.f32.mrb[0].mxu0
      %v5730 = vadd.f32 0.0, %v5729
      %v5731 = vpop.f32.mrb[0].mxu0
      %5732 = vmatprep.mubr.f32.mxu0 0.0
      %5733 = vmatmul.mubr.f32.gmra.mrb[0].mxu0 %v5547
      %v5734 = vpop.f32.mrb[0].mxu0
      %v5735 = vadd.f32 0.0, %v5734
      %v5736 = vpop.f32.mrb[0].mxu0
      %5737 = vmatprep.mubr.f32.mxu0 0.0
      %5738 = vmatmul.mubr.f32.gmra.mrb[0].mxu0 %v5550
      %v5739 = vpop.f32.mrb[0].mxu0
      %v5740 = vadd.f32 0.0, %v5739
      %v5741 = vpop.f32.mrb[0].mxu0
      %5742 = vmatprep.mubr.f32.mxu0 0.0
      %5743 = vmatmul.mubr.f32.gmra.mrb[0].mxu0 %v5553
      %v5744 = vpop.f32.mrb[0].mxu0
      %v5745 = vadd.f32 0.0, %v5744
      %v5746 = vpop.f32.mrb[0].mxu0
      %5747 = vmatprep.mubr.f32.mxu0 0.0
      %5748 = vmatmul.mubr.f32.gmra.mrb[0].mxu0 %v5556
      %v5749 = vpop.f32.mrb[0].mxu0
      %v5750 = vadd.f32 0.0, %v5749
      %v5751 = vpop.f32.mrb[0].mxu0
      %5752 = vmatprep.mubr.f32.mxu0 0.0
      %5753 = vmatmul.mubr.f32.gmra.mrb[0].mxu0 %v5559
      %v5754 = vpop.f32.mrb[0].mxu0
      %v5755 = vadd.f32 0.0, %v5754
      %v5756 = vpop.f32.mrb[0].mxu0
      %5757 = vmatprep.mubr.f32.mxu0 0.0
      %5758 = vmatmul.mubr.f32.gmra.mrb[0].mxu0 %v5562
      %v5759 = vpop.f32.mrb[0].mxu0
      %v5760 = vadd.f32 0.0, %v5759
      %v5761 = vpop.f32.mrb[0].mxu0
      %5762 = vmatprep.mubr.f32.mxu0 0.0
      %5763 = vmatmul.mubr.f32.gmra.mrb[0].mxu0 %v5565
      %v5764 = vpop.f32.mrb[0].mxu0
      %v5765 = vadd.f32 0.0, %v5764
      %v5766 = vpop.f32.mrb[0].mxu0
      %5767 = vmatprep.mubr.f32.mxu0 0.0
      %5768 = vmatmul.mubr.f32.gmra.mrb[0].mxu0 %v5568
      %v5769 = vpop.f32.mrb[0].mxu0
      %v5770 = vadd.f32 0.0, %v5769
      %v5771 = vpop.f32.mrb[0].mxu0
      %5772 = vmatprep.mubr.f32.mxu0 0.0
      %5773 = vmatmul.mubr.f32.gmra.mrb[0].mxu0 %v5571
      %v5774 = vpop.f32.mrb[0].mxu0
      %v5775 = vadd.f32 0.0, %v5774
      %v5776 = vpop.f32.mrb[0].mxu0
      %5777 = vmatprep.mubr.f32.mxu0 0.0
      %5778 = vmatmul.mubr.f32.gmra.mrb[0].mxu0 %v5574
      %v5779 = vpop.f32.mrb[0].mxu0
      %v5780 = vadd.f32 0.0, %v5779
      %v5781 = vpop.f32.mrb[0].mxu0
      %5782 = vmatprep.mubr.f32.mxu0 0.0
      %5783 = vmatmul.mubr.f32.gmra.mrb[0].mxu0 %v5577
      %v5784 = vpop.f32.mrb[0].mxu0
      %v5785 = vadd.f32 0.0, %v5784
      %v5786 = vpop.f32.mrb[0].mxu0
      %5787 = vmatprep.mubr.f32.mxu0 0.0
      %5788 = vmatmul.mubr.f32.gmra.mrb[0].mxu0 %v5580
      %v5789 = vpop.f32.mrb[0].mxu0
      %v5790 = vadd.f32 0.0, %v5789
      %v5791 = vpop.f32.mrb[0].mxu0
      %5792 = vmatprep.mubr.f32.mxu0 0.0
      %5793 = vmatmul.mubr.f32.gmra.mrb[0].mxu0 %v5583
      %v5794 = vpop.f32.mrb[0].mxu0
      %v5795 = vadd.f32 0.0, %v5794
      %v5796 = vpop.f32.mrb[0].mxu0
      %5797 = vmatprep.mubr.f32.mxu0 0.0
      %5798 = vmatmul.mubr.f32.gmra.mrb[0].mxu0 %v5586
      %v5799 = vpop.f32.mrb[0].mxu0
      %v5800 = vadd.f32 0.0, %v5799
      %v5801 = vpop.f32.mrb[0].mxu0
      %5802 = vmatprep.mubr.f32.mxu0 0.0
      %5803 = vmatmul.mubr.f32.gmra.mrb[0].mxu0 %v5589
      %v5804 = vpop.f32.mrb[0].mxu0
      %v5805 = vadd.f32 0.0, %v5804
      %v5806 = vpop.f32.mrb[0].mxu0
      %5807 = vmatprep.mubr.f32.mxu0 0.0
      %5808 = vmatmul.mubr.f32.gmra.mrb[0].mxu0 %v5592
      %v5809 = vpop.f32.mrb[0].mxu0
      %v5810 = vadd.f32 0.0, %v5809
      %v5811 = vpop.f32.mrb[0].mxu0
      %5812 = vmatprep.mubr.f32.mxu0 0.0
      %5813 = vmatmul.mubr.f32.gmra.mrb[0].mxu0 %v5595
      %v5814 = vpop.f32.mrb[0].mxu0
      %v5815 = vadd.f32 0.0, %v5814
      %v5816 = vpop.f32.mrb[0].mxu0
      %5817 = vmatprep.mubr.f32.mxu0 0.0
      %5818 = vmatmul.mubr.f32.gmra.mrb[0].mxu0 %v5598
      %v5819 = vpop.f32.mrb[0].mxu0
      %v5820 = vadd.f32 0.0, %v5819
      %v5821 = vpop.f32.mrb[0].mxu0
      %5822 = vmatprep.mubr.f32.mxu0 0.0
      %5823 = vmatmul.mubr.f32.gmra.mrb[0].mxu0 %v5601
      %v5824 = vpop.f32.mrb[0].mxu0
      %v5825 = vadd.f32 0.0, %v5824
      %v5826 = vpop.f32.mrb[0].mxu0
      %5827 = vdwg.mxu0
      %v5828 = vadd.f32 %v5441, %v5670
      %v5829 = vadd.f32 %v5442, %v5675
      %v5830 = vadd.f32 %v5443, %v5680
      %v5831 = vadd.f32 %v5444, %v5685
      %v5832 = vadd.f32 %v5445, %v5690
      %v5833 = vadd.f32 %v5446, %v5695
      %v5834 = vadd.f32 %v5447, %v5700
      %v5835 = vadd.f32 %v5448, %v5705
      %v5836 = vadd.f32 %v5449, %v5710
      %v5837 = vadd.f32 %v5450, %v5715
      %v5838 = vadd.f32 %v5451, %v5720
      %v5839 = vadd.f32 %v5452, %v5725
      %v5840 = vadd.f32 %v5453, %v5730
      %v5841 = vadd.f32 %v5454, %v5735
      %v5842 = vadd.f32 %v5455, %v5740
      %v5843 = vadd.f32 %v5456, %v5745
      %v5844 = vadd.f32 %v5457, %v5750
      %v5845 = vadd.f32 %v5458, %v5755
      %v5846 = vadd.f32 %v5459, %v5760
      %v5847 = vadd.f32 %v5460, %v5765
      %v5848 = vadd.f32 %v5461, %v5770
      %v5849 = vadd.f32 %v5462, %v5775
      %v5850 = vadd.f32 %v5463, %v5780
      %v5851 = vadd.f32 %v5464, %v5785
      %v5852 = vadd.f32 %v5465, %v5790
      %v5853 = vadd.f32 %v5466, %v5795
      %v5854 = vadd.f32 %v5467, %v5800
      %v5855 = vadd.f32 %v5468, %v5805
      %v5856 = vadd.f32 %v5469, %v5810
      %v5857 = vadd.f32 %v5470, %v5815
      %v5858 = vadd.f32 %v5471, %v5820
      %v5859 = vadd.f32 %v5472, %v5825
      %v5860 = vld [vmem:[%s4273 + $0x1] sm:$0xff]
      %v5861 = vld [vmem:[%s4273 + $0x9] sm:$0xff]
      %v5862 = vld [vmem:[%s4273 + $0x19] sm:$0xff]
      %v5863 = vld [vmem:[%s4273 + $0x21] sm:$0xff]
      %v5864 = vld [vmem:[%s4273 + $0x31] sm:$0xff]
      %v5865 = vld [vmem:[%s4273 + $0x39] sm:$0xff]
      %v5866 = vld [vmem:[%s4273 + $0x49] sm:$0xff]
      %v5867 = vld [vmem:[%s4273 + $0x51] sm:$0xff]
      %v5868 = vld [vmem:[%s4273 + $0x61] sm:$0xff]
      %v5869 = vld [vmem:[%s4273 + $0x69] sm:$0xff]
      %v5870 = vld [vmem:[%s4273 + $0x79] sm:$0xff]
      %v5871 = vld [vmem:[%s4273 + $0x81] sm:$0xff]
      %v5872 = vld [vmem:[%s4273 + $0x91] sm:$0xff]
      %v5873 = vld [vmem:[%s4273 + $0x99] sm:$0xff]
      %v5874 = vld [vmem:[%s4273 + $0xa9] sm:$0xff]
      %v5875 = vld [vmem:[%s4273 + $0xb1] sm:$0xff]
      %v5876 = vld [vmem:[%s4273 + $0xc1] sm:$0xff]
      %v5877 = vld [vmem:[%s4273 + $0xc9] sm:$0xff]
      %v5878 = vld [vmem:[%s4273 + $0xd9] sm:$0xff]
      %v5879 = vld [vmem:[%s4273 + $0xe1] sm:$0xff]
      %v5880 = vld [vmem:[%s4273 + $0xf1] sm:$0xff]
      %v5881 = vld [vmem:[%s4273 + $0xf9] sm:$0xff]
      %v5882 = vld [vmem:[%s4273 + $0x109] sm:$0xff]
      %v5883 = vld [vmem:[%s4273 + $0x111] sm:$0xff]
      %v5884 = vld [vmem:[%s4273 + $0x121] sm:$0xff]
      %v5885 = vld [vmem:[%s4273 + $0x129] sm:$0xff]
      %v5886 = vld [vmem:[%s4273 + $0x139] sm:$0xff]
      %v5887 = vld [vmem:[%s4273 + $0x141] sm:$0xff]
      %v5888 = vld [vmem:[%s4273 + $0x151] sm:$0xff]
      %v5889 = vld [vmem:[%s4273 + $0x159] sm:$0xff]
      %v5890 = vld [vmem:[%s4273 + $0x169] sm:$0xff]
      %v5891 = vld [vmem:[%s4273 + $0x171] sm:$0xff]
      %s5892 = scalar_lea.vmem %s3, 32
      %v5893 = vld [vmem:[%s5892] sm:$0xff]
      %v5895 = vsel %vm3992, %v5860, 0
      %v5898 = vsel %vm3992, %v5861, 0
      %v5901 = vsel %vm3992, %v5862, 0
      %v5904 = vsel %vm3992, %v5863, 0
      %v5907 = vsel %vm3992, %v5864, 0
      %v5910 = vsel %vm3992, %v5865, 0
      %v5913 = vsel %vm3992, %v5866, 0
      %v5916 = vsel %vm3992, %v5867, 0
      %v5919 = vsel %vm3992, %v5868, 0
      %v5922 = vsel %vm3992, %v5869, 0
      %v5925 = vsel %vm3992, %v5870, 0
      %v5928 = vsel %vm3992, %v5871, 0
      %v5931 = vsel %vm3992, %v5872, 0
      %v5934 = vsel %vm3992, %v5873, 0
      %v5937 = vsel %vm3992, %v5874, 0
      %v5940 = vsel %vm3992, %v5875, 0
      %v5943 = vsel %vm3992, %v5876, 0
      %v5946 = vsel %vm3992, %v5877, 0
      %v5949 = vsel %vm3992, %v5878, 0
      %v5952 = vsel %vm3992, %v5879, 0
      %v5955 = vsel %vm3992, %v5880, 0
      %v5958 = vsel %vm3992, %v5881, 0
      %v5961 = vsel %vm3992, %v5882, 0
      %v5964 = vsel %vm3992, %v5883, 0
      %v5967 = vsel %vm3992, %v5884, 0
      %v5970 = vsel %vm3992, %v5885, 0
      %v5973 = vsel %vm3992, %v5886, 0
      %v5976 = vsel %vm3992, %v5887, 0
      %v5979 = vsel %vm3992, %v5888, 0
      %v5982 = vsel %vm3992, %v5889, 0
      %v5985 = vsel %vm3992, %v5890, 0
      %v5988 = vsel %vm3992, %v5891, 0
      %5990 = vmatprep.subr.mxu0 0.0
      %5991 = vmatpush1.msra.mxu0 %v5893
      %5992 = vmatprep.subr.mxu0 0.0
      %5993 = vmatpush1.msra.mxu0 0.0
      %5994 = vmatprep.subr.mxu0 0.0
      %5995 = vmatpush1.msra.mxu0 0.0
      %5996 = vmatprep.subr.mxu0 0.0
      %5997 = vmatpush1.msra.mxu0 0.0
      %5998 = vmatprep.subr.mxu0 0.0
      %5999 = vmatpush1.msra.mxu0 0.0
      %6000 = vmatprep.subr.mxu0 0.0
      %6001 = vmatpush1.msra.mxu0 0.0
      %6002 = vmatprep.subr.mxu0 0.0
      %6003 = vmatpush1.msra.mxu0 0.0
      %6004 = vmatprep.subr.mxu0 0.0
      %6005 = vmatpush1.msra.mxu0 0.0
      %6006 = vmatprep.subr.mxu0 0.0
      %6007 = vmatpush1.msra.mxu0 0.0
      %6008 = vmatprep.subr.mxu0 0.0
      %6009 = vmatpush1.msra.mxu0 0.0
      %6010 = vmatprep.subr.mxu0 0.0
      %6011 = vmatpush1.msra.mxu0 0.0
      %6012 = vmatprep.subr.mxu0 0.0
      %6013 = vmatpush1.msra.mxu0 0.0
      %6014 = vmatprep.subr.mxu0 0.0
      %6015 = vmatpush1.msra.mxu0 0.0
      %6016 = vmatprep.subr.mxu0 0.0
      %6017 = vmatpush1.msra.mxu0 0.0
      %6018 = vmatprep.subr.mxu0 0.0
      %6019 = vmatpush1.msra.mxu0 0.0
      %6020 = vmatprep.subr.mxu0 0.0
      %6021 = vmatpush1.msra.mxu0 0.0
      %6022 = vmatprep.subr.mxu0 0.0
      %6023 = vmatpush1.msra.mxu0 0.0
      %6024 = vmatprep.subr.mxu0 0.0
      %6025 = vmatpush1.msra.mxu0 0.0
      %6026 = vmatprep.subr.mxu0 0.0
      %6027 = vmatpush1.msra.mxu0 0.0
      %6028 = vmatprep.subr.mxu0 0.0
      %6029 = vmatpush1.msra.mxu0 0.0
      %6030 = vmatprep.subr.mxu0 0.0
      %6031 = vmatpush1.msra.mxu0 0.0
      %6032 = vmatprep.subr.mxu0 0.0
      %6033 = vmatpush1.msra.mxu0 0.0
      %6034 = vmatprep.subr.mxu0 0.0
      %6035 = vmatpush1.msra.mxu0 0.0
      %6036 = vmatprep.subr.mxu0 0.0
      %6037 = vmatpush1.msra.mxu0 0.0
      %6038 = vmatprep.subr.mxu0 0.0
      %6039 = vmatpush1.msra.mxu0 0.0
      %6040 = vmatprep.subr.mxu0 0.0
      %6041 = vmatpush1.msra.mxu0 0.0
      %6042 = vmatprep.subr.mxu0 0.0
      %6043 = vmatpush1.msra.mxu0 0.0
      %6044 = vmatprep.subr.mxu0 0.0
      %6045 = vmatpush1.msra.mxu0 0.0
      %6046 = vmatprep.subr.mxu0 0.0
      %6047 = vmatpush1.msra.mxu0 0.0
      %6048 = vmatprep.subr.mxu0 0.0
      %6049 = vmatpush1.msra.mxu0 0.0
      %6050 = vmatprep.subr.mxu0 0.0
      %6051 = vmatpush1.msra.mxu0 0.0
      %6052 = vmatprep.subr.mxu0 0.0
      %6053 = vmatpush1.msra.mxu0 0.0
      %6054 = vmatprep.mubr.f32.mxu0 0.0
      %6055 = vmatmul.mubr.f32.gmra.mrb[0].mxu0 %v5895
      %v6056 = vpop.f32.mrb[0].mxu0
      %v6057 = vadd.f32 0.0, %v6056
      %v6058 = vpop.f32.mrb[0].mxu0
      %6059 = vmatprep.mubr.f32.mxu0 0.0
      %6060 = vmatmul.mubr.f32.gmra.mrb[0].mxu0 %v5898
      %v6061 = vpop.f32.mrb[0].mxu0
      %v6062 = vadd.f32 0.0, %v6061
      %v6063 = vpop.f32.mrb[0].mxu0
      %6064 = vmatprep.mubr.f32.mxu0 0.0
      %6065 = vmatmul.mubr.f32.gmra.mrb[0].mxu0 %v5901
      %v6066 = vpop.f32.mrb[0].mxu0
      %v6067 = vadd.f32 0.0, %v6066
      %v6068 = vpop.f32.mrb[0].mxu0
      %6069 = vmatprep.mubr.f32.mxu0 0.0
      %6070 = vmatmul.mubr.f32.gmra.mrb[0].mxu0 %v5904
      %v6071 = vpop.f32.mrb[0].mxu0
      %v6072 = vadd.f32 0.0, %v6071
      %v6073 = vpop.f32.mrb[0].mxu0
      %6074 = vmatprep.mubr.f32.mxu0 0.0
      %6075 = vmatmul.mubr.f32.gmra.mrb[0].mxu0 %v5907
      %v6076 = vpop.f32.mrb[0].mxu0
      %v6077 = vadd.f32 0.0, %v6076
      %v6078 = vpop.f32.mrb[0].mxu0
      %6079 = vmatprep.mubr.f32.mxu0 0.0
      %6080 = vmatmul.mubr.f32.gmra.mrb[0].mxu0 %v5910
      %v6081 = vpop.f32.mrb[0].mxu0
      %v6082 = vadd.f32 0.0, %v6081
      %v6083 = vpop.f32.mrb[0].mxu0
      %6084 = vmatprep.mubr.f32.mxu0 0.0
      %6085 = vmatmul.mubr.f32.gmra.mrb[0].mxu0 %v5913
      %v6086 = vpop.f32.mrb[0].mxu0
      %v6087 = vadd.f32 0.0, %v6086
      %v6088 = vpop.f32.mrb[0].mxu0
      %6089 = vmatprep.mubr.f32.mxu0 0.0
      %6090 = vmatmul.mubr.f32.gmra.mrb[0].mxu0 %v5916
      %v6091 = vpop.f32.mrb[0].mxu0
      %v6092 = vadd.f32 0.0, %v6091
      %v6093 = vpop.f32.mrb[0].mxu0
      %6094 = vmatprep.mubr.f32.mxu0 0.0
      %6095 = vmatmul.mubr.f32.gmra.mrb[0].mxu0 %v5919
      %v6096 = vpop.f32.mrb[0].mxu0
      %v6097 = vadd.f32 0.0, %v6096
      %v6098 = vpop.f32.mrb[0].mxu0
      %6099 = vmatprep.mubr.f32.mxu0 0.0
      %6100 = vmatmul.mubr.f32.gmra.mrb[0].mxu0 %v5922
      %v6101 = vpop.f32.mrb[0].mxu0
      %v6102 = vadd.f32 0.0, %v6101
      %v6103 = vpop.f32.mrb[0].mxu0
      %6104 = vmatprep.mubr.f32.mxu0 0.0
      %6105 = vmatmul.mubr.f32.gmra.mrb[0].mxu0 %v5925
      %v6106 = vpop.f32.mrb[0].mxu0
      %v6107 = vadd.f32 0.0, %v6106
      %v6108 = vpop.f32.mrb[0].mxu0
      %6109 = vmatprep.mubr.f32.mxu0 0.0
      %6110 = vmatmul.mubr.f32.gmra.mrb[0].mxu0 %v5928
      %v6111 = vpop.f32.mrb[0].mxu0
      %v6112 = vadd.f32 0.0, %v6111
      %v6113 = vpop.f32.mrb[0].mxu0
      %6114 = vmatprep.mubr.f32.mxu0 0.0
      %6115 = vmatmul.mubr.f32.gmra.mrb[0].mxu0 %v5931
      %v6116 = vpop.f32.mrb[0].mxu0
      %v6117 = vadd.f32 0.0, %v6116
      %v6118 = vpop.f32.mrb[0].mxu0
      %6119 = vmatprep.mubr.f32.mxu0 0.0
      %6120 = vmatmul.mubr.f32.gmra.mrb[0].mxu0 %v5934
      %v6121 = vpop.f32.mrb[0].mxu0
      %v6122 = vadd.f32 0.0, %v6121
      %v6123 = vpop.f32.mrb[0].mxu0
      %6124 = vmatprep.mubr.f32.mxu0 0.0
      %6125 = vmatmul.mubr.f32.gmra.mrb[0].mxu0 %v5937
      %v6126 = vpop.f32.mrb[0].mxu0
      %v6127 = vadd.f32 0.0, %v6126
      %v6128 = vpop.f32.mrb[0].mxu0
      %6129 = vmatprep.mubr.f32.mxu0 0.0
      %6130 = vmatmul.mubr.f32.gmra.mrb[0].mxu0 %v5940
      %v6131 = vpop.f32.mrb[0].mxu0
      %v6132 = vadd.f32 0.0, %v6131
      %v6133 = vpop.f32.mrb[0].mxu0
      %6134 = vmatprep.mubr.f32.mxu0 0.0
      %6135 = vmatmul.mubr.f32.gmra.mrb[0].mxu0 %v5943
      %v6136 = vpop.f32.mrb[0].mxu0
      %v6137 = vadd.f32 0.0, %v6136
      %v6138 = vpop.f32.mrb[0].mxu0
      %6139 = vmatprep.mubr.f32.mxu0 0.0
      %6140 = vmatmul.mubr.f32.gmra.mrb[0].mxu0 %v5946
      %v6141 = vpop.f32.mrb[0].mxu0
      %v6142 = vadd.f32 0.0, %v6141
      %v6143 = vpop.f32.mrb[0].mxu0
      %6144 = vmatprep.mubr.f32.mxu0 0.0
      %6145 = vmatmul.mubr.f32.gmra.mrb[0].mxu0 %v5949
      %v6146 = vpop.f32.mrb[0].mxu0
      %v6147 = vadd.f32 0.0, %v6146
      %v6148 = vpop.f32.mrb[0].mxu0
      %6149 = vmatprep.mubr.f32.mxu0 0.0
      %6150 = vmatmul.mubr.f32.gmra.mrb[0].mxu0 %v5952
      %v6151 = vpop.f32.mrb[0].mxu0
      %v6152 = vadd.f32 0.0, %v6151
      %v6153 = vpop.f32.mrb[0].mxu0
      %6154 = vmatprep.mubr.f32.mxu0 0.0
      %6155 = vmatmul.mubr.f32.gmra.mrb[0].mxu0 %v5955
      %v6156 = vpop.f32.mrb[0].mxu0
      %v6157 = vadd.f32 0.0, %v6156
      %v6158 = vpop.f32.mrb[0].mxu0
      %6159 = vmatprep.mubr.f32.mxu0 0.0
      %6160 = vmatmul.mubr.f32.gmra.mrb[0].mxu0 %v5958
      %v6161 = vpop.f32.mrb[0].mxu0
      %v6162 = vadd.f32 0.0, %v6161
      %v6163 = vpop.f32.mrb[0].mxu0
      %6164 = vmatprep.mubr.f32.mxu0 0.0
      %6165 = vmatmul.mubr.f32.gmra.mrb[0].mxu0 %v5961
      %v6166 = vpop.f32.mrb[0].mxu0
      %v6167 = vadd.f32 0.0, %v6166
      %v6168 = vpop.f32.mrb[0].mxu0
      %6169 = vmatprep.mubr.f32.mxu0 0.0
      %6170 = vmatmul.mubr.f32.gmra.mrb[0].mxu0 %v5964
      %v6171 = vpop.f32.mrb[0].mxu0
      %v6172 = vadd.f32 0.0, %v6171
      %v6173 = vpop.f32.mrb[0].mxu0
      %6174 = vmatprep.mubr.f32.mxu0 0.0
      %6175 = vmatmul.mubr.f32.gmra.mrb[0].mxu0 %v5967
      %v6176 = vpop.f32.mrb[0].mxu0
      %v6177 = vadd.f32 0.0, %v6176
      %v6178 = vpop.f32.mrb[0].mxu0
      %6179 = vmatprep.mubr.f32.mxu0 0.0
      %6180 = vmatmul.mubr.f32.gmra.mrb[0].mxu0 %v5970
      %v6181 = vpop.f32.mrb[0].mxu0
      %v6182 = vadd.f32 0.0, %v6181
      %v6183 = vpop.f32.mrb[0].mxu0
      %6184 = vmatprep.mubr.f32.mxu0 0.0
      %6185 = vmatmul.mubr.f32.gmra.mrb[0].mxu0 %v5973
      %v6186 = vpop.f32.mrb[0].mxu0
      %v6187 = vadd.f32 0.0, %v6186
      %v6188 = vpop.f32.mrb[0].mxu0
      %6189 = vmatprep.mubr.f32.mxu0 0.0
      %6190 = vmatmul.mubr.f32.gmra.mrb[0].mxu0 %v5976
      %v6191 = vpop.f32.mrb[0].mxu0
      %v6192 = vadd.f32 0.0, %v6191
      %v6193 = vpop.f32.mrb[0].mxu0
      %6194 = vmatprep.mubr.f32.mxu0 0.0
      %6195 = vmatmul.mubr.f32.gmra.mrb[0].mxu0 %v5979
      %v6196 = vpop.f32.mrb[0].mxu0
      %v6197 = vadd.f32 0.0, %v6196
      %v6198 = vpop.f32.mrb[0].mxu0
      %6199 = vmatprep.mubr.f32.mxu0 0.0
      %6200 = vmatmul.mubr.f32.gmra.mrb[0].mxu0 %v5982
      %v6201 = vpop.f32.mrb[0].mxu0
      %v6202 = vadd.f32 0.0, %v6201
      %v6203 = vpop.f32.mrb[0].mxu0
      %6204 = vmatprep.mubr.f32.mxu0 0.0
      %6205 = vmatmul.mubr.f32.gmra.mrb[0].mxu0 %v5985
      %v6206 = vpop.f32.mrb[0].mxu0
      %v6207 = vadd.f32 0.0, %v6206
      %v6208 = vpop.f32.mrb[0].mxu0
      %6209 = vmatprep.mubr.f32.mxu0 0.0
      %6210 = vmatmul.mubr.f32.gmra.mrb[0].mxu0 %v5988
      %v6211 = vpop.f32.mrb[0].mxu0
      %v6212 = vadd.f32 0.0, %v6211
      %v6213 = vpop.f32.mrb[0].mxu0
      %6214 = vdwg.mxu0
      %v6215 = vadd.f32 %v5828, %v6057
      %v6216 = vadd.f32 %v5829, %v6062
      %v6217 = vadd.f32 %v5830, %v6067
      %v6218 = vadd.f32 %v5831, %v6072
      %v6219 = vadd.f32 %v5832, %v6077
      %v6220 = vadd.f32 %v5833, %v6082
      %v6221 = vadd.f32 %v5834, %v6087
      %v6222 = vadd.f32 %v5835, %v6092
      %v6223 = vadd.f32 %v5836, %v6097
      %v6224 = vadd.f32 %v5837, %v6102
      %v6225 = vadd.f32 %v5838, %v6107
      %v6226 = vadd.f32 %v5839, %v6112
      %v6227 = vadd.f32 %v5840, %v6117
      %v6228 = vadd.f32 %v5841, %v6122
      %v6229 = vadd.f32 %v5842, %v6127
      %v6230 = vadd.f32 %v5843, %v6132
      %v6231 = vadd.f32 %v5844, %v6137
      %v6232 = vadd.f32 %v5845, %v6142
      %v6233 = vadd.f32 %v5846, %v6147
      %v6234 = vadd.f32 %v5847, %v6152
      %v6235 = vadd.f32 %v5848, %v6157
      %v6236 = vadd.f32 %v5849, %v6162
      %v6237 = vadd.f32 %v5850, %v6167
      %v6238 = vadd.f32 %v5851, %v6172
      %v6239 = vadd.f32 %v5852, %v6177
      %v6240 = vadd.f32 %v5853, %v6182
      %v6241 = vadd.f32 %v5854, %v6187
      %v6242 = vadd.f32 %v5855, %v6192
      %v6243 = vadd.f32 %v5856, %v6197
      %v6244 = vadd.f32 %v5857, %v6202
      %v6245 = vadd.f32 %v5858, %v6207
      %v6246 = vadd.f32 %v5859, %v6212
      %v6247 = vld [vmem:[%s4273 + $0x2] sm:$0xff]
      %v6248 = vld [vmem:[%s4273 + $0xa] sm:$0xff]
      %v6249 = vld [vmem:[%s4273 + $0x1a] sm:$0xff]
      %v6250 = vld [vmem:[%s4273 + $0x22] sm:$0xff]
      %v6251 = vld [vmem:[%s4273 + $0x32] sm:$0xff]
      %v6252 = vld [vmem:[%s4273 + $0x3a] sm:$0xff]
      %v6253 = vld [vmem:[%s4273 + $0x4a] sm:$0xff]
      %v6254 = vld [vmem:[%s4273 + $0x52] sm:$0xff]
      %v6255 = vld [vmem:[%s4273 + $0x62] sm:$0xff]
      %v6256 = vld [vmem:[%s4273 + $0x6a] sm:$0xff]
      %v6257 = vld [vmem:[%s4273 + $0x7a] sm:$0xff]
      %v6258 = vld [vmem:[%s4273 + $0x82] sm:$0xff]
      %v6259 = vld [vmem:[%s4273 + $0x92] sm:$0xff]
      %v6260 = vld [vmem:[%s4273 + $0x9a] sm:$0xff]
      %v6261 = vld [vmem:[%s4273 + $0xaa] sm:$0xff]
      %v6262 = vld [vmem:[%s4273 + $0xb2] sm:$0xff]
      %v6263 = vld [vmem:[%s4273 + $0xc2] sm:$0xff]
      %v6264 = vld [vmem:[%s4273 + $0xca] sm:$0xff]
      %v6265 = vld [vmem:[%s4273 + $0xda] sm:$0xff]
      %v6266 = vld [vmem:[%s4273 + $0xe2] sm:$0xff]
      %v6267 = vld [vmem:[%s4273 + $0xf2] sm:$0xff]
      %v6268 = vld [vmem:[%s4273 + $0xfa] sm:$0xff]
      %v6269 = vld [vmem:[%s4273 + $0x10a] sm:$0xff]
      %v6270 = vld [vmem:[%s4273 + $0x112] sm:$0xff]
      %v6271 = vld [vmem:[%s4273 + $0x122] sm:$0xff]
      %v6272 = vld [vmem:[%s4273 + $0x12a] sm:$0xff]
      %v6273 = vld [vmem:[%s4273 + $0x13a] sm:$0xff]
      %v6274 = vld [vmem:[%s4273 + $0x142] sm:$0xff]
      %v6275 = vld [vmem:[%s4273 + $0x152] sm:$0xff]
      %v6276 = vld [vmem:[%s4273 + $0x15a] sm:$0xff]
      %v6277 = vld [vmem:[%s4273 + $0x16a] sm:$0xff]
      %v6278 = vld [vmem:[%s4273 + $0x172] sm:$0xff]
      %s6279 = scalar_lea.vmem %s3, 40
      %v6280 = vld [vmem:[%s6279] sm:$0xff]
      %v6282 = vsel %vm3992, %v6247, 0
      %v6285 = vsel %vm3992, %v6248, 0
      %v6288 = vsel %vm3992, %v6249, 0
      %v6291 = vsel %vm3992, %v6250, 0
      %v6294 = vsel %vm3992, %v6251, 0
      %v6297 = vsel %vm3992, %v6252, 0
      %v6300 = vsel %vm3992, %v6253, 0
      %v6303 = vsel %vm3992, %v6254, 0
      %v6306 = vsel %vm3992, %v6255, 0
      %v6309 = vsel %vm3992, %v6256, 0
      %v6312 = vsel %vm3992, %v6257, 0
      %v6315 = vsel %vm3992, %v6258, 0
      %v6318 = vsel %vm3992, %v6259, 0
      %v6321 = vsel %vm3992, %v6260, 0
      %v6324 = vsel %vm3992, %v6261, 0
      %v6327 = vsel %vm3992, %v6262, 0
      %v6330 = vsel %vm3992, %v6263, 0
      %v6333 = vsel %vm3992, %v6264, 0
      %v6336 = vsel %vm3992, %v6265, 0
      %v6339 = vsel %vm3992, %v6266, 0
      %v6342 = vsel %vm3992, %v6267, 0
      %v6345 = vsel %vm3992, %v6268, 0
      %v6348 = vsel %vm3992, %v6269, 0
      %v6351 = vsel %vm3992, %v6270, 0
      %v6354 = vsel %vm3992, %v6271, 0
      %v6357 = vsel %vm3992, %v6272, 0
      %v6360 = vsel %vm3992, %v6273, 0
      %v6363 = vsel %vm3992, %v6274, 0
      %v6366 = vsel %vm3992, %v6275, 0
      %v6369 = vsel %vm3992, %v6276, 0
      %v6372 = vsel %vm3992, %v6277, 0
      %v6375 = vsel %vm3992, %v6278, 0
      %6377 = vmatprep.subr.mxu0 0.0
      %6378 = vmatpush1.msra.mxu0 %v6280
      %6379 = vmatprep.subr.mxu0 0.0
      %6380 = vmatpush1.msra.mxu0 0.0
      %6381 = vmatprep.subr.mxu0 0.0
      %6382 = vmatpush1.msra.mxu0 0.0
      %6383 = vmatprep.subr.mxu0 0.0
      %6384 = vmatpush1.msra.mxu0 0.0
      %6385 = vmatprep.subr.mxu0 0.0
      %6386 = vmatpush1.msra.mxu0 0.0
      %6387 = vmatprep.subr.mxu0 0.0
      %6388 = vmatpush1.msra.mxu0 0.0
      %6389 = vmatprep.subr.mxu0 0.0
      %6390 = vmatpush1.msra.mxu0 0.0
      %6391 = vmatprep.subr.mxu0 0.0
      %6392 = vmatpush1.msra.mxu0 0.0
      %6393 = vmatprep.subr.mxu0 0.0
      %6394 = vmatpush1.msra.mxu0 0.0
      %6395 = vmatprep.subr.mxu0 0.0
      %6396 = vmatpush1.msra.mxu0 0.0
      %6397 = vmatprep.subr.mxu0 0.0
      %6398 = vmatpush1.msra.mxu0 0.0
      %6399 = vmatprep.subr.mxu0 0.0
      %6400 = vmatpush1.msra.mxu0 0.0
      %6401 = vmatprep.subr.mxu0 0.0
      %6402 = vmatpush1.msra.mxu0 0.0
      %6403 = vmatprep.subr.mxu0 0.0
      %6404 = vmatpush1.msra.mxu0 0.0
      %6405 = vmatprep.subr.mxu0 0.0
      %6406 = vmatpush1.msra.mxu0 0.0
      %6407 = vmatprep.subr.mxu0 0.0
      %6408 = vmatpush1.msra.mxu0 0.0
      %6409 = vmatprep.subr.mxu0 0.0
      %6410 = vmatpush1.msra.mxu0 0.0
      %6411 = vmatprep.subr.mxu0 0.0
      %6412 = vmatpush1.msra.mxu0 0.0
      %6413 = vmatprep.subr.mxu0 0.0
      %6414 = vmatpush1.msra.mxu0 0.0
      %6415 = vmatprep.subr.mxu0 0.0
      %6416 = vmatpush1.msra.mxu0 0.0
      %6417 = vmatprep.subr.mxu0 0.0
      %6418 = vmatpush1.msra.mxu0 0.0
      %6419 = vmatprep.subr.mxu0 0.0
      %6420 = vmatpush1.msra.mxu0 0.0
      %6421 = vmatprep.subr.mxu0 0.0
      %6422 = vmatpush1.msra.mxu0 0.0
      %6423 = vmatprep.subr.mxu0 0.0
      %6424 = vmatpush1.msra.mxu0 0.0
      %6425 = vmatprep.subr.mxu0 0.0
      %6426 = vmatpush1.msra.mxu0 0.0
      %6427 = vmatprep.subr.mxu0 0.0
      %6428 = vmatpush1.msra.mxu0 0.0
      %6429 = vmatprep.subr.mxu0 0.0
      %6430 = vmatpush1.msra.mxu0 0.0
      %6431 = vmatprep.subr.mxu0 0.0
      %6432 = vmatpush1.msra.mxu0 0.0
      %6433 = vmatprep.subr.mxu0 0.0
      %6434 = vmatpush1.msra.mxu0 0.0
      %6435 = vmatprep.subr.mxu0 0.0
      %6436 = vmatpush1.msra.mxu0 0.0
      %6437 = vmatprep.subr.mxu0 0.0
      %6438 = vmatpush1.msra.mxu0 0.0
      %6439 = vmatprep.subr.mxu0 0.0
      %6440 = vmatpush1.msra.mxu0 0.0
      %6441 = vmatprep.mubr.f32.mxu0 0.0
      %6442 = vmatmul.mubr.f32.gmra.mrb[0].mxu0 %v6282
      %v6443 = vpop.f32.mrb[0].mxu0
      %v6444 = vadd.f32 0.0, %v6443
      %v6445 = vpop.f32.mrb[0].mxu0
      %6446 = vmatprep.mubr.f32.mxu0 0.0
      %6447 = vmatmul.mubr.f32.gmra.mrb[0].mxu0 %v6285
      %v6448 = vpop.f32.mrb[0].mxu0
      %v6449 = vadd.f32 0.0, %v6448
      %v6450 = vpop.f32.mrb[0].mxu0
      %6451 = vmatprep.mubr.f32.mxu0 0.0
      %6452 = vmatmul.mubr.f32.gmra.mrb[0].mxu0 %v6288
      %v6453 = vpop.f32.mrb[0].mxu0
      %v6454 = vadd.f32 0.0, %v6453
      %v6455 = vpop.f32.mrb[0].mxu0
      %6456 = vmatprep.mubr.f32.mxu0 0.0
      %6457 = vmatmul.mubr.f32.gmra.mrb[0].mxu0 %v6291
      %v6458 = vpop.f32.mrb[0].mxu0
      %v6459 = vadd.f32 0.0, %v6458
      %v6460 = vpop.f32.mrb[0].mxu0
      %6461 = vmatprep.mubr.f32.mxu0 0.0
      %6462 = vmatmul.mubr.f32.gmra.mrb[0].mxu0 %v6294
      %v6463 = vpop.f32.mrb[0].mxu0
      %v6464 = vadd.f32 0.0, %v6463
      %v6465 = vpop.f32.mrb[0].mxu0
      %6466 = vmatprep.mubr.f32.mxu0 0.0
      %6467 = vmatmul.mubr.f32.gmra.mrb[0].mxu0 %v6297
      %v6468 = vpop.f32.mrb[0].mxu0
      %v6469 = vadd.f32 0.0, %v6468
      %v6470 = vpop.f32.mrb[0].mxu0
      %6471 = vmatprep.mubr.f32.mxu0 0.0
      %6472 = vmatmul.mubr.f32.gmra.mrb[0].mxu0 %v6300
      %v6473 = vpop.f32.mrb[0].mxu0
      %v6474 = vadd.f32 0.0, %v6473
      %v6475 = vpop.f32.mrb[0].mxu0
      %6476 = vmatprep.mubr.f32.mxu0 0.0
      %6477 = vmatmul.mubr.f32.gmra.mrb[0].mxu0 %v6303
      %v6478 = vpop.f32.mrb[0].mxu0
      %v6479 = vadd.f32 0.0, %v6478
      %v6480 = vpop.f32.mrb[0].mxu0
      %6481 = vmatprep.mubr.f32.mxu0 0.0
      %6482 = vmatmul.mubr.f32.gmra.mrb[0].mxu0 %v6306
      %v6483 = vpop.f32.mrb[0].mxu0
      %v6484 = vadd.f32 0.0, %v6483
      %v6485 = vpop.f32.mrb[0].mxu0
      %6486 = vmatprep.mubr.f32.mxu0 0.0
      %6487 = vmatmul.mubr.f32.gmra.mrb[0].mxu0 %v6309
      %v6488 = vpop.f32.mrb[0].mxu0
      %v6489 = vadd.f32 0.0, %v6488
      %v6490 = vpop.f32.mrb[0].mxu0
      %6491 = vmatprep.mubr.f32.mxu0 0.0
      %6492 = vmatmul.mubr.f32.gmra.mrb[0].mxu0 %v6312
      %v6493 = vpop.f32.mrb[0].mxu0
      %v6494 = vadd.f32 0.0, %v6493
      %v6495 = vpop.f32.mrb[0].mxu0
      %6496 = vmatprep.mubr.f32.mxu0 0.0
      %6497 = vmatmul.mubr.f32.gmra.mrb[0].mxu0 %v6315
      %v6498 = vpop.f32.mrb[0].mxu0
      %v6499 = vadd.f32 0.0, %v6498
      %v6500 = vpop.f32.mrb[0].mxu0
      %6501 = vmatprep.mubr.f32.mxu0 0.0
      %6502 = vmatmul.mubr.f32.gmra.mrb[0].mxu0 %v6318
      %v6503 = vpop.f32.mrb[0].mxu0
      %v6504 = vadd.f32 0.0, %v6503
      %v6505 = vpop.f32.mrb[0].mxu0
      %6506 = vmatprep.mubr.f32.mxu0 0.0
      %6507 = vmatmul.mubr.f32.gmra.mrb[0].mxu0 %v6321
      %v6508 = vpop.f32.mrb[0].mxu0
      %v6509 = vadd.f32 0.0, %v6508
      %v6510 = vpop.f32.mrb[0].mxu0
      %6511 = vmatprep.mubr.f32.mxu0 0.0
      %6512 = vmatmul.mubr.f32.gmra.mrb[0].mxu0 %v6324
      %v6513 = vpop.f32.mrb[0].mxu0
      %v6514 = vadd.f32 0.0, %v6513
      %v6515 = vpop.f32.mrb[0].mxu0
      %6516 = vmatprep.mubr.f32.mxu0 0.0
      %6517 = vmatmul.mubr.f32.gmra.mrb[0].mxu0 %v6327
      %v6518 = vpop.f32.mrb[0].mxu0
      %v6519 = vadd.f32 0.0, %v6518
      %v6520 = vpop.f32.mrb[0].mxu0
      %6521 = vmatprep.mubr.f32.mxu0 0.0
      %6522 = vmatmul.mubr.f32.gmra.mrb[0].mxu0 %v6330
      %v6523 = vpop.f32.mrb[0].mxu0
      %v6524 = vadd.f32 0.0, %v6523
      %v6525 = vpop.f32.mrb[0].mxu0
      %6526 = vmatprep.mubr.f32.mxu0 0.0
      %6527 = vmatmul.mubr.f32.gmra.mrb[0].mxu0 %v6333
      %v6528 = vpop.f32.mrb[0].mxu0
      %v6529 = vadd.f32 0.0, %v6528
      %v6530 = vpop.f32.mrb[0].mxu0
      %6531 = vmatprep.mubr.f32.mxu0 0.0
      %6532 = vmatmul.mubr.f32.gmra.mrb[0].mxu0 %v6336
      %v6533 = vpop.f32.mrb[0].mxu0
      %v6534 = vadd.f32 0.0, %v6533
      %v6535 = vpop.f32.mrb[0].mxu0
      %6536 = vmatprep.mubr.f32.mxu0 0.0
      %6537 = vmatmul.mubr.f32.gmra.mrb[0].mxu0 %v6339
      %v6538 = vpop.f32.mrb[0].mxu0
      %v6539 = vadd.f32 0.0, %v6538
      %v6540 = vpop.f32.mrb[0].mxu0
      %6541 = vmatprep.mubr.f32.mxu0 0.0
      %6542 = vmatmul.mubr.f32.gmra.mrb[0].mxu0 %v6342
      %v6543 = vpop.f32.mrb[0].mxu0
      %v6544 = vadd.f32 0.0, %v6543
      %v6545 = vpop.f32.mrb[0].mxu0
      %6546 = vmatprep.mubr.f32.mxu0 0.0
      %6547 = vmatmul.mubr.f32.gmra.mrb[0].mxu0 %v6345
      %v6548 = vpop.f32.mrb[0].mxu0
      %v6549 = vadd.f32 0.0, %v6548
      %v6550 = vpop.f32.mrb[0].mxu0
      %6551 = vmatprep.mubr.f32.mxu0 0.0
      %6552 = vmatmul.mubr.f32.gmra.mrb[0].mxu0 %v6348
      %v6553 = vpop.f32.mrb[0].mxu0
      %v6554 = vadd.f32 0.0, %v6553
      %v6555 = vpop.f32.mrb[0].mxu0
      %6556 = vmatprep.mubr.f32.mxu0 0.0
      %6557 = vmatmul.mubr.f32.gmra.mrb[0].mxu0 %v6351
      %v6558 = vpop.f32.mrb[0].mxu0
      %v6559 = vadd.f32 0.0, %v6558
      %v6560 = vpop.f32.mrb[0].mxu0
      %6561 = vmatprep.mubr.f32.mxu0 0.0
      %6562 = vmatmul.mubr.f32.gmra.mrb[0].mxu0 %v6354
      %v6563 = vpop.f32.mrb[0].mxu0
      %v6564 = vadd.f32 0.0, %v6563
      %v6565 = vpop.f32.mrb[0].mxu0
      %6566 = vmatprep.mubr.f32.mxu0 0.0
      %6567 = vmatmul.mubr.f32.gmra.mrb[0].mxu0 %v6357
      %v6568 = vpop.f32.mrb[0].mxu0
      %v6569 = vadd.f32 0.0, %v6568
      %v6570 = vpop.f32.mrb[0].mxu0
      %6571 = vmatprep.mubr.f32.mxu0 0.0
      %6572 = vmatmul.mubr.f32.gmra.mrb[0].mxu0 %v6360
      %v6573 = vpop.f32.mrb[0].mxu0
      %v6574 = vadd.f32 0.0, %v6573
      %v6575 = vpop.f32.mrb[0].mxu0
      %6576 = vmatprep.mubr.f32.mxu0 0.0
      %6577 = vmatmul.mubr.f32.gmra.mrb[0].mxu0 %v6363
      %v6578 = vpop.f32.mrb[0].mxu0
      %v6579 = vadd.f32 0.0, %v6578
      %v6580 = vpop.f32.mrb[0].mxu0
      %6581 = vmatprep.mubr.f32.mxu0 0.0
      %6582 = vmatmul.mubr.f32.gmra.mrb[0].mxu0 %v6366
      %v6583 = vpop.f32.mrb[0].mxu0
      %v6584 = vadd.f32 0.0, %v6583
      %v6585 = vpop.f32.mrb[0].mxu0
      %6586 = vmatprep.mubr.f32.mxu0 0.0
      %6587 = vmatmul.mubr.f32.gmra.mrb[0].mxu0 %v6369
      %v6588 = vpop.f32.mrb[0].mxu0
      %v6589 = vadd.f32 0.0, %v6588
      %v6590 = vpop.f32.mrb[0].mxu0
      %6591 = vmatprep.mubr.f32.mxu0 0.0
      %6592 = vmatmul.mubr.f32.gmra.mrb[0].mxu0 %v6372
      %v6593 = vpop.f32.mrb[0].mxu0
      %v6594 = vadd.f32 0.0, %v6593
      %v6595 = vpop.f32.mrb[0].mxu0
      %6596 = vmatprep.mubr.f32.mxu0 0.0
      %6597 = vmatmul.mubr.f32.gmra.mrb[0].mxu0 %v6375
      %v6598 = vpop.f32.mrb[0].mxu0
      %v6599 = vadd.f32 0.0, %v6598
      %v6600 = vpop.f32.mrb[0].mxu0
      %6601 = vdwg.mxu0
      %v6602 = vadd.f32 %v6215, %v6444
      %v6603 = vadd.f32 %v6216, %v6449
      %v6604 = vadd.f32 %v6217, %v6454
      %v6605 = vadd.f32 %v6218, %v6459
      %v6606 = vadd.f32 %v6219, %v6464
      %v6607 = vadd.f32 %v6220, %v6469
      %v6608 = vadd.f32 %v6221, %v6474
      %v6609 = vadd.f32 %v6222, %v6479
      %v6610 = vadd.f32 %v6223, %v6484
      %v6611 = vadd.f32 %v6224, %v6489
      %v6612 = vadd.f32 %v6225, %v6494
      %v6613 = vadd.f32 %v6226, %v6499
      %v6614 = vadd.f32 %v6227, %v6504
      %v6615 = vadd.f32 %v6228, %v6509
      %v6616 = vadd.f32 %v6229, %v6514
      %v6617 = vadd.f32 %v6230, %v6519
      %v6618 = vadd.f32 %v6231, %v6524
      %v6619 = vadd.f32 %v6232, %v6529
      %v6620 = vadd.f32 %v6233, %v6534
      %v6621 = vadd.f32 %v6234, %v6539
      %v6622 = vadd.f32 %v6235, %v6544
      %v6623 = vadd.f32 %v6236, %v6549
      %v6624 = vadd.f32 %v6237, %v6554
      %v6625 = vadd.f32 %v6238, %v6559
      %v6626 = vadd.f32 %v6239, %v6564
      %v6627 = vadd.f32 %v6240, %v6569
      %v6628 = vadd.f32 %v6241, %v6574
      %v6629 = vadd.f32 %v6242, %v6579
      %v6630 = vadd.f32 %v6243, %v6584
      %v6631 = vadd.f32 %v6244, %v6589
      %v6632 = vadd.f32 %v6245, %v6594
      %v6633 = vadd.f32 %v6246, %v6599
      %s6634 = scalar_lea.vmem [#allocation3], 48
      %v6635 = vld [vmem:[%s6634] sm:$0xff]
      %v6636 = vld [vmem:[%s6634 + $0x8] sm:$0xff]
      %v6637 = vld [vmem:[%s6634 + $0x18] sm:$0xff]
      %v6638 = vld [vmem:[%s6634 + $0x20] sm:$0xff]
      %v6639 = vld [vmem:[%s6634 + $0x30] sm:$0xff]
      %v6640 = vld [vmem:[%s6634 + $0x38] sm:$0xff]
      %v6641 = vld [vmem:[%s6634 + $0x48] sm:$0xff]
      %v6642 = vld [vmem:[%s6634 + $0x50] sm:$0xff]
      %v6643 = vld [vmem:[%s6634 + $0x60] sm:$0xff]
      %v6644 = vld [vmem:[%s6634 + $0x68] sm:$0xff]
      %v6645 = vld [vmem:[%s6634 + $0x78] sm:$0xff]
      %v6646 = vld [vmem:[%s6634 + $0x80] sm:$0xff]
      %v6647 = vld [vmem:[%s6634 + $0x90] sm:$0xff]
      %v6648 = vld [vmem:[%s6634 + $0x98] sm:$0xff]
      %v6649 = vld [vmem:[%s6634 + $0xa8] sm:$0xff]
      %v6650 = vld [vmem:[%s6634 + $0xb0] sm:$0xff]
      %v6651 = vld [vmem:[%s6634 + $0xc0] sm:$0xff]
      %v6652 = vld [vmem:[%s6634 + $0xc8] sm:$0xff]
      %v6653 = vld [vmem:[%s6634 + $0xd8] sm:$0xff]
      %v6654 = vld [vmem:[%s6634 + $0xe0] sm:$0xff]
      %v6655 = vld [vmem:[%s6634 + $0xf0] sm:$0xff]
      %v6656 = vld [vmem:[%s6634 + $0xf8] sm:$0xff]
      %v6657 = vld [vmem:[%s6634 + $0x108] sm:$0xff]
      %v6658 = vld [vmem:[%s6634 + $0x110] sm:$0xff]
      %v6659 = vld [vmem:[%s6634 + $0x120] sm:$0xff]
      %v6660 = vld [vmem:[%s6634 + $0x128] sm:$0xff]
      %v6661 = vld [vmem:[%s6634 + $0x138] sm:$0xff]
      %v6662 = vld [vmem:[%s6634 + $0x140] sm:$0xff]
      %v6663 = vld [vmem:[%s6634 + $0x150] sm:$0xff]
      %v6664 = vld [vmem:[%s6634 + $0x158] sm:$0xff]
      %v6665 = vld [vmem:[%s6634 + $0x168] sm:$0xff]
      %v6666 = vld [vmem:[%s6634 + $0x170] sm:$0xff]
      %s6667 = scalar_lea.vmem %s3, 48
      %v6668 = vld [vmem:[%s6667] sm:$0xff]
      %v6670 = vsel %vm3992, %v6635, 0
      %v6673 = vsel %vm3992, %v6636, 0
      %v6676 = vsel %vm3992, %v6637, 0
      %v6679 = vsel %vm3992, %v6638, 0
      %v6682 = vsel %vm3992, %v6639, 0
      %v6685 = vsel %vm3992, %v6640, 0
      %v6688 = vsel %vm3992, %v6641, 0
      %v6691 = vsel %vm3992, %v6642, 0
      %v6694 = vsel %vm3992, %v6643, 0
      %v6697 = vsel %vm3992, %v6644, 0
      %v6700 = vsel %vm3992, %v6645, 0
      %v6703 = vsel %vm3992, %v6646, 0
      %v6706 = vsel %vm3992, %v6647, 0
      %v6709 = vsel %vm3992, %v6648, 0
      %v6712 = vsel %vm3992, %v6649, 0
      %v6715 = vsel %vm3992, %v6650, 0
      %v6718 = vsel %vm3992, %v6651, 0
      %v6721 = vsel %vm3992, %v6652, 0
      %v6724 = vsel %vm3992, %v6653, 0
      %v6727 = vsel %vm3992, %v6654, 0
      %v6730 = vsel %vm3992, %v6655, 0
      %v6733 = vsel %vm3992, %v6656, 0
      %v6736 = vsel %vm3992, %v6657, 0
      %v6739 = vsel %vm3992, %v6658, 0
      %v6742 = vsel %vm3992, %v6659, 0
      %v6745 = vsel %vm3992, %v6660, 0
      %v6748 = vsel %vm3992, %v6661, 0
      %v6751 = vsel %vm3992, %v6662, 0
      %v6754 = vsel %vm3992, %v6663, 0
      %v6757 = vsel %vm3992, %v6664, 0
      %v6760 = vsel %vm3992, %v6665, 0
      %v6763 = vsel %vm3992, %v6666, 0
      %6765 = vmatprep.subr.mxu0 0.0
      %6766 = vmatpush1.msra.mxu0 %v6668
      %6767 = vmatprep.subr.mxu0 0.0
      %6768 = vmatpush1.msra.mxu0 0.0
      %6769 = vmatprep.subr.mxu0 0.0
      %6770 = vmatpush1.msra.mxu0 0.0
      %6771 = vmatprep.subr.mxu0 0.0
      %6772 = vmatpush1.msra.mxu0 0.0
      %6773 = vmatprep.subr.mxu0 0.0
      %6774 = vmatpush1.msra.mxu0 0.0
      %6775 = vmatprep.subr.mxu0 0.0
      %6776 = vmatpush1.msra.mxu0 0.0
      %6777 = vmatprep.subr.mxu0 0.0
      %6778 = vmatpush1.msra.mxu0 0.0
      %6779 = vmatprep.subr.mxu0 0.0
      %6780 = vmatpush1.msra.mxu0 0.0
      %6781 = vmatprep.subr.mxu0 0.0
      %6782 = vmatpush1.msra.mxu0 0.0
      %6783 = vmatprep.subr.mxu0 0.0
      %6784 = vmatpush1.msra.mxu0 0.0
      %6785 = vmatprep.subr.mxu0 0.0
      %6786 = vmatpush1.msra.mxu0 0.0
      %6787 = vmatprep.subr.mxu0 0.0
      %6788 = vmatpush1.msra.mxu0 0.0
      %6789 = vmatprep.subr.mxu0 0.0
      %6790 = vmatpush1.msra.mxu0 0.0
      %6791 = vmatprep.subr.mxu0 0.0
      %6792 = vmatpush1.msra.mxu0 0.0
      %6793 = vmatprep.subr.mxu0 0.0
      %6794 = vmatpush1.msra.mxu0 0.0
      %6795 = vmatprep.subr.mxu0 0.0
      %6796 = vmatpush1.msra.mxu0 0.0
      %6797 = vmatprep.subr.mxu0 0.0
      %6798 = vmatpush1.msra.mxu0 0.0
      %6799 = vmatprep.subr.mxu0 0.0
      %6800 = vmatpush1.msra.mxu0 0.0
      %6801 = vmatprep.subr.mxu0 0.0
      %6802 = vmatpush1.msra.mxu0 0.0
      %6803 = vmatprep.subr.mxu0 0.0
      %6804 = vmatpush1.msra.mxu0 0.0
      %6805 = vmatprep.subr.mxu0 0.0
      %6806 = vmatpush1.msra.mxu0 0.0
      %6807 = vmatprep.subr.mxu0 0.0
      %6808 = vmatpush1.msra.mxu0 0.0
      %6809 = vmatprep.subr.mxu0 0.0
      %6810 = vmatpush1.msra.mxu0 0.0
      %6811 = vmatprep.subr.mxu0 0.0
      %6812 = vmatpush1.msra.mxu0 0.0
      %6813 = vmatprep.subr.mxu0 0.0
      %6814 = vmatpush1.msra.mxu0 0.0
      %6815 = vmatprep.subr.mxu0 0.0
      %6816 = vmatpush1.msra.mxu0 0.0
      %6817 = vmatprep.subr.mxu0 0.0
      %6818 = vmatpush1.msra.mxu0 0.0
      %6819 = vmatprep.subr.mxu0 0.0
      %6820 = vmatpush1.msra.mxu0 0.0
      %6821 = vmatprep.subr.mxu0 0.0
      %6822 = vmatpush1.msra.mxu0 0.0
      %6823 = vmatprep.subr.mxu0 0.0
      %6824 = vmatpush1.msra.mxu0 0.0
      %6825 = vmatprep.subr.mxu0 0.0
      %6826 = vmatpush1.msra.mxu0 0.0
      %6827 = vmatprep.subr.mxu0 0.0
      %6828 = vmatpush1.msra.mxu0 0.0
      %6829 = vmatprep.mubr.f32.mxu0 0.0
      %6830 = vmatmul.mubr.f32.gmra.mrb[0].mxu0 %v6670
      %v6831 = vpop.f32.mrb[0].mxu0
      %v6832 = vadd.f32 0.0, %v6831
      %v6833 = vpop.f32.mrb[0].mxu0
      %6834 = vmatprep.mubr.f32.mxu0 0.0
      %6835 = vmatmul.mubr.f32.gmra.mrb[0].mxu0 %v6673
      %v6836 = vpop.f32.mrb[0].mxu0
      %v6837 = vadd.f32 0.0, %v6836
      %v6838 = vpop.f32.mrb[0].mxu0
      %6839 = vmatprep.mubr.f32.mxu0 0.0
      %6840 = vmatmul.mubr.f32.gmra.mrb[0].mxu0 %v6676
      %v6841 = vpop.f32.mrb[0].mxu0
      %v6842 = vadd.f32 0.0, %v6841
      %v6843 = vpop.f32.mrb[0].mxu0
      %6844 = vmatprep.mubr.f32.mxu0 0.0
      %6845 = vmatmul.mubr.f32.gmra.mrb[0].mxu0 %v6679
      %v6846 = vpop.f32.mrb[0].mxu0
      %v6847 = vadd.f32 0.0, %v6846
      %v6848 = vpop.f32.mrb[0].mxu0
      %6849 = vmatprep.mubr.f32.mxu0 0.0
      %6850 = vmatmul.mubr.f32.gmra.mrb[0].mxu0 %v6682
      %v6851 = vpop.f32.mrb[0].mxu0
      %v6852 = vadd.f32 0.0, %v6851
      %v6853 = vpop.f32.mrb[0].mxu0
      %6854 = vmatprep.mubr.f32.mxu0 0.0
      %6855 = vmatmul.mubr.f32.gmra.mrb[0].mxu0 %v6685
      %v6856 = vpop.f32.mrb[0].mxu0
      %v6857 = vadd.f32 0.0, %v6856
      %v6858 = vpop.f32.mrb[0].mxu0
      %6859 = vmatprep.mubr.f32.mxu0 0.0
      %6860 = vmatmul.mubr.f32.gmra.mrb[0].mxu0 %v6688
      %v6861 = vpop.f32.mrb[0].mxu0
      %v6862 = vadd.f32 0.0, %v6861
      %v6863 = vpop.f32.mrb[0].mxu0
      %6864 = vmatprep.mubr.f32.mxu0 0.0
      %6865 = vmatmul.mubr.f32.gmra.mrb[0].mxu0 %v6691
      %v6866 = vpop.f32.mrb[0].mxu0
      %v6867 = vadd.f32 0.0, %v6866
      %v6868 = vpop.f32.mrb[0].mxu0
      %6869 = vmatprep.mubr.f32.mxu0 0.0
      %6870 = vmatmul.mubr.f32.gmra.mrb[0].mxu0 %v6694
      %v6871 = vpop.f32.mrb[0].mxu0
      %v6872 = vadd.f32 0.0, %v6871
      %v6873 = vpop.f32.mrb[0].mxu0
      %6874 = vmatprep.mubr.f32.mxu0 0.0
      %6875 = vmatmul.mubr.f32.gmra.mrb[0].mxu0 %v6697
      %v6876 = vpop.f32.mrb[0].mxu0
      %v6877 = vadd.f32 0.0, %v6876
      %v6878 = vpop.f32.mrb[0].mxu0
      %6879 = vmatprep.mubr.f32.mxu0 0.0
      %6880 = vmatmul.mubr.f32.gmra.mrb[0].mxu0 %v6700
      %v6881 = vpop.f32.mrb[0].mxu0
      %v6882 = vadd.f32 0.0, %v6881
      %v6883 = vpop.f32.mrb[0].mxu0
      %6884 = vmatprep.mubr.f32.mxu0 0.0
      %6885 = vmatmul.mubr.f32.gmra.mrb[0].mxu0 %v6703
      %v6886 = vpop.f32.mrb[0].mxu0
      %v6887 = vadd.f32 0.0, %v6886
      %v6888 = vpop.f32.mrb[0].mxu0
      %6889 = vmatprep.mubr.f32.mxu0 0.0
      %6890 = vmatmul.mubr.f32.gmra.mrb[0].mxu0 %v6706
      %v6891 = vpop.f32.mrb[0].mxu0
      %v6892 = vadd.f32 0.0, %v6891
      %v6893 = vpop.f32.mrb[0].mxu0
      %6894 = vmatprep.mubr.f32.mxu0 0.0
      %6895 = vmatmul.mubr.f32.gmra.mrb[0].mxu0 %v6709
      %v6896 = vpop.f32.mrb[0].mxu0
      %v6897 = vadd.f32 0.0, %v6896
      %v6898 = vpop.f32.mrb[0].mxu0
      %6899 = vmatprep.mubr.f32.mxu0 0.0
      %6900 = vmatmul.mubr.f32.gmra.mrb[0].mxu0 %v6712
      %v6901 = vpop.f32.mrb[0].mxu0
      %v6902 = vadd.f32 0.0, %v6901
      %v6903 = vpop.f32.mrb[0].mxu0
      %6904 = vmatprep.mubr.f32.mxu0 0.0
      %6905 = vmatmul.mubr.f32.gmra.mrb[0].mxu0 %v6715
      %v6906 = vpop.f32.mrb[0].mxu0
      %v6907 = vadd.f32 0.0, %v6906
      %v6908 = vpop.f32.mrb[0].mxu0
      %6909 = vmatprep.mubr.f32.mxu0 0.0
      %6910 = vmatmul.mubr.f32.gmra.mrb[0].mxu0 %v6718
      %v6911 = vpop.f32.mrb[0].mxu0
      %v6912 = vadd.f32 0.0, %v6911
      %v6913 = vpop.f32.mrb[0].mxu0
      %6914 = vmatprep.mubr.f32.mxu0 0.0
      %6915 = vmatmul.mubr.f32.gmra.mrb[0].mxu0 %v6721
      %v6916 = vpop.f32.mrb[0].mxu0
      %v6917 = vadd.f32 0.0, %v6916
      %v6918 = vpop.f32.mrb[0].mxu0
      %6919 = vmatprep.mubr.f32.mxu0 0.0
      %6920 = vmatmul.mubr.f32.gmra.mrb[0].mxu0 %v6724
      %v6921 = vpop.f32.mrb[0].mxu0
      %v6922 = vadd.f32 0.0, %v6921
      %v6923 = vpop.f32.mrb[0].mxu0
      %6924 = vmatprep.mubr.f32.mxu0 0.0
      %6925 = vmatmul.mubr.f32.gmra.mrb[0].mxu0 %v6727
      %v6926 = vpop.f32.mrb[0].mxu0
      %v6927 = vadd.f32 0.0, %v6926
      %v6928 = vpop.f32.mrb[0].mxu0
      %6929 = vmatprep.mubr.f32.mxu0 0.0
      %6930 = vmatmul.mubr.f32.gmra.mrb[0].mxu0 %v6730
      %v6931 = vpop.f32.mrb[0].mxu0
      %v6932 = vadd.f32 0.0, %v6931
      %v6933 = vpop.f32.mrb[0].mxu0
      %6934 = vmatprep.mubr.f32.mxu0 0.0
      %6935 = vmatmul.mubr.f32.gmra.mrb[0].mxu0 %v6733
      %v6936 = vpop.f32.mrb[0].mxu0
      %v6937 = vadd.f32 0.0, %v6936
      %v6938 = vpop.f32.mrb[0].mxu0
      %6939 = vmatprep.mubr.f32.mxu0 0.0
      %6940 = vmatmul.mubr.f32.gmra.mrb[0].mxu0 %v6736
      %v6941 = vpop.f32.mrb[0].mxu0
      %v6942 = vadd.f32 0.0, %v6941
      %v6943 = vpop.f32.mrb[0].mxu0
      %6944 = vmatprep.mubr.f32.mxu0 0.0
      %6945 = vmatmul.mubr.f32.gmra.mrb[0].mxu0 %v6739
      %v6946 = vpop.f32.mrb[0].mxu0
      %v6947 = vadd.f32 0.0, %v6946
      %v6948 = vpop.f32.mrb[0].mxu0
      %6949 = vmatprep.mubr.f32.mxu0 0.0
      %6950 = vmatmul.mubr.f32.gmra.mrb[0].mxu0 %v6742
      %v6951 = vpop.f32.mrb[0].mxu0
      %v6952 = vadd.f32 0.0, %v6951
      %v6953 = vpop.f32.mrb[0].mxu0
      %6954 = vmatprep.mubr.f32.mxu0 0.0
      %6955 = vmatmul.mubr.f32.gmra.mrb[0].mxu0 %v6745
      %v6956 = vpop.f32.mrb[0].mxu0
      %v6957 = vadd.f32 0.0, %v6956
      %v6958 = vpop.f32.mrb[0].mxu0
      %6959 = vmatprep.mubr.f32.mxu0 0.0
      %6960 = vmatmul.mubr.f32.gmra.mrb[0].mxu0 %v6748
      %v6961 = vpop.f32.mrb[0].mxu0
      %v6962 = vadd.f32 0.0, %v6961
      %v6963 = vpop.f32.mrb[0].mxu0
      %6964 = vmatprep.mubr.f32.mxu0 0.0
      %6965 = vmatmul.mubr.f32.gmra.mrb[0].mxu0 %v6751
      %v6966 = vpop.f32.mrb[0].mxu0
      %v6967 = vadd.f32 0.0, %v6966
      %v6968 = vpop.f32.mrb[0].mxu0
      %6969 = vmatprep.mubr.f32.mxu0 0.0
      %6970 = vmatmul.mubr.f32.gmra.mrb[0].mxu0 %v6754
      %v6971 = vpop.f32.mrb[0].mxu0
      %v6972 = vadd.f32 0.0, %v6971
      %v6973 = vpop.f32.mrb[0].mxu0
      %6974 = vmatprep.mubr.f32.mxu0 0.0
      %6975 = vmatmul.mubr.f32.gmra.mrb[0].mxu0 %v6757
      %v6976 = vpop.f32.mrb[0].mxu0
      %v6977 = vadd.f32 0.0, %v6976
      %v6978 = vpop.f32.mrb[0].mxu0
      %6979 = vmatprep.mubr.f32.mxu0 0.0
      %6980 = vmatmul.mubr.f32.gmra.mrb[0].mxu0 %v6760
      %v6981 = vpop.f32.mrb[0].mxu0
      %v6982 = vadd.f32 0.0, %v6981
      %v6983 = vpop.f32.mrb[0].mxu0
      %6984 = vmatprep.mubr.f32.mxu0 0.0
      %6985 = vmatmul.mubr.f32.gmra.mrb[0].mxu0 %v6763
      %v6986 = vpop.f32.mrb[0].mxu0
      %v6987 = vadd.f32 0.0, %v6986
      %v6988 = vpop.f32.mrb[0].mxu0
      %6989 = vdwg.mxu0
      %v6990 = vadd.f32 %v6602, %v6832
      %v6991 = vadd.f32 %v6603, %v6837
      %v6992 = vadd.f32 %v6604, %v6842
      %v6993 = vadd.f32 %v6605, %v6847
      %v6994 = vadd.f32 %v6606, %v6852
      %v6995 = vadd.f32 %v6607, %v6857
      %v6996 = vadd.f32 %v6608, %v6862
      %v6997 = vadd.f32 %v6609, %v6867
      %v6998 = vadd.f32 %v6610, %v6872
      %v6999 = vadd.f32 %v6611, %v6877
      %v7000 = vadd.f32 %v6612, %v6882
      %v7001 = vadd.f32 %v6613, %v6887
      %v7002 = vadd.f32 %v6614, %v6892
      %v7003 = vadd.f32 %v6615, %v6897
      %v7004 = vadd.f32 %v6616, %v6902
      %v7005 = vadd.f32 %v6617, %v6907
      %v7006 = vadd.f32 %v6618, %v6912
      %v7007 = vadd.f32 %v6619, %v6917
      %v7008 = vadd.f32 %v6620, %v6922
      %v7009 = vadd.f32 %v6621, %v6927
      %v7010 = vadd.f32 %v6622, %v6932
      %v7011 = vadd.f32 %v6623, %v6937
      %v7012 = vadd.f32 %v6624, %v6942
      %v7013 = vadd.f32 %v6625, %v6947
      %v7014 = vadd.f32 %v6626, %v6952
      %v7015 = vadd.f32 %v6627, %v6957
      %v7016 = vadd.f32 %v6628, %v6962
      %v7017 = vadd.f32 %v6629, %v6967
      %v7018 = vadd.f32 %v6630, %v6972
      %v7019 = vadd.f32 %v6631, %v6977
      %v7020 = vadd.f32 %v6632, %v6982
      %v7021 = vadd.f32 %v6633, %v6987
      %v7022 = vld [vmem:[%s6634 + $0x1] sm:$0xff]
      %v7023 = vld [vmem:[%s6634 + $0x9] sm:$0xff]
      %v7024 = vld [vmem:[%s6634 + $0x19] sm:$0xff]
      %v7025 = vld [vmem:[%s6634 + $0x21] sm:$0xff]
      %v7026 = vld [vmem:[%s6634 + $0x31] sm:$0xff]
      %v7027 = vld [vmem:[%s6634 + $0x39] sm:$0xff]
      %v7028 = vld [vmem:[%s6634 + $0x49] sm:$0xff]
      %v7029 = vld [vmem:[%s6634 + $0x51] sm:$0xff]
      %v7030 = vld [vmem:[%s6634 + $0x61] sm:$0xff]
      %v7031 = vld [vmem:[%s6634 + $0x69] sm:$0xff]
      %v7032 = vld [vmem:[%s6634 + $0x79] sm:$0xff]
      %v7033 = vld [vmem:[%s6634 + $0x81] sm:$0xff]
      %v7034 = vld [vmem:[%s6634 + $0x91] sm:$0xff]
      %v7035 = vld [vmem:[%s6634 + $0x99] sm:$0xff]
      %v7036 = vld [vmem:[%s6634 + $0xa9] sm:$0xff]
      %v7037 = vld [vmem:[%s6634 + $0xb1] sm:$0xff]
      %v7038 = vld [vmem:[%s6634 + $0xc1] sm:$0xff]
      %v7039 = vld [vmem:[%s6634 + $0xc9] sm:$0xff]
      %v7040 = vld [vmem:[%s6634 + $0xd9] sm:$0xff]
      %v7041 = vld [vmem:[%s6634 + $0xe1] sm:$0xff]
      %v7042 = vld [vmem:[%s6634 + $0xf1] sm:$0xff]
      %v7043 = vld [vmem:[%s6634 + $0xf9] sm:$0xff]
      %v7044 = vld [vmem:[%s6634 + $0x109] sm:$0xff]
      %v7045 = vld [vmem:[%s6634 + $0x111] sm:$0xff]
      %v7046 = vld [vmem:[%s6634 + $0x121] sm:$0xff]
      %v7047 = vld [vmem:[%s6634 + $0x129] sm:$0xff]
      %v7048 = vld [vmem:[%s6634 + $0x139] sm:$0xff]
      %v7049 = vld [vmem:[%s6634 + $0x141] sm:$0xff]
      %v7050 = vld [vmem:[%s6634 + $0x151] sm:$0xff]
      %v7051 = vld [vmem:[%s6634 + $0x159] sm:$0xff]
      %v7052 = vld [vmem:[%s6634 + $0x169] sm:$0xff]
      %v7053 = vld [vmem:[%s6634 + $0x171] sm:$0xff]
      %s7054 = scalar_lea.vmem %s3, 56
      %v7055 = vld [vmem:[%s7054] sm:$0xff]
      %v7057 = vsel %vm3992, %v7022, 0
      %v7060 = vsel %vm3992, %v7023, 0
      %v7063 = vsel %vm3992, %v7024, 0
      %v7066 = vsel %vm3992, %v7025, 0
      %v7069 = vsel %vm3992, %v7026, 0
      %v7072 = vsel %vm3992, %v7027, 0
      %v7075 = vsel %vm3992, %v7028, 0
      %v7078 = vsel %vm3992, %v7029, 0
      %v7081 = vsel %vm3992, %v7030, 0
      %v7084 = vsel %vm3992, %v7031, 0
      %v7087 = vsel %vm3992, %v7032, 0
      %v7090 = vsel %vm3992, %v7033, 0
      %v7093 = vsel %vm3992, %v7034, 0
      %v7096 = vsel %vm3992, %v7035, 0
      %v7099 = vsel %vm3992, %v7036, 0
      %v7102 = vsel %vm3992, %v7037, 0
      %v7105 = vsel %vm3992, %v7038, 0
      %v7108 = vsel %vm3992, %v7039, 0
      %v7111 = vsel %vm3992, %v7040, 0
      %v7114 = vsel %vm3992, %v7041, 0
      %v7117 = vsel %vm3992, %v7042, 0
      %v7120 = vsel %vm3992, %v7043, 0
      %v7123 = vsel %vm3992, %v7044, 0
      %v7126 = vsel %vm3992, %v7045, 0
      %v7129 = vsel %vm3992, %v7046, 0
      %v7132 = vsel %vm3992, %v7047, 0
      %v7135 = vsel %vm3992, %v7048, 0
      %v7138 = vsel %vm3992, %v7049, 0
      %v7141 = vsel %vm3992, %v7050, 0
      %v7144 = vsel %vm3992, %v7051, 0
      %v7147 = vsel %vm3992, %v7052, 0
      %v7150 = vsel %vm3992, %v7053, 0
      %7152 = vmatprep.subr.mxu0 0.0
      %7153 = vmatpush1.msra.mxu0 %v7055
      %7154 = vmatprep.subr.mxu0 0.0
      %7155 = vmatpush1.msra.mxu0 0.0
      %7156 = vmatprep.subr.mxu0 0.0
      %7157 = vmatpush1.msra.mxu0 0.0
      %7158 = vmatprep.subr.mxu0 0.0
      %7159 = vmatpush1.msra.mxu0 0.0
      %7160 = vmatprep.subr.mxu0 0.0
      %7161 = vmatpush1.msra.mxu0 0.0
      %7162 = vmatprep.subr.mxu0 0.0
      %7163 = vmatpush1.msra.mxu0 0.0
      %7164 = vmatprep.subr.mxu0 0.0
      %7165 = vmatpush1.msra.mxu0 0.0
      %7166 = vmatprep.subr.mxu0 0.0
      %7167 = vmatpush1.msra.mxu0 0.0
      %7168 = vmatprep.subr.mxu0 0.0
      %7169 = vmatpush1.msra.mxu0 0.0
      %7170 = vmatprep.subr.mxu0 0.0
      %7171 = vmatpush1.msra.mxu0 0.0
      %7172 = vmatprep.subr.mxu0 0.0
      %7173 = vmatpush1.msra.mxu0 0.0
      %7174 = vmatprep.subr.mxu0 0.0
      %7175 = vmatpush1.msra.mxu0 0.0
      %7176 = vmatprep.subr.mxu0 0.0
      %7177 = vmatpush1.msra.mxu0 0.0
      %7178 = vmatprep.subr.mxu0 0.0
      %7179 = vmatpush1.msra.mxu0 0.0
      %7180 = vmatprep.subr.mxu0 0.0
      %7181 = vmatpush1.msra.mxu0 0.0
      %7182 = vmatprep.subr.mxu0 0.0
      %7183 = vmatpush1.msra.mxu0 0.0
      %7184 = vmatprep.subr.mxu0 0.0
      %7185 = vmatpush1.msra.mxu0 0.0
      %7186 = vmatprep.subr.mxu0 0.0
      %7187 = vmatpush1.msra.mxu0 0.0
      %7188 = vmatprep.subr.mxu0 0.0
      %7189 = vmatpush1.msra.mxu0 0.0
      %7190 = vmatprep.subr.mxu0 0.0
      %7191 = vmatpush1.msra.mxu0 0.0
      %7192 = vmatprep.subr.mxu0 0.0
      %7193 = vmatpush1.msra.mxu0 0.0
      %7194 = vmatprep.subr.mxu0 0.0
      %7195 = vmatpush1.msra.mxu0 0.0
      %7196 = vmatprep.subr.mxu0 0.0
      %7197 = vmatpush1.msra.mxu0 0.0
      %7198 = vmatprep.subr.mxu0 0.0
      %7199 = vmatpush1.msra.mxu0 0.0
      %7200 = vmatprep.subr.mxu0 0.0
      %7201 = vmatpush1.msra.mxu0 0.0
      %7202 = vmatprep.subr.mxu0 0.0
      %7203 = vmatpush1.msra.mxu0 0.0
      %7204 = vmatprep.subr.mxu0 0.0
      %7205 = vmatpush1.msra.mxu0 0.0
      %7206 = vmatprep.subr.mxu0 0.0
      %7207 = vmatpush1.msra.mxu0 0.0
      %7208 = vmatprep.subr.mxu0 0.0
      %7209 = vmatpush1.msra.mxu0 0.0
      %7210 = vmatprep.subr.mxu0 0.0
      %7211 = vmatpush1.msra.mxu0 0.0
      %7212 = vmatprep.subr.mxu0 0.0
      %7213 = vmatpush1.msra.mxu0 0.0
      %7214 = vmatprep.subr.mxu0 0.0
      %7215 = vmatpush1.msra.mxu0 0.0
      %7216 = vmatprep.mubr.f32.mxu0 0.0
      %7217 = vmatmul.mubr.f32.gmra.mrb[0].mxu0 %v7057
      %v7218 = vpop.f32.mrb[0].mxu0
      %v7219 = vadd.f32 0.0, %v7218
      %v7220 = vpop.f32.mrb[0].mxu0
      %7221 = vmatprep.mubr.f32.mxu0 0.0
      %7222 = vmatmul.mubr.f32.gmra.mrb[0].mxu0 %v7060
      %v7223 = vpop.f32.mrb[0].mxu0
      %v7224 = vadd.f32 0.0, %v7223
      %v7225 = vpop.f32.mrb[0].mxu0
      %7226 = vmatprep.mubr.f32.mxu0 0.0
      %7227 = vmatmul.mubr.f32.gmra.mrb[0].mxu0 %v7063
      %v7228 = vpop.f32.mrb[0].mxu0
      %v7229 = vadd.f32 0.0, %v7228
      %v7230 = vpop.f32.mrb[0].mxu0
      %7231 = vmatprep.mubr.f32.mxu0 0.0
      %7232 = vmatmul.mubr.f32.gmra.mrb[0].mxu0 %v7066
      %v7233 = vpop.f32.mrb[0].mxu0
      %v7234 = vadd.f32 0.0, %v7233
      %v7235 = vpop.f32.mrb[0].mxu0
      %7236 = vmatprep.mubr.f32.mxu0 0.0
      %7237 = vmatmul.mubr.f32.gmra.mrb[0].mxu0 %v7069
      %v7238 = vpop.f32.mrb[0].mxu0
      %v7239 = vadd.f32 0.0, %v7238
      %v7240 = vpop.f32.mrb[0].mxu0
      %7241 = vmatprep.mubr.f32.mxu0 0.0
      %7242 = vmatmul.mubr.f32.gmra.mrb[0].mxu0 %v7072
      %v7243 = vpop.f32.mrb[0].mxu0
      %v7244 = vadd.f32 0.0, %v7243
      %v7245 = vpop.f32.mrb[0].mxu0
      %7246 = vmatprep.mubr.f32.mxu0 0.0
      %7247 = vmatmul.mubr.f32.gmra.mrb[0].mxu0 %v7075
      %v7248 = vpop.f32.mrb[0].mxu0
      %v7249 = vadd.f32 0.0, %v7248
      %v7250 = vpop.f32.mrb[0].mxu0
      %7251 = vmatprep.mubr.f32.mxu0 0.0
      %7252 = vmatmul.mubr.f32.gmra.mrb[0].mxu0 %v7078
      %v7253 = vpop.f32.mrb[0].mxu0
      %v7254 = vadd.f32 0.0, %v7253
      %v7255 = vpop.f32.mrb[0].mxu0
      %7256 = vmatprep.mubr.f32.mxu0 0.0
      %7257 = vmatmul.mubr.f32.gmra.mrb[0].mxu0 %v7081
      %v7258 = vpop.f32.mrb[0].mxu0
      %v7259 = vadd.f32 0.0, %v7258
      %v7260 = vpop.f32.mrb[0].mxu0
      %7261 = vmatprep.mubr.f32.mxu0 0.0
      %7262 = vmatmul.mubr.f32.gmra.mrb[0].mxu0 %v7084
      %v7263 = vpop.f32.mrb[0].mxu0
      %v7264 = vadd.f32 0.0, %v7263
      %v7265 = vpop.f32.mrb[0].mxu0
      %7266 = vmatprep.mubr.f32.mxu0 0.0
      %7267 = vmatmul.mubr.f32.gmra.mrb[0].mxu0 %v7087
      %v7268 = vpop.f32.mrb[0].mxu0
      %v7269 = vadd.f32 0.0, %v7268
      %v7270 = vpop.f32.mrb[0].mxu0
      %7271 = vmatprep.mubr.f32.mxu0 0.0
      %7272 = vmatmul.mubr.f32.gmra.mrb[0].mxu0 %v7090
      %v7273 = vpop.f32.mrb[0].mxu0
      %v7274 = vadd.f32 0.0, %v7273
      %v7275 = vpop.f32.mrb[0].mxu0
      %7276 = vmatprep.mubr.f32.mxu0 0.0
      %7277 = vmatmul.mubr.f32.gmra.mrb[0].mxu0 %v7093
      %v7278 = vpop.f32.mrb[0].mxu0
      %v7279 = vadd.f32 0.0, %v7278
      %v7280 = vpop.f32.mrb[0].mxu0
      %7281 = vmatprep.mubr.f32.mxu0 0.0
      %7282 = vmatmul.mubr.f32.gmra.mrb[0].mxu0 %v7096
      %v7283 = vpop.f32.mrb[0].mxu0
      %v7284 = vadd.f32 0.0, %v7283
      %v7285 = vpop.f32.mrb[0].mxu0
      %7286 = vmatprep.mubr.f32.mxu0 0.0
      %7287 = vmatmul.mubr.f32.gmra.mrb[0].mxu0 %v7099
      %v7288 = vpop.f32.mrb[0].mxu0
      %v7289 = vadd.f32 0.0, %v7288
      %v7290 = vpop.f32.mrb[0].mxu0
      %7291 = vmatprep.mubr.f32.mxu0 0.0
      %7292 = vmatmul.mubr.f32.gmra.mrb[0].mxu0 %v7102
      %v7293 = vpop.f32.mrb[0].mxu0
      %v7294 = vadd.f32 0.0, %v7293
      %v7295 = vpop.f32.mrb[0].mxu0
      %7296 = vmatprep.mubr.f32.mxu0 0.0
      %7297 = vmatmul.mubr.f32.gmra.mrb[0].mxu0 %v7105
      %v7298 = vpop.f32.mrb[0].mxu0
      %v7299 = vadd.f32 0.0, %v7298
      %v7300 = vpop.f32.mrb[0].mxu0
      %7301 = vmatprep.mubr.f32.mxu0 0.0
      %7302 = vmatmul.mubr.f32.gmra.mrb[0].mxu0 %v7108
      %v7303 = vpop.f32.mrb[0].mxu0
      %v7304 = vadd.f32 0.0, %v7303
      %v7305 = vpop.f32.mrb[0].mxu0
      %7306 = vmatprep.mubr.f32.mxu0 0.0
      %7307 = vmatmul.mubr.f32.gmra.mrb[0].mxu0 %v7111
      %v7308 = vpop.f32.mrb[0].mxu0
      %v7309 = vadd.f32 0.0, %v7308
      %v7310 = vpop.f32.mrb[0].mxu0
      %7311 = vmatprep.mubr.f32.mxu0 0.0
      %7312 = vmatmul.mubr.f32.gmra.mrb[0].mxu0 %v7114
      %v7313 = vpop.f32.mrb[0].mxu0
      %v7314 = vadd.f32 0.0, %v7313
      %v7315 = vpop.f32.mrb[0].mxu0
      %7316 = vmatprep.mubr.f32.mxu0 0.0
      %7317 = vmatmul.mubr.f32.gmra.mrb[0].mxu0 %v7117
      %v7318 = vpop.f32.mrb[0].mxu0
      %v7319 = vadd.f32 0.0, %v7318
      %v7320 = vpop.f32.mrb[0].mxu0
      %7321 = vmatprep.mubr.f32.mxu0 0.0
      %7322 = vmatmul.mubr.f32.gmra.mrb[0].mxu0 %v7120
      %v7323 = vpop.f32.mrb[0].mxu0
      %v7324 = vadd.f32 0.0, %v7323
      %v7325 = vpop.f32.mrb[0].mxu0
      %7326 = vmatprep.mubr.f32.mxu0 0.0
      %7327 = vmatmul.mubr.f32.gmra.mrb[0].mxu0 %v7123
      %v7328 = vpop.f32.mrb[0].mxu0
      %v7329 = vadd.f32 0.0, %v7328
      %v7330 = vpop.f32.mrb[0].mxu0
      %7331 = vmatprep.mubr.f32.mxu0 0.0
      %7332 = vmatmul.mubr.f32.gmra.mrb[0].mxu0 %v7126
      %v7333 = vpop.f32.mrb[0].mxu0
      %v7334 = vadd.f32 0.0, %v7333
      %v7335 = vpop.f32.mrb[0].mxu0
      %7336 = vmatprep.mubr.f32.mxu0 0.0
      %7337 = vmatmul.mubr.f32.gmra.mrb[0].mxu0 %v7129
      %v7338 = vpop.f32.mrb[0].mxu0
      %v7339 = vadd.f32 0.0, %v7338
      %v7340 = vpop.f32.mrb[0].mxu0
      %7341 = vmatprep.mubr.f32.mxu0 0.0
      %7342 = vmatmul.mubr.f32.gmra.mrb[0].mxu0 %v7132
      %v7343 = vpop.f32.mrb[0].mxu0
      %v7344 = vadd.f32 0.0, %v7343
      %v7345 = vpop.f32.mrb[0].mxu0
      %7346 = vmatprep.mubr.f32.mxu0 0.0
      %7347 = vmatmul.mubr.f32.gmra.mrb[0].mxu0 %v7135
      %v7348 = vpop.f32.mrb[0].mxu0
      %v7349 = vadd.f32 0.0, %v7348
      %v7350 = vpop.f32.mrb[0].mxu0
      %7351 = vmatprep.mubr.f32.mxu0 0.0
      %7352 = vmatmul.mubr.f32.gmra.mrb[0].mxu0 %v7138
      %v7353 = vpop.f32.mrb[0].mxu0
      %v7354 = vadd.f32 0.0, %v7353
      %v7355 = vpop.f32.mrb[0].mxu0
      %7356 = vmatprep.mubr.f32.mxu0 0.0
      %7357 = vmatmul.mubr.f32.gmra.mrb[0].mxu0 %v7141
      %v7358 = vpop.f32.mrb[0].mxu0
      %v7359 = vadd.f32 0.0, %v7358
      %v7360 = vpop.f32.mrb[0].mxu0
      %7361 = vmatprep.mubr.f32.mxu0 0.0
      %7362 = vmatmul.mubr.f32.gmra.mrb[0].mxu0 %v7144
      %v7363 = vpop.f32.mrb[0].mxu0
      %v7364 = vadd.f32 0.0, %v7363
      %v7365 = vpop.f32.mrb[0].mxu0
      %7366 = vmatprep.mubr.f32.mxu0 0.0
      %7367 = vmatmul.mubr.f32.gmra.mrb[0].mxu0 %v7147
      %v7368 = vpop.f32.mrb[0].mxu0
      %v7369 = vadd.f32 0.0, %v7368
      %v7370 = vpop.f32.mrb[0].mxu0
      %7371 = vmatprep.mubr.f32.mxu0 0.0
      %7372 = vmatmul.mubr.f32.gmra.mrb[0].mxu0 %v7150
      %v7373 = vpop.f32.mrb[0].mxu0
      %v7374 = vadd.f32 0.0, %v7373
      %v7375 = vpop.f32.mrb[0].mxu0
      %7376 = vdwg.mxu0
      %v7377 = vadd.f32 %v6990, %v7219
      %v7378 = vadd.f32 %v6991, %v7224
      %v7379 = vadd.f32 %v6992, %v7229
      %v7380 = vadd.f32 %v6993, %v7234
      %v7381 = vadd.f32 %v6994, %v7239
      %v7382 = vadd.f32 %v6995, %v7244
      %v7383 = vadd.f32 %v6996, %v7249
      %v7384 = vadd.f32 %v6997, %v7254
      %v7385 = vadd.f32 %v6998, %v7259
      %v7386 = vadd.f32 %v6999, %v7264
      %v7387 = vadd.f32 %v7000, %v7269
      %v7388 = vadd.f32 %v7001, %v7274
      %v7389 = vadd.f32 %v7002, %v7279
      %v7390 = vadd.f32 %v7003, %v7284
      %v7391 = vadd.f32 %v7004, %v7289
      %v7392 = vadd.f32 %v7005, %v7294
      %v7393 = vadd.f32 %v7006, %v7299
      %v7394 = vadd.f32 %v7007, %v7304
      %v7395 = vadd.f32 %v7008, %v7309
      %v7396 = vadd.f32 %v7009, %v7314
      %v7397 = vadd.f32 %v7010, %v7319
      %v7398 = vadd.f32 %v7011, %v7324
      %v7399 = vadd.f32 %v7012, %v7329
      %v7400 = vadd.f32 %v7013, %v7334
      %v7401 = vadd.f32 %v7014, %v7339
      %v7402 = vadd.f32 %v7015, %v7344
      %v7403 = vadd.f32 %v7016, %v7349
      %v7404 = vadd.f32 %v7017, %v7354
      %v7405 = vadd.f32 %v7018, %v7359
      %v7406 = vadd.f32 %v7019, %v7364
      %v7407 = vadd.f32 %v7020, %v7369
      %v7408 = vadd.f32 %v7021, %v7374
      %v7409 = vld [vmem:[%s6634 + $0x2] sm:$0xff]
      %v7410 = vld [vmem:[%s6634 + $0xa] sm:$0xff]
      %v7411 = vld [vmem:[%s6634 + $0x1a] sm:$0xff]
      %v7412 = vld [vmem:[%s6634 + $0x22] sm:$0xff]
      %v7413 = vld [vmem:[%s6634 + $0x32] sm:$0xff]
      %v7414 = vld [vmem:[%s6634 + $0x3a] sm:$0xff]
      %v7415 = vld [vmem:[%s6634 + $0x4a] sm:$0xff]
      %v7416 = vld [vmem:[%s6634 + $0x52] sm:$0xff]
      %v7417 = vld [vmem:[%s6634 + $0x62] sm:$0xff]
      %v7418 = vld [vmem:[%s6634 + $0x6a] sm:$0xff]
      %v7419 = vld [vmem:[%s6634 + $0x7a] sm:$0xff]
      %v7420 = vld [vmem:[%s6634 + $0x82] sm:$0xff]
      %v7421 = vld [vmem:[%s6634 + $0x92] sm:$0xff]
      %v7422 = vld [vmem:[%s6634 + $0x9a] sm:$0xff]
      %v7423 = vld [vmem:[%s6634 + $0xaa] sm:$0xff]
      %v7424 = vld [vmem:[%s6634 + $0xb2] sm:$0xff]
      %v7425 = vld [vmem:[%s6634 + $0xc2] sm:$0xff]
      %v7426 = vld [vmem:[%s6634 + $0xca] sm:$0xff]
      %v7427 = vld [vmem:[%s6634 + $0xda] sm:$0xff]
      %v7428 = vld [vmem:[%s6634 + $0xe2] sm:$0xff]
      %v7429 = vld [vmem:[%s6634 + $0xf2] sm:$0xff]
      %v7430 = vld [vmem:[%s6634 + $0xfa] sm:$0xff]
      %v7431 = vld [vmem:[%s6634 + $0x10a] sm:$0xff]
      %v7432 = vld [vmem:[%s6634 + $0x112] sm:$0xff]
      %v7433 = vld [vmem:[%s6634 + $0x122] sm:$0xff]
      %v7434 = vld [vmem:[%s6634 + $0x12a] sm:$0xff]
      %v7435 = vld [vmem:[%s6634 + $0x13a] sm:$0xff]
      %v7436 = vld [vmem:[%s6634 + $0x142] sm:$0xff]
      %v7437 = vld [vmem:[%s6634 + $0x152] sm:$0xff]
      %v7438 = vld [vmem:[%s6634 + $0x15a] sm:$0xff]
      %v7439 = vld [vmem:[%s6634 + $0x16a] sm:$0xff]
      %v7440 = vld [vmem:[%s6634 + $0x172] sm:$0xff]
      %s7441 = scalar_lea.vmem %s3, 64
      %v7442 = vld [vmem:[%s7441] sm:$0xff]
      %v7444 = vsel %vm3992, %v7409, 0
      %v7447 = vsel %vm3992, %v7410, 0
      %v7450 = vsel %vm3992, %v7411, 0
      %v7453 = vsel %vm3992, %v7412, 0
      %v7456 = vsel %vm3992, %v7413, 0
      %v7459 = vsel %vm3992, %v7414, 0
      %v7462 = vsel %vm3992, %v7415, 0
      %v7465 = vsel %vm3992, %v7416, 0
      %v7468 = vsel %vm3992, %v7417, 0
      %v7471 = vsel %vm3992, %v7418, 0
      %v7474 = vsel %vm3992, %v7419, 0
      %v7477 = vsel %vm3992, %v7420, 0
      %v7480 = vsel %vm3992, %v7421, 0
      %v7483 = vsel %vm3992, %v7422, 0
      %v7486 = vsel %vm3992, %v7423, 0
      %v7489 = vsel %vm3992, %v7424, 0
      %v7492 = vsel %vm3992, %v7425, 0
      %v7495 = vsel %vm3992, %v7426, 0
      %v7498 = vsel %vm3992, %v7427, 0
      %v7501 = vsel %vm3992, %v7428, 0
      %v7504 = vsel %vm3992, %v7429, 0
      %v7507 = vsel %vm3992, %v7430, 0
      %v7510 = vsel %vm3992, %v7431, 0
      %v7513 = vsel %vm3992, %v7432, 0
      %v7516 = vsel %vm3992, %v7433, 0
      %v7519 = vsel %vm3992, %v7434, 0
      %v7522 = vsel %vm3992, %v7435, 0
      %v7525 = vsel %vm3992, %v7436, 0
      %v7528 = vsel %vm3992, %v7437, 0
      %v7531 = vsel %vm3992, %v7438, 0
      %v7534 = vsel %vm3992, %v7439, 0
      %v7537 = vsel %vm3992, %v7440, 0
      %7539 = vmatprep.subr.mxu0 0.0
      %7540 = vmatpush1.msra.mxu0 %v7442
      %7541 = vmatprep.subr.mxu0 0.0
      %7542 = vmatpush1.msra.mxu0 0.0
      %7543 = vmatprep.subr.mxu0 0.0
      %7544 = vmatpush1.msra.mxu0 0.0
      %7545 = vmatprep.subr.mxu0 0.0
      %7546 = vmatpush1.msra.mxu0 0.0
      %7547 = vmatprep.subr.mxu0 0.0
      %7548 = vmatpush1.msra.mxu0 0.0
      %7549 = vmatprep.subr.mxu0 0.0
      %7550 = vmatpush1.msra.mxu0 0.0
      %7551 = vmatprep.subr.mxu0 0.0
      %7552 = vmatpush1.msra.mxu0 0.0
      %7553 = vmatprep.subr.mxu0 0.0
      %7554 = vmatpush1.msra.mxu0 0.0
      %7555 = vmatprep.subr.mxu0 0.0
      %7556 = vmatpush1.msra.mxu0 0.0
      %7557 = vmatprep.subr.mxu0 0.0
      %7558 = vmatpush1.msra.mxu0 0.0
      %7559 = vmatprep.subr.mxu0 0.0
      %7560 = vmatpush1.msra.mxu0 0.0
      %7561 = vmatprep.subr.mxu0 0.0
      %7562 = vmatpush1.msra.mxu0 0.0
      %7563 = vmatprep.subr.mxu0 0.0
      %7564 = vmatpush1.msra.mxu0 0.0
      %7565 = vmatprep.subr.mxu0 0.0
      %7566 = vmatpush1.msra.mxu0 0.0
      %7567 = vmatprep.subr.mxu0 0.0
      %7568 = vmatpush1.msra.mxu0 0.0
      %7569 = vmatprep.subr.mxu0 0.0
      %7570 = vmatpush1.msra.mxu0 0.0
      %7571 = vmatprep.subr.mxu0 0.0
      %7572 = vmatpush1.msra.mxu0 0.0
      %7573 = vmatprep.subr.mxu0 0.0
      %7574 = vmatpush1.msra.mxu0 0.0
      %7575 = vmatprep.subr.mxu0 0.0
      %7576 = vmatpush1.msra.mxu0 0.0
      %7577 = vmatprep.subr.mxu0 0.0
      %7578 = vmatpush1.msra.mxu0 0.0
      %7579 = vmatprep.subr.mxu0 0.0
      %7580 = vmatpush1.msra.mxu0 0.0
      %7581 = vmatprep.subr.mxu0 0.0
      %7582 = vmatpush1.msra.mxu0 0.0
      %7583 = vmatprep.subr.mxu0 0.0
      %7584 = vmatpush1.msra.mxu0 0.0
      %7585 = vmatprep.subr.mxu0 0.0
      %7586 = vmatpush1.msra.mxu0 0.0
      %7587 = vmatprep.subr.mxu0 0.0
      %7588 = vmatpush1.msra.mxu0 0.0
      %7589 = vmatprep.subr.mxu0 0.0
      %7590 = vmatpush1.msra.mxu0 0.0
      %7591 = vmatprep.subr.mxu0 0.0
      %7592 = vmatpush1.msra.mxu0 0.0
      %7593 = vmatprep.subr.mxu0 0.0
      %7594 = vmatpush1.msra.mxu0 0.0
      %7595 = vmatprep.subr.mxu0 0.0
      %7596 = vmatpush1.msra.mxu0 0.0
      %7597 = vmatprep.subr.mxu0 0.0
      %7598 = vmatpush1.msra.mxu0 0.0
      %7599 = vmatprep.subr.mxu0 0.0
      %7600 = vmatpush1.msra.mxu0 0.0
      %7601 = vmatprep.subr.mxu0 0.0
      %7602 = vmatpush1.msra.mxu0 0.0
      %7603 = vmatprep.mubr.f32.mxu0 0.0
      %7604 = vmatmul.mubr.f32.gmra.mrb[0].mxu0 %v7444
      %v7605 = vpop.f32.mrb[0].mxu0
      %v7606 = vadd.f32 0.0, %v7605
      %v7607 = vpop.f32.mrb[0].mxu0
      %7608 = vmatprep.mubr.f32.mxu0 0.0
      %7609 = vmatmul.mubr.f32.gmra.mrb[0].mxu0 %v7447
      %v7610 = vpop.f32.mrb[0].mxu0
      %v7611 = vadd.f32 0.0, %v7610
      %v7612 = vpop.f32.mrb[0].mxu0
      %7613 = vmatprep.mubr.f32.mxu0 0.0
      %7614 = vmatmul.mubr.f32.gmra.mrb[0].mxu0 %v7450
      %v7615 = vpop.f32.mrb[0].mxu0
      %v7616 = vadd.f32 0.0, %v7615
      %v7617 = vpop.f32.mrb[0].mxu0
      %7618 = vmatprep.mubr.f32.mxu0 0.0
      %7619 = vmatmul.mubr.f32.gmra.mrb[0].mxu0 %v7453
      %v7620 = vpop.f32.mrb[0].mxu0
      %v7621 = vadd.f32 0.0, %v7620
      %v7622 = vpop.f32.mrb[0].mxu0
      %7623 = vmatprep.mubr.f32.mxu0 0.0
      %7624 = vmatmul.mubr.f32.gmra.mrb[0].mxu0 %v7456
      %v7625 = vpop.f32.mrb[0].mxu0
      %v7626 = vadd.f32 0.0, %v7625
      %v7627 = vpop.f32.mrb[0].mxu0
      %7628 = vmatprep.mubr.f32.mxu0 0.0
      %7629 = vmatmul.mubr.f32.gmra.mrb[0].mxu0 %v7459
      %v7630 = vpop.f32.mrb[0].mxu0
      %v7631 = vadd.f32 0.0, %v7630
      %v7632 = vpop.f32.mrb[0].mxu0
      %7633 = vmatprep.mubr.f32.mxu0 0.0
      %7634 = vmatmul.mubr.f32.gmra.mrb[0].mxu0 %v7462
      %v7635 = vpop.f32.mrb[0].mxu0
      %v7636 = vadd.f32 0.0, %v7635
      %v7637 = vpop.f32.mrb[0].mxu0
      %7638 = vmatprep.mubr.f32.mxu0 0.0
      %7639 = vmatmul.mubr.f32.gmra.mrb[0].mxu0 %v7465
      %v7640 = vpop.f32.mrb[0].mxu0
      %v7641 = vadd.f32 0.0, %v7640
      %v7642 = vpop.f32.mrb[0].mxu0
      %7643 = vmatprep.mubr.f32.mxu0 0.0
      %7644 = vmatmul.mubr.f32.gmra.mrb[0].mxu0 %v7468
      %v7645 = vpop.f32.mrb[0].mxu0
      %v7646 = vadd.f32 0.0, %v7645
      %v7647 = vpop.f32.mrb[0].mxu0
      %7648 = vmatprep.mubr.f32.mxu0 0.0
      %7649 = vmatmul.mubr.f32.gmra.mrb[0].mxu0 %v7471
      %v7650 = vpop.f32.mrb[0].mxu0
      %v7651 = vadd.f32 0.0, %v7650
      %v7652 = vpop.f32.mrb[0].mxu0
      %7653 = vmatprep.mubr.f32.mxu0 0.0
      %7654 = vmatmul.mubr.f32.gmra.mrb[0].mxu0 %v7474
      %v7655 = vpop.f32.mrb[0].mxu0
      %v7656 = vadd.f32 0.0, %v7655
      %v7657 = vpop.f32.mrb[0].mxu0
      %7658 = vmatprep.mubr.f32.mxu0 0.0
      %7659 = vmatmul.mubr.f32.gmra.mrb[0].mxu0 %v7477
      %v7660 = vpop.f32.mrb[0].mxu0
      %v7661 = vadd.f32 0.0, %v7660
      %v7662 = vpop.f32.mrb[0].mxu0
      %7663 = vmatprep.mubr.f32.mxu0 0.0
      %7664 = vmatmul.mubr.f32.gmra.mrb[0].mxu0 %v7480
      %v7665 = vpop.f32.mrb[0].mxu0
      %v7666 = vadd.f32 0.0, %v7665
      %v7667 = vpop.f32.mrb[0].mxu0
      %7668 = vmatprep.mubr.f32.mxu0 0.0
      %7669 = vmatmul.mubr.f32.gmra.mrb[0].mxu0 %v7483
      %v7670 = vpop.f32.mrb[0].mxu0
      %v7671 = vadd.f32 0.0, %v7670
      %v7672 = vpop.f32.mrb[0].mxu0
      %7673 = vmatprep.mubr.f32.mxu0 0.0
      %7674 = vmatmul.mubr.f32.gmra.mrb[0].mxu0 %v7486
      %v7675 = vpop.f32.mrb[0].mxu0
      %v7676 = vadd.f32 0.0, %v7675
      %v7677 = vpop.f32.mrb[0].mxu0
      %7678 = vmatprep.mubr.f32.mxu0 0.0
      %7679 = vmatmul.mubr.f32.gmra.mrb[0].mxu0 %v7489
      %v7680 = vpop.f32.mrb[0].mxu0
      %v7681 = vadd.f32 0.0, %v7680
      %v7682 = vpop.f32.mrb[0].mxu0
      %7683 = vmatprep.mubr.f32.mxu0 0.0
      %7684 = vmatmul.mubr.f32.gmra.mrb[0].mxu0 %v7492
      %v7685 = vpop.f32.mrb[0].mxu0
      %v7686 = vadd.f32 0.0, %v7685
      %v7687 = vpop.f32.mrb[0].mxu0
      %7688 = vmatprep.mubr.f32.mxu0 0.0
      %7689 = vmatmul.mubr.f32.gmra.mrb[0].mxu0 %v7495
      %v7690 = vpop.f32.mrb[0].mxu0
      %v7691 = vadd.f32 0.0, %v7690
      %v7692 = vpop.f32.mrb[0].mxu0
      %7693 = vmatprep.mubr.f32.mxu0 0.0
      %7694 = vmatmul.mubr.f32.gmra.mrb[0].mxu0 %v7498
      %v7695 = vpop.f32.mrb[0].mxu0
      %v7696 = vadd.f32 0.0, %v7695
      %v7697 = vpop.f32.mrb[0].mxu0
      %7698 = vmatprep.mubr.f32.mxu0 0.0
      %7699 = vmatmul.mubr.f32.gmra.mrb[0].mxu0 %v7501
      %v7700 = vpop.f32.mrb[0].mxu0
      %v7701 = vadd.f32 0.0, %v7700
      %v7702 = vpop.f32.mrb[0].mxu0
      %7703 = vmatprep.mubr.f32.mxu0 0.0
      %7704 = vmatmul.mubr.f32.gmra.mrb[0].mxu0 %v7504
      %v7705 = vpop.f32.mrb[0].mxu0
      %v7706 = vadd.f32 0.0, %v7705
      %v7707 = vpop.f32.mrb[0].mxu0
      %7708 = vmatprep.mubr.f32.mxu0 0.0
      %7709 = vmatmul.mubr.f32.gmra.mrb[0].mxu0 %v7507
      %v7710 = vpop.f32.mrb[0].mxu0
      %v7711 = vadd.f32 0.0, %v7710
      %v7712 = vpop.f32.mrb[0].mxu0
      %7713 = vmatprep.mubr.f32.mxu0 0.0
      %7714 = vmatmul.mubr.f32.gmra.mrb[0].mxu0 %v7510
      %v7715 = vpop.f32.mrb[0].mxu0
      %v7716 = vadd.f32 0.0, %v7715
      %v7717 = vpop.f32.mrb[0].mxu0
      %7718 = vmatprep.mubr.f32.mxu0 0.0
      %7719 = vmatmul.mubr.f32.gmra.mrb[0].mxu0 %v7513
      %v7720 = vpop.f32.mrb[0].mxu0
      %v7721 = vadd.f32 0.0, %v7720
      %v7722 = vpop.f32.mrb[0].mxu0
      %7723 = vmatprep.mubr.f32.mxu0 0.0
      %7724 = vmatmul.mubr.f32.gmra.mrb[0].mxu0 %v7516
      %v7725 = vpop.f32.mrb[0].mxu0
      %v7726 = vadd.f32 0.0, %v7725
      %v7727 = vpop.f32.mrb[0].mxu0
      %7728 = vmatprep.mubr.f32.mxu0 0.0
      %7729 = vmatmul.mubr.f32.gmra.mrb[0].mxu0 %v7519
      %v7730 = vpop.f32.mrb[0].mxu0
      %v7731 = vadd.f32 0.0, %v7730
      %v7732 = vpop.f32.mrb[0].mxu0
      %7733 = vmatprep.mubr.f32.mxu0 0.0
      %7734 = vmatmul.mubr.f32.gmra.mrb[0].mxu0 %v7522
      %v7735 = vpop.f32.mrb[0].mxu0
      %v7736 = vadd.f32 0.0, %v7735
      %v7737 = vpop.f32.mrb[0].mxu0
      %7738 = vmatprep.mubr.f32.mxu0 0.0
      %7739 = vmatmul.mubr.f32.gmra.mrb[0].mxu0 %v7525
      %v7740 = vpop.f32.mrb[0].mxu0
      %v7741 = vadd.f32 0.0, %v7740
      %v7742 = vpop.f32.mrb[0].mxu0
      %7743 = vmatprep.mubr.f32.mxu0 0.0
      %7744 = vmatmul.mubr.f32.gmra.mrb[0].mxu0 %v7528
      %v7745 = vpop.f32.mrb[0].mxu0
      %v7746 = vadd.f32 0.0, %v7745
      %v7747 = vpop.f32.mrb[0].mxu0
      %7748 = vmatprep.mubr.f32.mxu0 0.0
      %7749 = vmatmul.mubr.f32.gmra.mrb[0].mxu0 %v7531
      %v7750 = vpop.f32.mrb[0].mxu0
      %v7751 = vadd.f32 0.0, %v7750
      %v7752 = vpop.f32.mrb[0].mxu0
      %7753 = vmatprep.mubr.f32.mxu0 0.0
      %7754 = vmatmul.mubr.f32.gmra.mrb[0].mxu0 %v7534
      %v7755 = vpop.f32.mrb[0].mxu0
      %v7756 = vadd.f32 0.0, %v7755
      %v7757 = vpop.f32.mrb[0].mxu0
      %7758 = vmatprep.mubr.f32.mxu0 0.0
      %7759 = vmatmul.mubr.f32.gmra.mrb[0].mxu0 %v7537
      %v7760 = vpop.f32.mrb[0].mxu0
      %v7761 = vadd.f32 0.0, %v7760
      %v7762 = vpop.f32.mrb[0].mxu0
      %7763 = vdwg.mxu0
      %v7764 = vadd.f32 %v7377, %v7606
      %v7765 = vadd.f32 %v7378, %v7611
      %v7766 = vadd.f32 %v7379, %v7616
      %v7767 = vadd.f32 %v7380, %v7621
      %v7768 = vadd.f32 %v7381, %v7626
      %v7769 = vadd.f32 %v7382, %v7631
      %v7770 = vadd.f32 %v7383, %v7636
      %v7771 = vadd.f32 %v7384, %v7641
      %v7772 = vadd.f32 %v7385, %v7646
      %v7773 = vadd.f32 %v7386, %v7651
      %v7774 = vadd.f32 %v7387, %v7656
      %v7775 = vadd.f32 %v7388, %v7661
      %v7776 = vadd.f32 %v7389, %v7666
      %v7777 = vadd.f32 %v7390, %v7671
      %v7778 = vadd.f32 %v7391, %v7676
      %v7779 = vadd.f32 %v7392, %v7681
      %v7780 = vadd.f32 %v7393, %v7686
      %v7781 = vadd.f32 %v7394, %v7691
      %v7782 = vadd.f32 %v7395, %v7696
      %v7783 = vadd.f32 %v7396, %v7701
      %v7784 = vadd.f32 %v7397, %v7706
      %v7785 = vadd.f32 %v7398, %v7711
      %v7786 = vadd.f32 %v7399, %v7716
      %v7787 = vadd.f32 %v7400, %v7721
      %v7788 = vadd.f32 %v7401, %v7726
      %v7789 = vadd.f32 %v7402, %v7731
      %v7790 = vadd.f32 %v7403, %v7736
      %v7791 = vadd.f32 %v7404, %v7741
      %v7792 = vadd.f32 %v7405, %v7746
      %v7793 = vadd.f32 %v7406, %v7751
      %v7794 = vadd.f32 %v7407, %v7756
      %v7795 = vadd.f32 %v7408, %v7761
      %vm7796 = vcmp.ge.f32.partialorder %v7764, 0.0
      %vm7797 = vcmp.ge.f32.partialorder %v7765, 0.0
      %vm7798 = vcmp.ge.f32.partialorder %v7766, 0.0
      %vm7799 = vcmp.ge.f32.partialorder %v7767, 0.0
      %vm7800 = vcmp.ge.f32.partialorder %v7768, 0.0
      %vm7801 = vcmp.ge.f32.partialorder %v7769, 0.0
      %vm7802 = vcmp.ge.f32.partialorder %v7770, 0.0
      %vm7803 = vcmp.ge.f32.partialorder %v7771, 0.0
      %vm7804 = vcmp.ge.f32.partialorder %v7772, 0.0
      %vm7805 = vcmp.ge.f32.partialorder %v7773, 0.0
      %vm7806 = vcmp.ge.f32.partialorder %v7774, 0.0
      %vm7807 = vcmp.ge.f32.partialorder %v7775, 0.0
      %vm7808 = vcmp.ge.f32.partialorder %v7776, 0.0
      %vm7809 = vcmp.ge.f32.partialorder %v7777, 0.0
      %vm7810 = vcmp.ge.f32.partialorder %v7778, 0.0
      %vm7811 = vcmp.ge.f32.partialorder %v7779, 0.0
      %vm7812 = vcmp.ge.f32.partialorder %v7780, 0.0
      %vm7813 = vcmp.ge.f32.partialorder %v7781, 0.0
      %vm7814 = vcmp.ge.f32.partialorder %v7782, 0.0
      %vm7815 = vcmp.ge.f32.partialorder %v7783, 0.0
      %vm7816 = vcmp.ge.f32.partialorder %v7784, 0.0
      %vm7817 = vcmp.ge.f32.partialorder %v7785, 0.0
      %vm7818 = vcmp.ge.f32.partialorder %v7786, 0.0
      %vm7819 = vcmp.ge.f32.partialorder %v7787, 0.0
      %vm7820 = vcmp.ge.f32.partialorder %v7788, 0.0
      %vm7821 = vcmp.ge.f32.partialorder %v7789, 0.0
      %vm7822 = vcmp.ge.f32.partialorder %v7790, 0.0
      %vm7823 = vcmp.ge.f32.partialorder %v7791, 0.0
      %vm7824 = vcmp.ge.f32.partialorder %v7792, 0.0
      %vm7825 = vcmp.ge.f32.partialorder %v7793, 0.0
      %vm7826 = vcmp.ge.f32.partialorder %v7794, 0.0
      %vm7827 = vcmp.ge.f32.partialorder %v7795, 0.0
      %v7828 = vmul.f32 %v7764, 0.2
      %v7829 = vmul.f32 %v7765, 0.2
      %v7830 = vmul.f32 %v7766, 0.2
      %v7831 = vmul.f32 %v7767, 0.2
      %v7832 = vmul.f32 %v7768, 0.2
      %v7833 = vmul.f32 %v7769, 0.2
      %v7834 = vmul.f32 %v7770, 0.2
      %v7835 = vmul.f32 %v7771, 0.2
      %v7836 = vmul.f32 %v7772, 0.2
      %v7837 = vmul.f32 %v7773, 0.2
      %v7838 = vmul.f32 %v7774, 0.2
      %v7839 = vmul.f32 %v7775, 0.2
      %v7840 = vmul.f32 %v7776, 0.2
      %v7841 = vmul.f32 %v7777, 0.2
      %v7842 = vmul.f32 %v7778, 0.2
      %v7843 = vmul.f32 %v7779, 0.2
      %v7844 = vmul.f32 %v7780, 0.2
      %v7845 = vmul.f32 %v7781, 0.2
      %v7846 = vmul.f32 %v7782, 0.2
      %v7847 = vmul.f32 %v7783, 0.2
      %v7848 = vmul.f32 %v7784, 0.2
      %v7849 = vmul.f32 %v7785, 0.2
      %v7850 = vmul.f32 %v7786, 0.2
      %v7851 = vmul.f32 %v7787, 0.2
      %v7852 = vmul.f32 %v7788, 0.2
      %v7853 = vmul.f32 %v7789, 0.2
      %v7854 = vmul.f32 %v7790, 0.2
      %v7855 = vmul.f32 %v7791, 0.2
      %v7856 = vmul.f32 %v7792, 0.2
      %v7857 = vmul.f32 %v7793, 0.2
      %v7858 = vmul.f32 %v7794, 0.2
      %v7859 = vmul.f32 %v7795, 0.2
      %v7860 = vsel %vm7796, %v7764, %v7828
      %v7861 = vsel %vm7797, %v7765, %v7829
      %v7862 = vsel %vm7798, %v7766, %v7830
      %v7863 = vsel %vm7799, %v7767, %v7831
      %v7864 = vsel %vm7800, %v7768, %v7832
      %v7865 = vsel %vm7801, %v7769, %v7833
      %v7866 = vsel %vm7802, %v7770, %v7834
      %v7867 = vsel %vm7803, %v7771, %v7835
      %v7868 = vsel %vm7804, %v7772, %v7836
      %v7869 = vsel %vm7805, %v7773, %v7837
      %v7870 = vsel %vm7806, %v7774, %v7838
      %v7871 = vsel %vm7807, %v7775, %v7839
      %v7872 = vsel %vm7808, %v7776, %v7840
      %v7873 = vsel %vm7809, %v7777, %v7841
      %v7874 = vsel %vm7810, %v7778, %v7842
      %v7875 = vsel %vm7811, %v7779, %v7843
      %v7876 = vsel %vm7812, %v7780, %v7844
      %v7877 = vsel %vm7813, %v7781, %v7845
      %v7878 = vsel %vm7814, %v7782, %v7846
      %v7879 = vsel %vm7815, %v7783, %v7847
      %v7880 = vsel %vm7816, %v7784, %v7848
      %v7881 = vsel %vm7817, %v7785, %v7849
      %v7882 = vsel %vm7818, %v7786, %v7850
      %v7883 = vsel %vm7819, %v7787, %v7851
      %v7884 = vsel %vm7820, %v7788, %v7852
      %v7885 = vsel %vm7821, %v7789, %v7853
      %v7886 = vsel %vm7822, %v7790, %v7854
      %v7887 = vsel %vm7823, %v7791, %v7855
      %v7888 = vsel %vm7824, %v7792, %v7856
      %v7889 = vsel %vm7825, %v7793, %v7857
      %v7890 = vsel %vm7826, %v7794, %v7858
      %v7891 = vsel %vm7827, %v7795, %v7859
      %v7892 = vmul.f32 %v7860, %v7860
      %v7893 = vmul.f32 %v7861, %v7861
      %v7894 = vmul.f32 %v7862, %v7862
      %v7895 = vmul.f32 %v7863, %v7863
      %v7896 = vmul.f32 %v7864, %v7864
      %v7897 = vmul.f32 %v7865, %v7865
      %v7898 = vmul.f32 %v7866, %v7866
      %v7899 = vmul.f32 %v7867, %v7867
      %v7900 = vmul.f32 %v7868, %v7868
      %v7901 = vmul.f32 %v7869, %v7869
      %v7902 = vmul.f32 %v7870, %v7870
      %v7903 = vmul.f32 %v7871, %v7871
      %v7904 = vmul.f32 %v7872, %v7872
      %v7905 = vmul.f32 %v7873, %v7873
      %v7906 = vmul.f32 %v7874, %v7874
      %v7907 = vmul.f32 %v7875, %v7875
      %v7908 = vmul.f32 %v7876, %v7876
      %v7909 = vmul.f32 %v7877, %v7877
      %v7910 = vmul.f32 %v7878, %v7878
      %v7911 = vmul.f32 %v7879, %v7879
      %v7912 = vmul.f32 %v7880, %v7880
      %v7913 = vmul.f32 %v7881, %v7881
      %v7914 = vmul.f32 %v7882, %v7882
      %v7915 = vmul.f32 %v7883, %v7883
      %v7916 = vmul.f32 %v7884, %v7884
      %v7917 = vmul.f32 %v7885, %v7885
      %v7918 = vmul.f32 %v7886, %v7886
      %v7919 = vmul.f32 %v7887, %v7887
      %v7920 = vmul.f32 %v7888, %v7888
      %v7921 = vmul.f32 %v7889, %v7889
      %v7922 = vmul.f32 %v7890, %v7890
      %v7923 = vmul.f32 %v7891, %v7891
      %v7924 = vsel %vm3992, %v7892, 0.0
      %7925 = vadd.xlane.f32.xlu0 %v7924
      %v7926 = vpop.xlane.xlu0 %7925
      %v7927 = vsel %vm3992, %v7893, 0.0
      %7928 = vadd.xlane.f32.xlu0 %v7927
      %v7929 = vpop.xlane.xlu0 %7928
      %v7930 = vsel %vm3992, %v7894, 0.0
      %7931 = vadd.xlane.f32.xlu0 %v7930
      %v7932 = vpop.xlane.xlu0 %7931
      %v7933 = vsel %vm3992, %v7895, 0.0
      %7934 = vadd.xlane.f32.xlu0 %v7933
      %v7935 = vpop.xlane.xlu0 %7934
      %v7936 = vsel %vm3992, %v7896, 0.0
      %7937 = vadd.xlane.f32.xlu0 %v7936
      %v7938 = vpop.xlane.xlu0 %7937
      %v7939 = vsel %vm3992, %v7897, 0.0
      %7940 = vadd.xlane.f32.xlu0 %v7939
      %v7941 = vpop.xlane.xlu0 %7940
      %v7942 = vsel %vm3992, %v7898, 0.0
      %7943 = vadd.xlane.f32.xlu0 %v7942
      %v7944 = vpop.xlane.xlu0 %7943
      %v7945 = vsel %vm3992, %v7899, 0.0
      %7946 = vadd.xlane.f32.xlu0 %v7945
      %v7947 = vpop.xlane.xlu0 %7946
      %v7948 = vsel %vm3992, %v7900, 0.0
      %7949 = vadd.xlane.f32.xlu0 %v7948
      %v7950 = vpop.xlane.xlu0 %7949
      %v7951 = vsel %vm3992, %v7901, 0.0
      %7952 = vadd.xlane.f32.xlu0 %v7951
      %v7953 = vpop.xlane.xlu0 %7952
      %v7954 = vsel %vm3992, %v7902, 0.0
      %7955 = vadd.xlane.f32.xlu0 %v7954
      %v7956 = vpop.xlane.xlu0 %7955
      %v7957 = vsel %vm3992, %v7903, 0.0
      %7958 = vadd.xlane.f32.xlu0 %v7957
      %v7959 = vpop.xlane.xlu0 %7958
      %v7960 = vsel %vm3992, %v7904, 0.0
      %7961 = vadd.xlane.f32.xlu0 %v7960
      %v7962 = vpop.xlane.xlu0 %7961
      %v7963 = vsel %vm3992, %v7905, 0.0
      %7964 = vadd.xlane.f32.xlu0 %v7963
      %v7965 = vpop.xlane.xlu0 %7964
      %v7966 = vsel %vm3992, %v7906, 0.0
      %7967 = vadd.xlane.f32.xlu0 %v7966
      %v7968 = vpop.xlane.xlu0 %7967
      %v7969 = vsel %vm3992, %v7907, 0.0
      %7970 = vadd.xlane.f32.xlu0 %v7969
      %v7971 = vpop.xlane.xlu0 %7970
      %v7972 = vsel %vm3992, %v7908, 0.0
      %7973 = vadd.xlane.f32.xlu0 %v7972
      %v7974 = vpop.xlane.xlu0 %7973
      %v7975 = vsel %vm3992, %v7909, 0.0
      %7976 = vadd.xlane.f32.xlu0 %v7975
      %v7977 = vpop.xlane.xlu0 %7976
      %v7978 = vsel %vm3992, %v7910, 0.0
      %7979 = vadd.xlane.f32.xlu0 %v7978
      %v7980 = vpop.xlane.xlu0 %7979
      %v7981 = vsel %vm3992, %v7911, 0.0
      %7982 = vadd.xlane.f32.xlu0 %v7981
      %v7983 = vpop.xlane.xlu0 %7982
      %v7984 = vsel %vm3992, %v7912, 0.0
      %7985 = vadd.xlane.f32.xlu0 %v7984
      %v7986 = vpop.xlane.xlu0 %7985
      %v7987 = vsel %vm3992, %v7913, 0.0
      %7988 = vadd.xlane.f32.xlu0 %v7987
      %v7989 = vpop.xlane.xlu0 %7988
      %v7990 = vsel %vm3992, %v7914, 0.0
      %7991 = vadd.xlane.f32.xlu0 %v7990
      %v7992 = vpop.xlane.xlu0 %7991
      %v7993 = vsel %vm3992, %v7915, 0.0
      %7994 = vadd.xlane.f32.xlu0 %v7993
      %v7995 = vpop.xlane.xlu0 %7994
      %v7996 = vsel %vm3992, %v7916, 0.0
      %7997 = vadd.xlane.f32.xlu0 %v7996
      %v7998 = vpop.xlane.xlu0 %7997
      %v7999 = vsel %vm3992, %v7917, 0.0
      %8000 = vadd.xlane.f32.xlu0 %v7999
      %v8001 = vpop.xlane.xlu0 %8000
      %v8002 = vsel %vm3992, %v7918, 0.0
      %8003 = vadd.xlane.f32.xlu0 %v8002
      %v8004 = vpop.xlane.xlu0 %8003
      %v8005 = vsel %vm3992, %v7919, 0.0
      %8006 = vadd.xlane.f32.xlu0 %v8005
      %v8007 = vpop.xlane.xlu0 %8006
      %v8008 = vsel %vm3992, %v7920, 0.0
      %8009 = vadd.xlane.f32.xlu0 %v8008
      %v8010 = vpop.xlane.xlu0 %8009
      %v8011 = vsel %vm3992, %v7921, 0.0
      %8012 = vadd.xlane.f32.xlu0 %v8011
      %v8013 = vpop.xlane.xlu0 %8012
      %v8014 = vsel %vm3992, %v7922, 0.0
      %8015 = vadd.xlane.f32.xlu0 %v8014
      %v8016 = vpop.xlane.xlu0 %8015
      %v8017 = vsel %vm3992, %v7923, 0.0
      %8018 = vadd.xlane.f32.xlu0 %v8017
      %v8019 = vpop.xlane.xlu0 %8018
      %v8020 = vmul.f32 %v7926, %v4089
      %v8021 = vmul.f32 %v7929, %v4089
      %v8022 = vmul.f32 %v7932, %v4089
      %v8023 = vmul.f32 %v7935, %v4089
      %v8024 = vmul.f32 %v7938, %v4089
      %v8025 = vmul.f32 %v7941, %v4089
      %v8026 = vmul.f32 %v7944, %v4089
      %v8027 = vmul.f32 %v7947, %v4089
      %v8028 = vmul.f32 %v7950, %v4089
      %v8029 = vmul.f32 %v7953, %v4089
      %v8030 = vmul.f32 %v7956, %v4089
      %v8031 = vmul.f32 %v7959, %v4089
      %v8032 = vmul.f32 %v7962, %v4089
      %v8033 = vmul.f32 %v7965, %v4089
      %v8034 = vmul.f32 %v7968, %v4089
      %v8035 = vmul.f32 %v7971, %v4089
      %v8036 = vmul.f32 %v7974, %v4089
      %v8037 = vmul.f32 %v7977, %v4089
      %v8038 = vmul.f32 %v7980, %v4089
      %v8039 = vmul.f32 %v7983, %v4089
      %v8040 = vmul.f32 %v7986, %v4089
      %v8041 = vmul.f32 %v7989, %v4089
      %v8042 = vmul.f32 %v7992, %v4089
      %v8043 = vmul.f32 %v7995, %v4089
      %v8044 = vmul.f32 %v7998, %v4089
      %v8045 = vmul.f32 %v8001, %v4089
      %v8046 = vmul.f32 %v8004, %v4089
      %v8047 = vmul.f32 %v8007, %v4089
      %v8048 = vmul.f32 %v8010, %v4089
      %v8049 = vmul.f32 %v8013, %v4089
      %v8050 = vmul.f32 %v8016, %v4089
      %v8051 = vmul.f32 %v8019, %v4089
      %v8052 = vadd.f32 %v8020, 1e-08
      %v8053 = vadd.f32 %v8021, 1e-08
      %v8054 = vadd.f32 %v8022, 1e-08
      %v8055 = vadd.f32 %v8023, 1e-08
      %v8056 = vadd.f32 %v8024, 1e-08
      %v8057 = vadd.f32 %v8025, 1e-08
      %v8058 = vadd.f32 %v8026, 1e-08
      %v8059 = vadd.f32 %v8027, 1e-08
      %v8060 = vadd.f32 %v8028, 1e-08
      %v8061 = vadd.f32 %v8029, 1e-08
      %v8062 = vadd.f32 %v8030, 1e-08
      %v8063 = vadd.f32 %v8031, 1e-08
      %v8064 = vadd.f32 %v8032, 1e-08
      %v8065 = vadd.f32 %v8033, 1e-08
      %v8066 = vadd.f32 %v8034, 1e-08
      %v8067 = vadd.f32 %v8035, 1e-08
      %v8068 = vadd.f32 %v8036, 1e-08
      %v8069 = vadd.f32 %v8037, 1e-08
      %v8070 = vadd.f32 %v8038, 1e-08
      %v8071 = vadd.f32 %v8039, 1e-08
      %v8072 = vadd.f32 %v8040, 1e-08
      %v8073 = vadd.f32 %v8041, 1e-08
      %v8074 = vadd.f32 %v8042, 1e-08
      %v8075 = vadd.f32 %v8043, 1e-08
      %v8076 = vadd.f32 %v8044, 1e-08
      %v8077 = vadd.f32 %v8045, 1e-08
      %v8078 = vadd.f32 %v8046, 1e-08
      %v8079 = vadd.f32 %v8047, 1e-08
      %v8080 = vadd.f32 %v8048, 1e-08
      %v8081 = vadd.f32 %v8049, 1e-08
      %v8082 = vadd.f32 %v8050, 1e-08
      %v8083 = vadd.f32 %v8051, 1e-08
      %v8084 = vrsqrt.pop %v8052
      %v8085 = vrsqrt.pop %v8053
      %v8086 = vrsqrt.pop %v8054
      %v8087 = vrsqrt.pop %v8055
      %v8088 = vrsqrt.pop %v8056
      %v8089 = vrsqrt.pop %v8057
      %v8090 = vrsqrt.pop %v8058
      %v8091 = vrsqrt.pop %v8059
      %v8092 = vrsqrt.pop %v8060
      %v8093 = vrsqrt.pop %v8061
      %v8094 = vrsqrt.pop %v8062
      %v8095 = vrsqrt.pop %v8063
      %v8096 = vrsqrt.pop %v8064
      %v8097 = vrsqrt.pop %v8065
      %v8098 = vrsqrt.pop %v8066
      %v8099 = vrsqrt.pop %v8067
      %v8100 = vrsqrt.pop %v8068
      %v8101 = vrsqrt.pop %v8069
      %v8102 = vrsqrt.pop %v8070
      %v8103 = vrsqrt.pop %v8071
      %v8104 = vrsqrt.pop %v8072
      %v8105 = vrsqrt.pop %v8073
      %v8106 = vrsqrt.pop %v8074
      %v8107 = vrsqrt.pop %v8075
      %v8108 = vrsqrt.pop %v8076
      %v8109 = vrsqrt.pop %v8077
      %v8110 = vrsqrt.pop %v8078
      %v8111 = vrsqrt.pop %v8079
      %v8112 = vrsqrt.pop %v8080
      %v8113 = vrsqrt.pop %v8081
      %v8114 = vrsqrt.pop %v8082
      %v8115 = vrsqrt.pop %v8083
      %v8116 = vmul.f32 %v7860, %v8084
      %v8117 = vmul.f32 %v7861, %v8085
      %v8118 = vmul.f32 %v7862, %v8086
      %v8119 = vmul.f32 %v7863, %v8087
      %v8120 = vmul.f32 %v7864, %v8088
      %v8121 = vmul.f32 %v7865, %v8089
      %v8122 = vmul.f32 %v7866, %v8090
      %v8123 = vmul.f32 %v7867, %v8091
      %v8124 = vmul.f32 %v7868, %v8092
      %v8125 = vmul.f32 %v7869, %v8093
      %v8126 = vmul.f32 %v7870, %v8094
      %v8127 = vmul.f32 %v7871, %v8095
      %v8128 = vmul.f32 %v7872, %v8096
      %v8129 = vmul.f32 %v7873, %v8097
      %v8130 = vmul.f32 %v7874, %v8098
      %v8131 = vmul.f32 %v7875, %v8099
      %v8132 = vmul.f32 %v7876, %v8100
      %v8133 = vmul.f32 %v7877, %v8101
      %v8134 = vmul.f32 %v7878, %v8102
      %v8135 = vmul.f32 %v7879, %v8103
      %v8136 = vmul.f32 %v7880, %v8104
      %v8137 = vmul.f32 %v7881, %v8105
      %v8138 = vmul.f32 %v7882, %v8106
      %v8139 = vmul.f32 %v7883, %v8107
      %v8140 = vmul.f32 %v7884, %v8108
      %v8141 = vmul.f32 %v7885, %v8109
      %v8142 = vmul.f32 %v7886, %v8110
      %v8143 = vmul.f32 %v7887, %v8111
      %v8144 = vmul.f32 %v7888, %v8112
      %v8145 = vmul.f32 %v7889, %v8113
      %v8146 = vmul.f32 %v7890, %v8114
      %v8147 = vmul.f32 %v7891, %v8115
      %8148 = vst.msk [vmem:[%s224] sm:$0xff] %vm3992, %v8116
      %8149 = vst.msk [vmem:[%s224 + $0x8] sm:$0xff] %vm3992, %v8117
      %8150 = vst.msk [vmem:[%s224 + $0x10] sm:$0xff] %vm3992, %v8118
      %8151 = vst.msk [vmem:[%s224 + $0x18] sm:$0xff] %vm3992, %v8119
      %8152 = vst.msk [vmem:[%s224 + $0x20] sm:$0xff] %vm3992, %v8120
      %8153 = vst.msk [vmem:[%s224 + $0x28] sm:$0xff] %vm3992, %v8121
      %8154 = vst.msk [vmem:[%s224 + $0x30] sm:$0xff] %vm3992, %v8122
      %8155 = vst.msk [vmem:[%s224 + $0x38] sm:$0xff] %vm3992, %v8123
      %8156 = vst.msk [vmem:[%s224 + $0x40] sm:$0xff] %vm3992, %v8124
      %8157 = vst.msk [vmem:[%s224 + $0x48] sm:$0xff] %vm3992, %v8125
      %8158 = vst.msk [vmem:[%s224 + $0x50] sm:$0xff] %vm3992, %v8126
      %8159 = vst.msk [vmem:[%s224 + $0x58] sm:$0xff] %vm3992, %v8127
      %8160 = vst.msk [vmem:[%s224 + $0x60] sm:$0xff] %vm3992, %v8128
      %8161 = vst.msk [vmem:[%s224 + $0x68] sm:$0xff] %vm3992, %v8129
      %8162 = vst.msk [vmem:[%s224 + $0x70] sm:$0xff] %vm3992, %v8130
      %8163 = vst.msk [vmem:[%s224 + $0x78] sm:$0xff] %vm3992, %v8131
      %8164 = vst.msk [vmem:[%s224 + $0x80] sm:$0xff] %vm3992, %v8132
      %8165 = vst.msk [vmem:[%s224 + $0x88] sm:$0xff] %vm3992, %v8133
      %8166 = vst.msk [vmem:[%s224 + $0x90] sm:$0xff] %vm3992, %v8134
      %8167 = vst.msk [vmem:[%s224 + $0x98] sm:$0xff] %vm3992, %v8135
      %8168 = vst.msk [vmem:[%s224 + $0xa0] sm:$0xff] %vm3992, %v8136
      %8169 = vst.msk [vmem:[%s224 + $0xa8] sm:$0xff] %vm3992, %v8137
      %8170 = vst.msk [vmem:[%s224 + $0xb0] sm:$0xff] %vm3992, %v8138
      %8171 = vst.msk [vmem:[%s224 + $0xb8] sm:$0xff] %vm3992, %v8139
      %8172 = vst.msk [vmem:[%s224 + $0xc0] sm:$0xff] %vm3992, %v8140
      %8173 = vst.msk [vmem:[%s224 + $0xc8] sm:$0xff] %vm3992, %v8141
      %8174 = vst.msk [vmem:[%s224 + $0xd0] sm:$0xff] %vm3992, %v8142
      %8175 = vst.msk [vmem:[%s224 + $0xd8] sm:$0xff] %vm3992, %v8143
      %8176 = vst.msk [vmem:[%s224 + $0xe0] sm:$0xff] %vm3992, %v8144
      %8177 = vst.msk [vmem:[%s224 + $0xe8] sm:$0xff] %vm3992, %v8145
      %8178 = vst.msk [vmem:[%s224 + $0xf0] sm:$0xff] %vm3992, %v8146
      %8179 = vst.msk [vmem:[%s224 + $0xf8] sm:$0xff] %vm3992, %v8147
      %p8180 = scmp.lt.s32.totalorder %s16, 1
      %s8181 = scalar_select %p8180, %s16, 1
      %s8182 = smul.addr %s8181, 32
      %s8183 = smul.addr %s8182, 8
      %s8184 = scalar_lea.vmem %s5, %s8183
      // Predicated region
      $region41: #{conv2d_block_forward.1} parent=39 // pred_check
        %p8185 = pneg %p144
      $region42: #{conv2d_block_forward.1} parent=39 // pred_check_branch
        %8187 = sbr.rel (%p8185) target = $region44
      $region43: #{conv2d_block_forward.1} parent=39 // pred_region
        _
      $region44: #{conv2d_block_forward.1} parent=39 // pred_fallthru
        _
    $region40: #{conv2d_block_forward.1} parent=5 // pred_fallthru
      _
    %p8188 = scmp.le.s32.totalorder 2, %s11
    // Predicated region
    $region45: #{conv2d_block_forward.1} parent=5 // pred_check
      %p8189 = pneg %p8188
    $region46: #{conv2d_block_forward.1} parent=5 // pred_check_branch
      %8191 = sbr.rel (%p8189) target = $region48
    $region47: #{conv2d_block_forward.1} parent=5 // pred_region
      %s8192 = ssub.s32 %s11, 2
      // Predicated region
      $region49: #{conv2d_block_forward.1} parent=47 // pred_check
        %p8193 = pneg %p150
      $region50: #{conv2d_block_forward.1} parent=47 // pred_check_branch
        %8195 = sbr.rel (%p8193) target = $region52
      $region51: #{conv2d_block_forward.1} parent=47 // pred_region
        %p8196 = scmp.lt.s32.totalorder %s17, 1
        %s8197 = scalar_select %p8196, %s17, 1
        %s8198 = smul.addr %s8197, 32
        %s8199 = smul.addr %s8198, 8
        %s8200 = scalar_lea.vmem %s5, %s8199
      $region52: #{conv2d_block_forward.1} parent=47 // pred_fallthru
        _
    $region48: #{conv2d_block_forward.1} parent=5 // pred_fallthru
      _
  $region6: #{conv2d_block_forward.1} parent=0 // loop_footer
    %s15 = sadd.s32 1, %s11
  $region7: #{conv2d_block_forward.1} parent=0 // loop_footer_branch
    %10 = sbr.rel target = $region3
  $region8: #{conv2d_block_forward.1} parent=0 // loop_exit
    _

</llo_original>
